<compile_context>
chip_gen: v5e
topology: v5e:2x2
jax: 0.10.0
libtpu: 0.0.40
codegen_flags: <defaults>
</compile_context>

<pallas_src>
import functools

import jax
import jax.numpy as jnp
from jax import lax
from jax.experimental import pallas as pl
from jax.experimental.pallas import tpu as pltpu


# ----------------------------- tiling helpers --------------------------------

def _row_tile(M, cap=128):
    """Largest multiple-of-8 divisor of M that is <= cap (else M itself)."""
    if M <= cap:
        return M
    t = cap - cap % 8
    while t >= 8:
        if M % t == 0:
            return t
        t -= 8
    return M


def _col_tile(D):
    """128-granule tile when D is 128-divisible, otherwise the full extent."""
    for t in (512, 256, 128):
        if D % t == 0:
            return t
    return D


# ------------------------------- LayerNorm ------------------------------------

def _layernorm_kernel(x_ref, g_ref, b_ref, o_ref):
    x = x_ref[...].astype(jnp.float32)
    mean = jnp.mean(x, axis=-1, keepdims=True)
    var = jnp.mean(jnp.square(x - mean), axis=-1, keepdims=True)
    inv = lax.rsqrt(var + 1e-5)
    o_ref[...] = ((x - mean) * inv * g_ref[...] + b_ref[...]).astype(o_ref.dtype)


def layernorm(x, gamma, beta):
    """x: (M, C); gamma/beta: (1, C).  Tiled over rows, parallel grid."""
    M, C = x.shape
    tm = _row_tile(M)
    return pl.pallas_call(
        _layernorm_kernel,
        out_shape=jax.ShapeDtypeStruct((M, C), jnp.float32),
        grid=(M // tm,),
        in_specs=[pl.BlockSpec((tm, C), lambda i: (i, 0)),
                  pl.BlockSpec((1, C), lambda i: (0, 0)),
                  pl.BlockSpec((1, C), lambda i: (0, 0))],
        out_specs=pl.BlockSpec((tm, C), lambda i: (i, 0)),
        compiler_params=pltpu.CompilerParams(dimension_semantics=("parallel",)),
    )(x, gamma, beta)


# --------------------------- fused LayerNorm + Linear --------------------------

def _ln_linear_kernel(x_ref, g_ref, bl_ref, w_ref, b_ref, o_ref):
    x = x_ref[...].astype(jnp.float32)
    mean = jnp.mean(x, axis=-1, keepdims=True)
    var = jnp.mean(jnp.square(x - mean), axis=-1, keepdims=True)
    xn = (x - mean) * lax.rsqrt(var + 1e-5) * g_ref[...] + bl_ref[...]
    acc = jnp.dot(xn.astype(jnp.bfloat16), w_ref[...].astype(jnp.bfloat16),
                  preferred_element_type=jnp.float32)
    o_ref[...] = (acc + b_ref[...]).astype(o_ref.dtype)


def ln_linear(x, gamma, beta, w, b):
    """LayerNorm over the last dim followed by x_n @ w + b, fused."""
    M, K = x.shape
    N = w.shape[1]
    tm = _row_tile(M)
    b2 = jnp.asarray(b, jnp.float32).reshape(1, N)
    return pl.pallas_call(
        _ln_linear_kernel,
        out_shape=jax.ShapeDtypeStruct((M, N), jnp.float32),
        grid=(M // tm,),
        in_specs=[pl.BlockSpec((tm, K), lambda i: (i, 0)),
                  pl.BlockSpec((1, K), lambda i: (0, 0)),
                  pl.BlockSpec((1, K), lambda i: (0, 0)),
                  pl.BlockSpec((K, N), lambda i: (0, 0)),
                  pl.BlockSpec((1, N), lambda i: (0, 0))],
        out_specs=pl.BlockSpec((tm, N), lambda i: (i, 0)),
        compiler_params=pltpu.CompilerParams(dimension_semantics=("parallel",)),
    )(x, gamma, beta, w, b2)


# -------------------------------- Linear ---------------------------------------

def _linear_kernel(x_ref, w_ref, b_ref, o_ref, acc_ref):
    @pl.when(pl.program_id(2) == 0)
    def _():
        acc_ref[...] = jnp.zeros_like(acc_ref)

    acc_ref[...] += jnp.dot(x_ref[...].astype(jnp.bfloat16),
                            w_ref[...].astype(jnp.bfloat16),
                            preferred_element_type=jnp.float32)

    @pl.when(pl.program_id(2) == pl.num_programs(2) - 1)
    def _():
        o_ref[...] = (acc_ref[...] + b_ref[...]).astype(o_ref.dtype)


def _linear_res_kernel(x_ref, w_ref, b_ref, res_ref, o_ref, acc_ref):
    @pl.when(pl.program_id(2) == 0)
    def _():
        acc_ref[...] = jnp.zeros_like(acc_ref)

    acc_ref[...] += jnp.dot(x_ref[...].astype(jnp.bfloat16),
                            w_ref[...].astype(jnp.bfloat16),
                            preferred_element_type=jnp.float32)

    @pl.when(pl.program_id(2) == pl.num_programs(2) - 1)
    def _():
        o_ref[...] = (acc_ref[...] + b_ref[...] + res_ref[...]).astype(o_ref.dtype)


def linear(x, w, b=None, res=None):
    """x: (M, K); w: (K, N); b: (N,) or None; optional fused residual add (res)."""
    M, K = x.shape
    N = w.shape[1]
    if b is None:
        b = jnp.zeros((N,), jnp.float32)
    b2 = jnp.asarray(b, jnp.float32).reshape(1, N)
    tm, tn, tk = _row_tile(M), _col_tile(N), _col_tile(K)
    grid = (M // tm, N // tn, K // tk)
    x_spec = pl.BlockSpec((tm, tk), lambda i, j, k: (i, k))
    w_spec = pl.BlockSpec((tk, tn), lambda i, j, k: (k, j))
    b_spec = pl.BlockSpec((1, tn), lambda i, j, k: (0, j))
    o_spec = pl.BlockSpec((tm, tn), lambda i, j, k: (i, j))
    common = dict(
        out_shape=jax.ShapeDtypeStruct((M, N), jnp.float32),
        grid=grid,
        out_specs=o_spec,
        scratch_shapes=[pltpu.VMEM((tm, tn), jnp.float32)],
        compiler_params=pltpu.CompilerParams(
            dimension_semantics=("parallel", "parallel", "arbitrary")),
    )
    if res is None:
        return pl.pallas_call(_linear_kernel,
                              in_specs=[x_spec, w_spec, b_spec],
                              **common)(x, w, b2)
    r_spec = pl.BlockSpec((tm, tn), lambda i, j, k: (i, j))
    return pl.pallas_call(_linear_res_kernel,
                          in_specs=[x_spec, w_spec, b_spec, r_spec],
                          **common)(x, w, b2, res)


# ------------------------ causal depthwise conv + SiLU --------------------------

def _dwconv_silu_kernel(xpad_ref, w_ref, b_ref, o_ref, *, L, K):
    acc = jnp.zeros(o_ref.shape, jnp.float32) + b_ref[...]
    for k in range(K):
        acc = acc + xpad_ref[k:k + L, :].astype(jnp.float32) * w_ref[k:k + 1, :]
    o_ref[...] = (acc * (1.0 / (1.0 + jnp.exp(-acc)))).astype(o_ref.dtype)  # SiLU


def dwconv_silu(x_f, w_f, b_f):
    """Folded layout: x_f (L, Dlane); w_f (K, Dlane); b_f (1, Dlane).
    One invocation covers every (batch, channel) lane."""
    L, Dlane = x_f.shape
    K = w_f.shape[0]
    xpad = jnp.pad(x_f, ((K - 1, 0), (0, 0)))
    return pl.pallas_call(
        functools.partial(_dwconv_silu_kernel, L=L, K=K),
        out_shape=jax.ShapeDtypeStruct((L, Dlane), jnp.float32),
        grid=(1,),
        in_specs=[pl.BlockSpec((L + K - 1, Dlane), lambda i: (0, 0)),
                  pl.BlockSpec((K, Dlane), lambda i: (0, 0)),
                  pl.BlockSpec((1, Dlane), lambda i: (0, 0))],
        out_specs=pl.BlockSpec((L, Dlane), lambda i: (0, 0)),
    )(xpad, w_f.astype(jnp.float32), b_f.astype(jnp.float32))


# ---------------------------- Mamba selective scan ------------------------------

def _scan_kernel(u_ref, dt_ref, AT_ref, B_ref, C_ref, D_ref, z_ref, sel_ref,
                 o_ref, dA_s, hs_s):
    """Folded layout: lanes = (batch, channel) = Bm*Dn; state h is (N, Dlane)."""
    L, Dlane = u_ref.shape
    N = AT_ref.shape[0]

    # ---- vectorized preamble (hoisted off the sequential critical path) ----
    u = u_ref[...].astype(jnp.float32)                                  # (L, Dlane)
    dtr = dt_ref[...].astype(jnp.float32)
    dt = jnp.maximum(dtr, 0.0) + jnp.log(1.0 + jnp.exp(-jnp.abs(dtr)))  # softplus
    AT = AT_ref[...].astype(jnp.float32)                                # (N, Dlane)
    sel = sel_ref[...]                                                  # (Bm, Dlane) 0/1

    dA_s[...] = jnp.exp(dt[:, None, :] * AT[None, :, :])                # (L, N, Dlane)
    # expand B over the channel lanes via a 0/1 selector matmul (no HBM blowup)
    Bf = jnp.dot(B_ref[...], sel, preferred_element_type=jnp.float32)   # (L*N, Dlane)
    hs_s[...] = (dt * u)[:, None, :] * Bf.reshape(L, N, Dlane)          # prefill dB*u

    # ---- sequential recurrence: mul/add on 2 full vregs + one store per step ----
    def body(t, h):
        h = dA_s[t] * h + hs_s[t]
        hs_s[t] = h
        return h

    lax.fori_loop(0, L, body, jnp.zeros((N, Dlane), jnp.float32))

    # ---- vectorized readout, deferred out of the loop ----
    Cf = jnp.dot(C_ref[...], sel, preferred_element_type=jnp.float32)   # (L*N, Dlane)
    ys = jnp.sum(Cf.reshape(L, N, Dlane) * hs_s[...], axis=1)           # (L, Dlane)
    y = ys + u * D_ref[...]
    z = z_ref[...].astype(jnp.float32)
    o_ref[...] = (y * (z * (1.0 / (1.0 + jnp.exp(-z))))).astype(o_ref.dtype)


def selective_scan(u_f, dt_f, AT_f, B_r, C_r, D_f, z_f, sel):
    L, Dlane = u_f.shape
    N = AT_f.shape[0]
    Bm = sel.shape[0]
    return pl.pallas_call(
        _scan_kernel,
        out_shape=jax.ShapeDtypeStruct((L, Dlane), jnp.float32),
        grid=(1,),
        in_specs=[pl.BlockSpec((L, Dlane), lambda i: (0, 0)),      # u (conv output)
                  pl.BlockSpec((L, Dlane), lambda i: (0, 0)),      # dt (pre-softplus)
                  pl.BlockSpec((N, Dlane), lambda i: (0, 0)),      # A^T, batch-tiled
                  pl.BlockSpec((L * N, Bm), lambda i: (0, 0)),     # B (compact)
                  pl.BlockSpec((L * N, Bm), lambda i: (0, 0)),     # C (compact)
                  pl.BlockSpec((1, Dlane), lambda i: (0, 0)),      # D
                  pl.BlockSpec((L, Dlane), lambda i: (0, 0)),      # z (gate)
                  pl.BlockSpec((Bm, Dlane), lambda i: (0, 0))],    # lane selector
        out_specs=pl.BlockSpec((L, Dlane), lambda i: (0, 0)),
        scratch_shapes=[pltpu.VMEM((L, N, Dlane), jnp.float32),    # dA
                        pltpu.VMEM((L, N, Dlane), jnp.float32)],   # dBu -> h history
    )(u_f, dt_f, AT_f, B_r, C_r, D_f, z_f, sel)


# ------------------------------- model wrappers ---------------------------------

def mamba_block(x, p, skip_scale):
    """Mamba(d_state=16, d_conv=4, expand=2) with the skip fused: returns
    mamba(x) + skip_scale * x.  x: (Bm, L, d_model)."""
    Bm, L, d_model = x.shape
    Dn, N = p["A_log"].shape
    dt_rank = p["dt_proj_w"].shape[0]
    Dlane = Bm * Dn

    x2d = x.reshape(Bm * L, d_model)
    xz = linear(x2d, p["in_proj_w"]).reshape(Bm, L, 2 * Dn)
    xc, z = xz[..., :Dn], xz[..., Dn:]

    def fold(t):      # (Bm, L, Dn) -> (L, Bm*Dn); lane index = b*Dn + d
        return t.transpose(1, 0, 2).reshape(L, Bm * Dn)

    def unfold(t):    # inverse
        return t.reshape(L, Bm, Dn).transpose(1, 0, 2)

    # causal depthwise conv + SiLU over all (batch, channel) lanes at once
    w_f = jnp.tile(p["conv_w"], (1, Bm))
    b_f = jnp.tile(p["conv_b"], (1, Bm))
    xconv_f = dwconv_silu(fold(xc), w_f, b_f)                             # (L, Dlane)
    xconv = unfold(xconv_f)                                               # (Bm, L, Dn)

    # x_proj and dt_proj composed into one matmul (exact weight algebra)
    W_dt = p["x_proj_w"][:, :dt_rank] @ p["dt_proj_w"]                    # (Dn, Dn)
    W_xdt = jnp.concatenate([W_dt, p["x_proj_w"][:, dt_rank:]], axis=1)   # (Dn, Dn+2N)
    b_xdt = jnp.concatenate([p["dt_proj_b"], jnp.zeros((2 * N,), jnp.float32)])
    xdbl = linear(xconv.reshape(Bm * L, Dn), W_xdt, b_xdt).reshape(Bm, L, Dn + 2 * N)
    dt_raw = xdbl[..., :Dn]
    Bc = xdbl[..., Dn:Dn + N]
    Cc = xdbl[..., Dn + N:]

    AT_f = jnp.tile((-jnp.exp(p["A_log"])).T, (1, Bm))                    # (N, Dlane)
    D_f = jnp.tile(p["D"].reshape(1, Dn), (1, Bm))                        # (1, Dlane)
    B_r = Bc.transpose(1, 2, 0).reshape(L * N, Bm)
    C_r = Cc.transpose(1, 2, 0).reshape(L * N, Bm)
    sel = (jnp.arange(Dlane)[None, :] // Dn
           == jnp.arange(Bm)[:, None]).astype(jnp.float32)                # (Bm, Dlane)

    y_f = selective_scan(xconv_f, fold(dt_raw), AT_f, B_r, C_r, D_f, fold(z), sel)
    y = unfold(y_f).reshape(Bm * L, Dn)

    # out_proj with the skip connection fused into the matmul epilogue
    out = linear(y, p["out_proj_w"], None, res=skip_scale * x2d)
    return out.reshape(Bm, L, d_model)


def asl_forward(rgb, ir, p):
    B, C, H, W = rgb.shape
    L = H * W
    half = C // 2

    def to_tokens(t):  # NCHW -> (B, L, C)
        return t.reshape(B, C, L).transpose(0, 2, 1)

    x_both = jnp.concatenate([to_tokens(rgb), to_tokens(ir)], axis=0)     # (2B, L, C)
    xn = layernorm(x_both.reshape(2 * B * L, C),
                   p["ln_w"], p["ln_b"]).reshape(2 * B, L, C)

    # both channel halves of both modalities share one Mamba pass (batch-stacked)
    xm_in = jnp.concatenate([xn[..., :half], xn[..., half:]], axis=0)     # (4B, L, half)
    ym = mamba_block(xm_in, p["mamba"], p["skip_scale"])                  # (4B, L, half)
    ycat = jnp.concatenate([ym[:2 * B], ym[2 * B:]], axis=-1)             # (2B, L, C)

    # LayerNorm + proj fused into one kernel
    yproj = ln_linear(ycat.reshape(2 * B * L, C), p["ln_w"], p["ln_b"],
                      p["proj_w"], p["proj_b"]).reshape(2 * B, L, C)
    out_rgb, out_ir = yproj[:B], yproj[B:]

    # DropPath(0.2) -> identity (eval).  Modality scalars folded into convt weights.
    convt_w = jnp.concatenate([p["weight_rgb"] * p["convt_w"][:C],
                               p["weight_ir"] * p["convt_w"][C:]], axis=0)
    cat = jnp.concatenate([out_rgb, out_ir], axis=-1).reshape(B * L, 2 * C)
    o = linear(cat, convt_w, p["convt_b"])                                # 1x1 conv == matmul
    return o.reshape(B, L, C).transpose(0, 2, 1).reshape(B, C, H, W)


# ------------------------------- parameter init ----------------------------------

def init_params(key, C):
    d_model = C // 2
    d_state = 16
    d_conv = 4
    expand = 2
    d_inner = expand * d_model
    dt_rank = max(1, -(-d_model // 16))
    ks = jax.random.split(key, 16)
    s = 0.1
    f = jnp.float32
    mamba = dict(
        in_proj_w=s * jax.random.normal(ks[0], (d_model, 2 * d_inner), f),
        conv_w=s * jax.random.normal(ks[1], (d_conv, d_inner), f),
        conv_b=s * jax.random.normal(ks[2], (1, d_inner), f),
        x_proj_w=s * jax.random.normal(ks[3], (d_inner, dt_rank + 2 * d_state), f),
        dt_proj_w=s * jax.random.normal(ks[4], (dt_rank, d_inner), f),
        dt_proj_b=s * jax.random.normal(ks[5], (d_inner,), f),
        A_log=jnp.log(jnp.broadcast_to(jnp.arange(1, d_state + 1, dtype=f),
                                       (d_inner, d_state))),
        D=jnp.ones((d_inner,), f),
        out_proj_w=s * jax.random.normal(ks[6], (d_inner, d_model), f),
    )
    return dict(
        ln_w=1.0 + s * jax.random.normal(ks[7], (1, C), f),
        ln_b=s * jax.random.normal(ks[8], (1, C), f),
        proj_w=s * jax.random.normal(ks[9], (C, C), f),
        proj_b=s * jax.random.normal(ks[10], (C,), f),
        skip_scale=jnp.ones((1,), f),
        convt_w=s * jax.random.normal(ks[11], (2 * C, C), f),
        convt_b=s * jax.random.normal(ks[12], (C,), f),
        weight_rgb=jnp.float32(0.5),
        weight_ir=jnp.float32(0.5),
        mamba=mamba,
    )


# ------------------------------- pure-JAX reference -------------------------------

def _ref_mamba(x, p):
    Bm, L, _ = x.shape
    Dn, N = p["A_log"].shape
    dt_rank = p["dt_proj_w"].shape[0]
    xz = x @ p["in_proj_w"]
    xc, z = xz[..., :Dn], xz[..., Dn:]
    K = p["conv_w"].shape[0]
    xpad = jnp.pad(xc, ((0, 0), (K - 1, 0), (0, 0)))
    conv = p["conv_b"] + sum(xpad[:, k:k + L, :] * p["conv_w"][k] for k in range(K))
    xconv = conv * jax.nn.sigmoid(conv)
    xdbl = xconv @ p["x_proj_w"]
    dt_raw = xdbl[..., :dt_rank] @ p["dt_proj_w"] + p["dt_proj_b"]
    Bc = xdbl[..., dt_rank:dt_rank + N]
    Cc = xdbl[..., dt_rank + N:]
    dt = jax.nn.softplus(dt_raw)
    A = -jnp.exp(p["A_log"])
    dA = jnp.exp(dt[..., None] * A)
    dBu = (dt * xconv)[..., None] * Bc[:, :, None, :]

    def step(h, inp):
        dA_t, dBu_t, c_t = inp
        h = dA_t * h + dBu_t
        return h, jnp.einsum("bdn,bn->bd", h, c_t)

    _, ys = lax.scan(step, jnp.zeros((Bm, Dn, N), jnp.float32),
                     (jnp.swapaxes(dA, 0, 1), jnp.swapaxes(dBu, 0, 1),
                      jnp.swapaxes(Cc, 0, 1)))
    y = jnp.swapaxes(ys, 0, 1) + xconv * p["D"]
    y = y * (z * jax.nn.sigmoid(z))
    return y @ p["out_proj_w"]


def ref_asl(rgb, ir, p):
    B, C, H, W = rgb.shape
    L = H * W
    half = C // 2

    def ln(x):
        mean = x.mean(-1, keepdims=True)
        var = ((x - mean) ** 2).mean(-1, keepdims=True)
        return (x - mean) / jnp.sqrt(var + 1e-5) * p["ln_w"] + p["ln_b"]

    def branch(img):
        xt = img.reshape(B, C, L).transpose(0, 2, 1)
        xn = ln(xt)
        x1, x2 = xn[..., :half], xn[..., half:]
        y1 = _ref_mamba(x1, p["mamba"]) + p["skip_scale"] * x1
        y2 = _ref_mamba(x2, p["mamba"]) + p["skip_scale"] * x2
        y = ln(jnp.concatenate([y1, y2], axis=-1))
        return y @ p["proj_w"] + p["proj_b"]

    out_rgb = branch(rgb)
    out_ir = branch(ir)
    cat = jnp.concatenate([p["weight_rgb"] * out_rgb, p["weight_ir"] * out_ir], axis=-1)
    o = cat @ p["convt_w"] + p["convt_b"]
    return o.transpose(0, 2, 1).reshape(B, C, H, W)


# -------------------------------------- main ---------------------------------------

if __name__ == "__main__":
    key = jax.random.PRNGKey(0)
    k1, k2, k3 = jax.random.split(key, 3)
    B, C, H, W = 2, 16, 8, 8
    rgb = jax.random.normal(k1, (B, C, H, W), jnp.float32)
    ir = jax.random.normal(k2, (B, C, H, W), jnp.float32)
    params = init_params(k3, C)

    out = jax.jit(asl_forward)(rgb, ir, params)
    out = jax.block_until_ready(out)
    assert out.shape == (B, C, H, W)

    ref = ref_asl(rgb, ir, params)
    err = float(jnp.max(jnp.abs(out - ref)))
    assert err < 3e-2, f"max abs error too large: {err}"
    print("KERNEL_OK")
</pallas_src>

<mosaic_0001>
module attributes {stable_mosaic.version = 11 : i64} {
  func.func @_layernorm_kernel(%arg0: i32, %arg1: memref<128x16xf32, #tpu.memory_space<vmem>>, %arg2: memref<1x16xf32, #tpu.memory_space<vmem>>, %arg3: memref<1x16xf32, #tpu.memory_space<vmem>>, %arg4: memref<128x16xf32, #tpu.memory_space<vmem>>) attributes {dimension_semantics = [#tpu.dimension_semantics<parallel>], iteration_bounds = array<i64: 2>, scalar_prefetch = 0 : i64, scratch_operands = 0 : i64, tpu.core_type = #tpu.core_type<tc>, window_params = [{transform_indices = @transform_0, window_bounds = array<i64: 128, 16>}, {pipeline_mode = #tpu.pipeline_mode<synchronous>, transform_indices = @transform_1, window_bounds = array<i64: 1, 16>}, {pipeline_mode = #tpu.pipeline_mode<synchronous>, transform_indices = @transform_2, window_bounds = array<i64: 1, 16>}, {transform_indices = @transform_3, window_bounds = array<i64: 128, 16>}]} {
    %c0 = arith.constant 0 : index
    %c0_0 = arith.constant 0 : index
    %0 = vector.load %arg1[%c0, %c0_0] : memref<128x16xf32, #tpu.memory_space<vmem>>, vector<128x16xf32>
    %cst = arith.constant dense<0.000000e+00> : vector<128xf32>
    %1 = vector.multi_reduction <add>, %0, %cst [1] : vector<128x16xf32> to vector<128xf32>
    %2 = vector.shape_cast %1 : vector<128xf32> to vector<128x1xf32>
    %cst_1 = arith.constant 1.600000e+01 : f32
    %3 = vector.broadcast %cst_1 : f32 to vector<128x1xf32>
    %4 = arith.divf %2, %3 : vector<128x1xf32>
    %5 = vector.broadcast %4 : vector<128x1xf32> to vector<128x16xf32>
    %6 = arith.subf %0, %5 : vector<128x16xf32>
    %7 = arith.mulf %6, %6 : vector<128x16xf32>
    %cst_2 = arith.constant dense<0.000000e+00> : vector<128xf32>
    %8 = vector.multi_reduction <add>, %7, %cst_2 [1] : vector<128x16xf32> to vector<128xf32>
    %9 = vector.shape_cast %8 : vector<128xf32> to vector<128x1xf32>
    %cst_3 = arith.constant 1.600000e+01 : f32
    %10 = vector.broadcast %cst_3 : f32 to vector<128x1xf32>
    %11 = arith.divf %9, %10 : vector<128x1xf32>
    %cst_4 = arith.constant 9.99999974E-6 : f32
    %12 = vector.broadcast %cst_4 : f32 to vector<128x1xf32>
    %13 = arith.addf %11, %12 : vector<128x1xf32>
    %14 = math.rsqrt %13 : vector<128x1xf32>
    %15 = vector.broadcast %4 : vector<128x1xf32> to vector<128x16xf32>
    %16 = arith.subf %0, %15 : vector<128x16xf32>
    %17 = vector.broadcast %14 : vector<128x1xf32> to vector<128x16xf32>
    %18 = arith.mulf %16, %17 : vector<128x16xf32>
    %c0_5 = arith.constant 0 : index
    %c0_6 = arith.constant 0 : index
    %19 = vector.load %arg2[%c0_5, %c0_6] : memref<1x16xf32, #tpu.memory_space<vmem>>, vector<1x16xf32>
    %20 = vector.broadcast %19 : vector<1x16xf32> to vector<128x16xf32>
    %21 = arith.mulf %18, %20 : vector<128x16xf32>
    %c0_7 = arith.constant 0 : index
    %c0_8 = arith.constant 0 : index
    %22 = vector.load %arg3[%c0_7, %c0_8] : memref<1x16xf32, #tpu.memory_space<vmem>>, vector<1x16xf32>
    %23 = vector.broadcast %22 : vector<1x16xf32> to vector<128x16xf32>
    %24 = arith.addf %21, %23 : vector<128x16xf32>
    %c0_9 = arith.constant 0 : index
    %c0_10 = arith.constant 0 : index
    %25 = vector.load %arg4[%c0_9, %c0_10] : memref<128x16xf32, #tpu.memory_space<vmem>>, vector<128x16xf32>
    tpu.vector_store %arg4[%c0_9, %c0_10], %24 {strides = array<i32>} : memref<128x16xf32, #tpu.memory_space<vmem>>, vector<128x16xf32>,
    return
  }
  func.func @transform_0(%arg0: i32) -> (i32, i32) {
    %c0_i32 = arith.constant 0 : i32
    %c0_i32_0 = arith.constant 0 : i32
    return %arg0, %c0_i32 : i32, i32
  }
  func.func @transform_1(%arg0: i32) -> (i32, i32) {
    %c0_i32 = arith.constant 0 : i32
    %c0_i32_0 = arith.constant 0 : i32
    %c0_i32_1 = arith.constant 0 : i32
    return %c0_i32, %c0_i32_0 : i32, i32
  }
  func.func @transform_2(%arg0: i32) -> (i32, i32) {
    %c0_i32 = arith.constant 0 : i32
    %c0_i32_0 = arith.constant 0 : i32
    %c0_i32_1 = arith.constant 0 : i32
    return %c0_i32, %c0_i32_0 : i32, i32
  }
  func.func @transform_3(%arg0: i32) -> (i32, i32) {
    %c0_i32 = arith.constant 0 : i32
    %c0_i32_0 = arith.constant 0 : i32
    return %arg0, %c0_i32 : i32, i32
  }
}

module attributes {stable_mosaic.version = 11 : i64} {
  func.func @_linear_kernel(%arg0: i32, %arg1: i32, %arg2: i32, %arg3: memref<128x8xf32, #tpu.memory_space<vmem>>, %arg4: memref<8x32xf32, #tpu.memory_space<vmem>>, %arg5: memref<1x32xf32, #tpu.memory_space<vmem>>, %arg6: memref<128x32xf32, #tpu.memory_space<vmem>>, %arg7: memref<128x32xf32, #tpu.memory_space<vmem>>) attributes {dimension_semantics = [#tpu.dimension_semantics<parallel>, #tpu.dimension_semantics<parallel>, #tpu.dimension_semantics<arbitrary>], iteration_bounds = array<i64: 4, 1, 1>, scalar_prefetch = 0 : i64, scratch_operands = 1 : i64, tpu.core_type = #tpu.core_type<tc>, window_params = [{transform_indices = @transform_0, window_bounds = array<i64: 128, 8>}, {transform_indices = @transform_1, window_bounds = array<i64: 8, 32>}, {transform_indices = @transform_2, window_bounds = array<i64: 1, 32>}, {transform_indices = @transform_3, window_bounds = array<i64: 128, 32>}]} {
    %c0_i32 = arith.constant 0 : i32
    %0 = arith.cmpi eq, %arg2, %c0_i32 : i32
    %1 = arith.extui %0 : i1 to i32
    %c0_i32_0 = arith.constant 0 : i32
    %2 = arith.cmpi ne, %1, %c0_i32_0 : i32
    scf.if %2 {
      %cst_10 = arith.constant 0.000000e+00 : f32
      %14 = vector.broadcast %cst_10 : f32 to vector<128x32xf32>
      %c0_11 = arith.constant 0 : index
      %c0_12 = arith.constant 0 : index
      %15 = vector.load %arg7[%c0_11, %c0_12] : memref<128x32xf32, #tpu.memory_space<vmem>>, vector<128x32xf32>
      tpu.vector_store %arg7[%c0_11, %c0_12], %14 {strides = array<i32>} : memref<128x32xf32, #tpu.memory_space<vmem>>, vector<128x32xf32>,
    } else {
    }
    %c0 = arith.constant 0 : index
    %c0_1 = arith.constant 0 : index
    %3 = vector.load %arg7[%c0, %c0_1] : memref<128x32xf32, #tpu.memory_space<vmem>>, vector<128x32xf32>
    %c0_2 = arith.constant 0 : index
    %c0_3 = arith.constant 0 : index
    %4 = vector.load %arg3[%c0_2, %c0_3] : memref<128x8xf32, #tpu.memory_space<vmem>>, vector<128x8xf32>
    %5 = arith.truncf %4 : vector<128x8xf32> to vector<128x8xbf16>
    %c0_4 = arith.constant 0 : index
    %c0_5 = arith.constant 0 : index
    %6 = vector.load %arg4[%c0_4, %c0_5] : memref<8x32xf32, #tpu.memory_space<vmem>>, vector<8x32xf32>
    %7 = arith.truncf %6 : vector<8x32xf32> to vector<8x32xbf16>
    %cst = arith.constant dense<0.000000e+00> : vector<128x32xf32>
    %8 = tpu.matmul %5, %7, %cst {dimension_numbers = #tpu.dot_dimension_numbers<[1], [0], [0], [1], [0, 0, 1, 1], [], []>} : vector<128x8xbf16>, vector<8x32xbf16>, vector<128x32xf32> -> vector<128x32xf32>
    %9 = arith.addf %3, %8 : vector<128x32xf32>
    %c0_6 = arith.constant 0 : index
    %c0_7 = arith.constant 0 : index
    %10 = vector.load %arg7[%c0_6, %c0_7] : memref<128x32xf32, #tpu.memory_space<vmem>>, vector<128x32xf32>
    tpu.vector_store %arg7[%c0_6, %c0_7], %9 {strides = array<i32>} : memref<128x32xf32, #tpu.memory_space<vmem>>, vector<128x32xf32>,
    %c0_i32_8 = arith.constant 0 : i32
    %11 = arith.cmpi eq, %arg2, %c0_i32_8 : i32
    %12 = arith.extui %11 : i1 to i32
    %c0_i32_9 = arith.constant 0 : i32
    %13 = arith.cmpi ne, %12, %c0_i32_9 : i32
    scf.if %13 {
      %c0_10 = arith.constant 0 : index
      %c0_11 = arith.constant 0 : index
      %14 = vector.load %arg7[%c0_10, %c0_11] : memref<128x32xf32, #tpu.memory_space<vmem>>, vector<128x32xf32>
      %c0_12 = arith.constant 0 : index
      %c0_13 = arith.constant 0 : index
      %15 = vector.load %arg5[%c0_12, %c0_13] : memref<1x32xf32, #tpu.memory_space<vmem>>, vector<1x32xf32>
      %16 = vector.broadcast %15 : vector<1x32xf32> to vector<128x32xf32>
      %17 = arith.addf %14, %16 : vector<128x32xf32>
      %c0_14 = arith.constant 0 : index
      %c0_15 = arith.constant 0 : index
      %18 = vector.load %arg6[%c0_14, %c0_15] : memref<128x32xf32, #tpu.memory_space<vmem>>, vector<128x32xf32>
      tpu.vector_store %arg6[%c0_14, %c0_15], %17 {strides = array<i32>} : memref<128x32xf32, #tpu.memory_space<vmem>>, vector<128x32xf32>,
    } else {
    }
    return
  }
  func.func @transform_0(%arg0: i32, %arg1: i32, %arg2: i32) -> (i32, i32) {
    %c0_i32 = arith.constant 0 : i32
    return %arg0, %arg2 : i32, i32
  }
  func.func @transform_1(%arg0: i32, %arg1: i32, %arg2: i32) -> (i32, i32) {
    %c0_i32 = arith.constant 0 : i32
    return %arg2, %arg1 : i32, i32
  }
  func.func @transform_2(%arg0: i32, %arg1: i32, %arg2: i32) -> (i32, i32) {
    %c0_i32 = arith.constant 0 : i32
    %c0_i32_0 = arith.constant 0 : i32
    return %c0_i32, %arg1 : i32, i32
  }
  func.func @transform_3(%arg0: i32, %arg1: i32, %arg2: i32) -> (i32, i32) {
    %c0_i32 = arith.constant 0 : i32
    return %arg0, %arg1 : i32, i32
  }
}

module attributes {stable_mosaic.version = 11 : i64} {
  func.func @_dwconv_silu_kernel(%arg0: i32, %arg1: memref<67x128xf32, #tpu.memory_space<vmem>>, %arg2: memref<4x128xf32, #tpu.memory_space<vmem>>, %arg3: memref<1x128xf32, #tpu.memory_space<vmem>>, %arg4: memref<64x128xf32, #tpu.memory_space<vmem>>) attributes {dimension_semantics = [#tpu.dimension_semantics<arbitrary>], iteration_bounds = array<i64: 1>, scalar_prefetch = 0 : i64, scratch_operands = 0 : i64, tpu.core_type = #tpu.core_type<tc>, window_params = [{pipeline_mode = #tpu.pipeline_mode<synchronous>, transform_indices = @transform_0, window_bounds = array<i64: 67, 128>}, {pipeline_mode = #tpu.pipeline_mode<synchronous>, transform_indices = @transform_1, window_bounds = array<i64: 4, 128>}, {pipeline_mode = #tpu.pipeline_mode<synchronous>, transform_indices = @transform_2, window_bounds = array<i64: 1, 128>}, {pipeline_mode = #tpu.pipeline_mode<synchronous>, transform_indices = @transform_3, window_bounds = array<i64: 64, 128>}]} {
    %cst = arith.constant 0.000000e+00 : f32
    %0 = vector.broadcast %cst : f32 to vector<64x128xf32>
    %c0 = arith.constant 0 : index
    %c0_0 = arith.constant 0 : index
    %1 = vector.load %arg3[%c0, %c0_0] : memref<1x128xf32, #tpu.memory_space<vmem>>, vector<1x128xf32>
    %2 = vector.broadcast %1 : vector<1x128xf32> to vector<64x128xf32>
    %3 = arith.addf %0, %2 : vector<64x128xf32>
    %c0_1 = arith.constant 0 : index
    %c0_2 = arith.constant 0 : index
    %4 = vector.load %arg1[%c0_1, %c0_2] : memref<67x128xf32, #tpu.memory_space<vmem>>, vector<64x128xf32>
    %c0_3 = arith.constant 0 : index
    %c0_4 = arith.constant 0 : index
    %5 = vector.load %arg2[%c0_3, %c0_4] : memref<4x128xf32, #tpu.memory_space<vmem>>, vector<1x128xf32>
    %6 = vector.broadcast %5 : vector<1x128xf32> to vector<64x128xf32>
    %7 = arith.mulf %4, %6 : vector<64x128xf32>
    %8 = arith.addf %3, %7 : vector<64x128xf32>
    %c1 = arith.constant 1 : index
    %c0_5 = arith.constant 0 : index
    %9 = vector.load %arg1[%c1, %c0_5] : memref<67x128xf32, #tpu.memory_space<vmem>>, vector<64x128xf32>
    %c1_6 = arith.constant 1 : index
    %c0_7 = arith.constant 0 : index
    %10 = vector.load %arg2[%c1_6, %c0_7] : memref<4x128xf32, #tpu.memory_space<vmem>>, vector<1x128xf32>
    %11 = vector.broadcast %10 : vector<1x128xf32> to vector<64x128xf32>
    %12 = arith.mulf %9, %11 : vector<64x128xf32>
    %13 = arith.addf %8, %12 : vector<64x128xf32>
    %c2 = arith.constant 2 : index
    %c0_8 = arith.constant 0 : index
    %14 = vector.load %arg1[%c2, %c0_8] : memref<67x128xf32, #tpu.memory_space<vmem>>, vector<64x128xf32>
    %c2_9 = arith.constant 2 : index
    %c0_10 = arith.constant 0 : index
    %15 = vector.load %arg2[%c2_9, %c0_10] : memref<4x128xf32, #tpu.memory_space<vmem>>, vector<1x128xf32>
    %16 = vector.broadcast %15 : vector<1x128xf32> to vector<64x128xf32>
    %17 = arith.mulf %14, %16 : vector<64x128xf32>
    %18 = arith.addf %13, %17 : vector<64x128xf32>
    %c3 = arith.constant 3 : index
    %c0_11 = arith.constant 0 : index
    %19 = vector.load %arg1[%c3, %c0_11] : memref<67x128xf32, #tpu.memory_space<vmem>>, vector<64x128xf32>
    %c3_12 = arith.constant 3 : index
    %c0_13 = arith.constant 0 : index
    %20 = vector.load %arg2[%c3_12, %c0_13] : memref<4x128xf32, #tpu.memory_space<vmem>>, vector<1x128xf32>
    %21 = vector.broadcast %20 : vector<1x128xf32> to vector<64x128xf32>
    %22 = arith.mulf %19, %21 : vector<64x128xf32>
    %23 = arith.addf %18, %22 : vector<64x128xf32>
    %cst_14 = arith.constant 0.000000e+00 : f32
    %24 = vector.broadcast %cst_14 : f32 to vector<64x128xf32>
    %25 = arith.subf %24, %23 : vector<64x128xf32>
    %26 = math.exp %25 : vector<64x128xf32>
    %cst_15 = arith.constant 1.000000e+00 : f32
    %27 = vector.broadcast %cst_15 : f32 to vector<64x128xf32>
    %28 = arith.addf %27, %26 : vector<64x128xf32>
    %cst_16 = arith.constant 1.000000e+00 : f32
    %29 = vector.broadcast %cst_16 : f32 to vector<64x128xf32>
    %30 = arith.divf %29, %28 : vector<64x128xf32>
    %31 = arith.mulf %23, %30 : vector<64x128xf32>
    %c0_17 = arith.constant 0 : index
    %c0_18 = arith.constant 0 : index
    %32 = vector.load %arg4[%c0_17, %c0_18] : memref<64x128xf32, #tpu.memory_space<vmem>>, vector<64x128xf32>
    tpu.vector_store %arg4[%c0_17, %c0_18], %31 {strides = array<i32>} : memref<64x128xf32, #tpu.memory_space<vmem>>, vector<64x128xf32>,
    return
  }
  func.func @transform_0(%arg0: i32) -> (i32, i32) {
    %c0_i32 = arith.constant 0 : i32
    %c0_i32_0 = arith.constant 0 : i32
    %c0_i32_1 = arith.constant 0 : i32
    return %c0_i32, %c0_i32_0 : i32, i32
  }
  func.func @transform_1(%arg0: i32) -> (i32, i32) {
    %c0_i32 = arith.constant 0 : i32
    %c0_i32_0 = arith.constant 0 : i32
    %c0_i32_1 = arith.constant 0 : i32
    return %c0_i32, %c0_i32_0 : i32, i32
  }
  func.func @transform_2(%arg0: i32) -> (i32, i32) {
    %c0_i32 = arith.constant 0 : i32
    %c0_i32_0 = arith.constant 0 : i32
    %c0_i32_1 = arith.constant 0 : i32
    return %c0_i32, %c0_i32_0 : i32, i32
  }
  func.func @transform_3(%arg0: i32) -> (i32, i32) {
    %c0_i32 = arith.constant 0 : i32
    %c0_i32_0 = arith.constant 0 : i32
    %c0_i32_1 = arith.constant 0 : i32
    return %c0_i32, %c0_i32_0 : i32, i32
  }
}

module attributes {stable_mosaic.version = 11 : i64} {
  func.func @_linear_kernel(%arg0: i32, %arg1: i32, %arg2: i32, %arg3: memref<128x16xf32, #tpu.memory_space<vmem>>, %arg4: memref<16x48xf32, #tpu.memory_space<vmem>>, %arg5: memref<1x48xf32, #tpu.memory_space<vmem>>, %arg6: memref<128x48xf32, #tpu.memory_space<vmem>>, %arg7: memref<128x48xf32, #tpu.memory_space<vmem>>) attributes {dimension_semantics = [#tpu.dimension_semantics<parallel>, #tpu.dimension_semantics<parallel>, #tpu.dimension_semantics<arbitrary>], iteration_bounds = array<i64: 4, 1, 1>, scalar_prefetch = 0 : i64, scratch_operands = 1 : i64, tpu.core_type = #tpu.core_type<tc>, window_params = [{transform_indices = @transform_0, window_bounds = array<i64: 128, 16>}, {transform_indices = @transform_1, window_bounds = array<i64: 16, 48>}, {transform_indices = @transform_2, window_bounds = array<i64: 1, 48>}, {transform_indices = @transform_3, window_bounds = array<i64: 128, 48>}]} {
    %c0_i32 = arith.constant 0 : i32
    %0 = arith.cmpi eq, %arg2, %c0_i32 : i32
    %1 = arith.extui %0 : i1 to i32
    %c0_i32_0 = arith.constant 0 : i32
    %2 = arith.cmpi ne, %1, %c0_i32_0 : i32
    scf.if %2 {
      %cst_10 = arith.constant 0.000000e+00 : f32
      %14 = vector.broadcast %cst_10 : f32 to vector<128x48xf32>
      %c0_11 = arith.constant 0 : index
      %c0_12 = arith.constant 0 : index
      %15 = vector.load %arg7[%c0_11, %c0_12] : memref<128x48xf32, #tpu.memory_space<vmem>>, vector<128x48xf32>
      tpu.vector_store %arg7[%c0_11, %c0_12], %14 {strides = array<i32>} : memref<128x48xf32, #tpu.memory_space<vmem>>, vector<128x48xf32>,
    } else {
    }
    %c0 = arith.constant 0 : index
    %c0_1 = arith.constant 0 : index
    %3 = vector.load %arg7[%c0, %c0_1] : memref<128x48xf32, #tpu.memory_space<vmem>>, vector<128x48xf32>
    %c0_2 = arith.constant 0 : index
    %c0_3 = arith.constant 0 : index
    %4 = vector.load %arg3[%c0_2, %c0_3] : memref<128x16xf32, #tpu.memory_space<vmem>>, vector<128x16xf32>
    %5 = arith.truncf %4 : vector<128x16xf32> to vector<128x16xbf16>
    %c0_4 = arith.constant 0 : index
    %c0_5 = arith.constant 0 : index
    %6 = vector.load %arg4[%c0_4, %c0_5] : memref<16x48xf32, #tpu.memory_space<vmem>>, vector<16x48xf32>
    %7 = arith.truncf %6 : vector<16x48xf32> to vector<16x48xbf16>
    %cst = arith.constant dense<0.000000e+00> : vector<128x48xf32>
    %8 = tpu.matmul %5, %7, %cst {dimension_numbers = #tpu.dot_dimension_numbers<[1], [0], [0], [1], [0, 0, 1, 1], [], []>} : vector<128x16xbf16>, vector<16x48xbf16>, vector<128x48xf32> -> vector<128x48xf32>
    %9 = arith.addf %3, %8 : vector<128x48xf32>
    %c0_6 = arith.constant 0 : index
    %c0_7 = arith.constant 0 : index
    %10 = vector.load %arg7[%c0_6, %c0_7] : memref<128x48xf32, #tpu.memory_space<vmem>>, vector<128x48xf32>
    tpu.vector_store %arg7[%c0_6, %c0_7], %9 {strides = array<i32>} : memref<128x48xf32, #tpu.memory_space<vmem>>, vector<128x48xf32>,
    %c0_i32_8 = arith.constant 0 : i32
    %11 = arith.cmpi eq, %arg2, %c0_i32_8 : i32
    %12 = arith.extui %11 : i1 to i32
    %c0_i32_9 = arith.constant 0 : i32
    %13 = arith.cmpi ne, %12, %c0_i32_9 : i32
    scf.if %13 {
      %c0_10 = arith.constant 0 : index
      %c0_11 = arith.constant 0 : index
      %14 = vector.load %arg7[%c0_10, %c0_11] : memref<128x48xf32, #tpu.memory_space<vmem>>, vector<128x48xf32>
      %c0_12 = arith.constant 0 : index
      %c0_13 = arith.constant 0 : index
      %15 = vector.load %arg5[%c0_12, %c0_13] : memref<1x48xf32, #tpu.memory_space<vmem>>, vector<1x48xf32>
      %16 = vector.broadcast %15 : vector<1x48xf32> to vector<128x48xf32>
      %17 = arith.addf %14, %16 : vector<128x48xf32>
      %c0_14 = arith.constant 0 : index
      %c0_15 = arith.constant 0 : index
      %18 = vector.load %arg6[%c0_14, %c0_15] : memref<128x48xf32, #tpu.memory_space<vmem>>, vector<128x48xf32>
      tpu.vector_store %arg6[%c0_14, %c0_15], %17 {strides = array<i32>} : memref<128x48xf32, #tpu.memory_space<vmem>>, vector<128x48xf32>,
    } else {
    }
    return
  }
  func.func @transform_0(%arg0: i32, %arg1: i32, %arg2: i32) -> (i32, i32) {
    %c0_i32 = arith.constant 0 : i32
    return %arg0, %arg2 : i32, i32
  }
  func.func @transform_1(%arg0: i32, %arg1: i32, %arg2: i32) -> (i32, i32) {
    %c0_i32 = arith.constant 0 : i32
    return %arg2, %arg1 : i32, i32
  }
  func.func @transform_2(%arg0: i32, %arg1: i32, %arg2: i32) -> (i32, i32) {
    %c0_i32 = arith.constant 0 : i32
    %c0_i32_0 = arith.constant 0 : i32
    return %c0_i32, %arg1 : i32, i32
  }
  func.func @transform_3(%arg0: i32, %arg1: i32, %arg2: i32) -> (i32, i32) {
    %c0_i32 = arith.constant 0 : i32
    return %arg0, %arg1 : i32, i32
  }
}

module attributes {stable_mosaic.version = 11 : i64} {
  func.func @_scan_kernel(%arg0: i32, %arg1: memref<64x128xf32, #tpu.memory_space<vmem>>, %arg2: memref<64x128xf32, #tpu.memory_space<vmem>>, %arg3: memref<16x128xf32, #tpu.memory_space<vmem>>, %arg4: memref<1024x8xf32, #tpu.memory_space<vmem>>, %arg5: memref<1024x8xf32, #tpu.memory_space<vmem>>, %arg6: memref<1x128xf32, #tpu.memory_space<vmem>>, %arg7: memref<64x128xf32, #tpu.memory_space<vmem>>, %arg8: memref<8x128xf32, #tpu.memory_space<vmem>>, %arg9: memref<64x128xf32, #tpu.memory_space<vmem>>, %arg10: memref<64x16x128xf32, #tpu.memory_space<vmem>>, %arg11: memref<64x16x128xf32, #tpu.memory_space<vmem>>) attributes {dimension_semantics = [#tpu.dimension_semantics<arbitrary>], iteration_bounds = array<i64: 1>, scalar_prefetch = 0 : i64, scratch_operands = 2 : i64, tpu.core_type = #tpu.core_type<tc>, window_params = [{pipeline_mode = #tpu.pipeline_mode<synchronous>, transform_indices = @transform_0, window_bounds = array<i64: 64, 128>}, {pipeline_mode = #tpu.pipeline_mode<synchronous>, transform_indices = @transform_1, window_bounds = array<i64: 64, 128>}, {pipeline_mode = #tpu.pipeline_mode<synchronous>, transform_indices = @transform_2, window_bounds = array<i64: 16, 128>}, {pipeline_mode = #tpu.pipeline_mode<synchronous>, transform_indices = @transform_3, window_bounds = array<i64: 1024, 8>}, {pipeline_mode = #tpu.pipeline_mode<synchronous>, transform_indices = @transform_4, window_bounds = array<i64: 1024, 8>}, {pipeline_mode = #tpu.pipeline_mode<synchronous>, transform_indices = @transform_5, window_bounds = array<i64: 1, 128>}, {pipeline_mode = #tpu.pipeline_mode<synchronous>, transform_indices = @transform_6, window_bounds = array<i64: 64, 128>}, {pipeline_mode = #tpu.pipeline_mode<synchronous>, transform_indices = @transform_7, window_bounds = array<i64: 8, 128>}, {pipeline_mode = #tpu.pipeline_mode<synchronous>, transform_indices = @transform_8, window_bounds = array<i64: 64, 128>}]} {
    %c0 = arith.constant 0 : index
    %c0_0 = arith.constant 0 : index
    %0 = vector.load %arg1[%c0, %c0_0] : memref<64x128xf32, #tpu.memory_space<vmem>>, vector<64x128xf32>
    %c0_1 = arith.constant 0 : index
    %c0_2 = arith.constant 0 : index
    %1 = vector.load %arg2[%c0_1, %c0_2] : memref<64x128xf32, #tpu.memory_space<vmem>>, vector<64x128xf32>
    %cst = arith.constant 0.000000e+00 : f32
    %2 = vector.broadcast %cst : f32 to vector<64x128xf32>
    %3 = arith.maximumf %1, %2 : vector<64x128xf32>
    %4 = math.absf %1 : vector<64x128xf32>
    %cst_3 = arith.constant 0.000000e+00 : f32
    %5 = vector.broadcast %cst_3 : f32 to vector<64x128xf32>
    %6 = arith.subf %5, %4 : vector<64x128xf32>
    %7 = math.exp %6 : vector<64x128xf32>
    %cst_4 = arith.constant 1.000000e+00 : f32
    %8 = vector.broadcast %cst_4 : f32 to vector<64x128xf32>
    %9 = arith.addf %8, %7 : vector<64x128xf32>
    %10 = math.log %9 : vector<64x128xf32>
    %11 = arith.addf %3, %10 : vector<64x128xf32>
    %c0_5 = arith.constant 0 : index
    %c0_6 = arith.constant 0 : index
    %12 = vector.load %arg3[%c0_5, %c0_6] : memref<16x128xf32, #tpu.memory_space<vmem>>, vector<16x128xf32>
    %c0_7 = arith.constant 0 : index
    %c0_8 = arith.constant 0 : index
    %13 = vector.load %arg8[%c0_7, %c0_8] : memref<8x128xf32, #tpu.memory_space<vmem>>, vector<8x128xf32>
    %14 = vector.shape_cast %11 : vector<64x128xf32> to vector<64x1x128xf32>
    %15 = vector.shape_cast %12 : vector<16x128xf32> to vector<1x16x128xf32>
    %16 = vector.broadcast %14 : vector<64x1x128xf32> to vector<64x16x128xf32>
    %17 = vector.broadcast %15 : vector<1x16x128xf32> to vector<64x16x128xf32>
    %18 = arith.mulf %16, %17 : vector<64x16x128xf32>
    %19 = math.exp %18 : vector<64x16x128xf32>
    %c0_9 = arith.constant 0 : index
    %c0_10 = arith.constant 0 : index
    %c0_11 = arith.constant 0 : index
    %20 = vector.load %arg10[%c0_9, %c0_10, %c0_11] : memref<64x16x128xf32, #tpu.memory_space<vmem>>, vector<64x16x128xf32>
    tpu.vector_store %arg10[%c0_9, %c0_10, %c0_11], %19 {strides = array<i32>} : memref<64x16x128xf32, #tpu.memory_space<vmem>>, vector<64x16x128xf32>,
    %c0_12 = arith.constant 0 : index
    %c0_13 = arith.constant 0 : index
    %21 = vector.load %arg4[%c0_12, %c0_13] : memref<1024x8xf32, #tpu.memory_space<vmem>>, vector<1024x8xf32>
    %cst_14 = arith.constant dense<0.000000e+00> : vector<1024x128xf32>
    %22 = tpu.matmul %21, %13, %cst_14 {dimension_numbers = #tpu.dot_dimension_numbers<[1], [0], [0], [1], [0, 0, 1, 1], [], []>} : vector<1024x8xf32>, vector<8x128xf32>, vector<1024x128xf32> -> vector<1024x128xf32>
    %23 = arith.mulf %11, %0 : vector<64x128xf32>
    %24 = vector.shape_cast %23 : vector<64x128xf32> to vector<64x1x128xf32>
    %25 = vector.shape_cast %22 : vector<1024x128xf32> to vector<64x16x128xf32>
    %26 = vector.broadcast %24 : vector<64x1x128xf32> to vector<64x16x128xf32>
    %27 = arith.mulf %26, %25 : vector<64x16x128xf32>
    %c0_15 = arith.constant 0 : index
    %c0_16 = arith.constant 0 : index
    %c0_17 = arith.constant 0 : index
    %28 = vector.load %arg11[%c0_15, %c0_16, %c0_17] : memref<64x16x128xf32, #tpu.memory_space<vmem>>, vector<64x16x128xf32>
    tpu.vector_store %arg11[%c0_15, %c0_16, %c0_17], %27 {strides = array<i32>} : memref<64x16x128xf32, #tpu.memory_space<vmem>>, vector<64x16x128xf32>,
    %cst_18 = arith.constant 0.000000e+00 : f32
    %29 = vector.broadcast %cst_18 : f32 to vector<16x128xf32>
    %c0_i32 = arith.constant 0 : i32
    %c64_i32 = arith.constant 64 : i32
    %30 = arith.addi %c0_i32, %c64_i32 : i32
    %c1_i32 = arith.constant 1 : i32
    %31 = scf.for %arg12 = %c0_i32 to %30 step %c1_i32 iter_args(%arg13 = %29) -> (vector<16x128xf32>)  : i32 {
      %53 = arith.index_cast %arg12 : i32 to index
      %c0_36 = arith.constant 0 : index
      %c0_37 = arith.constant 0 : index
      %54 = vector.load %arg10[%53, %c0_36, %c0_37] : memref<64x16x128xf32, #tpu.memory_space<vmem>>, vector<1x16x128xf32>
      %55 = vector.shape_cast %54 : vector<1x16x128xf32> to vector<16x128xf32>
      %56 = arith.mulf %55, %arg13 : vector<16x128xf32>
      %57 = arith.index_cast %arg12 : i32 to index
      %c0_38 = arith.constant 0 : index
      %c0_39 = arith.constant 0 : index
      %58 = vector.load %arg11[%57, %c0_38, %c0_39] : memref<64x16x128xf32, #tpu.memory_space<vmem>>, vector<1x16x128xf32>
      %59 = vector.shape_cast %58 : vector<1x16x128xf32> to vector<16x128xf32>
      %60 = arith.addf %56, %59 : vector<16x128xf32>
      %61 = arith.index_cast %arg12 : i32 to index
      %c0_40 = arith.constant 0 : index
      %c0_41 = arith.constant 0 : index
      %62 = vector.load %arg11[%61, %c0_40, %c0_41] : memref<64x16x128xf32, #tpu.memory_space<vmem>>, vector<1x16x128xf32>
      %63 = vector.shape_cast %62 : vector<1x16x128xf32> to vector<16x128xf32>
      %64 = vector.shape_cast %60 : vector<16x128xf32> to vector<1x16x128xf32>
      tpu.vector_store %arg11[%61, %c0_40, %c0_41], %64 {strides = array<i32>} : memref<64x16x128xf32, #tpu.memory_space<vmem>>, vector<1x16x128xf32>,
      scf.yield %60 : vector<16x128xf32>
    }
    %c64_i32_19 = arith.constant 64 : i32
    %c0_20 = arith.constant 0 : index
    %c0_21 = arith.constant 0 : index
    %32 = vector.load %arg5[%c0_20, %c0_21] : memref<1024x8xf32, #tpu.memory_space<vmem>>, vector<1024x8xf32>
    %cst_22 = arith.constant dense<0.000000e+00> : vector<1024x128xf32>
    %33 = tpu.matmul %32, %13, %cst_22 {dimension_numbers = #tpu.dot_dimension_numbers<[1], [0], [0], [1], [0, 0, 1, 1], [], []>} : vector<1024x8xf32>, vector<8x128xf32>, vector<1024x128xf32> -> vector<1024x128xf32>
    %34 = vector.shape_cast %33 : vector<1024x128xf32> to vector<64x16x128xf32>
    %c0_23 = arith.constant 0 : index
    %c0_24 = arith.constant 0 : index
    %c0_25 = arith.constant 0 : index
    %35 = vector.load %arg11[%c0_23, %c0_24, %c0_25] : memref<64x16x128xf32, #tpu.memory_space<vmem>>, vector<64x16x128xf32>
    %36 = arith.mulf %34, %35 : vector<64x16x128xf32>
    %cst_26 = arith.constant dense<0.000000e+00> : vector<64x128xf32>
    %37 = vector.multi_reduction <add>, %36, %cst_26 [1] : vector<64x16x128xf32> to vector<64x128xf32>
    %c0_27 = arith.constant 0 : index
    %c0_28 = arith.constant 0 : index
    %38 = vector.load %arg6[%c0_27, %c0_28] : memref<1x128xf32, #tpu.memory_space<vmem>>, vector<1x128xf32>
    %39 = vector.broadcast %38 : vector<1x128xf32> to vector<64x128xf32>
    %40 = arith.mulf %0, %39 : vector<64x128xf32>
    %41 = arith.addf %37, %40 : vector<64x128xf32>
    %c0_29 = arith.constant 0 : index
    %c0_30 = arith.constant 0 : index
    %42 = vector.load %arg7[%c0_29, %c0_30] : memref<64x128xf32, #tpu.memory_space<vmem>>, vector<64x128xf32>
    %cst_31 = arith.constant 0.000000e+00 : f32
    %43 = vector.broadcast %cst_31 : f32 to vector<64x128xf32>
    %44 = arith.subf %43, %42 : vector<64x128xf32>
    %45 = math.exp %44 : vector<64x128xf32>
    %cst_32 = arith.constant 1.000000e+00 : f32
    %46 = vector.broadcast %cst_32 : f32 to vector<64x128xf32>
    %47 = arith.addf %46, %45 : vector<64x128xf32>
    %cst_33 = arith.constant 1.000000e+00 : f32
    %48 = vector.broadcast %cst_33 : f32 to vector<64x128xf32>
    %49 = arith.divf %48, %47 : vector<64x128xf32>
    %50 = arith.mulf %42, %49 : vector<64x128xf32>
    %51 = arith.mulf %41, %50 : vector<64x128xf32>
    %c0_34 = arith.constant 0 : index
    %c0_35 = arith.constant 0 : index
    %52 = vector.load %arg9[%c0_34, %c0_35] : memref<64x128xf32, #tpu.memory_space<vmem>>, vector<64x128xf32>
    tpu.vector_store %arg9[%c0_34, %c0_35], %51 {strides = array<i32>} : memref<64x128xf32, #tpu.memory_space<vmem>>, vector<64x128xf32>,
    return
  }
  func.func @transform_0(%arg0: i32) -> (i32, i32) {
    %c0_i32 = arith.constant 0 : i32
    %c0_i32_0 = arith.constant 0 : i32
    %c0_i32_1 = arith.constant 0 : i32
    return %c0_i32, %c0_i32_0 : i32, i32
  }
  func.func @transform_1(%arg0: i32) -> (i32, i32) {
    %c0_i32 = arith.constant 0 : i32
    %c0_i32_0 = arith.constant 0 : i32
    %c0_i32_1 = arith.constant 0 : i32
    return %c0_i32, %c0_i32_0 : i32, i32
  }
  func.func @transform_2(%arg0: i32) -> (i32, i32) {
    %c0_i32 = arith.constant 0 : i32
    %c0_i32_0 = arith.constant 0 : i32
    %c0_i32_1 = arith.constant 0 : i32
    return %c0_i32, %c0_i32_0 : i32, i32
  }
  func.func @transform_3(%arg0: i32) -> (i32, i32) {
    %c0_i32 = arith.constant 0 : i32
    %c0_i32_0 = arith.constant 0 : i32
    %c0_i32_1 = arith.constant 0 : i32
    return %c0_i32, %c0_i32_0 : i32, i32
  }
  func.func @transform_4(%arg0: i32) -> (i32, i32) {
    %c0_i32 = arith.constant 0 : i32
    %c0_i32_0 = arith.constant 0 : i32
    %c0_i32_1 = arith.constant 0 : i32
    return %c0_i32, %c0_i32_0 : i32, i32
  }
  func.func @transform_5(%arg0: i32) -> (i32, i32) {
    %c0_i32 = arith.constant 0 : i32
    %c0_i32_0 = arith.constant 0 : i32
    %c0_i32_1 = arith.constant 0 : i32
    return %c0_i32, %c0_i32_0 : i32, i32
  }
  func.func @transform_6(%arg0: i32) -> (i32, i32) {
    %c0_i32 = arith.constant 0 : i32
    %c0_i32_0 = arith.constant 0 : i32
    %c0_i32_1 = arith.constant 0 : i32
    return %c0_i32, %c0_i32_0 : i32, i32
  }
  func.func @transform_7(%arg0: i32) -> (i32, i32) {
    %c0_i32 = arith.constant 0 : i32
    %c0_i32_0 = arith.constant 0 : i32
    %c0_i32_1 = arith.constant 0 : i32
    return %c0_i32, %c0_i32_0 : i32, i32
  }
  func.func @transform_8(%arg0: i32) -> (i32, i32) {
    %c0_i32 = arith.constant 0 : i32
    %c0_i32_0 = arith.constant 0 : i32
    %c0_i32_1 = arith.constant 0 : i32
    return %c0_i32, %c0_i32_0 : i32, i32
  }
}

module attributes {stable_mosaic.version = 11 : i64} {
  func.func @_linear_res_kernel(%arg0: i32, %arg1: i32, %arg2: i32, %arg3: memref<128x16xf32, #tpu.memory_space<vmem>>, %arg4: memref<16x8xf32, #tpu.memory_space<vmem>>, %arg5: memref<1x8xf32, #tpu.memory_space<vmem>>, %arg6: memref<128x8xf32, #tpu.memory_space<vmem>>, %arg7: memref<128x8xf32, #tpu.memory_space<vmem>>, %arg8: memref<128x8xf32, #tpu.memory_space<vmem>>) attributes {dimension_semantics = [#tpu.dimension_semantics<parallel>, #tpu.dimension_semantics<parallel>, #tpu.dimension_semantics<arbitrary>], iteration_bounds = array<i64: 4, 1, 1>, scalar_prefetch = 0 : i64, scratch_operands = 1 : i64, tpu.core_type = #tpu.core_type<tc>, window_params = [{transform_indices = @transform_0, window_bounds = array<i64: 128, 16>}, {transform_indices = @transform_1, window_bounds = array<i64: 16, 8>}, {transform_indices = @transform_2, window_bounds = array<i64: 1, 8>}, {transform_indices = @transform_3, window_bounds = array<i64: 128, 8>}, {transform_indices = @transform_4, window_bounds = array<i64: 128, 8>}]} {
    %c0_i32 = arith.constant 0 : i32
    %0 = arith.cmpi eq, %arg2, %c0_i32 : i32
    %1 = arith.extui %0 : i1 to i32
    %c0_i32_0 = arith.constant 0 : i32
    %2 = arith.cmpi ne, %1, %c0_i32_0 : i32
    scf.if %2 {
      %cst_10 = arith.constant 0.000000e+00 : f32
      %14 = vector.broadcast %cst_10 : f32 to vector<128x8xf32>
      %c0_11 = arith.constant 0 : index
      %c0_12 = arith.constant 0 : index
      %15 = vector.load %arg8[%c0_11, %c0_12] : memref<128x8xf32, #tpu.memory_space<vmem>>, vector<128x8xf32>
      tpu.vector_store %arg8[%c0_11, %c0_12], %14 {strides = array<i32>} : memref<128x8xf32, #tpu.memory_space<vmem>>, vector<128x8xf32>,
    } else {
    }
    %c0 = arith.constant 0 : index
    %c0_1 = arith.constant 0 : index
    %3 = vector.load %arg8[%c0, %c0_1] : memref<128x8xf32, #tpu.memory_space<vmem>>, vector<128x8xf32>
    %c0_2 = arith.constant 0 : index
    %c0_3 = arith.constant 0 : index
    %4 = vector.load %arg3[%c0_2, %c0_3] : memref<128x16xf32, #tpu.memory_space<vmem>>, vector<128x16xf32>
    %5 = arith.truncf %4 : vector<128x16xf32> to vector<128x16xbf16>
    %c0_4 = arith.constant 0 : index
    %c0_5 = arith.constant 0 : index
    %6 = vector.load %arg4[%c0_4, %c0_5] : memref<16x8xf32, #tpu.memory_space<vmem>>, vector<16x8xf32>
    %7 = arith.truncf %6 : vector<16x8xf32> to vector<16x8xbf16>
    %cst = arith.constant dense<0.000000e+00> : vector<128x8xf32>
    %8 = tpu.matmul %5, %7, %cst {dimension_numbers = #tpu.dot_dimension_numbers<[1], [0], [0], [1], [0, 0, 1, 1], [], []>} : vector<128x16xbf16>, vector<16x8xbf16>, vector<128x8xf32> -> vector<128x8xf32>
    %9 = arith.addf %3, %8 : vector<128x8xf32>
    %c0_6 = arith.constant 0 : index
    %c0_7 = arith.constant 0 : index
    %10 = vector.load %arg8[%c0_6, %c0_7] : memref<128x8xf32, #tpu.memory_space<vmem>>, vector<128x8xf32>
    tpu.vector_store %arg8[%c0_6, %c0_7], %9 {strides = array<i32>} : memref<128x8xf32, #tpu.memory_space<vmem>>, vector<128x8xf32>,
    %c0_i32_8 = arith.constant 0 : i32
    %11 = arith.cmpi eq, %arg2, %c0_i32_8 : i32
    %12 = arith.extui %11 : i1 to i32
    %c0_i32_9 = arith.constant 0 : i32
    %13 = arith.cmpi ne, %12, %c0_i32_9 : i32
    scf.if %13 {
      %c0_10 = arith.constant 0 : index
      %c0_11 = arith.constant 0 : index
      %14 = vector.load %arg8[%c0_10, %c0_11] : memref<128x8xf32, #tpu.memory_space<vmem>>, vector<128x8xf32>
      %c0_12 = arith.constant 0 : index
      %c0_13 = arith.constant 0 : index
      %15 = vector.load %arg5[%c0_12, %c0_13] : memref<1x8xf32, #tpu.memory_space<vmem>>, vector<1x8xf32>
      %16 = vector.broadcast %15 : vector<1x8xf32> to vector<128x8xf32>
      %17 = arith.addf %14, %16 : vector<128x8xf32>
      %c0_14 = arith.constant 0 : index
      %c0_15 = arith.constant 0 : index
      %18 = vector.load %arg6[%c0_14, %c0_15] : memref<128x8xf32, #tpu.memory_space<vmem>>, vector<128x8xf32>
      %19 = arith.addf %17, %18 : vector<128x8xf32>
      %c0_16 = arith.constant 0 : index
      %c0_17 = arith.constant 0 : index
      %20 = vector.load %arg7[%c0_16, %c0_17] : memref<128x8xf32, #tpu.memory_space<vmem>>, vector<128x8xf32>
      tpu.vector_store %arg7[%c0_16, %c0_17], %19 {strides = array<i32>} : memref<128x8xf32, #tpu.memory_space<vmem>>, vector<128x8xf32>,
    } else {
    }
    return
  }
  func.func @transform_0(%arg0: i32, %arg1: i32, %arg2: i32) -> (i32, i32) {
    %c0_i32 = arith.constant 0 : i32
    return %arg0, %arg2 : i32, i32
  }
  func.func @transform_1(%arg0: i32, %arg1: i32, %arg2: i32) -> (i32, i32) {
    %c0_i32 = arith.constant 0 : i32
    return %arg2, %arg1 : i32, i32
  }
  func.func @transform_2(%arg0: i32, %arg1: i32, %arg2: i32) -> (i32, i32) {
    %c0_i32 = arith.constant 0 : i32
    %c0_i32_0 = arith.constant 0 : i32
    return %c0_i32, %arg1 : i32, i32
  }
  func.func @transform_3(%arg0: i32, %arg1: i32, %arg2: i32) -> (i32, i32) {
    %c0_i32 = arith.constant 0 : i32
    return %arg0, %arg1 : i32, i32
  }
  func.func @transform_4(%arg0: i32, %arg1: i32, %arg2: i32) -> (i32, i32) {
    %c0_i32 = arith.constant 0 : i32
    return %arg0, %arg1 : i32, i32
  }
}

module attributes {stable_mosaic.version = 11 : i64} {
  func.func @_ln_linear_kernel(%arg0: i32, %arg1: memref<128x16xf32, #tpu.memory_space<vmem>>, %arg2: memref<1x16xf32, #tpu.memory_space<vmem>>, %arg3: memref<1x16xf32, #tpu.memory_space<vmem>>, %arg4: memref<16x16xf32, #tpu.memory_space<vmem>>, %arg5: memref<1x16xf32, #tpu.memory_space<vmem>>, %arg6: memref<128x16xf32, #tpu.memory_space<vmem>>) attributes {dimension_semantics = [#tpu.dimension_semantics<parallel>], iteration_bounds = array<i64: 2>, scalar_prefetch = 0 : i64, scratch_operands = 0 : i64, tpu.core_type = #tpu.core_type<tc>, window_params = [{transform_indices = @transform_0, window_bounds = array<i64: 128, 16>}, {pipeline_mode = #tpu.pipeline_mode<synchronous>, transform_indices = @transform_1, window_bounds = array<i64: 1, 16>}, {pipeline_mode = #tpu.pipeline_mode<synchronous>, transform_indices = @transform_2, window_bounds = array<i64: 1, 16>}, {pipeline_mode = #tpu.pipeline_mode<synchronous>, transform_indices = @transform_3, window_bounds = array<i64: 16, 16>}, {pipeline_mode = #tpu.pipeline_mode<synchronous>, transform_indices = @transform_4, window_bounds = array<i64: 1, 16>}, {transform_indices = @transform_5, window_bounds = array<i64: 128, 16>}]} {
    %c0 = arith.constant 0 : index
    %c0_0 = arith.constant 0 : index
    %0 = vector.load %arg1[%c0, %c0_0] : memref<128x16xf32, #tpu.memory_space<vmem>>, vector<128x16xf32>
    %cst = arith.constant dense<0.000000e+00> : vector<128xf32>
    %1 = vector.multi_reduction <add>, %0, %cst [1] : vector<128x16xf32> to vector<128xf32>
    %2 = vector.shape_cast %1 : vector<128xf32> to vector<128x1xf32>
    %cst_1 = arith.constant 1.600000e+01 : f32
    %3 = vector.broadcast %cst_1 : f32 to vector<128x1xf32>
    %4 = arith.divf %2, %3 : vector<128x1xf32>
    %5 = vector.broadcast %4 : vector<128x1xf32> to vector<128x16xf32>
    %6 = arith.subf %0, %5 : vector<128x16xf32>
    %7 = arith.mulf %6, %6 : vector<128x16xf32>
    %cst_2 = arith.constant dense<0.000000e+00> : vector<128xf32>
    %8 = vector.multi_reduction <add>, %7, %cst_2 [1] : vector<128x16xf32> to vector<128xf32>
    %9 = vector.shape_cast %8 : vector<128xf32> to vector<128x1xf32>
    %cst_3 = arith.constant 1.600000e+01 : f32
    %10 = vector.broadcast %cst_3 : f32 to vector<128x1xf32>
    %11 = arith.divf %9, %10 : vector<128x1xf32>
    %12 = vector.broadcast %4 : vector<128x1xf32> to vector<128x16xf32>
    %13 = arith.subf %0, %12 : vector<128x16xf32>
    %cst_4 = arith.constant 9.99999974E-6 : f32
    %14 = vector.broadcast %cst_4 : f32 to vector<128x1xf32>
    %15 = arith.addf %11, %14 : vector<128x1xf32>
    %16 = math.rsqrt %15 : vector<128x1xf32>
    %17 = vector.broadcast %16 : vector<128x1xf32> to vector<128x16xf32>
    %18 = arith.mulf %13, %17 : vector<128x16xf32>
    %c0_5 = arith.constant 0 : index
    %c0_6 = arith.constant 0 : index
    %19 = vector.load %arg2[%c0_5, %c0_6] : memref<1x16xf32, #tpu.memory_space<vmem>>, vector<1x16xf32>
    %20 = vector.broadcast %19 : vector<1x16xf32> to vector<128x16xf32>
    %21 = arith.mulf %18, %20 : vector<128x16xf32>
    %c0_7 = arith.constant 0 : index
    %c0_8 = arith.constant 0 : index
    %22 = vector.load %arg3[%c0_7, %c0_8] : memref<1x16xf32, #tpu.memory_space<vmem>>, vector<1x16xf32>
    %23 = vector.broadcast %22 : vector<1x16xf32> to vector<128x16xf32>
    %24 = arith.addf %21, %23 : vector<128x16xf32>
    %25 = arith.truncf %24 : vector<128x16xf32> to vector<128x16xbf16>
    %c0_9 = arith.constant 0 : index
    %c0_10 = arith.constant 0 : index
    %26 = vector.load %arg4[%c0_9, %c0_10] : memref<16x16xf32, #tpu.memory_space<vmem>>, vector<16x16xf32>
    %27 = arith.truncf %26 : vector<16x16xf32> to vector<16x16xbf16>
    %cst_11 = arith.constant dense<0.000000e+00> : vector<128x16xf32>
    %28 = tpu.matmul %25, %27, %cst_11 {dimension_numbers = #tpu.dot_dimension_numbers<[1], [0], [0], [1], [0, 0, 1, 1], [], []>} : vector<128x16xbf16>, vector<16x16xbf16>, vector<128x16xf32> -> vector<128x16xf32>
    %c0_12 = arith.constant 0 : index
    %c0_13 = arith.constant 0 : index
    %29 = vector.load %arg5[%c0_12, %c0_13] : memref<1x16xf32, #tpu.memory_space<vmem>>, vector<1x16xf32>
    %30 = vector.broadcast %29 : vector<1x16xf32> to vector<128x16xf32>
    %31 = arith.addf %28, %30 : vector<128x16xf32>
    %c0_14 = arith.constant 0 : index
    %c0_15 = arith.constant 0 : index
    %32 = vector.load %arg6[%c0_14, %c0_15] : memref<128x16xf32, #tpu.memory_space<vmem>>, vector<128x16xf32>
    tpu.vector_store %arg6[%c0_14, %c0_15], %31 {strides = array<i32>} : memref<128x16xf32, #tpu.memory_space<vmem>>, vector<128x16xf32>,
    return
  }
  func.func @transform_0(%arg0: i32) -> (i32, i32) {
    %c0_i32 = arith.constant 0 : i32
    %c0_i32_0 = arith.constant 0 : i32
    return %arg0, %c0_i32 : i32, i32
  }
  func.func @transform_1(%arg0: i32) -> (i32, i32) {
    %c0_i32 = arith.constant 0 : i32
    %c0_i32_0 = arith.constant 0 : i32
    %c0_i32_1 = arith.constant 0 : i32
    return %c0_i32, %c0_i32_0 : i32, i32
  }
  func.func @transform_2(%arg0: i32) -> (i32, i32) {
    %c0_i32 = arith.constant 0 : i32
    %c0_i32_0 = arith.constant 0 : i32
    %c0_i32_1 = arith.constant 0 : i32
    return %c0_i32, %c0_i32_0 : i32, i32
  }
  func.func @transform_3(%arg0: i32) -> (i32, i32) {
    %c0_i32 = arith.constant 0 : i32
    %c0_i32_0 = arith.constant 0 : i32
    %c0_i32_1 = arith.constant 0 : i32
    return %c0_i32, %c0_i32_0 : i32, i32
  }
  func.func @transform_4(%arg0: i32) -> (i32, i32) {
    %c0_i32 = arith.constant 0 : i32
    %c0_i32_0 = arith.constant 0 : i32
    %c0_i32_1 = arith.constant 0 : i32
    return %c0_i32, %c0_i32_0 : i32, i32
  }
  func.func @transform_5(%arg0: i32) -> (i32, i32) {
    %c0_i32 = arith.constant 0 : i32
    %c0_i32_0 = arith.constant 0 : i32
    return %arg0, %c0_i32 : i32, i32
  }
}

module attributes {stable_mosaic.version = 11 : i64} {
  func.func @_linear_kernel(%arg0: i32, %arg1: i32, %arg2: i32, %arg3: memref<128x32xf32, #tpu.memory_space<vmem>>, %arg4: memref<32x16xf32, #tpu.memory_space<vmem>>, %arg5: memref<1x16xf32, #tpu.memory_space<vmem>>, %arg6: memref<128x16xf32, #tpu.memory_space<vmem>>, %arg7: memref<128x16xf32, #tpu.memory_space<vmem>>) attributes {dimension_semantics = [#tpu.dimension_semantics<parallel>, #tpu.dimension_semantics<parallel>, #tpu.dimension_semantics<arbitrary>], iteration_bounds = array<i64: 1, 1, 1>, scalar_prefetch = 0 : i64, scratch_operands = 1 : i64, tpu.core_type = #tpu.core_type<tc>, window_params = [{transform_indices = @transform_0, window_bounds = array<i64: 128, 32>}, {transform_indices = @transform_1, window_bounds = array<i64: 32, 16>}, {transform_indices = @transform_2, window_bounds = array<i64: 1, 16>}, {transform_indices = @transform_3, window_bounds = array<i64: 128, 16>}]} {
    %c0_i32 = arith.constant 0 : i32
    %0 = arith.cmpi eq, %arg2, %c0_i32 : i32
    %1 = arith.extui %0 : i1 to i32
    %c0_i32_0 = arith.constant 0 : i32
    %2 = arith.cmpi ne, %1, %c0_i32_0 : i32
    scf.if %2 {
      %cst_10 = arith.constant 0.000000e+00 : f32
      %14 = vector.broadcast %cst_10 : f32 to vector<128x16xf32>
      %c0_11 = arith.constant 0 : index
      %c0_12 = arith.constant 0 : index
      %15 = vector.load %arg7[%c0_11, %c0_12] : memref<128x16xf32, #tpu.memory_space<vmem>>, vector<128x16xf32>
      tpu.vector_store %arg7[%c0_11, %c0_12], %14 {strides = array<i32>} : memref<128x16xf32, #tpu.memory_space<vmem>>, vector<128x16xf32>,
    } else {
    }
    %c0 = arith.constant 0 : index
    %c0_1 = arith.constant 0 : index
    %3 = vector.load %arg7[%c0, %c0_1] : memref<128x16xf32, #tpu.memory_space<vmem>>, vector<128x16xf32>
    %c0_2 = arith.constant 0 : index
    %c0_3 = arith.constant 0 : index
    %4 = vector.load %arg3[%c0_2, %c0_3] : memref<128x32xf32, #tpu.memory_space<vmem>>, vector<128x32xf32>
    %5 = arith.truncf %4 : vector<128x32xf32> to vector<128x32xbf16>
    %c0_4 = arith.constant 0 : index
    %c0_5 = arith.constant 0 : index
    %6 = vector.load %arg4[%c0_4, %c0_5] : memref<32x16xf32, #tpu.memory_space<vmem>>, vector<32x16xf32>
    %7 = arith.truncf %6 : vector<32x16xf32> to vector<32x16xbf16>
    %cst = arith.constant dense<0.000000e+00> : vector<128x16xf32>
    %8 = tpu.matmul %5, %7, %cst {dimension_numbers = #tpu.dot_dimension_numbers<[1], [0], [0], [1], [0, 0, 1, 1], [], []>} : vector<128x32xbf16>, vector<32x16xbf16>, vector<128x16xf32> -> vector<128x16xf32>
    %9 = arith.addf %3, %8 : vector<128x16xf32>
    %c0_6 = arith.constant 0 : index
    %c0_7 = arith.constant 0 : index
    %10 = vector.load %arg7[%c0_6, %c0_7] : memref<128x16xf32, #tpu.memory_space<vmem>>, vector<128x16xf32>
    tpu.vector_store %arg7[%c0_6, %c0_7], %9 {strides = array<i32>} : memref<128x16xf32, #tpu.memory_space<vmem>>, vector<128x16xf32>,
    %c0_i32_8 = arith.constant 0 : i32
    %11 = arith.cmpi eq, %arg2, %c0_i32_8 : i32
    %12 = arith.extui %11 : i1 to i32
    %c0_i32_9 = arith.constant 0 : i32
    %13 = arith.cmpi ne, %12, %c0_i32_9 : i32
    scf.if %13 {
      %c0_10 = arith.constant 0 : index
      %c0_11 = arith.constant 0 : index
      %14 = vector.load %arg7[%c0_10, %c0_11] : memref<128x16xf32, #tpu.memory_space<vmem>>, vector<128x16xf32>
      %c0_12 = arith.constant 0 : index
      %c0_13 = arith.constant 0 : index
      %15 = vector.load %arg5[%c0_12, %c0_13] : memref<1x16xf32, #tpu.memory_space<vmem>>, vector<1x16xf32>
      %16 = vector.broadcast %15 : vector<1x16xf32> to vector<128x16xf32>
      %17 = arith.addf %14, %16 : vector<128x16xf32>
      %c0_14 = arith.constant 0 : index
      %c0_15 = arith.constant 0 : index
      %18 = vector.load %arg6[%c0_14, %c0_15] : memref<128x16xf32, #tpu.memory_space<vmem>>, vector<128x16xf32>
      tpu.vector_store %arg6[%c0_14, %c0_15], %17 {strides = array<i32>} : memref<128x16xf32, #tpu.memory_space<vmem>>, vector<128x16xf32>,
    } else {
    }
    return
  }
  func.func @transform_0(%arg0: i32, %arg1: i32, %arg2: i32) -> (i32, i32) {
    %c0_i32 = arith.constant 0 : i32
    return %arg0, %arg2 : i32, i32
  }
  func.func @transform_1(%arg0: i32, %arg1: i32, %arg2: i32) -> (i32, i32) {
    %c0_i32 = arith.constant 0 : i32
    return %arg2, %arg1 : i32, i32
  }
  func.func @transform_2(%arg0: i32, %arg1: i32, %arg2: i32) -> (i32, i32) {
    %c0_i32 = arith.constant 0 : i32
    %c0_i32_0 = arith.constant 0 : i32
    return %c0_i32, %arg1 : i32, i32
  }
  func.func @transform_3(%arg0: i32, %arg1: i32, %arg2: i32) -> (i32, i32) {
    %c0_i32 = arith.constant 0 : i32
    return %arg0, %arg1 : i32, i32
  }
}

</mosaic_0001>

<llo_original>
// kernel: tile.23
$region0: #{tile.23}
  %s0 = inlined_call_operand.vmem [shape: f32[4,8,16], index: 0, kind: input, shape index: {}]
  %s1 = inlined_call_operand.vmem [shape: f32[4,128], index: 1, kind: output, shape index: {}]
  $region1: #{tile.23} parent=0
    #allocation0 [shape = 'u8[4096]{0}', space=vmem, size = 0x1000, scoped, tag = 'scoped mem for output reshape']
    %v2 = vld [vmem:[%s0] ss:$8 sm:$0xf]
    %vm3 = vcmask 130048
    %4 = vst.msk [vmem:[#allocation0] sm:$0xf] %vm3, %v2
    %s5 = scalar_lea.vmem %s0, 7
    %v6 = vld [vmem:[%s5] ss:$8 sm:$0xf]
    %7 = vrot.lane.b32.xlu0 %v6, 112
    %v8 = vpop.permute.xlu0 %7
    %vm9 = vcmask 1048448
    %10 = vst.msk [vmem:[#allocation0] sm:$0xf] %vm9, %v8
    %s11 = scalar_lea.vmem %s0, 6
    %v12 = vld [vmem:[%s11] ss:$8 sm:$0xf]
    %13 = vrot.lane.b32.xlu0 %v12, 96
    %v14 = vpop.permute.xlu0 %13
    %vm15 = vcmask 917248
    %16 = vst.msk [vmem:[#allocation0] sm:$0xf] %vm15, %v14
    %s17 = scalar_lea.vmem %s0, 5
    %v18 = vld [vmem:[%s17] ss:$8 sm:$0xf]
    %19 = vrot.lane.b32.xlu0 %v18, 80
    %v20 = vpop.permute.xlu0 %19
    %vm21 = vcmask 786048
    %22 = vst.msk [vmem:[#allocation0] sm:$0xf] %vm21, %v20
    %s23 = scalar_lea.vmem %s0, 4
    %v24 = vld [vmem:[%s23] ss:$8 sm:$0xf]
    %25 = vrot.lane.b32.xlu0 %v24, 64
    %v26 = vpop.permute.xlu0 %25
    %vm27 = vcmask 654848
    %28 = vst.msk [vmem:[#allocation0] sm:$0xf] %vm27, %v26
    %s29 = scalar_lea.vmem %s0, 3
    %v30 = vld [vmem:[%s29] ss:$8 sm:$0xf]
    %31 = vrot.lane.b32.xlu0 %v30, 48
    %v32 = vpop.permute.xlu0 %31
    %vm33 = vcmask 523648
    %34 = vst.msk [vmem:[#allocation0] sm:$0xf] %vm33, %v32
    %s35 = scalar_lea.vmem %s0, 2
    %v36 = vld [vmem:[%s35] ss:$8 sm:$0xf]
    %37 = vrot.lane.b32.xlu0 %v36, 32
    %v38 = vpop.permute.xlu0 %37
    %vm39 = vcmask 392448
    %40 = vst.msk [vmem:[#allocation0] sm:$0xf] %vm39, %v38
    %s41 = scalar_lea.vmem %s0, 1
    %v42 = vld [vmem:[%s41] ss:$8 sm:$0xf]
    %43 = vrot.lane.b32.xlu0 %v42, 16
    %v44 = vpop.permute.xlu0 %43
    %vm45 = vcmask 261248
    %46 = vst.msk [vmem:[#allocation0] sm:$0xf] %vm45, %v44
    %s48 = ssub.s32 16, 1
    %v49 = vld [vmem:[#allocation0] sm:%s48]
    %s51 = ssub.s32 16, 1
    %52 = vst [vmem:[%s1] sm:%s51] %v49

// kernel: tile.33
$region0: #{tile.33}
  %s0 = inlined_call_operand.vmem [shape: f32[16,8,16], index: 0, kind: input, shape index: {}]
  %s1 = inlined_call_operand.vmem [shape: f32[16,128], index: 1, kind: output, shape index: {}]
  %v2 = vld [vmem:[%s0] ss:$8 sm:$0xf]
  %v3 = vld [vmem:[%s0] ss:$8 sm:$0xf0]
  %vm4 = vcmask 1047556
  %v5 = vsel %vm4, %v3, %v2
  %vm6 = vcmask 130048
  %7 = vst.msk [vmem:[%s1] sm:$0xff] %vm6, %v5
  %s8 = scalar_lea.vmem %s0, 64
  %v9 = vld [vmem:[%s8] ss:$8 sm:$0xf]
  %s10 = scalar_lea.vmem %s0, 64
  %v11 = vld [vmem:[%s10] ss:$8 sm:$0xf0]
  %vm12 = vcmask 1047556
  %v13 = vsel %vm12, %v11, %v9
  %vm14 = vcmask 130048
  %s15 = scalar_lea.vmem %s1, 8
  %16 = vst.msk [vmem:[%s15] sm:$0xff] %vm14, %v13
  %s17 = scalar_lea.vmem %s0, 7
  %v18 = vld [vmem:[%s17] ss:$8 sm:$0xf]
  %s19 = scalar_lea.vmem %s0, 7
  %v20 = vld [vmem:[%s19] ss:$8 sm:$0xf0]
  %vm21 = vcmask 1047556
  %v22 = vsel %vm21, %v20, %v18
  %23 = vrot.lane.b32.xlu0 %v22, 112
  %v24 = vpop.permute.xlu0 %23
  %vm25 = vcmask 1048448
  %26 = vst.msk [vmem:[%s1] sm:$0xff] %vm25, %v24
  %s27 = scalar_lea.vmem %s0, 71
  %v28 = vld [vmem:[%s27] ss:$8 sm:$0xf]
  %s29 = scalar_lea.vmem %s0, 71
  %v30 = vld [vmem:[%s29] ss:$8 sm:$0xf0]
  %vm31 = vcmask 1047556
  %v32 = vsel %vm31, %v30, %v28
  %33 = vrot.lane.b32.xlu0 %v32, 112
  %v34 = vpop.permute.xlu0 %33
  %vm35 = vcmask 1048448
  %s36 = scalar_lea.vmem %s1, 8
  %37 = vst.msk [vmem:[%s36] sm:$0xff] %vm35, %v34
  %s38 = scalar_lea.vmem %s0, 6
  %v39 = vld [vmem:[%s38] ss:$8 sm:$0xf]
  %s40 = scalar_lea.vmem %s0, 6
  %v41 = vld [vmem:[%s40] ss:$8 sm:$0xf0]
  %vm42 = vcmask 1047556
  %v43 = vsel %vm42, %v41, %v39
  %44 = vrot.lane.b32.xlu0 %v43, 96
  %v45 = vpop.permute.xlu0 %44
  %vm46 = vcmask 917248
  %47 = vst.msk [vmem:[%s1] sm:$0xff] %vm46, %v45
  %s48 = scalar_lea.vmem %s0, 70
  %v49 = vld [vmem:[%s48] ss:$8 sm:$0xf]
  %s50 = scalar_lea.vmem %s0, 70
  %v51 = vld [vmem:[%s50] ss:$8 sm:$0xf0]
  %vm52 = vcmask 1047556
  %v53 = vsel %vm52, %v51, %v49
  %54 = vrot.lane.b32.xlu0 %v53, 96
  %v55 = vpop.permute.xlu0 %54
  %vm56 = vcmask 917248
  %s57 = scalar_lea.vmem %s1, 8
  %58 = vst.msk [vmem:[%s57] sm:$0xff] %vm56, %v55
  %s59 = scalar_lea.vmem %s0, 5
  %v60 = vld [vmem:[%s59] ss:$8 sm:$0xf]
  %s61 = scalar_lea.vmem %s0, 5
  %v62 = vld [vmem:[%s61] ss:$8 sm:$0xf0]
  %vm63 = vcmask 1047556
  %v64 = vsel %vm63, %v62, %v60
  %65 = vrot.lane.b32.xlu0 %v64, 80
  %v66 = vpop.permute.xlu0 %65
  %vm67 = vcmask 786048
  %68 = vst.msk [vmem:[%s1] sm:$0xff] %vm67, %v66
  %s69 = scalar_lea.vmem %s0, 69
  %v70 = vld [vmem:[%s69] ss:$8 sm:$0xf]
  %s71 = scalar_lea.vmem %s0, 69
  %v72 = vld [vmem:[%s71] ss:$8 sm:$0xf0]
  %vm73 = vcmask 1047556
  %v74 = vsel %vm73, %v72, %v70
  %75 = vrot.lane.b32.xlu0 %v74, 80
  %v76 = vpop.permute.xlu0 %75
  %vm77 = vcmask 786048
  %s78 = scalar_lea.vmem %s1, 8
  %79 = vst.msk [vmem:[%s78] sm:$0xff] %vm77, %v76
  %s80 = scalar_lea.vmem %s0, 4
  %v81 = vld [vmem:[%s80] ss:$8 sm:$0xf]
  %s82 = scalar_lea.vmem %s0, 4
  %v83 = vld [vmem:[%s82] ss:$8 sm:$0xf0]
  %vm84 = vcmask 1047556
  %v85 = vsel %vm84, %v83, %v81
  %86 = vrot.lane.b32.xlu0 %v85, 64
  %v87 = vpop.permute.xlu0 %86
  %vm88 = vcmask 654848
  %89 = vst.msk [vmem:[%s1] sm:$0xff] %vm88, %v87
  %s90 = scalar_lea.vmem %s0, 68
  %v91 = vld [vmem:[%s90] ss:$8 sm:$0xf]
  %s92 = scalar_lea.vmem %s0, 68
  %v93 = vld [vmem:[%s92] ss:$8 sm:$0xf0]
  %vm94 = vcmask 1047556
  %v95 = vsel %vm94, %v93, %v91
  %96 = vrot.lane.b32.xlu0 %v95, 64
  %v97 = vpop.permute.xlu0 %96
  %vm98 = vcmask 654848
  %s99 = scalar_lea.vmem %s1, 8
  %100 = vst.msk [vmem:[%s99] sm:$0xff] %vm98, %v97
  %s101 = scalar_lea.vmem %s0, 3
  %v102 = vld [vmem:[%s101] ss:$8 sm:$0xf]
  %s103 = scalar_lea.vmem %s0, 3
  %v104 = vld [vmem:[%s103] ss:$8 sm:$0xf0]
  %vm105 = vcmask 1047556
  %v106 = vsel %vm105, %v104, %v102
  %107 = vrot.lane.b32.xlu0 %v106, 48
  %v108 = vpop.permute.xlu0 %107
  %vm109 = vcmask 523648
  %110 = vst.msk [vmem:[%s1] sm:$0xff] %vm109, %v108
  %s111 = scalar_lea.vmem %s0, 67
  %v112 = vld [vmem:[%s111] ss:$8 sm:$0xf]
  %s113 = scalar_lea.vmem %s0, 67
  %v114 = vld [vmem:[%s113] ss:$8 sm:$0xf0]
  %vm115 = vcmask 1047556
  %v116 = vsel %vm115, %v114, %v112
  %117 = vrot.lane.b32.xlu0 %v116, 48
  %v118 = vpop.permute.xlu0 %117
  %vm119 = vcmask 523648
  %s120 = scalar_lea.vmem %s1, 8
  %121 = vst.msk [vmem:[%s120] sm:$0xff] %vm119, %v118
  %s122 = scalar_lea.vmem %s0, 2
  %v123 = vld [vmem:[%s122] ss:$8 sm:$0xf]
  %s124 = scalar_lea.vmem %s0, 2
  %v125 = vld [vmem:[%s124] ss:$8 sm:$0xf0]
  %vm126 = vcmask 1047556
  %v127 = vsel %vm126, %v125, %v123
  %128 = vrot.lane.b32.xlu0 %v127, 32
  %v129 = vpop.permute.xlu0 %128
  %vm130 = vcmask 392448
  %131 = vst.msk [vmem:[%s1] sm:$0xff] %vm130, %v129
  %s132 = scalar_lea.vmem %s0, 66
  %v133 = vld [vmem:[%s132] ss:$8 sm:$0xf]
  %s134 = scalar_lea.vmem %s0, 66
  %v135 = vld [vmem:[%s134] ss:$8 sm:$0xf0]
  %vm136 = vcmask 1047556
  %v137 = vsel %vm136, %v135, %v133
  %138 = vrot.lane.b32.xlu0 %v137, 32
  %v139 = vpop.permute.xlu0 %138
  %vm140 = vcmask 392448
  %s141 = scalar_lea.vmem %s1, 8
  %142 = vst.msk [vmem:[%s141] sm:$0xff] %vm140, %v139
  %s143 = scalar_lea.vmem %s0, 1
  %v144 = vld [vmem:[%s143] ss:$8 sm:$0xf]
  %s145 = scalar_lea.vmem %s0, 1
  %v146 = vld [vmem:[%s145] ss:$8 sm:$0xf0]
  %vm147 = vcmask 1047556
  %v148 = vsel %vm147, %v146, %v144
  %149 = vrot.lane.b32.xlu0 %v148, 16
  %v150 = vpop.permute.xlu0 %149
  %vm151 = vcmask 261248
  %152 = vst.msk [vmem:[%s1] sm:$0xff] %vm151, %v150
  %s153 = scalar_lea.vmem %s0, 65
  %v154 = vld [vmem:[%s153] ss:$8 sm:$0xf]
  %s155 = scalar_lea.vmem %s0, 65
  %v156 = vld [vmem:[%s155] ss:$8 sm:$0xf0]
  %vm157 = vcmask 1047556
  %v158 = vsel %vm157, %v156, %v154
  %159 = vrot.lane.b32.xlu0 %v158, 16
  %v160 = vpop.permute.xlu0 %159
  %vm161 = vcmask 261248
  %s162 = scalar_lea.vmem %s1, 8
  %163 = vst.msk [vmem:[%s162] sm:$0xff] %vm161, %v160

// kernel: asl_forward.8
$region0: #{asl_forward.8}
  #allocation0 [shape = 'u32[]', space=smem, size = 0x4, offset = 0x4, fixed_abs, tag = 'smem constant byte address 0x4 - core index']
  #allocation1 [shape = 'u32[72,128]{1,0:T(1,128)}', space=vmem, size = 0x9000, scoped, tag = 'internal scratch']
  %s0 = inlined_call_operand.vmem [shape: f32[256,16], index: 0, kind: input, shape index: {}]
  %s1 = inlined_call_operand.hbm [shape: f32[1,16], index: 1, kind: input, shape index: {}]
  %s2 = inlined_call_operand.hbm [shape: f32[1,16], index: 2, kind: input, shape index: {}]
  %s3 = inlined_call_operand.vmem [shape: f32[256,16], index: 3, kind: output, shape index: {}]
  %s4 = sld [smem:[#allocation0]]
  $region53: #{asl_forward.8} parent=0
    _
  %s6 = ssub.s32 1, %s4
  %s7 = scalar_select 0, %s6, %s4
  $region1: #{asl_forward.8} parent=0
    #allocation2 [shape = 'u8[512]{0}', space=vmem, size = 0x400, scoped, tag = 'input window, operand 1, single buffered']
    #allocation3 [shape = 's32[2]{0}', space=sflag, size = 0x8, scoped, tag = 'scoped memory for asl_forward.8']
    #allocation4 [shape = 'u8[512]{0}', space=vmem, size = 0x400, scoped, tag = 'input window, operand 2, single buffered']
    #allocation5 [shape = 's32[1]{0}', space=sflag, size = 0x4, scoped, tag = 'scoped memory for asl_forward.8']
    %8 = vsyncpa [#allocation3], 0
    %9 = vsyncpa [#allocation5], 0
    loop: start=0, step=1, limit=4
    $region2: #{asl_forward.8} parent=1 // loop_pre_header
      _
    $region3: #{asl_forward.8} parent=1 // loop_header
      %s11 = sphi 0, %s15
      %p12 = scmp.ge.s32.totalorder %s11, 4
      %s21 = sphi 0, %s23
      %s24 = sphi 0, %s21
      %s25 = sphi 0, %s24
      %s41 = sphi 0, %s25
      %s45 = sphi 0, %s45
      %s47 = sphi 0, %s45
      %s48 = sphi 0, %s47
      %s62 = sphi 0, %s48
      %s66 = sphi 0, %s66
      %s68 = sphi 0, %s66
      %s69 = sphi 0, %s68
      %s83 = sphi 0, %s69
      %s89 = sphi 0, %s91
      %s92 = sphi 0, %s89
      %s93 = sphi 0, %s92
      %s109 = sphi 0, %s93
    $region4: #{asl_forward.8} parent=1 // loop_header_branch
      %14 = sbr.rel (%p12) target = $region8
    $region5: #{asl_forward.8} parent=1 // loop_body
      %s16 = ssub.s32 %s11, 1
      %s17 = ssub.s32 %s11, 2
      %s18 = sadd.s32 %s11, 1
      %s19 = ssub.s32 %s11, %s18
      %p20 = scmp.eq.s32.totalorder %s19, 0
      %s22 = sadd.s32 %s21, 1
      %s23 = scalar_select %p20, %s21, %s22
      %p26 = pneg %p20
      %p27 = scmp.eq.s32.totalorder %s11, 1
      %p28 = por %p26, %p27
      %p29 = scmp.ne.s32.totalorder %s21, %s24
      %p30 = scmp.eq.s32.totalorder %s11, 0
      %p31 = por %p29, %p30
      %p32 = scmp.ne.s32.totalorder %s21, %s24
      %p33 = scmp.eq.s32.totalorder %s16, 1
      %p34 = por %p32, %p33
      %p35 = scmp.ne.s32.totalorder %s24, %s25
      %p36 = scmp.eq.s32.totalorder %s16, 0
      %p37 = por %p35, %p36
      %p38 = scmp.ne.s32.totalorder %s24, %s25
      %p39 = scmp.eq.s32.totalorder %s17, 1
      %p40 = por %p38, %p39
      %p42 = scmp.ne.s32.totalorder %s25, %s41
      %p43 = scmp.eq.s32.totalorder %s17, 0
      %p44 = por %p42, %p43
      %s46 = sadd.s32 %s45, 1
      %p49 = scmp.eq.s32.totalorder %s11, 1
      %p50 = scmp.ne.s32.totalorder %s45, %s47
      %p51 = scmp.eq.s32.totalorder %s11, 0
      %p52 = por %p50, %p51
      %p53 = scmp.ne.s32.totalorder %s45, %s47
      %p54 = scmp.eq.s32.totalorder %s16, 1
      %p55 = por %p53, %p54
      %p56 = scmp.ne.s32.totalorder %s47, %s48
      %p57 = scmp.eq.s32.totalorder %s16, 0
      %p58 = por %p56, %p57
      %p59 = scmp.ne.s32.totalorder %s47, %s48
      %p60 = scmp.eq.s32.totalorder %s17, 1
      %p61 = por %p59, %p60
      %p63 = scmp.ne.s32.totalorder %s48, %s62
      %p64 = scmp.eq.s32.totalorder %s17, 0
      %p65 = por %p63, %p64
      %s67 = sadd.s32 %s66, 1
      %p70 = scmp.eq.s32.totalorder %s11, 1
      %p71 = scmp.ne.s32.totalorder %s66, %s68
      %p72 = scmp.eq.s32.totalorder %s11, 0
      %p73 = por %p71, %p72
      %p74 = scmp.ne.s32.totalorder %s66, %s68
      %p75 = scmp.eq.s32.totalorder %s16, 1
      %p76 = por %p74, %p75
      %p77 = scmp.ne.s32.totalorder %s68, %s69
      %p78 = scmp.eq.s32.totalorder %s16, 0
      %p79 = por %p77, %p78
      %p80 = scmp.ne.s32.totalorder %s68, %s69
      %p81 = scmp.eq.s32.totalorder %s17, 1
      %p82 = por %p80, %p81
      %p84 = scmp.ne.s32.totalorder %s69, %s83
      %p85 = scmp.eq.s32.totalorder %s17, 0
      %p86 = por %p84, %p85
      %s87 = ssub.s32 %s11, %s18
      %p88 = scmp.eq.s32.totalorder %s87, 0
      %s90 = sadd.s32 %s89, 1
      %s91 = scalar_select %p88, %s89, %s90
      %p94 = pneg %p88
      %p95 = scmp.eq.s32.totalorder %s11, 1
      %p96 = por %p94, %p95
      %p97 = scmp.ne.s32.totalorder %s89, %s92
      %p98 = scmp.eq.s32.totalorder %s11, 0
      %p99 = por %p97, %p98
      %p100 = scmp.ne.s32.totalorder %s89, %s92
      %p101 = scmp.eq.s32.totalorder %s16, 1
      %p102 = por %p100, %p101
      %p103 = scmp.ne.s32.totalorder %s92, %s93
      %p104 = scmp.eq.s32.totalorder %s16, 0
      %p105 = por %p103, %p104
      %p106 = scmp.ne.s32.totalorder %s92, %s93
      %p107 = scmp.eq.s32.totalorder %s17, 1
      %p108 = por %p106, %p107
      %p110 = scmp.ne.s32.totalorder %s93, %s109
      %p111 = scmp.eq.s32.totalorder %s17, 0
      %p112 = por %p110, %p111
      %p113 = scmp.le.s32.totalorder 1, %s11
      %p114 = scmp.lt.s32.totalorder %s11, 3
      %p115 = pnand %p113, %p114
      %p116 = pneg %p115
      // Predicated region
      $region9: #{asl_forward.8} parent=5 // pred_check
        _
      $region10: #{asl_forward.8} parent=5 // pred_check_branch
        %118 = sbr.rel (%p115) target = $region12
      $region11: #{asl_forward.8} parent=5 // pred_region
        %s119 = ssub.s32 %s11, 1
        // Predicated region
        $region13: #{asl_forward.8} parent=11 // pred_check
          %p120 = pneg %p58
        $region14: #{asl_forward.8} parent=11 // pred_check_branch
          %122 = sbr.rel (%p120) target = $region16
        $region15: #{asl_forward.8} parent=11 // pred_region
          %124 = vsyncadd [#allocation3], 0
          %s126 = sshll.u32 %s1, 4
          %s127 = int_to_ptr.hbm [resolvable:$true] %s126
          %s128 = sshll.u32 [#allocation2], 4
          %s129 = int_to_ptr.vmem [resolvable:$true] %s128
          %131 = dma.hbm_to_vmem [thread:$0]  %s127, 16, %s129, [#allocation3]
        $region16: #{asl_forward.8} parent=11 // pred_fallthru
          _
        // Predicated region
        $region17: #{asl_forward.8} parent=11 // pred_check
          %p132 = pneg %p79
        $region18: #{asl_forward.8} parent=11 // pred_check_branch
          %134 = sbr.rel (%p132) target = $region20
        $region19: #{asl_forward.8} parent=11 // pred_region
          %136 = vsyncadd [#allocation5], 0
          %s138 = sshll.u32 %s2, 4
          %s139 = int_to_ptr.hbm [resolvable:$true] %s138
          %s140 = sshll.u32 [#allocation4], 4
          %s141 = int_to_ptr.vmem [resolvable:$true] %s140
          %143 = dma.hbm_to_vmem [thread:$0]  %s139, 16, %s141, [#allocation5]
        $region20: #{asl_forward.8} parent=11 // pred_fallthru
          _
      $region12: #{asl_forward.8} parent=5 // pred_fallthru
        _
      %p144 = scmp.lt.s32.totalorder %s11, 2
      // Predicated region
      $region21: #{asl_forward.8} parent=5 // pred_check
        %p145 = pneg %p144
      $region22: #{asl_forward.8} parent=5 // pred_check_branch
        %147 = sbr.rel (%p145) target = $region24
      $region23: #{asl_forward.8} parent=5 // pred_region
        // Predicated region
        $region25: #{asl_forward.8} parent=23 // pred_check
          %p148 = pneg %p31
        $region26: #{asl_forward.8} parent=23 // pred_check_branch
          %150 = sbr.rel (%p148) target = $region28
        $region27: #{asl_forward.8} parent=23 // pred_region
          %s151 = smul.u32 16, %s11
          %p152 = scmp.lt.s32.totalorder %s151, 31
          %s153 = scalar_select %p152, %s151, 31
          %s154 = smul.addr %s153, 8
          %s155 = scalar_lea.vmem %s0, %s154
          %s156 = smul.u32 16, %s11
        $region28: #{asl_forward.8} parent=23 // pred_fallthru
          _
      $region24: #{asl_forward.8} parent=5 // pred_fallthru
        _
      %p157 = scmp.le.s32.totalorder 1, %s11
      %p158 = scmp.lt.s32.totalorder %s11, 3
      %p159 = pnand %p157, %p158
      %p160 = pneg %p159
      // Predicated region
      $region29: #{asl_forward.8} parent=5 // pred_check
        _
      $region30: #{asl_forward.8} parent=5 // pred_check_branch
        %162 = sbr.rel (%p159) target = $region32
      $region31: #{asl_forward.8} parent=5 // pred_region
        %s163 = ssub.s32 %s11, 1
        // Predicated region
        $region33: #{asl_forward.8} parent=31 // pred_check
          %p164 = pneg %p58
        $region34: #{asl_forward.8} parent=31 // pred_check_branch
          %166 = sbr.rel (%p164) target = $region36
        $region35: #{asl_forward.8} parent=31 // pred_region
          %168 = dma.done [#allocation3], 16
        $region36: #{asl_forward.8} parent=31 // pred_fallthru
          _
        // Predicated region
        $region37: #{asl_forward.8} parent=31 // pred_check
          %p169 = pneg %p79
        $region38: #{asl_forward.8} parent=31 // pred_check_branch
          %171 = sbr.rel (%p169) target = $region40
        $region39: #{asl_forward.8} parent=31 // pred_region
          %173 = dma.done [#allocation5], 16
        $region40: #{asl_forward.8} parent=31 // pred_fallthru
          _
        %s174 = smul.u32 16, %s16
        %p175 = scmp.lt.s32.totalorder %s174, 31
        %s176 = scalar_select %p175, %s174, 31
        %s177 = smul.addr %s176, 8
        %s178 = scalar_lea.vmem %s0, %s177
        %p179 = pneg %p37
        %p180 = pneg %p34
        %p181 = pneg %p58
        %p182 = pneg %p55
        %p183 = pneg %p79
        %p184 = pneg %p76
        %p185 = pneg %p105
        %p186 = pneg %p102
        %s187 = smul.u32 16, %s16
        %p188 = scmp.lt.s32.totalorder %s187, 31
        %s189 = scalar_select %p188, %s187, 31
        %s190 = smul.addr %s189, 8
        %s191 = scalar_lea.vmem %s3, %s190
        %s192 = smul.u32 16, %s16
        %p193 = scmp.lt.s32.totalorder %s192, 31
        %s194 = scalar_select %p193, %s192, 31
        %s195 = smul.addr %s194, 8
        %s196 = scalar_lea.vmem %s0, %s195
        %s197 = smul.u32 16, %s16
        %s198 = smul.u32 16, %s16
        %p199 = scmp.lt.s32.totalorder %s198, 31
        %s200 = scalar_select %p199, %s198, 31
        %s201 = smul.addr %s200, 8
        %s202 = scalar_lea.vmem %s3, %s201
        %s203 = smul.u32 16, %s16
        %v204 = vld [vmem:[%s196] sm:$0xff]
        %v205 = vld [vmem:[%s196 + $0x8] sm:$0xff]
        %v206 = vld [vmem:[%s196 + $0x10] sm:$0xff]
        %v207 = vld [vmem:[%s196 + $0x18] sm:$0xff]
        %v208 = vld [vmem:[%s196 + $0x20] sm:$0xff]
        %v209 = vld [vmem:[%s196 + $0x28] sm:$0xff]
        %v210 = vld [vmem:[%s196 + $0x30] sm:$0xff]
        %v211 = vld [vmem:[%s196 + $0x38] sm:$0xff]
        %v212 = vld [vmem:[%s196 + $0x40] sm:$0xff]
        %v213 = vld [vmem:[%s196 + $0x48] sm:$0xff]
        %v214 = vld [vmem:[%s196 + $0x50] sm:$0xff]
        %v215 = vld [vmem:[%s196 + $0x58] sm:$0xff]
        %v216 = vld [vmem:[%s196 + $0x60] sm:$0xff]
        %v217 = vld [vmem:[%s196 + $0x68] sm:$0xff]
        %v218 = vld [vmem:[%s196 + $0x70] sm:$0xff]
        %v219 = vld [vmem:[%s196 + $0x78] sm:$0xff]
        %vm220 = vcmask 130048
        %v221 = vsel %vm220, %v204, 0.0
        %222 = vadd.xlane.f32.xlu0 %v221
        %v223 = vpop.xlane.xlu0 %222
        %v224 = vsel %vm220, %v205, 0.0
        %225 = vadd.xlane.f32.xlu0 %v224
        %v226 = vpop.xlane.xlu0 %225
        %v227 = vsel %vm220, %v206, 0.0
        %228 = vadd.xlane.f32.xlu0 %v227
        %v229 = vpop.xlane.xlu0 %228
        %v230 = vsel %vm220, %v207, 0.0
        %231 = vadd.xlane.f32.xlu0 %v230
        %v232 = vpop.xlane.xlu0 %231
        %v233 = vsel %vm220, %v208, 0.0
        %234 = vadd.xlane.f32.xlu0 %v233
        %v235 = vpop.xlane.xlu0 %234
        %v236 = vsel %vm220, %v209, 0.0
        %237 = vadd.xlane.f32.xlu0 %v236
        %v238 = vpop.xlane.xlu0 %237
        %v239 = vsel %vm220, %v210, 0.0
        %240 = vadd.xlane.f32.xlu0 %v239
        %v241 = vpop.xlane.xlu0 %240
        %v242 = vsel %vm220, %v211, 0.0
        %243 = vadd.xlane.f32.xlu0 %v242
        %v244 = vpop.xlane.xlu0 %243
        %v245 = vsel %vm220, %v212, 0.0
        %246 = vadd.xlane.f32.xlu0 %v245
        %v247 = vpop.xlane.xlu0 %246
        %v248 = vsel %vm220, %v213, 0.0
        %249 = vadd.xlane.f32.xlu0 %v248
        %v250 = vpop.xlane.xlu0 %249
        %v251 = vsel %vm220, %v214, 0.0
        %252 = vadd.xlane.f32.xlu0 %v251
        %v253 = vpop.xlane.xlu0 %252
        %v254 = vsel %vm220, %v215, 0.0
        %255 = vadd.xlane.f32.xlu0 %v254
        %v256 = vpop.xlane.xlu0 %255
        %v257 = vsel %vm220, %v216, 0.0
        %258 = vadd.xlane.f32.xlu0 %v257
        %v259 = vpop.xlane.xlu0 %258
        %v260 = vsel %vm220, %v217, 0.0
        %261 = vadd.xlane.f32.xlu0 %v260
        %v262 = vpop.xlane.xlu0 %261
        %v263 = vsel %vm220, %v218, 0.0
        %264 = vadd.xlane.f32.xlu0 %v263
        %v265 = vpop.xlane.xlu0 %264
        %v266 = vsel %vm220, %v219, 0.0
        %267 = vadd.xlane.f32.xlu0 %v266
        %v268 = vpop.xlane.xlu0 %267
        %v269 = vrcp.pop 16.0
        %v270 = vmul.f32 16.0, %v269
        %v271 = vsub.f32 1.0, %v270
        %v272 = vmul.f32 %v269, %v271
        %v273 = vadd.f32 %v269, %v272
        %vm274 = vweird.f32 %v269
        %v275 = vsel %vm274, %v269, %v273
        %v276 = vmul.f32 %v223, %v275
        %v277 = vmul.f32 %v226, %v275
        %v278 = vmul.f32 %v229, %v275
        %v279 = vmul.f32 %v232, %v275
        %v280 = vmul.f32 %v235, %v275
        %v281 = vmul.f32 %v238, %v275
        %v282 = vmul.f32 %v241, %v275
        %v283 = vmul.f32 %v244, %v275
        %v284 = vmul.f32 %v247, %v275
        %v285 = vmul.f32 %v250, %v275
        %v286 = vmul.f32 %v253, %v275
        %v287 = vmul.f32 %v256, %v275
        %v288 = vmul.f32 %v259, %v275
        %v289 = vmul.f32 %v262, %v275
        %v290 = vmul.f32 %v265, %v275
        %v291 = vmul.f32 %v268, %v275
        %v292 = vsub.f32 %v204, %v276
        %v293 = vsub.f32 %v205, %v277
        %v294 = vsub.f32 %v206, %v278
        %v295 = vsub.f32 %v207, %v279
        %v296 = vsub.f32 %v208, %v280
        %v297 = vsub.f32 %v209, %v281
        %v298 = vsub.f32 %v210, %v282
        %v299 = vsub.f32 %v211, %v283
        %v300 = vsub.f32 %v212, %v284
        %v301 = vsub.f32 %v213, %v285
        %v302 = vsub.f32 %v214, %v286
        %v303 = vsub.f32 %v215, %v287
        %v304 = vsub.f32 %v216, %v288
        %v305 = vsub.f32 %v217, %v289
        %v306 = vsub.f32 %v218, %v290
        %v307 = vsub.f32 %v219, %v291
        %v308 = vmul.f32 %v292, %v292
        %v309 = vmul.f32 %v293, %v293
        %v310 = vmul.f32 %v294, %v294
        %v311 = vmul.f32 %v295, %v295
        %v312 = vmul.f32 %v296, %v296
        %v313 = vmul.f32 %v297, %v297
        %v314 = vmul.f32 %v298, %v298
        %v315 = vmul.f32 %v299, %v299
        %v316 = vmul.f32 %v300, %v300
        %v317 = vmul.f32 %v301, %v301
        %v318 = vmul.f32 %v302, %v302
        %v319 = vmul.f32 %v303, %v303
        %v320 = vmul.f32 %v304, %v304
        %v321 = vmul.f32 %v305, %v305
        %v322 = vmul.f32 %v306, %v306
        %v323 = vmul.f32 %v307, %v307
        %v324 = vsel %vm220, %v308, 0.0
        %325 = vadd.xlane.f32.xlu0 %v324
        %v326 = vpop.xlane.xlu0 %325
        %v327 = vsel %vm220, %v309, 0.0
        %328 = vadd.xlane.f32.xlu0 %v327
        %v329 = vpop.xlane.xlu0 %328
        %v330 = vsel %vm220, %v310, 0.0
        %331 = vadd.xlane.f32.xlu0 %v330
        %v332 = vpop.xlane.xlu0 %331
        %v333 = vsel %vm220, %v311, 0.0
        %334 = vadd.xlane.f32.xlu0 %v333
        %v335 = vpop.xlane.xlu0 %334
        %v336 = vsel %vm220, %v312, 0.0
        %337 = vadd.xlane.f32.xlu0 %v336
        %v338 = vpop.xlane.xlu0 %337
        %v339 = vsel %vm220, %v313, 0.0
        %340 = vadd.xlane.f32.xlu0 %v339
        %v341 = vpop.xlane.xlu0 %340
        %v342 = vsel %vm220, %v314, 0.0
        %343 = vadd.xlane.f32.xlu0 %v342
        %v344 = vpop.xlane.xlu0 %343
        %v345 = vsel %vm220, %v315, 0.0
        %346 = vadd.xlane.f32.xlu0 %v345
        %v347 = vpop.xlane.xlu0 %346
        %v348 = vsel %vm220, %v316, 0.0
        %349 = vadd.xlane.f32.xlu0 %v348
        %v350 = vpop.xlane.xlu0 %349
        %v351 = vsel %vm220, %v317, 0.0
        %352 = vadd.xlane.f32.xlu0 %v351
        %v353 = vpop.xlane.xlu0 %352
        %v354 = vsel %vm220, %v318, 0.0
        %355 = vadd.xlane.f32.xlu0 %v354
        %v356 = vpop.xlane.xlu0 %355
        %v357 = vsel %vm220, %v319, 0.0
        %358 = vadd.xlane.f32.xlu0 %v357
        %v359 = vpop.xlane.xlu0 %358
        %v360 = vsel %vm220, %v320, 0.0
        %361 = vadd.xlane.f32.xlu0 %v360
        %v362 = vpop.xlane.xlu0 %361
        %v363 = vsel %vm220, %v321, 0.0
        %364 = vadd.xlane.f32.xlu0 %v363
        %v365 = vpop.xlane.xlu0 %364
        %v366 = vsel %vm220, %v322, 0.0
        %367 = vadd.xlane.f32.xlu0 %v366
        %v368 = vpop.xlane.xlu0 %367
        %v369 = vsel %vm220, %v323, 0.0
        %370 = vadd.xlane.f32.xlu0 %v369
        %v371 = vpop.xlane.xlu0 %370
        %v372 = vmul.f32 %v326, %v275
        %v373 = vmul.f32 %v329, %v275
        %v374 = vmul.f32 %v332, %v275
        %v375 = vmul.f32 %v335, %v275
        %v376 = vmul.f32 %v338, %v275
        %v377 = vmul.f32 %v341, %v275
        %v378 = vmul.f32 %v344, %v275
        %v379 = vmul.f32 %v347, %v275
        %v380 = vmul.f32 %v350, %v275
        %v381 = vmul.f32 %v353, %v275
        %v382 = vmul.f32 %v356, %v275
        %v383 = vmul.f32 %v359, %v275
        %v384 = vmul.f32 %v362, %v275
        %v385 = vmul.f32 %v365, %v275
        %v386 = vmul.f32 %v368, %v275
        %v387 = vmul.f32 %v371, %v275
        %v388 = vadd.f32 %v372, 1e-05
        %v389 = vadd.f32 %v373, 1e-05
        %v390 = vadd.f32 %v374, 1e-05
        %v391 = vadd.f32 %v375, 1e-05
        %v392 = vadd.f32 %v376, 1e-05
        %v393 = vadd.f32 %v377, 1e-05
        %v394 = vadd.f32 %v378, 1e-05
        %v395 = vadd.f32 %v379, 1e-05
        %v396 = vadd.f32 %v380, 1e-05
        %v397 = vadd.f32 %v381, 1e-05
        %v398 = vadd.f32 %v382, 1e-05
        %v399 = vadd.f32 %v383, 1e-05
        %v400 = vadd.f32 %v384, 1e-05
        %v401 = vadd.f32 %v385, 1e-05
        %v402 = vadd.f32 %v386, 1e-05
        %v403 = vadd.f32 %v387, 1e-05
        %v404 = vrsqrt.pop %v388
        %v405 = vmul.f32 %v404, %v388
        %v406 = vmul.f32 %v405, %v404
        %v407 = vmul.f32 0.5, %v406
        %v408 = vsub.f32 1.5, %v407
        %v409 = vmul.f32 %v404, %v408
        %vm410 = vweird.f32 %v388
        %vm411 = vweird.f32 %v404
        %vm412 = vmor %vm410, %vm411
        %v413 = vsel %vm412, %v404, %v409
        %v414 = vrsqrt.pop %v389
        %v415 = vmul.f32 %v414, %v389
        %v416 = vmul.f32 %v415, %v414
        %v417 = vmul.f32 0.5, %v416
        %v418 = vsub.f32 1.5, %v417
        %v419 = vmul.f32 %v414, %v418
        %vm420 = vweird.f32 %v389
        %vm421 = vweird.f32 %v414
        %vm422 = vmor %vm420, %vm421
        %v423 = vsel %vm422, %v414, %v419
        %v424 = vrsqrt.pop %v390
        %v425 = vmul.f32 %v424, %v390
        %v426 = vmul.f32 %v425, %v424
        %v427 = vmul.f32 0.5, %v426
        %v428 = vsub.f32 1.5, %v427
        %v429 = vmul.f32 %v424, %v428
        %vm430 = vweird.f32 %v390
        %vm431 = vweird.f32 %v424
        %vm432 = vmor %vm430, %vm431
        %v433 = vsel %vm432, %v424, %v429
        %v434 = vrsqrt.pop %v391
        %v435 = vmul.f32 %v434, %v391
        %v436 = vmul.f32 %v435, %v434
        %v437 = vmul.f32 0.5, %v436
        %v438 = vsub.f32 1.5, %v437
        %v439 = vmul.f32 %v434, %v438
        %vm440 = vweird.f32 %v391
        %vm441 = vweird.f32 %v434
        %vm442 = vmor %vm440, %vm441
        %v443 = vsel %vm442, %v434, %v439
        %v444 = vrsqrt.pop %v392
        %v445 = vmul.f32 %v444, %v392
        %v446 = vmul.f32 %v445, %v444
        %v447 = vmul.f32 0.5, %v446
        %v448 = vsub.f32 1.5, %v447
        %v449 = vmul.f32 %v444, %v448
        %vm450 = vweird.f32 %v392
        %vm451 = vweird.f32 %v444
        %vm452 = vmor %vm450, %vm451
        %v453 = vsel %vm452, %v444, %v449
        %v454 = vrsqrt.pop %v393
        %v455 = vmul.f32 %v454, %v393
        %v456 = vmul.f32 %v455, %v454
        %v457 = vmul.f32 0.5, %v456
        %v458 = vsub.f32 1.5, %v457
        %v459 = vmul.f32 %v454, %v458
        %vm460 = vweird.f32 %v393
        %vm461 = vweird.f32 %v454
        %vm462 = vmor %vm460, %vm461
        %v463 = vsel %vm462, %v454, %v459
        %v464 = vrsqrt.pop %v394
        %v465 = vmul.f32 %v464, %v394
        %v466 = vmul.f32 %v465, %v464
        %v467 = vmul.f32 0.5, %v466
        %v468 = vsub.f32 1.5, %v467
        %v469 = vmul.f32 %v464, %v468
        %vm470 = vweird.f32 %v394
        %vm471 = vweird.f32 %v464
        %vm472 = vmor %vm470, %vm471
        %v473 = vsel %vm472, %v464, %v469
        %v474 = vrsqrt.pop %v395
        %v475 = vmul.f32 %v474, %v395
        %v476 = vmul.f32 %v475, %v474
        %v477 = vmul.f32 0.5, %v476
        %v478 = vsub.f32 1.5, %v477
        %v479 = vmul.f32 %v474, %v478
        %vm480 = vweird.f32 %v395
        %vm481 = vweird.f32 %v474
        %vm482 = vmor %vm480, %vm481
        %v483 = vsel %vm482, %v474, %v479
        %v484 = vrsqrt.pop %v396
        %v485 = vmul.f32 %v484, %v396
        %v486 = vmul.f32 %v485, %v484
        %v487 = vmul.f32 0.5, %v486
        %v488 = vsub.f32 1.5, %v487
        %v489 = vmul.f32 %v484, %v488
        %vm490 = vweird.f32 %v396
        %vm491 = vweird.f32 %v484
        %vm492 = vmor %vm490, %vm491
        %v493 = vsel %vm492, %v484, %v489
        %v494 = vrsqrt.pop %v397
        %v495 = vmul.f32 %v494, %v397
        %v496 = vmul.f32 %v495, %v494
        %v497 = vmul.f32 0.5, %v496
        %v498 = vsub.f32 1.5, %v497
        %v499 = vmul.f32 %v494, %v498
        %vm500 = vweird.f32 %v397
        %vm501 = vweird.f32 %v494
        %vm502 = vmor %vm500, %vm501
        %v503 = vsel %vm502, %v494, %v499
        %v504 = vrsqrt.pop %v398
        %v505 = vmul.f32 %v504, %v398
        %v506 = vmul.f32 %v505, %v504
        %v507 = vmul.f32 0.5, %v506
        %v508 = vsub.f32 1.5, %v507
        %v509 = vmul.f32 %v504, %v508
        %vm510 = vweird.f32 %v398
        %vm511 = vweird.f32 %v504
        %vm512 = vmor %vm510, %vm511
        %v513 = vsel %vm512, %v504, %v509
        %v514 = vrsqrt.pop %v399
        %v515 = vmul.f32 %v514, %v399
        %v516 = vmul.f32 %v515, %v514
        %v517 = vmul.f32 0.5, %v516
        %v518 = vsub.f32 1.5, %v517
        %v519 = vmul.f32 %v514, %v518
        %vm520 = vweird.f32 %v399
        %vm521 = vweird.f32 %v514
        %vm522 = vmor %vm520, %vm521
        %v523 = vsel %vm522, %v514, %v519
        %v524 = vrsqrt.pop %v400
        %v525 = vmul.f32 %v524, %v400
        %v526 = vmul.f32 %v525, %v524
        %v527 = vmul.f32 0.5, %v526
        %v528 = vsub.f32 1.5, %v527
        %v529 = vmul.f32 %v524, %v528
        %vm530 = vweird.f32 %v400
        %vm531 = vweird.f32 %v524
        %vm532 = vmor %vm530, %vm531
        %v533 = vsel %vm532, %v524, %v529
        %v534 = vrsqrt.pop %v401
        %v535 = vmul.f32 %v534, %v401
        %v536 = vmul.f32 %v535, %v534
        %v537 = vmul.f32 0.5, %v536
        %v538 = vsub.f32 1.5, %v537
        %v539 = vmul.f32 %v534, %v538
        %vm540 = vweird.f32 %v401
        %vm541 = vweird.f32 %v534
        %vm542 = vmor %vm540, %vm541
        %v543 = vsel %vm542, %v534, %v539
        %v544 = vrsqrt.pop %v402
        %v545 = vmul.f32 %v544, %v402
        %v546 = vmul.f32 %v545, %v544
        %v547 = vmul.f32 0.5, %v546
        %v548 = vsub.f32 1.5, %v547
        %v549 = vmul.f32 %v544, %v548
        %vm550 = vweird.f32 %v402
        %vm551 = vweird.f32 %v544
        %vm552 = vmor %vm550, %vm551
        %v553 = vsel %vm552, %v544, %v549
        %v554 = vrsqrt.pop %v403
        %v555 = vmul.f32 %v554, %v403
        %v556 = vmul.f32 %v555, %v554
        %v557 = vmul.f32 0.5, %v556
        %v558 = vsub.f32 1.5, %v557
        %v559 = vmul.f32 %v554, %v558
        %vm560 = vweird.f32 %v403
        %vm561 = vweird.f32 %v554
        %vm562 = vmor %vm560, %vm561
        %v563 = vsel %vm562, %v554, %v559
        %v564 = vmul.f32 %v292, %v413
        %v565 = vmul.f32 %v293, %v423
        %v566 = vmul.f32 %v294, %v433
        %v567 = vmul.f32 %v295, %v443
        %v568 = vmul.f32 %v296, %v453
        %v569 = vmul.f32 %v297, %v463
        %v570 = vmul.f32 %v298, %v473
        %v571 = vmul.f32 %v299, %v483
        %v572 = vmul.f32 %v300, %v493
        %v573 = vmul.f32 %v301, %v503
        %v574 = vmul.f32 %v302, %v513
        %v575 = vmul.f32 %v303, %v523
        %v576 = vmul.f32 %v304, %v533
        %v577 = vmul.f32 %v305, %v543
        %v578 = vmul.f32 %v306, %v553
        %v579 = vmul.f32 %v307, %v563
        %v580 = vld [vmem:[#allocation2] sm:$0x1]
        %v582 = vperm.slane %v580, 0
        %v584 = vmul.f32 %v564, %v582
        %v585 = vmul.f32 %v565, %v582
        %v586 = vmul.f32 %v566, %v582
        %v587 = vmul.f32 %v567, %v582
        %v588 = vmul.f32 %v568, %v582
        %v589 = vmul.f32 %v569, %v582
        %v590 = vmul.f32 %v570, %v582
        %v591 = vmul.f32 %v571, %v582
        %v592 = vmul.f32 %v572, %v582
        %v593 = vmul.f32 %v573, %v582
        %v594 = vmul.f32 %v574, %v582
        %v595 = vmul.f32 %v575, %v582
        %v596 = vmul.f32 %v576, %v582
        %v597 = vmul.f32 %v577, %v582
        %v598 = vmul.f32 %v578, %v582
        %v599 = vmul.f32 %v579, %v582
        %v600 = vld [vmem:[#allocation4] sm:$0x1]
        %v602 = vperm.slane %v600, 0
        %v604 = vadd.f32 %v584, %v602
        %v605 = vadd.f32 %v585, %v602
        %v606 = vadd.f32 %v586, %v602
        %v607 = vadd.f32 %v587, %v602
        %v608 = vadd.f32 %v588, %v602
        %v609 = vadd.f32 %v589, %v602
        %v610 = vadd.f32 %v590, %v602
        %v611 = vadd.f32 %v591, %v602
        %v612 = vadd.f32 %v592, %v602
        %v613 = vadd.f32 %v593, %v602
        %v614 = vadd.f32 %v594, %v602
        %v615 = vadd.f32 %v595, %v602
        %v616 = vadd.f32 %v596, %v602
        %v617 = vadd.f32 %v597, %v602
        %v618 = vadd.f32 %v598, %v602
        %v619 = vadd.f32 %v599, %v602
        %620 = vst.msk [vmem:[%s202] sm:$0xff] %vm220, %v604
        %621 = vst.msk [vmem:[%s202 + $0x8] sm:$0xff] %vm220, %v605
        %622 = vst.msk [vmem:[%s202 + $0x10] sm:$0xff] %vm220, %v606
        %623 = vst.msk [vmem:[%s202 + $0x18] sm:$0xff] %vm220, %v607
        %624 = vst.msk [vmem:[%s202 + $0x20] sm:$0xff] %vm220, %v608
        %625 = vst.msk [vmem:[%s202 + $0x28] sm:$0xff] %vm220, %v609
        %626 = vst.msk [vmem:[%s202 + $0x30] sm:$0xff] %vm220, %v610
        %627 = vst.msk [vmem:[%s202 + $0x38] sm:$0xff] %vm220, %v611
        %628 = vst.msk [vmem:[%s202 + $0x40] sm:$0xff] %vm220, %v612
        %629 = vst.msk [vmem:[%s202 + $0x48] sm:$0xff] %vm220, %v613
        %630 = vst.msk [vmem:[%s202 + $0x50] sm:$0xff] %vm220, %v614
        %631 = vst.msk [vmem:[%s202 + $0x58] sm:$0xff] %vm220, %v615
        %632 = vst.msk [vmem:[%s202 + $0x60] sm:$0xff] %vm220, %v616
        %633 = vst.msk [vmem:[%s202 + $0x68] sm:$0xff] %vm220, %v617
        %634 = vst.msk [vmem:[%s202 + $0x70] sm:$0xff] %vm220, %v618
        %635 = vst.msk [vmem:[%s202 + $0x78] sm:$0xff] %vm220, %v619
        %s636 = smul.u32 16, %s16
        %p637 = scmp.lt.s32.totalorder %s636, 31
        %s638 = scalar_select %p637, %s636, 31
        %s639 = smul.addr %s638, 8
        %s640 = scalar_lea.vmem %s3, %s639
        // Predicated region
        $region41: #{asl_forward.8} parent=31 // pred_check
          %p641 = pneg %p102
        $region42: #{asl_forward.8} parent=31 // pred_check_branch
          %643 = sbr.rel (%p641) target = $region44
        $region43: #{asl_forward.8} parent=31 // pred_region
          %s644 = smul.u32 16, %s16
        $region44: #{asl_forward.8} parent=31 // pred_fallthru
          _
      $region32: #{asl_forward.8} parent=5 // pred_fallthru
        _
      %p645 = scmp.le.s32.totalorder 2, %s11
      // Predicated region
      $region45: #{asl_forward.8} parent=5 // pred_check
        %p646 = pneg %p645
      $region46: #{asl_forward.8} parent=5 // pred_check_branch
        %648 = sbr.rel (%p646) target = $region48
      $region47: #{asl_forward.8} parent=5 // pred_region
        %s649 = ssub.s32 %s11, 2
        // Predicated region
        $region49: #{asl_forward.8} parent=47 // pred_check
          %p650 = pneg %p108
        $region50: #{asl_forward.8} parent=47 // pred_check_branch
          %652 = sbr.rel (%p650) target = $region52
        $region51: #{asl_forward.8} parent=47 // pred_region
          %s653 = smul.u32 16, %s17
          %p654 = scmp.lt.s32.totalorder %s653, 31
          %s655 = scalar_select %p654, %s653, 31
          %s656 = smul.addr %s655, 8
          %s657 = scalar_lea.vmem %s3, %s656
        $region52: #{asl_forward.8} parent=47 // pred_fallthru
          _
      $region48: #{asl_forward.8} parent=5 // pred_fallthru
        _
    $region6: #{asl_forward.8} parent=1 // loop_footer
      %s15 = sadd.s32 1, %s11
    $region7: #{asl_forward.8} parent=1 // loop_footer_branch
      %10 = sbr.rel target = $region3
    $region8: #{asl_forward.8} parent=1 // loop_exit
      _
    %658 = vsyncpa [#allocation3], 1
    %s659 = scalar_lea.sflag [#allocation3], 1
    %660 = vsyncpa %s659, 1
    %661 = vsyncpa [#allocation5], 1

// kernel: asl_forward.9
$region0: #{asl_forward.9}
  #allocation0 [shape = 'u32[]', space=smem, size = 0x4, offset = 0x4, fixed_abs, tag = 'smem constant byte address 0x4 - core index']
  #allocation1 [shape = 'u32[72,128]{1,0:T(1,128)}', space=vmem, size = 0x9000, scoped, tag = 'internal scratch']
  #allocation2 [shape = 'f32[128,32]{1,0:T(8,128)}', space=vmem, size = 0x10000, scoped, tag = 'scratch operand']
  %s0 = inlined_call_operand.vmem [shape: f32[512,8], index: 0, kind: input, shape index: {}]
  %s1 = inlined_call_operand.vmem [shape: f32[8,32], index: 1, kind: input, shape index: {}]
  %s2 = inlined_call_operand.vmem [shape: f32[1,32], index: 2, kind: input, shape index: {}]
  %s3 = inlined_call_operand.vmem [shape: f32[512,32], index: 3, kind: output, shape index: {}]
  %s4 = sld [smem:[#allocation0]]
  $region53: #{asl_forward.9} parent=0
    _
  %s6 = ssub.s32 1, %s4
  %s7 = scalar_select 0, %s6, %s4
  loop: start=0, step=1, limit=6
  $region2: #{asl_forward.9} parent=0 // loop_pre_header
    _
  $region3: #{asl_forward.9} parent=0 // loop_header
    %s9 = sphi 0, %s13
    %p10 = scmp.ge.s32.totalorder %s9, 6
    %s16 = sphi 0, %s35
    %s17 = sphi 0, %s31
    %s18 = sphi 0, %s27
    %s19 = sphi 0, %s16
    %s20 = sphi 0, %s17
    %s21 = sphi 0, %s18
    %s22 = sphi 0, %s19
    %s23 = sphi 0, %s20
    %s24 = sphi 0, %s21
    %s40 = sphi 0, %s42
    %s43 = sphi 0, %s40
    %s44 = sphi 0, %s43
    %s60 = sphi 0, %s44
    %s68 = sphi 0, %s70
    %s71 = sphi 0, %s68
    %s72 = sphi 0, %s71
    %s88 = sphi 0, %s72
    %s94 = sphi 0, %s96
    %s97 = sphi 0, %s94
    %s98 = sphi 0, %s97
    %s114 = sphi 0, %s98
    %s122 = sphi 0, %s124
    %s125 = sphi 0, %s122
    %s126 = sphi 0, %s125
    %s142 = sphi 0, %s126
  $region4: #{asl_forward.9} parent=0 // loop_header_branch
    %12 = sbr.rel (%p10) target = $region8
  $region5: #{asl_forward.9} parent=0 // loop_body
    %s14 = ssub.s32 %s9, 1
    %s15 = ssub.s32 %s9, 2
    %s25 = sadd.s32 1, %s18
    %p26 = scmp.ge.s32.totalorder %s25, 1
    %s27 = scalar_select %p26, 0, %s25
    %s28 = sadd.s32 1, %s17
    %s29 = scalar_select %p26, %s28, %s17
    %p30 = scmp.ge.s32.totalorder %s29, 1
    %s31 = scalar_select %p30, 0, %s29
    %s32 = sadd.s32 1, %s16
    %s33 = scalar_select %p30, %s32, %s16
    %p34 = scmp.ge.s32.totalorder %s33, 4
    %s35 = scalar_select %p34, 0, %s33
    %s36 = ssub.s32 %s16, %s35
    %s37 = ssub.s32 %s18, %s27
    %s38 = sor.u32 %s36, %s37
    %p39 = scmp.eq.s32.totalorder %s38, 0
    %s41 = sadd.s32 %s40, 1
    %s42 = scalar_select %p39, %s40, %s41
    %p45 = pneg %p39
    %p46 = scmp.eq.s32.totalorder %s9, 3
    %p47 = por %p45, %p46
    %p48 = scmp.ne.s32.totalorder %s40, %s43
    %p49 = scmp.eq.s32.totalorder %s9, 0
    %p50 = por %p48, %p49
    %p51 = scmp.ne.s32.totalorder %s40, %s43
    %p52 = scmp.eq.s32.totalorder %s14, 3
    %p53 = por %p51, %p52
    %p54 = scmp.ne.s32.totalorder %s43, %s44
    %p55 = scmp.eq.s32.totalorder %s14, 0
    %p56 = por %p54, %p55
    %p57 = scmp.ne.s32.totalorder %s43, %s44
    %p58 = scmp.eq.s32.totalorder %s15, 3
    %p59 = por %p57, %p58
    %p61 = scmp.ne.s32.totalorder %s44, %s60
    %p62 = scmp.eq.s32.totalorder %s15, 0
    %p63 = por %p61, %p62
    %s64 = ssub.s32 %s18, %s27
    %s65 = ssub.s32 %s17, %s31
    %s66 = sor.u32 %s64, %s65
    %p67 = scmp.eq.s32.totalorder %s66, 0
    %s69 = sadd.s32 %s68, 1
    %s70 = scalar_select %p67, %s68, %s69
    %p73 = pneg %p67
    %p74 = scmp.eq.s32.totalorder %s9, 3
    %p75 = por %p73, %p74
    %p76 = scmp.ne.s32.totalorder %s68, %s71
    %p77 = scmp.eq.s32.totalorder %s9, 0
    %p78 = por %p76, %p77
    %p79 = scmp.ne.s32.totalorder %s68, %s71
    %p80 = scmp.eq.s32.totalorder %s14, 3
    %p81 = por %p79, %p80
    %p82 = scmp.ne.s32.totalorder %s71, %s72
    %p83 = scmp.eq.s32.totalorder %s14, 0
    %p84 = por %p82, %p83
    %p85 = scmp.ne.s32.totalorder %s71, %s72
    %p86 = scmp.eq.s32.totalorder %s15, 3
    %p87 = por %p85, %p86
    %p89 = scmp.ne.s32.totalorder %s72, %s88
    %p90 = scmp.eq.s32.totalorder %s15, 0
    %p91 = por %p89, %p90
    %s92 = ssub.s32 %s17, %s31
    %p93 = scmp.eq.s32.totalorder %s92, 0
    %s95 = sadd.s32 %s94, 1
    %s96 = scalar_select %p93, %s94, %s95
    %p99 = pneg %p93
    %p100 = scmp.eq.s32.totalorder %s9, 3
    %p101 = por %p99, %p100
    %p102 = scmp.ne.s32.totalorder %s94, %s97
    %p103 = scmp.eq.s32.totalorder %s9, 0
    %p104 = por %p102, %p103
    %p105 = scmp.ne.s32.totalorder %s94, %s97
    %p106 = scmp.eq.s32.totalorder %s14, 3
    %p107 = por %p105, %p106
    %p108 = scmp.ne.s32.totalorder %s97, %s98
    %p109 = scmp.eq.s32.totalorder %s14, 0
    %p110 = por %p108, %p109
    %p111 = scmp.ne.s32.totalorder %s97, %s98
    %p112 = scmp.eq.s32.totalorder %s15, 3
    %p113 = por %p111, %p112
    %p115 = scmp.ne.s32.totalorder %s98, %s114
    %p116 = scmp.eq.s32.totalorder %s15, 0
    %p117 = por %p115, %p116
    %s118 = ssub.s32 %s16, %s35
    %s119 = ssub.s32 %s17, %s31
    %s120 = sor.u32 %s118, %s119
    %p121 = scmp.eq.s32.totalorder %s120, 0
    %s123 = sadd.s32 %s122, 1
    %s124 = scalar_select %p121, %s122, %s123
    %p127 = pneg %p121
    %p128 = scmp.eq.s32.totalorder %s9, 3
    %p129 = por %p127, %p128
    %p130 = scmp.ne.s32.totalorder %s122, %s125
    %p131 = scmp.eq.s32.totalorder %s9, 0
    %p132 = por %p130, %p131
    %p133 = scmp.ne.s32.totalorder %s122, %s125
    %p134 = scmp.eq.s32.totalorder %s14, 3
    %p135 = por %p133, %p134
    %p136 = scmp.ne.s32.totalorder %s125, %s126
    %p137 = scmp.eq.s32.totalorder %s14, 0
    %p138 = por %p136, %p137
    %p139 = scmp.ne.s32.totalorder %s125, %s126
    %p140 = scmp.eq.s32.totalorder %s15, 3
    %p141 = por %p139, %p140
    %p143 = scmp.ne.s32.totalorder %s126, %s142
    %p144 = scmp.eq.s32.totalorder %s15, 0
    %p145 = por %p143, %p144
    %p146 = scmp.le.s32.totalorder 1, %s9
    %p147 = scmp.lt.s32.totalorder %s9, 5
    %p148 = pnand %p146, %p147
    %p149 = pneg %p148
    // Predicated region
    $region9: #{asl_forward.9} parent=5 // pred_check
      _
    $region10: #{asl_forward.9} parent=5 // pred_check_branch
      %151 = sbr.rel (%p148) target = $region12
    $region11: #{asl_forward.9} parent=5 // pred_region
      %s152 = ssub.s32 %s9, 1
      // Predicated region
      $region13: #{asl_forward.9} parent=11 // pred_check
        %p153 = pneg %p84
      $region14: #{asl_forward.9} parent=11 // pred_check_branch
        %155 = sbr.rel (%p153) target = $region16
      $region15: #{asl_forward.9} parent=11 // pred_region
        %p156 = scmp.lt.s32.totalorder %s21, 0
        %s157 = scalar_select %p156, %s21, 0
        %p158 = scmp.lt.s32.totalorder %s20, 0
        %s159 = scalar_select %p158, %s20, 0
        %s160 = sadd.s32 %s159, %s157
        %s161 = smul.addr %s160, 8
        %s162 = scalar_lea.vmem %s1, %s161
      $region16: #{asl_forward.9} parent=11 // pred_fallthru
        _
      // Predicated region
      $region17: #{asl_forward.9} parent=11 // pred_check
        %p163 = pneg %p110
      $region18: #{asl_forward.9} parent=11 // pred_check_branch
        %165 = sbr.rel (%p163) target = $region20
      $region19: #{asl_forward.9} parent=11 // pred_region
        %p166 = scmp.lt.s32.totalorder %s20, 0
        %s167 = scalar_select %p166, %s20, 0
        %s168 = scalar_lea.vmem %s2, %s167
      $region20: #{asl_forward.9} parent=11 // pred_fallthru
        _
    $region12: #{asl_forward.9} parent=5 // pred_fallthru
      _
    %p169 = scmp.lt.s32.totalorder %s9, 4
    // Predicated region
    $region21: #{asl_forward.9} parent=5 // pred_check
      %p170 = pneg %p169
    $region22: #{asl_forward.9} parent=5 // pred_check_branch
      %172 = sbr.rel (%p170) target = $region24
    $region23: #{asl_forward.9} parent=5 // pred_region
      // Predicated region
      $region25: #{asl_forward.9} parent=23 // pred_check
        %p173 = pneg %p50
      $region26: #{asl_forward.9} parent=23 // pred_check_branch
        %175 = sbr.rel (%p173) target = $region28
      $region27: #{asl_forward.9} parent=23 // pred_region
        %s176 = smul.u32 16, %s16
        %p177 = scmp.lt.s32.totalorder %s176, 63
        %s178 = scalar_select %p177, %s176, 63
        %p179 = scmp.lt.s32.totalorder %s18, 0
        %s180 = scalar_select %p179, %s18, 0
        %s181 = sadd.s32 %s180, %s178
        %s182 = smul.addr %s181, 8
        %s183 = scalar_lea.vmem %s0, %s182
        %s184 = smul.u32 16, %s16
      $region28: #{asl_forward.9} parent=23 // pred_fallthru
        _
    $region24: #{asl_forward.9} parent=5 // pred_fallthru
      _
    %p185 = scmp.le.s32.totalorder 1, %s9
    %p186 = scmp.lt.s32.totalorder %s9, 5
    %p187 = pnand %p185, %p186
    %p188 = pneg %p187
    // Predicated region
    $region29: #{asl_forward.9} parent=5 // pred_check
      _
    $region30: #{asl_forward.9} parent=5 // pred_check_branch
      %190 = sbr.rel (%p187) target = $region32
    $region31: #{asl_forward.9} parent=5 // pred_region
      %s191 = ssub.s32 %s9, 1
      %s192 = smul.u32 16, %s19
      %p193 = scmp.lt.s32.totalorder %s192, 63
      %s194 = scalar_select %p193, %s192, 63
      %p195 = scmp.lt.s32.totalorder %s21, 0
      %s196 = scalar_select %p195, %s21, 0
      %s197 = sadd.s32 %s196, %s194
      %s198 = smul.addr %s197, 8
      %s199 = scalar_lea.vmem %s0, %s198
      %p200 = pneg %p56
      %p201 = pneg %p53
      %p202 = scmp.lt.s32.totalorder %s21, 0
      %s203 = scalar_select %p202, %s21, 0
      %p204 = scmp.lt.s32.totalorder %s20, 0
      %s205 = scalar_select %p204, %s20, 0
      %s206 = sadd.s32 %s205, %s203
      %s207 = smul.addr %s206, 8
      %s208 = scalar_lea.vmem %s1, %s207
      %p209 = pneg %p84
      %p210 = pneg %p81
      %p211 = scmp.lt.s32.totalorder %s20, 0
      %s212 = scalar_select %p211, %s20, 0
      %s213 = scalar_lea.vmem %s2, %s212
      %p214 = pneg %p110
      %p215 = pneg %p107
      %p216 = pneg %p138
      %p217 = pneg %p135
      %s218 = smul.u32 16, %s19
      %p219 = scmp.lt.s32.totalorder %s218, 63
      %s220 = scalar_select %p219, %s218, 63
      %p221 = scmp.lt.s32.totalorder %s20, 0
      %s222 = scalar_select %p221, %s20, 0
      %s223 = sadd.s32 %s222, %s220
      %s224 = smul.addr %s223, 8
      %s225 = scalar_lea.vmem %s3, %s224
      %s226 = smul.u32 16, %s19
      %p227 = scmp.lt.s32.totalorder %s226, 63
      %s228 = scalar_select %p227, %s226, 63
      %p229 = scmp.lt.s32.totalorder %s21, 0
      %s230 = scalar_select %p229, %s21, 0
      %s231 = sadd.s32 %s230, %s228
      %s232 = smul.addr %s231, 8
      %s233 = scalar_lea.vmem %s0, %s232
      %s234 = smul.u32 16, %s19
      %p235 = scmp.lt.s32.totalorder %s21, 0
      %s236 = scalar_select %p235, %s21, 0
      %p237 = scmp.lt.s32.totalorder %s20, 0
      %s238 = scalar_select %p237, %s20, 0
      %s239 = sadd.s32 %s238, %s236
      %s240 = smul.addr %s239, 8
      %s241 = scalar_lea.vmem %s1, %s240
      %p242 = scmp.lt.s32.totalorder %s20, 0
      %s243 = scalar_select %p242, %s20, 0
      %s244 = scalar_lea.vmem %s2, %s243
      %s245 = smul.u32 16, %s19
      %p246 = scmp.lt.s32.totalorder %s245, 63
      %s247 = scalar_select %p246, %s245, 63
      %p248 = scmp.lt.s32.totalorder %s20, 0
      %s249 = scalar_select %p248, %s20, 0
      %s250 = sadd.s32 %s249, %s247
      %s251 = smul.addr %s250, 8
      %s252 = scalar_lea.vmem %s3, %s251
      %s253 = smul.u32 16, %s19
      %p255 = scmp.eq.s32.totalorder %s21, 0
      // Predicated region
      $region33: #{asl_forward.9} parent=31 // pred_check
        %p256 = pneg %p255
      $region34: #{asl_forward.9} parent=31 // pred_check_branch
        %258 = sbr.rel (%p256) target = $region36
      $region35: #{asl_forward.9} parent=31 // pred_region
        %vm259 = vcmask 261120
        %260 = vst.msk [vmem:[#allocation2] sm:$0xff] %vm259, 0.0
        %261 = vst.msk [vmem:[#allocation2 + $0x8] sm:$0xff] %vm259, 0.0
        %262 = vst.msk [vmem:[#allocation2 + $0x10] sm:$0xff] %vm259, 0.0
        %263 = vst.msk [vmem:[#allocation2 + $0x18] sm:$0xff] %vm259, 0.0
        %264 = vst.msk [vmem:[#allocation2 + $0x20] sm:$0xff] %vm259, 0.0
        %265 = vst.msk [vmem:[#allocation2 + $0x28] sm:$0xff] %vm259, 0.0
        %266 = vst.msk [vmem:[#allocation2 + $0x30] sm:$0xff] %vm259, 0.0
        %267 = vst.msk [vmem:[#allocation2 + $0x38] sm:$0xff] %vm259, 0.0
        %268 = vst.msk [vmem:[#allocation2 + $0x40] sm:$0xff] %vm259, 0.0
        %269 = vst.msk [vmem:[#allocation2 + $0x48] sm:$0xff] %vm259, 0.0
        %270 = vst.msk [vmem:[#allocation2 + $0x50] sm:$0xff] %vm259, 0.0
        %271 = vst.msk [vmem:[#allocation2 + $0x58] sm:$0xff] %vm259, 0.0
        %272 = vst.msk [vmem:[#allocation2 + $0x60] sm:$0xff] %vm259, 0.0
        %273 = vst.msk [vmem:[#allocation2 + $0x68] sm:$0xff] %vm259, 0.0
        %274 = vst.msk [vmem:[#allocation2 + $0x70] sm:$0xff] %vm259, 0.0
        %275 = vst.msk [vmem:[#allocation2 + $0x78] sm:$0xff] %vm259, 0.0
      $region36: #{asl_forward.9} parent=31 // pred_fallthru
        _
      %v276 = vld [vmem:[#allocation2] sm:$0xff]
      %v277 = vld [vmem:[#allocation2 + $0x8] sm:$0xff]
      %v278 = vld [vmem:[#allocation2 + $0x10] sm:$0xff]
      %v279 = vld [vmem:[#allocation2 + $0x18] sm:$0xff]
      %v280 = vld [vmem:[#allocation2 + $0x20] sm:$0xff]
      %v281 = vld [vmem:[#allocation2 + $0x28] sm:$0xff]
      %v282 = vld [vmem:[#allocation2 + $0x30] sm:$0xff]
      %v283 = vld [vmem:[#allocation2 + $0x38] sm:$0xff]
      %v284 = vld [vmem:[#allocation2 + $0x40] sm:$0xff]
      %v285 = vld [vmem:[#allocation2 + $0x48] sm:$0xff]
      %v286 = vld [vmem:[#allocation2 + $0x50] sm:$0xff]
      %v287 = vld [vmem:[#allocation2 + $0x58] sm:$0xff]
      %v288 = vld [vmem:[#allocation2 + $0x60] sm:$0xff]
      %v289 = vld [vmem:[#allocation2 + $0x68] sm:$0xff]
      %v290 = vld [vmem:[#allocation2 + $0x70] sm:$0xff]
      %v291 = vld [vmem:[#allocation2 + $0x78] sm:$0xff]
      %v292 = vld [vmem:[%s233] sm:$0xff]
      %v293 = vld [vmem:[%s233 + $0x8] sm:$0xff]
      %v294 = vld [vmem:[%s233 + $0x10] sm:$0xff]
      %v295 = vld [vmem:[%s233 + $0x18] sm:$0xff]
      %v296 = vld [vmem:[%s233 + $0x20] sm:$0xff]
      %v297 = vld [vmem:[%s233 + $0x28] sm:$0xff]
      %v298 = vld [vmem:[%s233 + $0x30] sm:$0xff]
      %v299 = vld [vmem:[%s233 + $0x38] sm:$0xff]
      %v300 = vld [vmem:[%s233 + $0x40] sm:$0xff]
      %v301 = vld [vmem:[%s233 + $0x48] sm:$0xff]
      %v302 = vld [vmem:[%s233 + $0x50] sm:$0xff]
      %v303 = vld [vmem:[%s233 + $0x58] sm:$0xff]
      %v304 = vld [vmem:[%s233 + $0x60] sm:$0xff]
      %v305 = vld [vmem:[%s233 + $0x68] sm:$0xff]
      %v306 = vld [vmem:[%s233 + $0x70] sm:$0xff]
      %v307 = vld [vmem:[%s233 + $0x78] sm:$0xff]
      %v308 = vpack.c.bf16 %v293, %v292
      %v309 = vpack.c.bf16 %v295, %v294
      %v310 = vpack.c.bf16 %v297, %v296
      %v311 = vpack.c.bf16 %v299, %v298
      %v312 = vpack.c.bf16 %v301, %v300
      %v313 = vpack.c.bf16 %v303, %v302
      %v314 = vpack.c.bf16 %v305, %v304
      %v315 = vpack.c.bf16 %v307, %v306
      %v316 = vld [vmem:[%s241] sm:$0xff]
      %v317 = vpack.c.bf16 %v316, %v316
      %vm318 = vcmask 64512
      %v320 = vsel %vm318, %v308, 0
      %v323 = vsel %vm318, %v309, 0
      %v326 = vsel %vm318, %v310, 0
      %v329 = vsel %vm318, %v311, 0
      %v332 = vsel %vm318, %v312, 0
      %v335 = vsel %vm318, %v313, 0
      %v338 = vsel %vm318, %v314, 0
      %v341 = vsel %vm318, %v315, 0
      %vm343 = vcmask 1043456
      %v345 = vsel %vm343, %v317, 0
      %347 = vmatpush.bf16.msra.mxu0 0
      %348 = vmatpush.bf16.msra.mxu0 0
      %349 = vmatpush.bf16.msra.mxu0 0
      %350 = vmatpush.bf16.msra.mxu0 0
      %351 = vmatpush.bf16.msra.mxu0 0
      %352 = vmatpush.bf16.msra.mxu0 0
      %353 = vmatpush.bf16.msra.mxu0 0
      %354 = vmatpush.bf16.msra.mxu0 %v345
      %355 = vmatmul.bf16.gmra.mxu0 %v320
      %v356 = vpop.f32.mrf.mxu0
      %v357 = vadd.f32 0.0, %v356
      %v358 = vpop.f32.mrf.mxu0
      %v359 = vadd.f32 0.0, %v358
      %360 = vmatmul.bf16.gmra.mxu0 %v323
      %v361 = vpop.f32.mrf.mxu0
      %v362 = vadd.f32 0.0, %v361
      %v363 = vpop.f32.mrf.mxu0
      %v364 = vadd.f32 0.0, %v363
      %365 = vmatmul.bf16.gmra.mxu0 %v326
      %v366 = vpop.f32.mrf.mxu0
      %v367 = vadd.f32 0.0, %v366
      %v368 = vpop.f32.mrf.mxu0
      %v369 = vadd.f32 0.0, %v368
      %370 = vmatmul.bf16.gmra.mxu0 %v329
      %v371 = vpop.f32.mrf.mxu0
      %v372 = vadd.f32 0.0, %v371
      %v373 = vpop.f32.mrf.mxu0
      %v374 = vadd.f32 0.0, %v373
      %375 = vmatmul.bf16.gmra.mxu0 %v332
      %v376 = vpop.f32.mrf.mxu0
      %v377 = vadd.f32 0.0, %v376
      %v378 = vpop.f32.mrf.mxu0
      %v379 = vadd.f32 0.0, %v378
      %380 = vmatmul.bf16.gmra.mxu0 %v335
      %v381 = vpop.f32.mrf.mxu0
      %v382 = vadd.f32 0.0, %v381
      %v383 = vpop.f32.mrf.mxu0
      %v384 = vadd.f32 0.0, %v383
      %385 = vmatmul.bf16.gmra.mxu0 %v338
      %v386 = vpop.f32.mrf.mxu0
      %v387 = vadd.f32 0.0, %v386
      %v388 = vpop.f32.mrf.mxu0
      %v389 = vadd.f32 0.0, %v388
      %390 = vmatmul.bf16.gmra.mxu0 %v341
      %v391 = vpop.f32.mrf.mxu0
      %v392 = vadd.f32 0.0, %v391
      %v393 = vpop.f32.mrf.mxu0
      %v394 = vadd.f32 0.0, %v393
      %395 = vdwg.mxu0
      %v396 = vadd.f32 %v276, %v357
      %v397 = vadd.f32 %v277, %v359
      %v398 = vadd.f32 %v278, %v362
      %v399 = vadd.f32 %v279, %v364
      %v400 = vadd.f32 %v280, %v367
      %v401 = vadd.f32 %v281, %v369
      %v402 = vadd.f32 %v282, %v372
      %v403 = vadd.f32 %v283, %v374
      %v404 = vadd.f32 %v284, %v377
      %v405 = vadd.f32 %v285, %v379
      %v406 = vadd.f32 %v286, %v382
      %v407 = vadd.f32 %v287, %v384
      %v408 = vadd.f32 %v288, %v387
      %v409 = vadd.f32 %v289, %v389
      %v410 = vadd.f32 %v290, %v392
      %v411 = vadd.f32 %v291, %v394
      %vm412 = vcmask 261120
      %413 = vst.msk [vmem:[#allocation2] sm:$0xff] %vm412, %v396
      %414 = vst.msk [vmem:[#allocation2 + $0x8] sm:$0xff] %vm412, %v397
      %415 = vst.msk [vmem:[#allocation2 + $0x10] sm:$0xff] %vm412, %v398
      %416 = vst.msk [vmem:[#allocation2 + $0x18] sm:$0xff] %vm412, %v399
      %417 = vst.msk [vmem:[#allocation2 + $0x20] sm:$0xff] %vm412, %v400
      %418 = vst.msk [vmem:[#allocation2 + $0x28] sm:$0xff] %vm412, %v401
      %419 = vst.msk [vmem:[#allocation2 + $0x30] sm:$0xff] %vm412, %v402
      %420 = vst.msk [vmem:[#allocation2 + $0x38] sm:$0xff] %vm412, %v403
      %421 = vst.msk [vmem:[#allocation2 + $0x40] sm:$0xff] %vm412, %v404
      %422 = vst.msk [vmem:[#allocation2 + $0x48] sm:$0xff] %vm412, %v405
      %423 = vst.msk [vmem:[#allocation2 + $0x50] sm:$0xff] %vm412, %v406
      %424 = vst.msk [vmem:[#allocation2 + $0x58] sm:$0xff] %vm412, %v407
      %425 = vst.msk [vmem:[#allocation2 + $0x60] sm:$0xff] %vm412, %v408
      %426 = vst.msk [vmem:[#allocation2 + $0x68] sm:$0xff] %vm412, %v409
      %427 = vst.msk [vmem:[#allocation2 + $0x70] sm:$0xff] %vm412, %v410
      %428 = vst.msk [vmem:[#allocation2 + $0x78] sm:$0xff] %vm412, %v411
      // Predicated region
      $region37: #{asl_forward.9} parent=31 // pred_check
        %p429 = pneg %p255
      $region38: #{asl_forward.9} parent=31 // pred_check_branch
        %431 = sbr.rel (%p429) target = $region40
      $region39: #{asl_forward.9} parent=31 // pred_region
        %v432 = vld [vmem:[#allocation2] sm:$0xff]
        %v433 = vld [vmem:[#allocation2 + $0x8] sm:$0xff]
        %v434 = vld [vmem:[#allocation2 + $0x10] sm:$0xff]
        %v435 = vld [vmem:[#allocation2 + $0x18] sm:$0xff]
        %v436 = vld [vmem:[#allocation2 + $0x20] sm:$0xff]
        %v437 = vld [vmem:[#allocation2 + $0x28] sm:$0xff]
        %v438 = vld [vmem:[#allocation2 + $0x30] sm:$0xff]
        %v439 = vld [vmem:[#allocation2 + $0x38] sm:$0xff]
        %v440 = vld [vmem:[#allocation2 + $0x40] sm:$0xff]
        %v441 = vld [vmem:[#allocation2 + $0x48] sm:$0xff]
        %v442 = vld [vmem:[#allocation2 + $0x50] sm:$0xff]
        %v443 = vld [vmem:[#allocation2 + $0x58] sm:$0xff]
        %v444 = vld [vmem:[#allocation2 + $0x60] sm:$0xff]
        %v445 = vld [vmem:[#allocation2 + $0x68] sm:$0xff]
        %v446 = vld [vmem:[#allocation2 + $0x70] sm:$0xff]
        %v447 = vld [vmem:[#allocation2 + $0x78] sm:$0xff]
        %v448 = vld [vmem:[%s244] sm:$0x1]
        %v450 = vperm.slane %v448, 0
        %v452 = vadd.f32 %v432, %v450
        %v453 = vadd.f32 %v433, %v450
        %v454 = vadd.f32 %v434, %v450
        %v455 = vadd.f32 %v435, %v450
        %v456 = vadd.f32 %v436, %v450
        %v457 = vadd.f32 %v437, %v450
        %v458 = vadd.f32 %v438, %v450
        %v459 = vadd.f32 %v439, %v450
        %v460 = vadd.f32 %v440, %v450
        %v461 = vadd.f32 %v441, %v450
        %v462 = vadd.f32 %v442, %v450
        %v463 = vadd.f32 %v443, %v450
        %v464 = vadd.f32 %v444, %v450
        %v465 = vadd.f32 %v445, %v450
        %v466 = vadd.f32 %v446, %v450
        %v467 = vadd.f32 %v447, %v450
        %468 = vst.msk [vmem:[%s252] sm:$0xff] %vm412, %v452
        %469 = vst.msk [vmem:[%s252 + $0x8] sm:$0xff] %vm412, %v453
        %470 = vst.msk [vmem:[%s252 + $0x10] sm:$0xff] %vm412, %v454
        %471 = vst.msk [vmem:[%s252 + $0x18] sm:$0xff] %vm412, %v455
        %472 = vst.msk [vmem:[%s252 + $0x20] sm:$0xff] %vm412, %v456
        %473 = vst.msk [vmem:[%s252 + $0x28] sm:$0xff] %vm412, %v457
        %474 = vst.msk [vmem:[%s252 + $0x30] sm:$0xff] %vm412, %v458
        %475 = vst.msk [vmem:[%s252 + $0x38] sm:$0xff] %vm412, %v459
        %476 = vst.msk [vmem:[%s252 + $0x40] sm:$0xff] %vm412, %v460
        %477 = vst.msk [vmem:[%s252 + $0x48] sm:$0xff] %vm412, %v461
        %478 = vst.msk [vmem:[%s252 + $0x50] sm:$0xff] %vm412, %v462
        %479 = vst.msk [vmem:[%s252 + $0x58] sm:$0xff] %vm412, %v463
        %480 = vst.msk [vmem:[%s252 + $0x60] sm:$0xff] %vm412, %v464
        %481 = vst.msk [vmem:[%s252 + $0x68] sm:$0xff] %vm412, %v465
        %482 = vst.msk [vmem:[%s252 + $0x70] sm:$0xff] %vm412, %v466
        %483 = vst.msk [vmem:[%s252 + $0x78] sm:$0xff] %vm412, %v467
      $region40: #{asl_forward.9} parent=31 // pred_fallthru
        _
      %s484 = smul.u32 16, %s19
      %p485 = scmp.lt.s32.totalorder %s484, 63
      %s486 = scalar_select %p485, %s484, 63
      %p487 = scmp.lt.s32.totalorder %s20, 0
      %s488 = scalar_select %p487, %s20, 0
      %s489 = sadd.s32 %s488, %s486
      %s490 = smul.addr %s489, 8
      %s491 = scalar_lea.vmem %s3, %s490
      // Predicated region
      $region41: #{asl_forward.9} parent=31 // pred_check
        %p492 = pneg %p135
      $region42: #{asl_forward.9} parent=31 // pred_check_branch
        %494 = sbr.rel (%p492) target = $region44
      $region43: #{asl_forward.9} parent=31 // pred_region
        %s495 = smul.u32 16, %s19
      $region44: #{asl_forward.9} parent=31 // pred_fallthru
        _
    $region32: #{asl_forward.9} parent=5 // pred_fallthru
      _
    %p496 = scmp.le.s32.totalorder 2, %s9
    // Predicated region
    $region45: #{asl_forward.9} parent=5 // pred_check
      %p497 = pneg %p496
    $region46: #{asl_forward.9} parent=5 // pred_check_branch
      %499 = sbr.rel (%p497) target = $region48
    $region47: #{asl_forward.9} parent=5 // pred_region
      %s500 = ssub.s32 %s9, 2
      // Predicated region
      $region49: #{asl_forward.9} parent=47 // pred_check
        %p501 = pneg %p141
      $region50: #{asl_forward.9} parent=47 // pred_check_branch
        %503 = sbr.rel (%p501) target = $region52
      $region51: #{asl_forward.9} parent=47 // pred_region
        %s504 = smul.u32 16, %s22
        %p505 = scmp.lt.s32.totalorder %s504, 63
        %s506 = scalar_select %p505, %s504, 63
        %p507 = scmp.lt.s32.totalorder %s23, 0
        %s508 = scalar_select %p507, %s23, 0
        %s509 = sadd.s32 %s508, %s506
        %s510 = smul.addr %s509, 8
        %s511 = scalar_lea.vmem %s3, %s510
      $region52: #{asl_forward.9} parent=47 // pred_fallthru
        _
    $region48: #{asl_forward.9} parent=5 // pred_fallthru
      _
  $region6: #{asl_forward.9} parent=0 // loop_footer
    %s13 = sadd.s32 1, %s9
  $region7: #{asl_forward.9} parent=0 // loop_footer_branch
    %8 = sbr.rel target = $region3
  $region8: #{asl_forward.9} parent=0 // loop_exit
    _

// kernel: asl_forward.10
$region0: #{asl_forward.10}
  #allocation0 [shape = 'u32[]', space=smem, size = 0x4, offset = 0x4, fixed_abs, tag = 'smem constant byte address 0x4 - core index']
  #allocation1 [shape = 'u32[72,128]{1,0:T(1,128)}', space=vmem, size = 0x9000, scoped, tag = 'internal scratch']
  %s0 = inlined_call_operand.vmem [shape: f32[67,128], index: 0, kind: input, shape index: {}]
  %s1 = inlined_call_operand.vmem [shape: f32[4,128], index: 1, kind: input, shape index: {}]
  %s2 = inlined_call_operand.vmem [shape: f32[1,128], index: 2, kind: input, shape index: {}]
  %s3 = inlined_call_operand.vmem [shape: f32[64,128], index: 3, kind: output, shape index: {}]
  %s4 = sld [smem:[#allocation0]]
  $region22: #{asl_forward.10} parent=0
    _
  %s6 = ssub.s32 1, %s4
  %s7 = scalar_select 0, %s6, %s4
  // Predicated region
  $region2: #{asl_forward.10} parent=0 // pred_check
    _
  $region3: #{asl_forward.10} parent=0 // pred_check_branch
    %9 = sbr.rel (0) target = $region5
  $region4: #{asl_forward.10} parent=0 // pred_region
    _
  $region5: #{asl_forward.10} parent=0 // pred_fallthru
    _
  // Predicated region
  $region6: #{asl_forward.10} parent=0 // pred_check
    _
  $region7: #{asl_forward.10} parent=0 // pred_check_branch
    %11 = sbr.rel (0) target = $region9
  $region8: #{asl_forward.10} parent=0 // pred_region
    _
  $region9: #{asl_forward.10} parent=0 // pred_fallthru
    _
  // Predicated region
  $region10: #{asl_forward.10} parent=0 // pred_check
    _
  $region11: #{asl_forward.10} parent=0 // pred_check_branch
    %13 = sbr.rel (0) target = $region13
  $region12: #{asl_forward.10} parent=0 // pred_region
    _
  $region13: #{asl_forward.10} parent=0 // pred_fallthru
    _
  %v14 = vld [vmem:[%s2] sm:$0x1]
  %v16 = vperm.slane %v14, 0
  %v18 = vadd.f32 %v16, 0.0
  %v19 = vld [vmem:[%s0] sm:$0xff]
  %v20 = vld [vmem:[%s0 + $0x8] sm:$0xff]
  %v21 = vld [vmem:[%s0 + $0x10] sm:$0xff]
  %v22 = vld [vmem:[%s0 + $0x18] sm:$0xff]
  %v23 = vld [vmem:[%s0 + $0x20] sm:$0xff]
  %v24 = vld [vmem:[%s0 + $0x28] sm:$0xff]
  %v25 = vld [vmem:[%s0 + $0x30] sm:$0xff]
  %v26 = vld [vmem:[%s0 + $0x38] sm:$0xff]
  %v27 = vld [vmem:[%s1] sm:$0x1]
  %v28 = vperm.slane %v27, 0
  %v29 = vmul.f32 %v19, %v28
  %v30 = vmul.f32 %v20, %v28
  %v31 = vmul.f32 %v21, %v28
  %v32 = vmul.f32 %v22, %v28
  %v33 = vmul.f32 %v23, %v28
  %v34 = vmul.f32 %v24, %v28
  %v35 = vmul.f32 %v25, %v28
  %v36 = vmul.f32 %v26, %v28
  %v37 = vadd.f32 %v18, %v29
  %v38 = vadd.f32 %v18, %v30
  %v39 = vadd.f32 %v18, %v31
  %v40 = vadd.f32 %v18, %v32
  %v41 = vadd.f32 %v18, %v33
  %v42 = vadd.f32 %v18, %v34
  %v43 = vadd.f32 %v18, %v35
  %v44 = vadd.f32 %v18, %v36
  %v45 = vld [vmem:[%s0 + $0x1] sm:$0xff]
  %v46 = vld [vmem:[%s0 + $0x9] sm:$0xff]
  %v47 = vld [vmem:[%s0 + $0x11] sm:$0xff]
  %v48 = vld [vmem:[%s0 + $0x19] sm:$0xff]
  %v49 = vld [vmem:[%s0 + $0x21] sm:$0xff]
  %v50 = vld [vmem:[%s0 + $0x29] sm:$0xff]
  %v51 = vld [vmem:[%s0 + $0x31] sm:$0xff]
  %v52 = vld [vmem:[%s0 + $0x39] sm:$0xff]
  %v53 = vld [vmem:[%s1 + $0x1] sm:$0x1]
  %v54 = vperm.slane %v53, 0
  %v55 = vmul.f32 %v45, %v54
  %v56 = vmul.f32 %v46, %v54
  %v57 = vmul.f32 %v47, %v54
  %v58 = vmul.f32 %v48, %v54
  %v59 = vmul.f32 %v49, %v54
  %v60 = vmul.f32 %v50, %v54
  %v61 = vmul.f32 %v51, %v54
  %v62 = vmul.f32 %v52, %v54
  %v63 = vadd.f32 %v37, %v55
  %v64 = vadd.f32 %v38, %v56
  %v65 = vadd.f32 %v39, %v57
  %v66 = vadd.f32 %v40, %v58
  %v67 = vadd.f32 %v41, %v59
  %v68 = vadd.f32 %v42, %v60
  %v69 = vadd.f32 %v43, %v61
  %v70 = vadd.f32 %v44, %v62
  %v71 = vld [vmem:[%s0 + $0x2] sm:$0xff]
  %v72 = vld [vmem:[%s0 + $0xa] sm:$0xff]
  %v73 = vld [vmem:[%s0 + $0x12] sm:$0xff]
  %v74 = vld [vmem:[%s0 + $0x1a] sm:$0xff]
  %v75 = vld [vmem:[%s0 + $0x22] sm:$0xff]
  %v76 = vld [vmem:[%s0 + $0x2a] sm:$0xff]
  %v77 = vld [vmem:[%s0 + $0x32] sm:$0xff]
  %v78 = vld [vmem:[%s0 + $0x3a] sm:$0xff]
  %v79 = vld [vmem:[%s1 + $0x2] sm:$0x1]
  %v80 = vperm.slane %v79, 0
  %v81 = vmul.f32 %v71, %v80
  %v82 = vmul.f32 %v72, %v80
  %v83 = vmul.f32 %v73, %v80
  %v84 = vmul.f32 %v74, %v80
  %v85 = vmul.f32 %v75, %v80
  %v86 = vmul.f32 %v76, %v80
  %v87 = vmul.f32 %v77, %v80
  %v88 = vmul.f32 %v78, %v80
  %v89 = vadd.f32 %v63, %v81
  %v90 = vadd.f32 %v64, %v82
  %v91 = vadd.f32 %v65, %v83
  %v92 = vadd.f32 %v66, %v84
  %v93 = vadd.f32 %v67, %v85
  %v94 = vadd.f32 %v68, %v86
  %v95 = vadd.f32 %v69, %v87
  %v96 = vadd.f32 %v70, %v88
  %v97 = vld [vmem:[%s0 + $0x3] sm:$0xff]
  %v98 = vld [vmem:[%s0 + $0xb] sm:$0xff]
  %v99 = vld [vmem:[%s0 + $0x13] sm:$0xff]
  %v100 = vld [vmem:[%s0 + $0x1b] sm:$0xff]
  %v101 = vld [vmem:[%s0 + $0x23] sm:$0xff]
  %v102 = vld [vmem:[%s0 + $0x2b] sm:$0xff]
  %v103 = vld [vmem:[%s0 + $0x33] sm:$0xff]
  %v104 = vld [vmem:[%s0 + $0x3b] sm:$0xff]
  %v105 = vld [vmem:[%s1 + $0x3] sm:$0x1]
  %v106 = vperm.slane %v105, 0
  %v107 = vmul.f32 %v97, %v106
  %v108 = vmul.f32 %v98, %v106
  %v109 = vmul.f32 %v99, %v106
  %v110 = vmul.f32 %v100, %v106
  %v111 = vmul.f32 %v101, %v106
  %v112 = vmul.f32 %v102, %v106
  %v113 = vmul.f32 %v103, %v106
  %v114 = vmul.f32 %v104, %v106
  %v115 = vadd.f32 %v89, %v107
  %v116 = vadd.f32 %v90, %v108
  %v117 = vadd.f32 %v91, %v109
  %v118 = vadd.f32 %v92, %v110
  %v119 = vadd.f32 %v93, %v111
  %v120 = vadd.f32 %v94, %v112
  %v121 = vadd.f32 %v95, %v113
  %v122 = vadd.f32 %v96, %v114
  %v123 = vsub.f32 0.0, %v115
  %v124 = vsub.f32 0.0, %v116
  %v125 = vsub.f32 0.0, %v117
  %v126 = vsub.f32 0.0, %v118
  %v127 = vsub.f32 0.0, %v119
  %v128 = vsub.f32 0.0, %v120
  %v129 = vsub.f32 0.0, %v121
  %v130 = vsub.f32 0.0, %v122
  %v131 = vmul.f32 %v123, 1.442695
  %v132 = vpow.pop %v131
  %v133 = vmul.f32 %v124, 1.442695
  %v134 = vpow.pop %v133
  %v135 = vmul.f32 %v125, 1.442695
  %v136 = vpow.pop %v135
  %v137 = vmul.f32 %v126, 1.442695
  %v138 = vpow.pop %v137
  %v139 = vmul.f32 %v127, 1.442695
  %v140 = vpow.pop %v139
  %v141 = vmul.f32 %v128, 1.442695
  %v142 = vpow.pop %v141
  %v143 = vmul.f32 %v129, 1.442695
  %v144 = vpow.pop %v143
  %v145 = vmul.f32 %v130, 1.442695
  %v146 = vpow.pop %v145
  %v147 = vadd.f32 %v132, 1.0
  %v148 = vadd.f32 %v134, 1.0
  %v149 = vadd.f32 %v136, 1.0
  %v150 = vadd.f32 %v138, 1.0
  %v151 = vadd.f32 %v140, 1.0
  %v152 = vadd.f32 %v142, 1.0
  %v153 = vadd.f32 %v144, 1.0
  %v154 = vadd.f32 %v146, 1.0
  %v155 = vrcp.pop %v147
  %v156 = vmul.f32 %v147, %v155
  %v157 = vsub.f32 1.0, %v156
  %v158 = vmul.f32 %v155, %v157
  %v159 = vadd.f32 %v155, %v158
  %vm160 = vweird.f32 %v147
  %vm161 = vweird.f32 %v155
  %vm162 = vmor %vm160, %vm161
  %v163 = vsel %vm162, %v155, %v159
  %v164 = vand.u32 2147483647, %v147
  %vm165 = vcmp.eq.f32.partialorder %v164, 8.507059e+37
  %v166 = vand.u32 %v147, 2147483648
  %v167 = vor.u32 1.1754944e-38, %v166
  %v168 = vsel %vm165, %v167, %v163
  %v169 = vmul.f32 1.0, %v168
  %v170 = vrcp.pop %v148
  %v171 = vmul.f32 %v148, %v170
  %v172 = vsub.f32 1.0, %v171
  %v173 = vmul.f32 %v170, %v172
  %v174 = vadd.f32 %v170, %v173
  %vm175 = vweird.f32 %v148
  %vm176 = vweird.f32 %v170
  %vm177 = vmor %vm175, %vm176
  %v178 = vsel %vm177, %v170, %v174
  %v179 = vand.u32 2147483647, %v148
  %vm180 = vcmp.eq.f32.partialorder %v179, 8.507059e+37
  %v181 = vand.u32 %v148, 2147483648
  %v182 = vor.u32 1.1754944e-38, %v181
  %v183 = vsel %vm180, %v182, %v178
  %v184 = vmul.f32 1.0, %v183
  %v185 = vrcp.pop %v149
  %v186 = vmul.f32 %v149, %v185
  %v187 = vsub.f32 1.0, %v186
  %v188 = vmul.f32 %v185, %v187
  %v189 = vadd.f32 %v185, %v188
  %vm190 = vweird.f32 %v149
  %vm191 = vweird.f32 %v185
  %vm192 = vmor %vm190, %vm191
  %v193 = vsel %vm192, %v185, %v189
  %v194 = vand.u32 2147483647, %v149
  %vm195 = vcmp.eq.f32.partialorder %v194, 8.507059e+37
  %v196 = vand.u32 %v149, 2147483648
  %v197 = vor.u32 1.1754944e-38, %v196
  %v198 = vsel %vm195, %v197, %v193
  %v199 = vmul.f32 1.0, %v198
  %v200 = vrcp.pop %v150
  %v201 = vmul.f32 %v150, %v200
  %v202 = vsub.f32 1.0, %v201
  %v203 = vmul.f32 %v200, %v202
  %v204 = vadd.f32 %v200, %v203
  %vm205 = vweird.f32 %v150
  %vm206 = vweird.f32 %v200
  %vm207 = vmor %vm205, %vm206
  %v208 = vsel %vm207, %v200, %v204
  %v209 = vand.u32 2147483647, %v150
  %vm210 = vcmp.eq.f32.partialorder %v209, 8.507059e+37
  %v211 = vand.u32 %v150, 2147483648
  %v212 = vor.u32 1.1754944e-38, %v211
  %v213 = vsel %vm210, %v212, %v208
  %v214 = vmul.f32 1.0, %v213
  %v215 = vrcp.pop %v151
  %v216 = vmul.f32 %v151, %v215
  %v217 = vsub.f32 1.0, %v216
  %v218 = vmul.f32 %v215, %v217
  %v219 = vadd.f32 %v215, %v218
  %vm220 = vweird.f32 %v151
  %vm221 = vweird.f32 %v215
  %vm222 = vmor %vm220, %vm221
  %v223 = vsel %vm222, %v215, %v219
  %v224 = vand.u32 2147483647, %v151
  %vm225 = vcmp.eq.f32.partialorder %v224, 8.507059e+37
  %v226 = vand.u32 %v151, 2147483648
  %v227 = vor.u32 1.1754944e-38, %v226
  %v228 = vsel %vm225, %v227, %v223
  %v229 = vmul.f32 1.0, %v228
  %v230 = vrcp.pop %v152
  %v231 = vmul.f32 %v152, %v230
  %v232 = vsub.f32 1.0, %v231
  %v233 = vmul.f32 %v230, %v232
  %v234 = vadd.f32 %v230, %v233
  %vm235 = vweird.f32 %v152
  %vm236 = vweird.f32 %v230
  %vm237 = vmor %vm235, %vm236
  %v238 = vsel %vm237, %v230, %v234
  %v239 = vand.u32 2147483647, %v152
  %vm240 = vcmp.eq.f32.partialorder %v239, 8.507059e+37
  %v241 = vand.u32 %v152, 2147483648
  %v242 = vor.u32 1.1754944e-38, %v241
  %v243 = vsel %vm240, %v242, %v238
  %v244 = vmul.f32 1.0, %v243
  %v245 = vrcp.pop %v153
  %v246 = vmul.f32 %v153, %v245
  %v247 = vsub.f32 1.0, %v246
  %v248 = vmul.f32 %v245, %v247
  %v249 = vadd.f32 %v245, %v248
  %vm250 = vweird.f32 %v153
  %vm251 = vweird.f32 %v245
  %vm252 = vmor %vm250, %vm251
  %v253 = vsel %vm252, %v245, %v249
  %v254 = vand.u32 2147483647, %v153
  %vm255 = vcmp.eq.f32.partialorder %v254, 8.507059e+37
  %v256 = vand.u32 %v153, 2147483648
  %v257 = vor.u32 1.1754944e-38, %v256
  %v258 = vsel %vm255, %v257, %v253
  %v259 = vmul.f32 1.0, %v258
  %v260 = vrcp.pop %v154
  %v261 = vmul.f32 %v154, %v260
  %v262 = vsub.f32 1.0, %v261
  %v263 = vmul.f32 %v260, %v262
  %v264 = vadd.f32 %v260, %v263
  %vm265 = vweird.f32 %v154
  %vm266 = vweird.f32 %v260
  %vm267 = vmor %vm265, %vm266
  %v268 = vsel %vm267, %v260, %v264
  %v269 = vand.u32 2147483647, %v154
  %vm270 = vcmp.eq.f32.partialorder %v269, 8.507059e+37
  %v271 = vand.u32 %v154, 2147483648
  %v272 = vor.u32 1.1754944e-38, %v271
  %v273 = vsel %vm270, %v272, %v268
  %v274 = vmul.f32 1.0, %v273
  %v275 = vmul.f32 %v115, %v169
  %v276 = vmul.f32 %v116, %v184
  %v277 = vmul.f32 %v117, %v199
  %v278 = vmul.f32 %v118, %v214
  %v279 = vmul.f32 %v119, %v229
  %v280 = vmul.f32 %v120, %v244
  %v281 = vmul.f32 %v121, %v259
  %v282 = vmul.f32 %v122, %v274
  %283 = vst [vmem:[%s3] sm:$0xff] %v275
  %284 = vst [vmem:[%s3 + $0x8] sm:$0xff] %v276
  %285 = vst [vmem:[%s3 + $0x10] sm:$0xff] %v277
  %286 = vst [vmem:[%s3 + $0x18] sm:$0xff] %v278
  %287 = vst [vmem:[%s3 + $0x20] sm:$0xff] %v279
  %288 = vst [vmem:[%s3 + $0x28] sm:$0xff] %v280
  %289 = vst [vmem:[%s3 + $0x30] sm:$0xff] %v281
  %290 = vst [vmem:[%s3 + $0x38] sm:$0xff] %v282
  // Predicated region
  $region14: #{asl_forward.10} parent=0 // pred_check
    _
  $region15: #{asl_forward.10} parent=0 // pred_check_branch
    %292 = sbr.rel (0) target = $region17
  $region16: #{asl_forward.10} parent=0 // pred_region
    _
  $region17: #{asl_forward.10} parent=0 // pred_fallthru
    _
  // Predicated region
  $region18: #{asl_forward.10} parent=0 // pred_check
    _
  $region19: #{asl_forward.10} parent=0 // pred_check_branch
    %294 = sbr.rel (0) target = $region21
  $region20: #{asl_forward.10} parent=0 // pred_region
    _
  $region21: #{asl_forward.10} parent=0 // pred_fallthru
    _

// kernel: asl_forward.11
$region0: #{asl_forward.11}
  #allocation0 [shape = 'u32[]', space=smem, size = 0x4, offset = 0x4, fixed_abs, tag = 'smem constant byte address 0x4 - core index']
  #allocation1 [shape = 'u32[72,128]{1,0:T(1,128)}', space=vmem, size = 0x9000, scoped, tag = 'internal scratch']
  #allocation2 [shape = 'f32[128,48]{1,0:T(8,128)}', space=vmem, size = 0x10000, scoped, tag = 'scratch operand']
  %s0 = inlined_call_operand.vmem [shape: f32[512,16], index: 0, kind: input, shape index: {}]
  %s1 = inlined_call_operand.vmem [shape: f32[16,48], index: 1, kind: input, shape index: {}]
  %s2 = inlined_call_operand.vmem [shape: f32[1,48], index: 2, kind: input, shape index: {}]
  %s3 = inlined_call_operand.vmem [shape: f32[512,48], index: 3, kind: output, shape index: {}]
  %s4 = sld [smem:[#allocation0]]
  $region53: #{asl_forward.11} parent=0
    _
  %s6 = ssub.s32 1, %s4
  %s7 = scalar_select 0, %s6, %s4
  loop: start=0, step=1, limit=6
  $region2: #{asl_forward.11} parent=0 // loop_pre_header
    _
  $region3: #{asl_forward.11} parent=0 // loop_header
    %s9 = sphi 0, %s13
    %p10 = scmp.ge.s32.totalorder %s9, 6
    %s16 = sphi 0, %s35
    %s17 = sphi 0, %s31
    %s18 = sphi 0, %s27
    %s19 = sphi 0, %s16
    %s20 = sphi 0, %s17
    %s21 = sphi 0, %s18
    %s22 = sphi 0, %s19
    %s23 = sphi 0, %s20
    %s24 = sphi 0, %s21
    %s40 = sphi 0, %s42
    %s43 = sphi 0, %s40
    %s44 = sphi 0, %s43
    %s60 = sphi 0, %s44
    %s68 = sphi 0, %s70
    %s71 = sphi 0, %s68
    %s72 = sphi 0, %s71
    %s88 = sphi 0, %s72
    %s94 = sphi 0, %s96
    %s97 = sphi 0, %s94
    %s98 = sphi 0, %s97
    %s114 = sphi 0, %s98
    %s122 = sphi 0, %s124
    %s125 = sphi 0, %s122
    %s126 = sphi 0, %s125
    %s142 = sphi 0, %s126
  $region4: #{asl_forward.11} parent=0 // loop_header_branch
    %12 = sbr.rel (%p10) target = $region8
  $region5: #{asl_forward.11} parent=0 // loop_body
    %s14 = ssub.s32 %s9, 1
    %s15 = ssub.s32 %s9, 2
    %s25 = sadd.s32 1, %s18
    %p26 = scmp.ge.s32.totalorder %s25, 1
    %s27 = scalar_select %p26, 0, %s25
    %s28 = sadd.s32 1, %s17
    %s29 = scalar_select %p26, %s28, %s17
    %p30 = scmp.ge.s32.totalorder %s29, 1
    %s31 = scalar_select %p30, 0, %s29
    %s32 = sadd.s32 1, %s16
    %s33 = scalar_select %p30, %s32, %s16
    %p34 = scmp.ge.s32.totalorder %s33, 4
    %s35 = scalar_select %p34, 0, %s33
    %s36 = ssub.s32 %s16, %s35
    %s37 = ssub.s32 %s18, %s27
    %s38 = sor.u32 %s36, %s37
    %p39 = scmp.eq.s32.totalorder %s38, 0
    %s41 = sadd.s32 %s40, 1
    %s42 = scalar_select %p39, %s40, %s41
    %p45 = pneg %p39
    %p46 = scmp.eq.s32.totalorder %s9, 3
    %p47 = por %p45, %p46
    %p48 = scmp.ne.s32.totalorder %s40, %s43
    %p49 = scmp.eq.s32.totalorder %s9, 0
    %p50 = por %p48, %p49
    %p51 = scmp.ne.s32.totalorder %s40, %s43
    %p52 = scmp.eq.s32.totalorder %s14, 3
    %p53 = por %p51, %p52
    %p54 = scmp.ne.s32.totalorder %s43, %s44
    %p55 = scmp.eq.s32.totalorder %s14, 0
    %p56 = por %p54, %p55
    %p57 = scmp.ne.s32.totalorder %s43, %s44
    %p58 = scmp.eq.s32.totalorder %s15, 3
    %p59 = por %p57, %p58
    %p61 = scmp.ne.s32.totalorder %s44, %s60
    %p62 = scmp.eq.s32.totalorder %s15, 0
    %p63 = por %p61, %p62
    %s64 = ssub.s32 %s18, %s27
    %s65 = ssub.s32 %s17, %s31
    %s66 = sor.u32 %s64, %s65
    %p67 = scmp.eq.s32.totalorder %s66, 0
    %s69 = sadd.s32 %s68, 1
    %s70 = scalar_select %p67, %s68, %s69
    %p73 = pneg %p67
    %p74 = scmp.eq.s32.totalorder %s9, 3
    %p75 = por %p73, %p74
    %p76 = scmp.ne.s32.totalorder %s68, %s71
    %p77 = scmp.eq.s32.totalorder %s9, 0
    %p78 = por %p76, %p77
    %p79 = scmp.ne.s32.totalorder %s68, %s71
    %p80 = scmp.eq.s32.totalorder %s14, 3
    %p81 = por %p79, %p80
    %p82 = scmp.ne.s32.totalorder %s71, %s72
    %p83 = scmp.eq.s32.totalorder %s14, 0
    %p84 = por %p82, %p83
    %p85 = scmp.ne.s32.totalorder %s71, %s72
    %p86 = scmp.eq.s32.totalorder %s15, 3
    %p87 = por %p85, %p86
    %p89 = scmp.ne.s32.totalorder %s72, %s88
    %p90 = scmp.eq.s32.totalorder %s15, 0
    %p91 = por %p89, %p90
    %s92 = ssub.s32 %s17, %s31
    %p93 = scmp.eq.s32.totalorder %s92, 0
    %s95 = sadd.s32 %s94, 1
    %s96 = scalar_select %p93, %s94, %s95
    %p99 = pneg %p93
    %p100 = scmp.eq.s32.totalorder %s9, 3
    %p101 = por %p99, %p100
    %p102 = scmp.ne.s32.totalorder %s94, %s97
    %p103 = scmp.eq.s32.totalorder %s9, 0
    %p104 = por %p102, %p103
    %p105 = scmp.ne.s32.totalorder %s94, %s97
    %p106 = scmp.eq.s32.totalorder %s14, 3
    %p107 = por %p105, %p106
    %p108 = scmp.ne.s32.totalorder %s97, %s98
    %p109 = scmp.eq.s32.totalorder %s14, 0
    %p110 = por %p108, %p109
    %p111 = scmp.ne.s32.totalorder %s97, %s98
    %p112 = scmp.eq.s32.totalorder %s15, 3
    %p113 = por %p111, %p112
    %p115 = scmp.ne.s32.totalorder %s98, %s114
    %p116 = scmp.eq.s32.totalorder %s15, 0
    %p117 = por %p115, %p116
    %s118 = ssub.s32 %s16, %s35
    %s119 = ssub.s32 %s17, %s31
    %s120 = sor.u32 %s118, %s119
    %p121 = scmp.eq.s32.totalorder %s120, 0
    %s123 = sadd.s32 %s122, 1
    %s124 = scalar_select %p121, %s122, %s123
    %p127 = pneg %p121
    %p128 = scmp.eq.s32.totalorder %s9, 3
    %p129 = por %p127, %p128
    %p130 = scmp.ne.s32.totalorder %s122, %s125
    %p131 = scmp.eq.s32.totalorder %s9, 0
    %p132 = por %p130, %p131
    %p133 = scmp.ne.s32.totalorder %s122, %s125
    %p134 = scmp.eq.s32.totalorder %s14, 3
    %p135 = por %p133, %p134
    %p136 = scmp.ne.s32.totalorder %s125, %s126
    %p137 = scmp.eq.s32.totalorder %s14, 0
    %p138 = por %p136, %p137
    %p139 = scmp.ne.s32.totalorder %s125, %s126
    %p140 = scmp.eq.s32.totalorder %s15, 3
    %p141 = por %p139, %p140
    %p143 = scmp.ne.s32.totalorder %s126, %s142
    %p144 = scmp.eq.s32.totalorder %s15, 0
    %p145 = por %p143, %p144
    %p146 = scmp.le.s32.totalorder 1, %s9
    %p147 = scmp.lt.s32.totalorder %s9, 5
    %p148 = pnand %p146, %p147
    %p149 = pneg %p148
    // Predicated region
    $region9: #{asl_forward.11} parent=5 // pred_check
      _
    $region10: #{asl_forward.11} parent=5 // pred_check_branch
      %151 = sbr.rel (%p148) target = $region12
    $region11: #{asl_forward.11} parent=5 // pred_region
      %s152 = ssub.s32 %s9, 1
      // Predicated region
      $region13: #{asl_forward.11} parent=11 // pred_check
        %p153 = pneg %p84
      $region14: #{asl_forward.11} parent=11 // pred_check_branch
        %155 = sbr.rel (%p153) target = $region16
      $region15: #{asl_forward.11} parent=11 // pred_region
        %s156 = smul.u32 2, %s21
        %p157 = scmp.lt.s32.totalorder %s156, 1
        %s158 = scalar_select %p157, %s156, 1
        %p159 = scmp.lt.s32.totalorder %s20, 0
        %s160 = scalar_select %p159, %s20, 0
        %s161 = sadd.s32 %s160, %s158
        %s162 = smul.addr %s161, 8
        %s163 = scalar_lea.vmem %s1, %s162
        %s164 = smul.u32 2, %s21
      $region16: #{asl_forward.11} parent=11 // pred_fallthru
        _
      // Predicated region
      $region17: #{asl_forward.11} parent=11 // pred_check
        %p165 = pneg %p110
      $region18: #{asl_forward.11} parent=11 // pred_check_branch
        %167 = sbr.rel (%p165) target = $region20
      $region19: #{asl_forward.11} parent=11 // pred_region
        %p168 = scmp.lt.s32.totalorder %s20, 0
        %s169 = scalar_select %p168, %s20, 0
        %s170 = scalar_lea.vmem %s2, %s169
      $region20: #{asl_forward.11} parent=11 // pred_fallthru
        _
    $region12: #{asl_forward.11} parent=5 // pred_fallthru
      _
    %p171 = scmp.lt.s32.totalorder %s9, 4
    // Predicated region
    $region21: #{asl_forward.11} parent=5 // pred_check
      %p172 = pneg %p171
    $region22: #{asl_forward.11} parent=5 // pred_check_branch
      %174 = sbr.rel (%p172) target = $region24
    $region23: #{asl_forward.11} parent=5 // pred_region
      // Predicated region
      $region25: #{asl_forward.11} parent=23 // pred_check
        %p175 = pneg %p50
      $region26: #{asl_forward.11} parent=23 // pred_check_branch
        %177 = sbr.rel (%p175) target = $region28
      $region27: #{asl_forward.11} parent=23 // pred_region
        %s178 = smul.u32 16, %s16
        %p179 = scmp.lt.s32.totalorder %s178, 63
        %s180 = scalar_select %p179, %s178, 63
        %p181 = scmp.lt.s32.totalorder %s18, 0
        %s182 = scalar_select %p181, %s18, 0
        %s183 = sadd.s32 %s182, %s180
        %s184 = smul.addr %s183, 8
        %s185 = scalar_lea.vmem %s0, %s184
        %s186 = smul.u32 16, %s16
      $region28: #{asl_forward.11} parent=23 // pred_fallthru
        _
    $region24: #{asl_forward.11} parent=5 // pred_fallthru
      _
    %p187 = scmp.le.s32.totalorder 1, %s9
    %p188 = scmp.lt.s32.totalorder %s9, 5
    %p189 = pnand %p187, %p188
    %p190 = pneg %p189
    // Predicated region
    $region29: #{asl_forward.11} parent=5 // pred_check
      _
    $region30: #{asl_forward.11} parent=5 // pred_check_branch
      %192 = sbr.rel (%p189) target = $region32
    $region31: #{asl_forward.11} parent=5 // pred_region
      %s193 = ssub.s32 %s9, 1
      %s194 = smul.u32 16, %s19
      %p195 = scmp.lt.s32.totalorder %s194, 63
      %s196 = scalar_select %p195, %s194, 63
      %p197 = scmp.lt.s32.totalorder %s21, 0
      %s198 = scalar_select %p197, %s21, 0
      %s199 = sadd.s32 %s198, %s196
      %s200 = smul.addr %s199, 8
      %s201 = scalar_lea.vmem %s0, %s200
      %p202 = pneg %p56
      %p203 = pneg %p53
      %s204 = smul.u32 2, %s21
      %p205 = scmp.lt.s32.totalorder %s204, 1
      %s206 = scalar_select %p205, %s204, 1
      %p207 = scmp.lt.s32.totalorder %s20, 0
      %s208 = scalar_select %p207, %s20, 0
      %s209 = sadd.s32 %s208, %s206
      %s210 = smul.addr %s209, 8
      %s211 = scalar_lea.vmem %s1, %s210
      %p212 = pneg %p84
      %p213 = pneg %p81
      %p214 = scmp.lt.s32.totalorder %s20, 0
      %s215 = scalar_select %p214, %s20, 0
      %s216 = scalar_lea.vmem %s2, %s215
      %p217 = pneg %p110
      %p218 = pneg %p107
      %p219 = pneg %p138
      %p220 = pneg %p135
      %s221 = smul.u32 16, %s19
      %p222 = scmp.lt.s32.totalorder %s221, 63
      %s223 = scalar_select %p222, %s221, 63
      %p224 = scmp.lt.s32.totalorder %s20, 0
      %s225 = scalar_select %p224, %s20, 0
      %s226 = sadd.s32 %s225, %s223
      %s227 = smul.addr %s226, 8
      %s228 = scalar_lea.vmem %s3, %s227
      %s229 = smul.u32 16, %s19
      %p230 = scmp.lt.s32.totalorder %s229, 63
      %s231 = scalar_select %p230, %s229, 63
      %p232 = scmp.lt.s32.totalorder %s21, 0
      %s233 = scalar_select %p232, %s21, 0
      %s234 = sadd.s32 %s233, %s231
      %s235 = smul.addr %s234, 8
      %s236 = scalar_lea.vmem %s0, %s235
      %s237 = smul.u32 16, %s19
      %s238 = smul.u32 2, %s21
      %p239 = scmp.lt.s32.totalorder %s238, 1
      %s240 = scalar_select %p239, %s238, 1
      %p241 = scmp.lt.s32.totalorder %s20, 0
      %s242 = scalar_select %p241, %s20, 0
      %s243 = sadd.s32 %s242, %s240
      %s244 = smul.addr %s243, 8
      %s245 = scalar_lea.vmem %s1, %s244
      %s246 = smul.u32 2, %s21
      %p247 = scmp.lt.s32.totalorder %s20, 0
      %s248 = scalar_select %p247, %s20, 0
      %s249 = scalar_lea.vmem %s2, %s248
      %s250 = smul.u32 16, %s19
      %p251 = scmp.lt.s32.totalorder %s250, 63
      %s252 = scalar_select %p251, %s250, 63
      %p253 = scmp.lt.s32.totalorder %s20, 0
      %s254 = scalar_select %p253, %s20, 0
      %s255 = sadd.s32 %s254, %s252
      %s256 = smul.addr %s255, 8
      %s257 = scalar_lea.vmem %s3, %s256
      %s258 = smul.u32 16, %s19
      %p260 = scmp.eq.s32.totalorder %s21, 0
      // Predicated region
      $region33: #{asl_forward.11} parent=31 // pred_check
        %p261 = pneg %p260
      $region34: #{asl_forward.11} parent=31 // pred_check_branch
        %263 = sbr.rel (%p261) target = $region36
      $region35: #{asl_forward.11} parent=31 // pred_region
        %vm264 = vcmask 392192
        %265 = vst.msk [vmem:[#allocation2] sm:$0xff] %vm264, 0.0
        %266 = vst.msk [vmem:[#allocation2 + $0x8] sm:$0xff] %vm264, 0.0
        %267 = vst.msk [vmem:[#allocation2 + $0x10] sm:$0xff] %vm264, 0.0
        %268 = vst.msk [vmem:[#allocation2 + $0x18] sm:$0xff] %vm264, 0.0
        %269 = vst.msk [vmem:[#allocation2 + $0x20] sm:$0xff] %vm264, 0.0
        %270 = vst.msk [vmem:[#allocation2 + $0x28] sm:$0xff] %vm264, 0.0
        %271 = vst.msk [vmem:[#allocation2 + $0x30] sm:$0xff] %vm264, 0.0
        %272 = vst.msk [vmem:[#allocation2 + $0x38] sm:$0xff] %vm264, 0.0
        %273 = vst.msk [vmem:[#allocation2 + $0x40] sm:$0xff] %vm264, 0.0
        %274 = vst.msk [vmem:[#allocation2 + $0x48] sm:$0xff] %vm264, 0.0
        %275 = vst.msk [vmem:[#allocation2 + $0x50] sm:$0xff] %vm264, 0.0
        %276 = vst.msk [vmem:[#allocation2 + $0x58] sm:$0xff] %vm264, 0.0
        %277 = vst.msk [vmem:[#allocation2 + $0x60] sm:$0xff] %vm264, 0.0
        %278 = vst.msk [vmem:[#allocation2 + $0x68] sm:$0xff] %vm264, 0.0
        %279 = vst.msk [vmem:[#allocation2 + $0x70] sm:$0xff] %vm264, 0.0
        %280 = vst.msk [vmem:[#allocation2 + $0x78] sm:$0xff] %vm264, 0.0
      $region36: #{asl_forward.11} parent=31 // pred_fallthru
        _
      %v281 = vld [vmem:[#allocation2] sm:$0xff]
      %v282 = vld [vmem:[#allocation2 + $0x8] sm:$0xff]
      %v283 = vld [vmem:[#allocation2 + $0x10] sm:$0xff]
      %v284 = vld [vmem:[#allocation2 + $0x18] sm:$0xff]
      %v285 = vld [vmem:[#allocation2 + $0x20] sm:$0xff]
      %v286 = vld [vmem:[#allocation2 + $0x28] sm:$0xff]
      %v287 = vld [vmem:[#allocation2 + $0x30] sm:$0xff]
      %v288 = vld [vmem:[#allocation2 + $0x38] sm:$0xff]
      %v289 = vld [vmem:[#allocation2 + $0x40] sm:$0xff]
      %v290 = vld [vmem:[#allocation2 + $0x48] sm:$0xff]
      %v291 = vld [vmem:[#allocation2 + $0x50] sm:$0xff]
      %v292 = vld [vmem:[#allocation2 + $0x58] sm:$0xff]
      %v293 = vld [vmem:[#allocation2 + $0x60] sm:$0xff]
      %v294 = vld [vmem:[#allocation2 + $0x68] sm:$0xff]
      %v295 = vld [vmem:[#allocation2 + $0x70] sm:$0xff]
      %v296 = vld [vmem:[#allocation2 + $0x78] sm:$0xff]
      %v297 = vld [vmem:[%s236] sm:$0xff]
      %v298 = vld [vmem:[%s236 + $0x8] sm:$0xff]
      %v299 = vld [vmem:[%s236 + $0x10] sm:$0xff]
      %v300 = vld [vmem:[%s236 + $0x18] sm:$0xff]
      %v301 = vld [vmem:[%s236 + $0x20] sm:$0xff]
      %v302 = vld [vmem:[%s236 + $0x28] sm:$0xff]
      %v303 = vld [vmem:[%s236 + $0x30] sm:$0xff]
      %v304 = vld [vmem:[%s236 + $0x38] sm:$0xff]
      %v305 = vld [vmem:[%s236 + $0x40] sm:$0xff]
      %v306 = vld [vmem:[%s236 + $0x48] sm:$0xff]
      %v307 = vld [vmem:[%s236 + $0x50] sm:$0xff]
      %v308 = vld [vmem:[%s236 + $0x58] sm:$0xff]
      %v309 = vld [vmem:[%s236 + $0x60] sm:$0xff]
      %v310 = vld [vmem:[%s236 + $0x68] sm:$0xff]
      %v311 = vld [vmem:[%s236 + $0x70] sm:$0xff]
      %v312 = vld [vmem:[%s236 + $0x78] sm:$0xff]
      %v313 = vpack.c.bf16 %v298, %v297
      %v314 = vpack.c.bf16 %v300, %v299
      %v315 = vpack.c.bf16 %v302, %v301
      %v316 = vpack.c.bf16 %v304, %v303
      %v317 = vpack.c.bf16 %v306, %v305
      %v318 = vpack.c.bf16 %v308, %v307
      %v319 = vpack.c.bf16 %v310, %v309
      %v320 = vpack.c.bf16 %v312, %v311
      %v321 = vld [vmem:[%s245] sm:$0xff]
      %v322 = vld [vmem:[%s245 + $0x8] sm:$0xff]
      %v323 = vpack.c.bf16 %v322, %v321
      %vm324 = vcmask 130048
      %v326 = vsel %vm324, %v313, 0
      %v329 = vsel %vm324, %v314, 0
      %v332 = vsel %vm324, %v315, 0
      %v335 = vsel %vm324, %v316, 0
      %v338 = vsel %vm324, %v317, 0
      %v341 = vsel %vm324, %v318, 0
      %v344 = vsel %vm324, %v319, 0
      %v347 = vsel %vm324, %v320, 0
      %349 = vmatpush.bf16.msra.mxu0 0
      %350 = vmatpush.bf16.msra.mxu0 0
      %351 = vmatpush.bf16.msra.mxu0 0
      %352 = vmatpush.bf16.msra.mxu0 0
      %353 = vmatpush.bf16.msra.mxu0 0
      %354 = vmatpush.bf16.msra.mxu0 0
      %355 = vmatpush.bf16.msra.mxu0 0
      %356 = vmatpush.bf16.msra.mxu0 %v323
      %357 = vmatmul.bf16.gmra.mxu0 %v326
      %v358 = vpop.f32.mrf.mxu0
      %v359 = vadd.f32 0.0, %v358
      %v360 = vpop.f32.mrf.mxu0
      %v361 = vadd.f32 0.0, %v360
      %362 = vmatmul.bf16.gmra.mxu0 %v329
      %v363 = vpop.f32.mrf.mxu0
      %v364 = vadd.f32 0.0, %v363
      %v365 = vpop.f32.mrf.mxu0
      %v366 = vadd.f32 0.0, %v365
      %367 = vmatmul.bf16.gmra.mxu0 %v332
      %v368 = vpop.f32.mrf.mxu0
      %v369 = vadd.f32 0.0, %v368
      %v370 = vpop.f32.mrf.mxu0
      %v371 = vadd.f32 0.0, %v370
      %372 = vmatmul.bf16.gmra.mxu0 %v335
      %v373 = vpop.f32.mrf.mxu0
      %v374 = vadd.f32 0.0, %v373
      %v375 = vpop.f32.mrf.mxu0
      %v376 = vadd.f32 0.0, %v375
      %377 = vmatmul.bf16.gmra.mxu0 %v338
      %v378 = vpop.f32.mrf.mxu0
      %v379 = vadd.f32 0.0, %v378
      %v380 = vpop.f32.mrf.mxu0
      %v381 = vadd.f32 0.0, %v380
      %382 = vmatmul.bf16.gmra.mxu0 %v341
      %v383 = vpop.f32.mrf.mxu0
      %v384 = vadd.f32 0.0, %v383
      %v385 = vpop.f32.mrf.mxu0
      %v386 = vadd.f32 0.0, %v385
      %387 = vmatmul.bf16.gmra.mxu0 %v344
      %v388 = vpop.f32.mrf.mxu0
      %v389 = vadd.f32 0.0, %v388
      %v390 = vpop.f32.mrf.mxu0
      %v391 = vadd.f32 0.0, %v390
      %392 = vmatmul.bf16.gmra.mxu0 %v347
      %v393 = vpop.f32.mrf.mxu0
      %v394 = vadd.f32 0.0, %v393
      %v395 = vpop.f32.mrf.mxu0
      %v396 = vadd.f32 0.0, %v395
      %397 = vdwg.mxu0
      %v398 = vadd.f32 %v281, %v359
      %v399 = vadd.f32 %v282, %v361
      %v400 = vadd.f32 %v283, %v364
      %v401 = vadd.f32 %v284, %v366
      %v402 = vadd.f32 %v285, %v369
      %v403 = vadd.f32 %v286, %v371
      %v404 = vadd.f32 %v287, %v374
      %v405 = vadd.f32 %v288, %v376
      %v406 = vadd.f32 %v289, %v379
      %v407 = vadd.f32 %v290, %v381
      %v408 = vadd.f32 %v291, %v384
      %v409 = vadd.f32 %v292, %v386
      %v410 = vadd.f32 %v293, %v389
      %v411 = vadd.f32 %v294, %v391
      %v412 = vadd.f32 %v295, %v394
      %v413 = vadd.f32 %v296, %v396
      %vm414 = vcmask 392192
      %415 = vst.msk [vmem:[#allocation2] sm:$0xff] %vm414, %v398
      %416 = vst.msk [vmem:[#allocation2 + $0x8] sm:$0xff] %vm414, %v399
      %417 = vst.msk [vmem:[#allocation2 + $0x10] sm:$0xff] %vm414, %v400
      %418 = vst.msk [vmem:[#allocation2 + $0x18] sm:$0xff] %vm414, %v401
      %419 = vst.msk [vmem:[#allocation2 + $0x20] sm:$0xff] %vm414, %v402
      %420 = vst.msk [vmem:[#allocation2 + $0x28] sm:$0xff] %vm414, %v403
      %421 = vst.msk [vmem:[#allocation2 + $0x30] sm:$0xff] %vm414, %v404
      %422 = vst.msk [vmem:[#allocation2 + $0x38] sm:$0xff] %vm414, %v405
      %423 = vst.msk [vmem:[#allocation2 + $0x40] sm:$0xff] %vm414, %v406
      %424 = vst.msk [vmem:[#allocation2 + $0x48] sm:$0xff] %vm414, %v407
      %425 = vst.msk [vmem:[#allocation2 + $0x50] sm:$0xff] %vm414, %v408
      %426 = vst.msk [vmem:[#allocation2 + $0x58] sm:$0xff] %vm414, %v409
      %427 = vst.msk [vmem:[#allocation2 + $0x60] sm:$0xff] %vm414, %v410
      %428 = vst.msk [vmem:[#allocation2 + $0x68] sm:$0xff] %vm414, %v411
      %429 = vst.msk [vmem:[#allocation2 + $0x70] sm:$0xff] %vm414, %v412
      %430 = vst.msk [vmem:[#allocation2 + $0x78] sm:$0xff] %vm414, %v413
      // Predicated region
      $region37: #{asl_forward.11} parent=31 // pred_check
        %p431 = pneg %p260
      $region38: #{asl_forward.11} parent=31 // pred_check_branch
        %433 = sbr.rel (%p431) target = $region40
      $region39: #{asl_forward.11} parent=31 // pred_region
        %v434 = vld [vmem:[#allocation2] sm:$0xff]
        %v435 = vld [vmem:[#allocation2 + $0x8] sm:$0xff]
        %v436 = vld [vmem:[#allocation2 + $0x10] sm:$0xff]
        %v437 = vld [vmem:[#allocation2 + $0x18] sm:$0xff]
        %v438 = vld [vmem:[#allocation2 + $0x20] sm:$0xff]
        %v439 = vld [vmem:[#allocation2 + $0x28] sm:$0xff]
        %v440 = vld [vmem:[#allocation2 + $0x30] sm:$0xff]
        %v441 = vld [vmem:[#allocation2 + $0x38] sm:$0xff]
        %v442 = vld [vmem:[#allocation2 + $0x40] sm:$0xff]
        %v443 = vld [vmem:[#allocation2 + $0x48] sm:$0xff]
        %v444 = vld [vmem:[#allocation2 + $0x50] sm:$0xff]
        %v445 = vld [vmem:[#allocation2 + $0x58] sm:$0xff]
        %v446 = vld [vmem:[#allocation2 + $0x60] sm:$0xff]
        %v447 = vld [vmem:[#allocation2 + $0x68] sm:$0xff]
        %v448 = vld [vmem:[#allocation2 + $0x70] sm:$0xff]
        %v449 = vld [vmem:[#allocation2 + $0x78] sm:$0xff]
        %v450 = vld [vmem:[%s249] sm:$0x1]
        %v452 = vperm.slane %v450, 0
        %v454 = vadd.f32 %v434, %v452
        %v455 = vadd.f32 %v435, %v452
        %v456 = vadd.f32 %v436, %v452
        %v457 = vadd.f32 %v437, %v452
        %v458 = vadd.f32 %v438, %v452
        %v459 = vadd.f32 %v439, %v452
        %v460 = vadd.f32 %v440, %v452
        %v461 = vadd.f32 %v441, %v452
        %v462 = vadd.f32 %v442, %v452
        %v463 = vadd.f32 %v443, %v452
        %v464 = vadd.f32 %v444, %v452
        %v465 = vadd.f32 %v445, %v452
        %v466 = vadd.f32 %v446, %v452
        %v467 = vadd.f32 %v447, %v452
        %v468 = vadd.f32 %v448, %v452
        %v469 = vadd.f32 %v449, %v452
        %470 = vst.msk [vmem:[%s257] sm:$0xff] %vm414, %v454
        %471 = vst.msk [vmem:[%s257 + $0x8] sm:$0xff] %vm414, %v455
        %472 = vst.msk [vmem:[%s257 + $0x10] sm:$0xff] %vm414, %v456
        %473 = vst.msk [vmem:[%s257 + $0x18] sm:$0xff] %vm414, %v457
        %474 = vst.msk [vmem:[%s257 + $0x20] sm:$0xff] %vm414, %v458
        %475 = vst.msk [vmem:[%s257 + $0x28] sm:$0xff] %vm414, %v459
        %476 = vst.msk [vmem:[%s257 + $0x30] sm:$0xff] %vm414, %v460
        %477 = vst.msk [vmem:[%s257 + $0x38] sm:$0xff] %vm414, %v461
        %478 = vst.msk [vmem:[%s257 + $0x40] sm:$0xff] %vm414, %v462
        %479 = vst.msk [vmem:[%s257 + $0x48] sm:$0xff] %vm414, %v463
        %480 = vst.msk [vmem:[%s257 + $0x50] sm:$0xff] %vm414, %v464
        %481 = vst.msk [vmem:[%s257 + $0x58] sm:$0xff] %vm414, %v465
        %482 = vst.msk [vmem:[%s257 + $0x60] sm:$0xff] %vm414, %v466
        %483 = vst.msk [vmem:[%s257 + $0x68] sm:$0xff] %vm414, %v467
        %484 = vst.msk [vmem:[%s257 + $0x70] sm:$0xff] %vm414, %v468
        %485 = vst.msk [vmem:[%s257 + $0x78] sm:$0xff] %vm414, %v469
      $region40: #{asl_forward.11} parent=31 // pred_fallthru
        _
      %s486 = smul.u32 16, %s19
      %p487 = scmp.lt.s32.totalorder %s486, 63
      %s488 = scalar_select %p487, %s486, 63
      %p489 = scmp.lt.s32.totalorder %s20, 0
      %s490 = scalar_select %p489, %s20, 0
      %s491 = sadd.s32 %s490, %s488
      %s492 = smul.addr %s491, 8
      %s493 = scalar_lea.vmem %s3, %s492
      // Predicated region
      $region41: #{asl_forward.11} parent=31 // pred_check
        %p494 = pneg %p135
      $region42: #{asl_forward.11} parent=31 // pred_check_branch
        %496 = sbr.rel (%p494) target = $region44
      $region43: #{asl_forward.11} parent=31 // pred_region
        %s497 = smul.u32 16, %s19
      $region44: #{asl_forward.11} parent=31 // pred_fallthru
        _
    $region32: #{asl_forward.11} parent=5 // pred_fallthru
      _
    %p498 = scmp.le.s32.totalorder 2, %s9
    // Predicated region
    $region45: #{asl_forward.11} parent=5 // pred_check
      %p499 = pneg %p498
    $region46: #{asl_forward.11} parent=5 // pred_check_branch
      %501 = sbr.rel (%p499) target = $region48
    $region47: #{asl_forward.11} parent=5 // pred_region
      %s502 = ssub.s32 %s9, 2
      // Predicated region
      $region49: #{asl_forward.11} parent=47 // pred_check
        %p503 = pneg %p141
      $region50: #{asl_forward.11} parent=47 // pred_check_branch
        %505 = sbr.rel (%p503) target = $region52
      $region51: #{asl_forward.11} parent=47 // pred_region
        %s506 = smul.u32 16, %s22
        %p507 = scmp.lt.s32.totalorder %s506, 63
        %s508 = scalar_select %p507, %s506, 63
        %p509 = scmp.lt.s32.totalorder %s23, 0
        %s510 = scalar_select %p509, %s23, 0
        %s511 = sadd.s32 %s510, %s508
        %s512 = smul.addr %s511, 8
        %s513 = scalar_lea.vmem %s3, %s512
      $region52: #{asl_forward.11} parent=47 // pred_fallthru
        _
    $region48: #{asl_forward.11} parent=5 // pred_fallthru
      _
  $region6: #{asl_forward.11} parent=0 // loop_footer
    %s13 = sadd.s32 1, %s9
  $region7: #{asl_forward.11} parent=0 // loop_footer_branch
    %8 = sbr.rel target = $region3
  $region8: #{asl_forward.11} parent=0 // loop_exit
    _

// kernel: asl_forward.13
$region0: #{asl_forward.13}
  #allocation0 [shape = 'u32[]', space=smem, size = 0x4, offset = 0x4, fixed_abs, tag = 'smem constant byte address 0x4 - core index']
  #allocation1 [shape = 'u32[72,128]{1,0:T(1,128)}', space=vmem, size = 0x9000, scoped, tag = 'internal scratch']
  #allocation2 [shape = 'f32[128,8]{1,0:T(8,128)}', space=vmem, size = 0x10000, scoped, tag = 'scratch operand']
  %s0 = inlined_call_operand.vmem [shape: f32[512,16], index: 0, kind: input, shape index: {}]
  %s1 = inlined_call_operand.vmem [shape: f32[16,8], index: 1, kind: input, shape index: {}]
  %s2 = inlined_call_operand.vmem [shape: f32[1,8], index: 2, kind: input, shape index: {}]
  %s3 = inlined_call_operand.vmem [shape: f32[512,8], index: 3, kind: input, shape index: {}]
  %s4 = inlined_call_operand.vmem [shape: f32[512,8], index: 4, kind: output, shape index: {}]
  %s5 = sld [smem:[#allocation0]]
  $region57: #{asl_forward.13} parent=0
    _
  %s7 = ssub.s32 1, %s5
  %s8 = scalar_select 0, %s7, %s5
  loop: start=0, step=1, limit=6
  $region2: #{asl_forward.13} parent=0 // loop_pre_header
    _
  $region3: #{asl_forward.13} parent=0 // loop_header
    %s10 = sphi 0, %s14
    %p11 = scmp.ge.s32.totalorder %s10, 6
    %s17 = sphi 0, %s36
    %s18 = sphi 0, %s32
    %s19 = sphi 0, %s28
    %s20 = sphi 0, %s17
    %s21 = sphi 0, %s18
    %s22 = sphi 0, %s19
    %s23 = sphi 0, %s20
    %s24 = sphi 0, %s21
    %s25 = sphi 0, %s22
    %s41 = sphi 0, %s43
    %s44 = sphi 0, %s41
    %s45 = sphi 0, %s44
    %s61 = sphi 0, %s45
    %s69 = sphi 0, %s71
    %s72 = sphi 0, %s69
    %s73 = sphi 0, %s72
    %s89 = sphi 0, %s73
    %s95 = sphi 0, %s97
    %s98 = sphi 0, %s95
    %s99 = sphi 0, %s98
    %s115 = sphi 0, %s99
    %s123 = sphi 0, %s125
    %s126 = sphi 0, %s123
    %s127 = sphi 0, %s126
    %s143 = sphi 0, %s127
    %s151 = sphi 0, %s153
    %s154 = sphi 0, %s151
    %s155 = sphi 0, %s154
    %s171 = sphi 0, %s155
  $region4: #{asl_forward.13} parent=0 // loop_header_branch
    %13 = sbr.rel (%p11) target = $region8
  $region5: #{asl_forward.13} parent=0 // loop_body
    %s15 = ssub.s32 %s10, 1
    %s16 = ssub.s32 %s10, 2
    %s26 = sadd.s32 1, %s19
    %p27 = scmp.ge.s32.totalorder %s26, 1
    %s28 = scalar_select %p27, 0, %s26
    %s29 = sadd.s32 1, %s18
    %s30 = scalar_select %p27, %s29, %s18
    %p31 = scmp.ge.s32.totalorder %s30, 1
    %s32 = scalar_select %p31, 0, %s30
    %s33 = sadd.s32 1, %s17
    %s34 = scalar_select %p31, %s33, %s17
    %p35 = scmp.ge.s32.totalorder %s34, 4
    %s36 = scalar_select %p35, 0, %s34
    %s37 = ssub.s32 %s17, %s36
    %s38 = ssub.s32 %s19, %s28
    %s39 = sor.u32 %s37, %s38
    %p40 = scmp.eq.s32.totalorder %s39, 0
    %s42 = sadd.s32 %s41, 1
    %s43 = scalar_select %p40, %s41, %s42
    %p46 = pneg %p40
    %p47 = scmp.eq.s32.totalorder %s10, 3
    %p48 = por %p46, %p47
    %p49 = scmp.ne.s32.totalorder %s41, %s44
    %p50 = scmp.eq.s32.totalorder %s10, 0
    %p51 = por %p49, %p50
    %p52 = scmp.ne.s32.totalorder %s41, %s44
    %p53 = scmp.eq.s32.totalorder %s15, 3
    %p54 = por %p52, %p53
    %p55 = scmp.ne.s32.totalorder %s44, %s45
    %p56 = scmp.eq.s32.totalorder %s15, 0
    %p57 = por %p55, %p56
    %p58 = scmp.ne.s32.totalorder %s44, %s45
    %p59 = scmp.eq.s32.totalorder %s16, 3
    %p60 = por %p58, %p59
    %p62 = scmp.ne.s32.totalorder %s45, %s61
    %p63 = scmp.eq.s32.totalorder %s16, 0
    %p64 = por %p62, %p63
    %s65 = ssub.s32 %s19, %s28
    %s66 = ssub.s32 %s18, %s32
    %s67 = sor.u32 %s65, %s66
    %p68 = scmp.eq.s32.totalorder %s67, 0
    %s70 = sadd.s32 %s69, 1
    %s71 = scalar_select %p68, %s69, %s70
    %p74 = pneg %p68
    %p75 = scmp.eq.s32.totalorder %s10, 3
    %p76 = por %p74, %p75
    %p77 = scmp.ne.s32.totalorder %s69, %s72
    %p78 = scmp.eq.s32.totalorder %s10, 0
    %p79 = por %p77, %p78
    %p80 = scmp.ne.s32.totalorder %s69, %s72
    %p81 = scmp.eq.s32.totalorder %s15, 3
    %p82 = por %p80, %p81
    %p83 = scmp.ne.s32.totalorder %s72, %s73
    %p84 = scmp.eq.s32.totalorder %s15, 0
    %p85 = por %p83, %p84
    %p86 = scmp.ne.s32.totalorder %s72, %s73
    %p87 = scmp.eq.s32.totalorder %s16, 3
    %p88 = por %p86, %p87
    %p90 = scmp.ne.s32.totalorder %s73, %s89
    %p91 = scmp.eq.s32.totalorder %s16, 0
    %p92 = por %p90, %p91
    %s93 = ssub.s32 %s18, %s32
    %p94 = scmp.eq.s32.totalorder %s93, 0
    %s96 = sadd.s32 %s95, 1
    %s97 = scalar_select %p94, %s95, %s96
    %p100 = pneg %p94
    %p101 = scmp.eq.s32.totalorder %s10, 3
    %p102 = por %p100, %p101
    %p103 = scmp.ne.s32.totalorder %s95, %s98
    %p104 = scmp.eq.s32.totalorder %s10, 0
    %p105 = por %p103, %p104
    %p106 = scmp.ne.s32.totalorder %s95, %s98
    %p107 = scmp.eq.s32.totalorder %s15, 3
    %p108 = por %p106, %p107
    %p109 = scmp.ne.s32.totalorder %s98, %s99
    %p110 = scmp.eq.s32.totalorder %s15, 0
    %p111 = por %p109, %p110
    %p112 = scmp.ne.s32.totalorder %s98, %s99
    %p113 = scmp.eq.s32.totalorder %s16, 3
    %p114 = por %p112, %p113
    %p116 = scmp.ne.s32.totalorder %s99, %s115
    %p117 = scmp.eq.s32.totalorder %s16, 0
    %p118 = por %p116, %p117
    %s119 = ssub.s32 %s17, %s36
    %s120 = ssub.s32 %s18, %s32
    %s121 = sor.u32 %s119, %s120
    %p122 = scmp.eq.s32.totalorder %s121, 0
    %s124 = sadd.s32 %s123, 1
    %s125 = scalar_select %p122, %s123, %s124
    %p128 = pneg %p122
    %p129 = scmp.eq.s32.totalorder %s10, 3
    %p130 = por %p128, %p129
    %p131 = scmp.ne.s32.totalorder %s123, %s126
    %p132 = scmp.eq.s32.totalorder %s10, 0
    %p133 = por %p131, %p132
    %p134 = scmp.ne.s32.totalorder %s123, %s126
    %p135 = scmp.eq.s32.totalorder %s15, 3
    %p136 = por %p134, %p135
    %p137 = scmp.ne.s32.totalorder %s126, %s127
    %p138 = scmp.eq.s32.totalorder %s15, 0
    %p139 = por %p137, %p138
    %p140 = scmp.ne.s32.totalorder %s126, %s127
    %p141 = scmp.eq.s32.totalorder %s16, 3
    %p142 = por %p140, %p141
    %p144 = scmp.ne.s32.totalorder %s127, %s143
    %p145 = scmp.eq.s32.totalorder %s16, 0
    %p146 = por %p144, %p145
    %s147 = ssub.s32 %s17, %s36
    %s148 = ssub.s32 %s18, %s32
    %s149 = sor.u32 %s147, %s148
    %p150 = scmp.eq.s32.totalorder %s149, 0
    %s152 = sadd.s32 %s151, 1
    %s153 = scalar_select %p150, %s151, %s152
    %p156 = pneg %p150
    %p157 = scmp.eq.s32.totalorder %s10, 3
    %p158 = por %p156, %p157
    %p159 = scmp.ne.s32.totalorder %s151, %s154
    %p160 = scmp.eq.s32.totalorder %s10, 0
    %p161 = por %p159, %p160
    %p162 = scmp.ne.s32.totalorder %s151, %s154
    %p163 = scmp.eq.s32.totalorder %s15, 3
    %p164 = por %p162, %p163
    %p165 = scmp.ne.s32.totalorder %s154, %s155
    %p166 = scmp.eq.s32.totalorder %s15, 0
    %p167 = por %p165, %p166
    %p168 = scmp.ne.s32.totalorder %s154, %s155
    %p169 = scmp.eq.s32.totalorder %s16, 3
    %p170 = por %p168, %p169
    %p172 = scmp.ne.s32.totalorder %s155, %s171
    %p173 = scmp.eq.s32.totalorder %s16, 0
    %p174 = por %p172, %p173
    %p175 = scmp.le.s32.totalorder 1, %s10
    %p176 = scmp.lt.s32.totalorder %s10, 5
    %p177 = pnand %p175, %p176
    %p178 = pneg %p177
    // Predicated region
    $region9: #{asl_forward.13} parent=5 // pred_check
      _
    $region10: #{asl_forward.13} parent=5 // pred_check_branch
      %180 = sbr.rel (%p177) target = $region12
    $region11: #{asl_forward.13} parent=5 // pred_region
      %s181 = ssub.s32 %s10, 1
      // Predicated region
      $region13: #{asl_forward.13} parent=11 // pred_check
        %p182 = pneg %p85
      $region14: #{asl_forward.13} parent=11 // pred_check_branch
        %184 = sbr.rel (%p182) target = $region16
      $region15: #{asl_forward.13} parent=11 // pred_region
        %s185 = smul.u32 2, %s22
        %p186 = scmp.lt.s32.totalorder %s185, 1
        %s187 = scalar_select %p186, %s185, 1
        %p188 = scmp.lt.s32.totalorder %s21, 0
        %s189 = scalar_select %p188, %s21, 0
        %s190 = sadd.s32 %s189, %s187
        %s191 = smul.addr %s190, 8
        %s192 = scalar_lea.vmem %s1, %s191
        %s193 = smul.u32 2, %s22
      $region16: #{asl_forward.13} parent=11 // pred_fallthru
        _
      // Predicated region
      $region17: #{asl_forward.13} parent=11 // pred_check
        %p194 = pneg %p111
      $region18: #{asl_forward.13} parent=11 // pred_check_branch
        %196 = sbr.rel (%p194) target = $region20
      $region19: #{asl_forward.13} parent=11 // pred_region
        %p197 = scmp.lt.s32.totalorder %s21, 0
        %s198 = scalar_select %p197, %s21, 0
        %s199 = scalar_lea.vmem %s2, %s198
      $region20: #{asl_forward.13} parent=11 // pred_fallthru
        _
    $region12: #{asl_forward.13} parent=5 // pred_fallthru
      _
    %p200 = scmp.lt.s32.totalorder %s10, 4
    // Predicated region
    $region21: #{asl_forward.13} parent=5 // pred_check
      %p201 = pneg %p200
    $region22: #{asl_forward.13} parent=5 // pred_check_branch
      %203 = sbr.rel (%p201) target = $region24
    $region23: #{asl_forward.13} parent=5 // pred_region
      // Predicated region
      $region25: #{asl_forward.13} parent=23 // pred_check
        %p204 = pneg %p51
      $region26: #{asl_forward.13} parent=23 // pred_check_branch
        %206 = sbr.rel (%p204) target = $region28
      $region27: #{asl_forward.13} parent=23 // pred_region
        %s207 = smul.u32 16, %s17
        %p208 = scmp.lt.s32.totalorder %s207, 63
        %s209 = scalar_select %p208, %s207, 63
        %p210 = scmp.lt.s32.totalorder %s19, 0
        %s211 = scalar_select %p210, %s19, 0
        %s212 = sadd.s32 %s211, %s209
        %s213 = smul.addr %s212, 8
        %s214 = scalar_lea.vmem %s0, %s213
        %s215 = smul.u32 16, %s17
      $region28: #{asl_forward.13} parent=23 // pred_fallthru
        _
      // Predicated region
      $region29: #{asl_forward.13} parent=23 // pred_check
        %p216 = pneg %p133
      $region30: #{asl_forward.13} parent=23 // pred_check_branch
        %218 = sbr.rel (%p216) target = $region32
      $region31: #{asl_forward.13} parent=23 // pred_region
        %s219 = smul.u32 16, %s17
        %p220 = scmp.lt.s32.totalorder %s219, 63
        %s221 = scalar_select %p220, %s219, 63
        %p222 = scmp.lt.s32.totalorder %s18, 0
        %s223 = scalar_select %p222, %s18, 0
        %s224 = sadd.s32 %s223, %s221
        %s225 = smul.addr %s224, 8
        %s226 = scalar_lea.vmem %s3, %s225
        %s227 = smul.u32 16, %s17
      $region32: #{asl_forward.13} parent=23 // pred_fallthru
        _
    $region24: #{asl_forward.13} parent=5 // pred_fallthru
      _
    %p228 = scmp.le.s32.totalorder 1, %s10
    %p229 = scmp.lt.s32.totalorder %s10, 5
    %p230 = pnand %p228, %p229
    %p231 = pneg %p230
    // Predicated region
    $region33: #{asl_forward.13} parent=5 // pred_check
      _
    $region34: #{asl_forward.13} parent=5 // pred_check_branch
      %233 = sbr.rel (%p230) target = $region36
    $region35: #{asl_forward.13} parent=5 // pred_region
      %s234 = ssub.s32 %s10, 1
      %s235 = smul.u32 16, %s20
      %p236 = scmp.lt.s32.totalorder %s235, 63
      %s237 = scalar_select %p236, %s235, 63
      %p238 = scmp.lt.s32.totalorder %s22, 0
      %s239 = scalar_select %p238, %s22, 0
      %s240 = sadd.s32 %s239, %s237
      %s241 = smul.addr %s240, 8
      %s242 = scalar_lea.vmem %s0, %s241
      %p243 = pneg %p57
      %p244 = pneg %p54
      %s245 = smul.u32 2, %s22
      %p246 = scmp.lt.s32.totalorder %s245, 1
      %s247 = scalar_select %p246, %s245, 1
      %p248 = scmp.lt.s32.totalorder %s21, 0
      %s249 = scalar_select %p248, %s21, 0
      %s250 = sadd.s32 %s249, %s247
      %s251 = smul.addr %s250, 8
      %s252 = scalar_lea.vmem %s1, %s251
      %p253 = pneg %p85
      %p254 = pneg %p82
      %p255 = scmp.lt.s32.totalorder %s21, 0
      %s256 = scalar_select %p255, %s21, 0
      %s257 = scalar_lea.vmem %s2, %s256
      %p258 = pneg %p111
      %p259 = pneg %p108
      %s260 = smul.u32 16, %s20
      %p261 = scmp.lt.s32.totalorder %s260, 63
      %s262 = scalar_select %p261, %s260, 63
      %p263 = scmp.lt.s32.totalorder %s21, 0
      %s264 = scalar_select %p263, %s21, 0
      %s265 = sadd.s32 %s264, %s262
      %s266 = smul.addr %s265, 8
      %s267 = scalar_lea.vmem %s3, %s266
      %p268 = pneg %p139
      %p269 = pneg %p136
      %p270 = pneg %p167
      %p271 = pneg %p164
      %s272 = smul.u32 16, %s20
      %p273 = scmp.lt.s32.totalorder %s272, 63
      %s274 = scalar_select %p273, %s272, 63
      %p275 = scmp.lt.s32.totalorder %s21, 0
      %s276 = scalar_select %p275, %s21, 0
      %s277 = sadd.s32 %s276, %s274
      %s278 = smul.addr %s277, 8
      %s279 = scalar_lea.vmem %s4, %s278
      %s280 = smul.u32 16, %s20
      %p281 = scmp.lt.s32.totalorder %s280, 63
      %s282 = scalar_select %p281, %s280, 63
      %p283 = scmp.lt.s32.totalorder %s22, 0
      %s284 = scalar_select %p283, %s22, 0
      %s285 = sadd.s32 %s284, %s282
      %s286 = smul.addr %s285, 8
      %s287 = scalar_lea.vmem %s0, %s286
      %s288 = smul.u32 16, %s20
      %s289 = smul.u32 2, %s22
      %p290 = scmp.lt.s32.totalorder %s289, 1
      %s291 = scalar_select %p290, %s289, 1
      %p292 = scmp.lt.s32.totalorder %s21, 0
      %s293 = scalar_select %p292, %s21, 0
      %s294 = sadd.s32 %s293, %s291
      %s295 = smul.addr %s294, 8
      %s296 = scalar_lea.vmem %s1, %s295
      %s297 = smul.u32 2, %s22
      %p298 = scmp.lt.s32.totalorder %s21, 0
      %s299 = scalar_select %p298, %s21, 0
      %s300 = scalar_lea.vmem %s2, %s299
      %s301 = smul.u32 16, %s20
      %p302 = scmp.lt.s32.totalorder %s301, 63
      %s303 = scalar_select %p302, %s301, 63
      %p304 = scmp.lt.s32.totalorder %s21, 0
      %s305 = scalar_select %p304, %s21, 0
      %s306 = sadd.s32 %s305, %s303
      %s307 = smul.addr %s306, 8
      %s308 = scalar_lea.vmem %s3, %s307
      %s309 = smul.u32 16, %s20
      %s310 = smul.u32 16, %s20
      %p311 = scmp.lt.s32.totalorder %s310, 63
      %s312 = scalar_select %p311, %s310, 63
      %p313 = scmp.lt.s32.totalorder %s21, 0
      %s314 = scalar_select %p313, %s21, 0
      %s315 = sadd.s32 %s314, %s312
      %s316 = smul.addr %s315, 8
      %s317 = scalar_lea.vmem %s4, %s316
      %s318 = smul.u32 16, %s20
      %p320 = scmp.eq.s32.totalorder %s22, 0
      // Predicated region
      $region37: #{asl_forward.13} parent=35 // pred_check
        %p321 = pneg %p320
      $region38: #{asl_forward.13} parent=35 // pred_check_branch
        %323 = sbr.rel (%p321) target = $region40
      $region39: #{asl_forward.13} parent=35 // pred_region
        %vm324 = vcmask 64512
        %325 = vst.msk [vmem:[#allocation2] sm:$0xff] %vm324, 0.0
        %326 = vst.msk [vmem:[#allocation2 + $0x8] sm:$0xff] %vm324, 0.0
        %327 = vst.msk [vmem:[#allocation2 + $0x10] sm:$0xff] %vm324, 0.0
        %328 = vst.msk [vmem:[#allocation2 + $0x18] sm:$0xff] %vm324, 0.0
        %329 = vst.msk [vmem:[#allocation2 + $0x20] sm:$0xff] %vm324, 0.0
        %330 = vst.msk [vmem:[#allocation2 + $0x28] sm:$0xff] %vm324, 0.0
        %331 = vst.msk [vmem:[#allocation2 + $0x30] sm:$0xff] %vm324, 0.0
        %332 = vst.msk [vmem:[#allocation2 + $0x38] sm:$0xff] %vm324, 0.0
        %333 = vst.msk [vmem:[#allocation2 + $0x40] sm:$0xff] %vm324, 0.0
        %334 = vst.msk [vmem:[#allocation2 + $0x48] sm:$0xff] %vm324, 0.0
        %335 = vst.msk [vmem:[#allocation2 + $0x50] sm:$0xff] %vm324, 0.0
        %336 = vst.msk [vmem:[#allocation2 + $0x58] sm:$0xff] %vm324, 0.0
        %337 = vst.msk [vmem:[#allocation2 + $0x60] sm:$0xff] %vm324, 0.0
        %338 = vst.msk [vmem:[#allocation2 + $0x68] sm:$0xff] %vm324, 0.0
        %339 = vst.msk [vmem:[#allocation2 + $0x70] sm:$0xff] %vm324, 0.0
        %340 = vst.msk [vmem:[#allocation2 + $0x78] sm:$0xff] %vm324, 0.0
      $region40: #{asl_forward.13} parent=35 // pred_fallthru
        _
      %v341 = vld [vmem:[#allocation2] sm:$0xff]
      %v342 = vld [vmem:[#allocation2 + $0x8] sm:$0xff]
      %v343 = vld [vmem:[#allocation2 + $0x10] sm:$0xff]
      %v344 = vld [vmem:[#allocation2 + $0x18] sm:$0xff]
      %v345 = vld [vmem:[#allocation2 + $0x20] sm:$0xff]
      %v346 = vld [vmem:[#allocation2 + $0x28] sm:$0xff]
      %v347 = vld [vmem:[#allocation2 + $0x30] sm:$0xff]
      %v348 = vld [vmem:[#allocation2 + $0x38] sm:$0xff]
      %v349 = vld [vmem:[#allocation2 + $0x40] sm:$0xff]
      %v350 = vld [vmem:[#allocation2 + $0x48] sm:$0xff]
      %v351 = vld [vmem:[#allocation2 + $0x50] sm:$0xff]
      %v352 = vld [vmem:[#allocation2 + $0x58] sm:$0xff]
      %v353 = vld [vmem:[#allocation2 + $0x60] sm:$0xff]
      %v354 = vld [vmem:[#allocation2 + $0x68] sm:$0xff]
      %v355 = vld [vmem:[#allocation2 + $0x70] sm:$0xff]
      %v356 = vld [vmem:[#allocation2 + $0x78] sm:$0xff]
      %v357 = vld [vmem:[%s287] sm:$0xff]
      %v358 = vld [vmem:[%s287 + $0x8] sm:$0xff]
      %v359 = vld [vmem:[%s287 + $0x10] sm:$0xff]
      %v360 = vld [vmem:[%s287 + $0x18] sm:$0xff]
      %v361 = vld [vmem:[%s287 + $0x20] sm:$0xff]
      %v362 = vld [vmem:[%s287 + $0x28] sm:$0xff]
      %v363 = vld [vmem:[%s287 + $0x30] sm:$0xff]
      %v364 = vld [vmem:[%s287 + $0x38] sm:$0xff]
      %v365 = vld [vmem:[%s287 + $0x40] sm:$0xff]
      %v366 = vld [vmem:[%s287 + $0x48] sm:$0xff]
      %v367 = vld [vmem:[%s287 + $0x50] sm:$0xff]
      %v368 = vld [vmem:[%s287 + $0x58] sm:$0xff]
      %v369 = vld [vmem:[%s287 + $0x60] sm:$0xff]
      %v370 = vld [vmem:[%s287 + $0x68] sm:$0xff]
      %v371 = vld [vmem:[%s287 + $0x70] sm:$0xff]
      %v372 = vld [vmem:[%s287 + $0x78] sm:$0xff]
      %v373 = vpack.c.bf16 %v358, %v357
      %v374 = vpack.c.bf16 %v360, %v359
      %v375 = vpack.c.bf16 %v362, %v361
      %v376 = vpack.c.bf16 %v364, %v363
      %v377 = vpack.c.bf16 %v366, %v365
      %v378 = vpack.c.bf16 %v368, %v367
      %v379 = vpack.c.bf16 %v370, %v369
      %v380 = vpack.c.bf16 %v372, %v371
      %v381 = vld [vmem:[%s296] sm:$0xff]
      %v382 = vld [vmem:[%s296 + $0x8] sm:$0xff]
      %v383 = vpack.c.bf16 %v382, %v381
      %vm384 = vcmask 130048
      %v386 = vsel %vm384, %v373, 0
      %v389 = vsel %vm384, %v374, 0
      %v392 = vsel %vm384, %v375, 0
      %v395 = vsel %vm384, %v376, 0
      %v398 = vsel %vm384, %v377, 0
      %v401 = vsel %vm384, %v378, 0
      %v404 = vsel %vm384, %v379, 0
      %v407 = vsel %vm384, %v380, 0
      %409 = vmatpush.bf16.msra.mxu0 0
      %410 = vmatpush.bf16.msra.mxu0 0
      %411 = vmatpush.bf16.msra.mxu0 0
      %412 = vmatpush.bf16.msra.mxu0 0
      %413 = vmatpush.bf16.msra.mxu0 0
      %414 = vmatpush.bf16.msra.mxu0 0
      %415 = vmatpush.bf16.msra.mxu0 0
      %416 = vmatpush.bf16.msra.mxu0 %v383
      %417 = vmatmul.bf16.gmra.mxu0 %v386
      %v418 = vpop.f32.mrf.mxu0
      %v419 = vadd.f32 0.0, %v418
      %v420 = vpop.f32.mrf.mxu0
      %v421 = vadd.f32 0.0, %v420
      %422 = vmatmul.bf16.gmra.mxu0 %v389
      %v423 = vpop.f32.mrf.mxu0
      %v424 = vadd.f32 0.0, %v423
      %v425 = vpop.f32.mrf.mxu0
      %v426 = vadd.f32 0.0, %v425
      %427 = vmatmul.bf16.gmra.mxu0 %v392
      %v428 = vpop.f32.mrf.mxu0
      %v429 = vadd.f32 0.0, %v428
      %v430 = vpop.f32.mrf.mxu0
      %v431 = vadd.f32 0.0, %v430
      %432 = vmatmul.bf16.gmra.mxu0 %v395
      %v433 = vpop.f32.mrf.mxu0
      %v434 = vadd.f32 0.0, %v433
      %v435 = vpop.f32.mrf.mxu0
      %v436 = vadd.f32 0.0, %v435
      %437 = vmatmul.bf16.gmra.mxu0 %v398
      %v438 = vpop.f32.mrf.mxu0
      %v439 = vadd.f32 0.0, %v438
      %v440 = vpop.f32.mrf.mxu0
      %v441 = vadd.f32 0.0, %v440
      %442 = vmatmul.bf16.gmra.mxu0 %v401
      %v443 = vpop.f32.mrf.mxu0
      %v444 = vadd.f32 0.0, %v443
      %v445 = vpop.f32.mrf.mxu0
      %v446 = vadd.f32 0.0, %v445
      %447 = vmatmul.bf16.gmra.mxu0 %v404
      %v448 = vpop.f32.mrf.mxu0
      %v449 = vadd.f32 0.0, %v448
      %v450 = vpop.f32.mrf.mxu0
      %v451 = vadd.f32 0.0, %v450
      %452 = vmatmul.bf16.gmra.mxu0 %v407
      %v453 = vpop.f32.mrf.mxu0
      %v454 = vadd.f32 0.0, %v453
      %v455 = vpop.f32.mrf.mxu0
      %v456 = vadd.f32 0.0, %v455
      %457 = vdwg.mxu0
      %v458 = vadd.f32 %v341, %v419
      %v459 = vadd.f32 %v342, %v421
      %v460 = vadd.f32 %v343, %v424
      %v461 = vadd.f32 %v344, %v426
      %v462 = vadd.f32 %v345, %v429
      %v463 = vadd.f32 %v346, %v431
      %v464 = vadd.f32 %v347, %v434
      %v465 = vadd.f32 %v348, %v436
      %v466 = vadd.f32 %v349, %v439
      %v467 = vadd.f32 %v350, %v441
      %v468 = vadd.f32 %v351, %v444
      %v469 = vadd.f32 %v352, %v446
      %v470 = vadd.f32 %v353, %v449
      %v471 = vadd.f32 %v354, %v451
      %v472 = vadd.f32 %v355, %v454
      %v473 = vadd.f32 %v356, %v456
      %vm474 = vcmask 64512
      %475 = vst.msk [vmem:[#allocation2] sm:$0xff] %vm474, %v458
      %476 = vst.msk [vmem:[#allocation2 + $0x8] sm:$0xff] %vm474, %v459
      %477 = vst.msk [vmem:[#allocation2 + $0x10] sm:$0xff] %vm474, %v460
      %478 = vst.msk [vmem:[#allocation2 + $0x18] sm:$0xff] %vm474, %v461
      %479 = vst.msk [vmem:[#allocation2 + $0x20] sm:$0xff] %vm474, %v462
      %480 = vst.msk [vmem:[#allocation2 + $0x28] sm:$0xff] %vm474, %v463
      %481 = vst.msk [vmem:[#allocation2 + $0x30] sm:$0xff] %vm474, %v464
      %482 = vst.msk [vmem:[#allocation2 + $0x38] sm:$0xff] %vm474, %v465
      %483 = vst.msk [vmem:[#allocation2 + $0x40] sm:$0xff] %vm474, %v466
      %484 = vst.msk [vmem:[#allocation2 + $0x48] sm:$0xff] %vm474, %v467
      %485 = vst.msk [vmem:[#allocation2 + $0x50] sm:$0xff] %vm474, %v468
      %486 = vst.msk [vmem:[#allocation2 + $0x58] sm:$0xff] %vm474, %v469
      %487 = vst.msk [vmem:[#allocation2 + $0x60] sm:$0xff] %vm474, %v470
      %488 = vst.msk [vmem:[#allocation2 + $0x68] sm:$0xff] %vm474, %v471
      %489 = vst.msk [vmem:[#allocation2 + $0x70] sm:$0xff] %vm474, %v472
      %490 = vst.msk [vmem:[#allocation2 + $0x78] sm:$0xff] %vm474, %v473
      // Predicated region
      $region41: #{asl_forward.13} parent=35 // pred_check
        %p491 = pneg %p320
      $region42: #{asl_forward.13} parent=35 // pred_check_branch
        %493 = sbr.rel (%p491) target = $region44
      $region43: #{asl_forward.13} parent=35 // pred_region
        %v494 = vld [vmem:[#allocation2] sm:$0xff]
        %v495 = vld [vmem:[#allocation2 + $0x8] sm:$0xff]
        %v496 = vld [vmem:[#allocation2 + $0x10] sm:$0xff]
        %v497 = vld [vmem:[#allocation2 + $0x18] sm:$0xff]
        %v498 = vld [vmem:[#allocation2 + $0x20] sm:$0xff]
        %v499 = vld [vmem:[#allocation2 + $0x28] sm:$0xff]
        %v500 = vld [vmem:[#allocation2 + $0x30] sm:$0xff]
        %v501 = vld [vmem:[#allocation2 + $0x38] sm:$0xff]
        %v502 = vld [vmem:[#allocation2 + $0x40] sm:$0xff]
        %v503 = vld [vmem:[#allocation2 + $0x48] sm:$0xff]
        %v504 = vld [vmem:[#allocation2 + $0x50] sm:$0xff]
        %v505 = vld [vmem:[#allocation2 + $0x58] sm:$0xff]
        %v506 = vld [vmem:[#allocation2 + $0x60] sm:$0xff]
        %v507 = vld [vmem:[#allocation2 + $0x68] sm:$0xff]
        %v508 = vld [vmem:[#allocation2 + $0x70] sm:$0xff]
        %v509 = vld [vmem:[#allocation2 + $0x78] sm:$0xff]
        %v510 = vld [vmem:[%s300] sm:$0x1]
        %v512 = vperm.slane %v510, 0
        %v514 = vadd.f32 %v494, %v512
        %v515 = vadd.f32 %v495, %v512
        %v516 = vadd.f32 %v496, %v512
        %v517 = vadd.f32 %v497, %v512
        %v518 = vadd.f32 %v498, %v512
        %v519 = vadd.f32 %v499, %v512
        %v520 = vadd.f32 %v500, %v512
        %v521 = vadd.f32 %v501, %v512
        %v522 = vadd.f32 %v502, %v512
        %v523 = vadd.f32 %v503, %v512
        %v524 = vadd.f32 %v504, %v512
        %v525 = vadd.f32 %v505, %v512
        %v526 = vadd.f32 %v506, %v512
        %v527 = vadd.f32 %v507, %v512
        %v528 = vadd.f32 %v508, %v512
        %v529 = vadd.f32 %v509, %v512
        %v530 = vld [vmem:[%s308] sm:$0xff]
        %v531 = vld [vmem:[%s308 + $0x8] sm:$0xff]
        %v532 = vld [vmem:[%s308 + $0x10] sm:$0xff]
        %v533 = vld [vmem:[%s308 + $0x18] sm:$0xff]
        %v534 = vld [vmem:[%s308 + $0x20] sm:$0xff]
        %v535 = vld [vmem:[%s308 + $0x28] sm:$0xff]
        %v536 = vld [vmem:[%s308 + $0x30] sm:$0xff]
        %v537 = vld [vmem:[%s308 + $0x38] sm:$0xff]
        %v538 = vld [vmem:[%s308 + $0x40] sm:$0xff]
        %v539 = vld [vmem:[%s308 + $0x48] sm:$0xff]
        %v540 = vld [vmem:[%s308 + $0x50] sm:$0xff]
        %v541 = vld [vmem:[%s308 + $0x58] sm:$0xff]
        %v542 = vld [vmem:[%s308 + $0x60] sm:$0xff]
        %v543 = vld [vmem:[%s308 + $0x68] sm:$0xff]
        %v544 = vld [vmem:[%s308 + $0x70] sm:$0xff]
        %v545 = vld [vmem:[%s308 + $0x78] sm:$0xff]
        %v546 = vadd.f32 %v514, %v530
        %v547 = vadd.f32 %v515, %v531
        %v548 = vadd.f32 %v516, %v532
        %v549 = vadd.f32 %v517, %v533
        %v550 = vadd.f32 %v518, %v534
        %v551 = vadd.f32 %v519, %v535
        %v552 = vadd.f32 %v520, %v536
        %v553 = vadd.f32 %v521, %v537
        %v554 = vadd.f32 %v522, %v538
        %v555 = vadd.f32 %v523, %v539
        %v556 = vadd.f32 %v524, %v540
        %v557 = vadd.f32 %v525, %v541
        %v558 = vadd.f32 %v526, %v542
        %v559 = vadd.f32 %v527, %v543
        %v560 = vadd.f32 %v528, %v544
        %v561 = vadd.f32 %v529, %v545
        %562 = vst.msk [vmem:[%s317] sm:$0xff] %vm474, %v546
        %563 = vst.msk [vmem:[%s317 + $0x8] sm:$0xff] %vm474, %v547
        %564 = vst.msk [vmem:[%s317 + $0x10] sm:$0xff] %vm474, %v548
        %565 = vst.msk [vmem:[%s317 + $0x18] sm:$0xff] %vm474, %v549
        %566 = vst.msk [vmem:[%s317 + $0x20] sm:$0xff] %vm474, %v550
        %567 = vst.msk [vmem:[%s317 + $0x28] sm:$0xff] %vm474, %v551
        %568 = vst.msk [vmem:[%s317 + $0x30] sm:$0xff] %vm474, %v552
        %569 = vst.msk [vmem:[%s317 + $0x38] sm:$0xff] %vm474, %v553
        %570 = vst.msk [vmem:[%s317 + $0x40] sm:$0xff] %vm474, %v554
        %571 = vst.msk [vmem:[%s317 + $0x48] sm:$0xff] %vm474, %v555
        %572 = vst.msk [vmem:[%s317 + $0x50] sm:$0xff] %vm474, %v556
        %573 = vst.msk [vmem:[%s317 + $0x58] sm:$0xff] %vm474, %v557
        %574 = vst.msk [vmem:[%s317 + $0x60] sm:$0xff] %vm474, %v558
        %575 = vst.msk [vmem:[%s317 + $0x68] sm:$0xff] %vm474, %v559
        %576 = vst.msk [vmem:[%s317 + $0x70] sm:$0xff] %vm474, %v560
        %577 = vst.msk [vmem:[%s317 + $0x78] sm:$0xff] %vm474, %v561
      $region44: #{asl_forward.13} parent=35 // pred_fallthru
        _
      %s578 = smul.u32 16, %s20
      %p579 = scmp.lt.s32.totalorder %s578, 63
      %s580 = scalar_select %p579, %s578, 63
      %p581 = scmp.lt.s32.totalorder %s21, 0
      %s582 = scalar_select %p581, %s21, 0
      %s583 = sadd.s32 %s582, %s580
      %s584 = smul.addr %s583, 8
      %s585 = scalar_lea.vmem %s4, %s584
      // Predicated region
      $region45: #{asl_forward.13} parent=35 // pred_check
        %p586 = pneg %p164
      $region46: #{asl_forward.13} parent=35 // pred_check_branch
        %588 = sbr.rel (%p586) target = $region48
      $region47: #{asl_forward.13} parent=35 // pred_region
        %s589 = smul.u32 16, %s20
      $region48: #{asl_forward.13} parent=35 // pred_fallthru
        _
    $region36: #{asl_forward.13} parent=5 // pred_fallthru
      _
    %p590 = scmp.le.s32.totalorder 2, %s10
    // Predicated region
    $region49: #{asl_forward.13} parent=5 // pred_check
      %p591 = pneg %p590
    $region50: #{asl_forward.13} parent=5 // pred_check_branch
      %593 = sbr.rel (%p591) target = $region52
    $region51: #{asl_forward.13} parent=5 // pred_region
      %s594 = ssub.s32 %s10, 2
      // Predicated region
      $region53: #{asl_forward.13} parent=51 // pred_check
        %p595 = pneg %p170
      $region54: #{asl_forward.13} parent=51 // pred_check_branch
        %597 = sbr.rel (%p595) target = $region56
      $region55: #{asl_forward.13} parent=51 // pred_region
        %s598 = smul.u32 16, %s23
        %p599 = scmp.lt.s32.totalorder %s598, 63
        %s600 = scalar_select %p599, %s598, 63
        %p601 = scmp.lt.s32.totalorder %s24, 0
        %s602 = scalar_select %p601, %s24, 0
        %s603 = sadd.s32 %s602, %s600
        %s604 = smul.addr %s603, 8
        %s605 = scalar_lea.vmem %s4, %s604
      $region56: #{asl_forward.13} parent=51 // pred_fallthru
        _
    $region52: #{asl_forward.13} parent=5 // pred_fallthru
      _
  $region6: #{asl_forward.13} parent=0 // loop_footer
    %s14 = sadd.s32 1, %s10
  $region7: #{asl_forward.13} parent=0 // loop_footer_branch
    %9 = sbr.rel target = $region3
  $region8: #{asl_forward.13} parent=0 // loop_exit
    _

// kernel: asl_forward.14
$region0: #{asl_forward.14}
  #allocation0 [shape = 'u32[]', space=smem, size = 0x4, offset = 0x4, fixed_abs, tag = 'smem constant byte address 0x4 - core index']
  #allocation1 [shape = 'u32[72,128]{1,0:T(1,128)}', space=vmem, size = 0x9000, scoped, tag = 'internal scratch']
  %s0 = inlined_call_operand.vmem [shape: f32[256,16], index: 0, kind: input, shape index: {}]
  %s1 = inlined_call_operand.vmem [shape: f32[1,16], index: 1, kind: input, shape index: {}]
  %s2 = inlined_call_operand.vmem [shape: f32[1,16], index: 2, kind: input, shape index: {}]
  %s3 = inlined_call_operand.vmem [shape: f32[16,16], index: 3, kind: input, shape index: {}]
  %s4 = inlined_call_operand.vmem [shape: f32[1,16], index: 4, kind: input, shape index: {}]
  %s5 = inlined_call_operand.vmem [shape: f32[256,16], index: 5, kind: output, shape index: {}]
  %s6 = sld [smem:[#allocation0]]
  $region53: #{asl_forward.14} parent=0
    _
  %s8 = ssub.s32 1, %s6
  %s9 = scalar_select 0, %s8, %s6
  loop: start=0, step=1, limit=4
  $region2: #{asl_forward.14} parent=0 // loop_pre_header
    _
  $region3: #{asl_forward.14} parent=0 // loop_header
    %s11 = sphi 0, %s15
    %p12 = scmp.ge.s32.totalorder %s11, 4
    %s21 = sphi 0, %s23
    %s24 = sphi 0, %s21
    %s25 = sphi 0, %s24
    %s41 = sphi 0, %s25
    %s45 = sphi 0, %s45
    %s47 = sphi 0, %s45
    %s48 = sphi 0, %s47
    %s62 = sphi 0, %s48
    %s66 = sphi 0, %s66
    %s68 = sphi 0, %s66
    %s69 = sphi 0, %s68
    %s83 = sphi 0, %s69
    %s87 = sphi 0, %s87
    %s89 = sphi 0, %s87
    %s90 = sphi 0, %s89
    %s104 = sphi 0, %s90
    %s108 = sphi 0, %s108
    %s110 = sphi 0, %s108
    %s111 = sphi 0, %s110
    %s125 = sphi 0, %s111
    %s131 = sphi 0, %s133
    %s134 = sphi 0, %s131
    %s135 = sphi 0, %s134
    %s151 = sphi 0, %s135
  $region4: #{asl_forward.14} parent=0 // loop_header_branch
    %14 = sbr.rel (%p12) target = $region8
  $region5: #{asl_forward.14} parent=0 // loop_body
    %s16 = ssub.s32 %s11, 1
    %s17 = ssub.s32 %s11, 2
    %s18 = sadd.s32 %s11, 1
    %s19 = ssub.s32 %s11, %s18
    %p20 = scmp.eq.s32.totalorder %s19, 0
    %s22 = sadd.s32 %s21, 1
    %s23 = scalar_select %p20, %s21, %s22
    %p26 = pneg %p20
    %p27 = scmp.eq.s32.totalorder %s11, 1
    %p28 = por %p26, %p27
    %p29 = scmp.ne.s32.totalorder %s21, %s24
    %p30 = scmp.eq.s32.totalorder %s11, 0
    %p31 = por %p29, %p30
    %p32 = scmp.ne.s32.totalorder %s21, %s24
    %p33 = scmp.eq.s32.totalorder %s16, 1
    %p34 = por %p32, %p33
    %p35 = scmp.ne.s32.totalorder %s24, %s25
    %p36 = scmp.eq.s32.totalorder %s16, 0
    %p37 = por %p35, %p36
    %p38 = scmp.ne.s32.totalorder %s24, %s25
    %p39 = scmp.eq.s32.totalorder %s17, 1
    %p40 = por %p38, %p39
    %p42 = scmp.ne.s32.totalorder %s25, %s41
    %p43 = scmp.eq.s32.totalorder %s17, 0
    %p44 = por %p42, %p43
    %s46 = sadd.s32 %s45, 1
    %p49 = scmp.eq.s32.totalorder %s11, 1
    %p50 = scmp.ne.s32.totalorder %s45, %s47
    %p51 = scmp.eq.s32.totalorder %s11, 0
    %p52 = por %p50, %p51
    %p53 = scmp.ne.s32.totalorder %s45, %s47
    %p54 = scmp.eq.s32.totalorder %s16, 1
    %p55 = por %p53, %p54
    %p56 = scmp.ne.s32.totalorder %s47, %s48
    %p57 = scmp.eq.s32.totalorder %s16, 0
    %p58 = por %p56, %p57
    %p59 = scmp.ne.s32.totalorder %s47, %s48
    %p60 = scmp.eq.s32.totalorder %s17, 1
    %p61 = por %p59, %p60
    %p63 = scmp.ne.s32.totalorder %s48, %s62
    %p64 = scmp.eq.s32.totalorder %s17, 0
    %p65 = por %p63, %p64
    %s67 = sadd.s32 %s66, 1
    %p70 = scmp.eq.s32.totalorder %s11, 1
    %p71 = scmp.ne.s32.totalorder %s66, %s68
    %p72 = scmp.eq.s32.totalorder %s11, 0
    %p73 = por %p71, %p72
    %p74 = scmp.ne.s32.totalorder %s66, %s68
    %p75 = scmp.eq.s32.totalorder %s16, 1
    %p76 = por %p74, %p75
    %p77 = scmp.ne.s32.totalorder %s68, %s69
    %p78 = scmp.eq.s32.totalorder %s16, 0
    %p79 = por %p77, %p78
    %p80 = scmp.ne.s32.totalorder %s68, %s69
    %p81 = scmp.eq.s32.totalorder %s17, 1
    %p82 = por %p80, %p81
    %p84 = scmp.ne.s32.totalorder %s69, %s83
    %p85 = scmp.eq.s32.totalorder %s17, 0
    %p86 = por %p84, %p85
    %s88 = sadd.s32 %s87, 1
    %p91 = scmp.eq.s32.totalorder %s11, 1
    %p92 = scmp.ne.s32.totalorder %s87, %s89
    %p93 = scmp.eq.s32.totalorder %s11, 0
    %p94 = por %p92, %p93
    %p95 = scmp.ne.s32.totalorder %s87, %s89
    %p96 = scmp.eq.s32.totalorder %s16, 1
    %p97 = por %p95, %p96
    %p98 = scmp.ne.s32.totalorder %s89, %s90
    %p99 = scmp.eq.s32.totalorder %s16, 0
    %p100 = por %p98, %p99
    %p101 = scmp.ne.s32.totalorder %s89, %s90
    %p102 = scmp.eq.s32.totalorder %s17, 1
    %p103 = por %p101, %p102
    %p105 = scmp.ne.s32.totalorder %s90, %s104
    %p106 = scmp.eq.s32.totalorder %s17, 0
    %p107 = por %p105, %p106
    %s109 = sadd.s32 %s108, 1
    %p112 = scmp.eq.s32.totalorder %s11, 1
    %p113 = scmp.ne.s32.totalorder %s108, %s110
    %p114 = scmp.eq.s32.totalorder %s11, 0
    %p115 = por %p113, %p114
    %p116 = scmp.ne.s32.totalorder %s108, %s110
    %p117 = scmp.eq.s32.totalorder %s16, 1
    %p118 = por %p116, %p117
    %p119 = scmp.ne.s32.totalorder %s110, %s111
    %p120 = scmp.eq.s32.totalorder %s16, 0
    %p121 = por %p119, %p120
    %p122 = scmp.ne.s32.totalorder %s110, %s111
    %p123 = scmp.eq.s32.totalorder %s17, 1
    %p124 = por %p122, %p123
    %p126 = scmp.ne.s32.totalorder %s111, %s125
    %p127 = scmp.eq.s32.totalorder %s17, 0
    %p128 = por %p126, %p127
    %s129 = ssub.s32 %s11, %s18
    %p130 = scmp.eq.s32.totalorder %s129, 0
    %s132 = sadd.s32 %s131, 1
    %s133 = scalar_select %p130, %s131, %s132
    %p136 = pneg %p130
    %p137 = scmp.eq.s32.totalorder %s11, 1
    %p138 = por %p136, %p137
    %p139 = scmp.ne.s32.totalorder %s131, %s134
    %p140 = scmp.eq.s32.totalorder %s11, 0
    %p141 = por %p139, %p140
    %p142 = scmp.ne.s32.totalorder %s131, %s134
    %p143 = scmp.eq.s32.totalorder %s16, 1
    %p144 = por %p142, %p143
    %p145 = scmp.ne.s32.totalorder %s134, %s135
    %p146 = scmp.eq.s32.totalorder %s16, 0
    %p147 = por %p145, %p146
    %p148 = scmp.ne.s32.totalorder %s134, %s135
    %p149 = scmp.eq.s32.totalorder %s17, 1
    %p150 = por %p148, %p149
    %p152 = scmp.ne.s32.totalorder %s135, %s151
    %p153 = scmp.eq.s32.totalorder %s17, 0
    %p154 = por %p152, %p153
    %p155 = scmp.le.s32.totalorder 1, %s11
    %p156 = scmp.lt.s32.totalorder %s11, 3
    %p157 = pnand %p155, %p156
    %p158 = pneg %p157
    // Predicated region
    $region9: #{asl_forward.14} parent=5 // pred_check
      _
    $region10: #{asl_forward.14} parent=5 // pred_check_branch
      %160 = sbr.rel (%p157) target = $region12
    $region11: #{asl_forward.14} parent=5 // pred_region
      %s161 = ssub.s32 %s11, 1
      // Predicated region
      $region13: #{asl_forward.14} parent=11 // pred_check
        %p162 = pneg %p58
      $region14: #{asl_forward.14} parent=11 // pred_check_branch
        %164 = sbr.rel (%p162) target = $region16
      $region15: #{asl_forward.14} parent=11 // pred_region
        _
      $region16: #{asl_forward.14} parent=11 // pred_fallthru
        _
      // Predicated region
      $region17: #{asl_forward.14} parent=11 // pred_check
        %p165 = pneg %p79
      $region18: #{asl_forward.14} parent=11 // pred_check_branch
        %167 = sbr.rel (%p165) target = $region20
      $region19: #{asl_forward.14} parent=11 // pred_region
        _
      $region20: #{asl_forward.14} parent=11 // pred_fallthru
        _
      // Predicated region
      $region21: #{asl_forward.14} parent=11 // pred_check
        %p168 = pneg %p100
      $region22: #{asl_forward.14} parent=11 // pred_check_branch
        %170 = sbr.rel (%p168) target = $region24
      $region23: #{asl_forward.14} parent=11 // pred_region
        _
      $region24: #{asl_forward.14} parent=11 // pred_fallthru
        _
      // Predicated region
      $region25: #{asl_forward.14} parent=11 // pred_check
        %p171 = pneg %p121
      $region26: #{asl_forward.14} parent=11 // pred_check_branch
        %173 = sbr.rel (%p171) target = $region28
      $region27: #{asl_forward.14} parent=11 // pred_region
        _
      $region28: #{asl_forward.14} parent=11 // pred_fallthru
        _
    $region12: #{asl_forward.14} parent=5 // pred_fallthru
      _
    %p174 = scmp.lt.s32.totalorder %s11, 2
    // Predicated region
    $region29: #{asl_forward.14} parent=5 // pred_check
      %p175 = pneg %p174
    $region30: #{asl_forward.14} parent=5 // pred_check_branch
      %177 = sbr.rel (%p175) target = $region32
    $region31: #{asl_forward.14} parent=5 // pred_region
      // Predicated region
      $region33: #{asl_forward.14} parent=31 // pred_check
        %p178 = pneg %p31
      $region34: #{asl_forward.14} parent=31 // pred_check_branch
        %180 = sbr.rel (%p178) target = $region36
      $region35: #{asl_forward.14} parent=31 // pred_region
        %s181 = smul.u32 16, %s11
        %p182 = scmp.lt.s32.totalorder %s181, 31
        %s183 = scalar_select %p182, %s181, 31
        %s184 = smul.addr %s183, 8
        %s185 = scalar_lea.vmem %s0, %s184
        %s186 = smul.u32 16, %s11
      $region36: #{asl_forward.14} parent=31 // pred_fallthru
        _
    $region32: #{asl_forward.14} parent=5 // pred_fallthru
      _
    %p187 = scmp.le.s32.totalorder 1, %s11
    %p188 = scmp.lt.s32.totalorder %s11, 3
    %p189 = pnand %p187, %p188
    %p190 = pneg %p189
    // Predicated region
    $region37: #{asl_forward.14} parent=5 // pred_check
      _
    $region38: #{asl_forward.14} parent=5 // pred_check_branch
      %192 = sbr.rel (%p189) target = $region40
    $region39: #{asl_forward.14} parent=5 // pred_region
      %s193 = ssub.s32 %s11, 1
      %s194 = smul.u32 16, %s16
      %p195 = scmp.lt.s32.totalorder %s194, 31
      %s196 = scalar_select %p195, %s194, 31
      %s197 = smul.addr %s196, 8
      %s198 = scalar_lea.vmem %s0, %s197
      %p199 = pneg %p37
      %p200 = pneg %p34
      %p201 = pneg %p58
      %p202 = pneg %p55
      %p203 = pneg %p79
      %p204 = pneg %p76
      %p205 = pneg %p100
      %p206 = pneg %p97
      %p207 = pneg %p121
      %p208 = pneg %p118
      %p209 = pneg %p147
      %p210 = pneg %p144
      %s211 = smul.u32 16, %s16
      %p212 = scmp.lt.s32.totalorder %s211, 31
      %s213 = scalar_select %p212, %s211, 31
      %s214 = smul.addr %s213, 8
      %s215 = scalar_lea.vmem %s5, %s214
      %s216 = smul.u32 16, %s16
      %p217 = scmp.lt.s32.totalorder %s216, 31
      %s218 = scalar_select %p217, %s216, 31
      %s219 = smul.addr %s218, 8
      %s220 = scalar_lea.vmem %s0, %s219
      %s221 = smul.u32 16, %s16
      %s222 = smul.u32 16, %s16
      %p223 = scmp.lt.s32.totalorder %s222, 31
      %s224 = scalar_select %p223, %s222, 31
      %s225 = smul.addr %s224, 8
      %s226 = scalar_lea.vmem %s5, %s225
      %s227 = smul.u32 16, %s16
      %v229 = vld [vmem:[%s220] sm:$0xff]
      %v230 = vld [vmem:[%s220 + $0x8] sm:$0xff]
      %v231 = vld [vmem:[%s220 + $0x10] sm:$0xff]
      %v232 = vld [vmem:[%s220 + $0x18] sm:$0xff]
      %v233 = vld [vmem:[%s220 + $0x20] sm:$0xff]
      %v234 = vld [vmem:[%s220 + $0x28] sm:$0xff]
      %v235 = vld [vmem:[%s220 + $0x30] sm:$0xff]
      %v236 = vld [vmem:[%s220 + $0x38] sm:$0xff]
      %v237 = vld [vmem:[%s220 + $0x40] sm:$0xff]
      %v238 = vld [vmem:[%s220 + $0x48] sm:$0xff]
      %v239 = vld [vmem:[%s220 + $0x50] sm:$0xff]
      %v240 = vld [vmem:[%s220 + $0x58] sm:$0xff]
      %v241 = vld [vmem:[%s220 + $0x60] sm:$0xff]
      %v242 = vld [vmem:[%s220 + $0x68] sm:$0xff]
      %v243 = vld [vmem:[%s220 + $0x70] sm:$0xff]
      %v244 = vld [vmem:[%s220 + $0x78] sm:$0xff]
      %vm245 = vcmask 130048
      %v246 = vsel %vm245, %v229, 0.0
      %247 = vadd.xlane.f32.xlu0 %v246
      %v248 = vpop.xlane.xlu0 %247
      %v249 = vsel %vm245, %v230, 0.0
      %250 = vadd.xlane.f32.xlu0 %v249
      %v251 = vpop.xlane.xlu0 %250
      %v252 = vsel %vm245, %v231, 0.0
      %253 = vadd.xlane.f32.xlu0 %v252
      %v254 = vpop.xlane.xlu0 %253
      %v255 = vsel %vm245, %v232, 0.0
      %256 = vadd.xlane.f32.xlu0 %v255
      %v257 = vpop.xlane.xlu0 %256
      %v258 = vsel %vm245, %v233, 0.0
      %259 = vadd.xlane.f32.xlu0 %v258
      %v260 = vpop.xlane.xlu0 %259
      %v261 = vsel %vm245, %v234, 0.0
      %262 = vadd.xlane.f32.xlu0 %v261
      %v263 = vpop.xlane.xlu0 %262
      %v264 = vsel %vm245, %v235, 0.0
      %265 = vadd.xlane.f32.xlu0 %v264
      %v266 = vpop.xlane.xlu0 %265
      %v267 = vsel %vm245, %v236, 0.0
      %268 = vadd.xlane.f32.xlu0 %v267
      %v269 = vpop.xlane.xlu0 %268
      %v270 = vsel %vm245, %v237, 0.0
      %271 = vadd.xlane.f32.xlu0 %v270
      %v272 = vpop.xlane.xlu0 %271
      %v273 = vsel %vm245, %v238, 0.0
      %274 = vadd.xlane.f32.xlu0 %v273
      %v275 = vpop.xlane.xlu0 %274
      %v276 = vsel %vm245, %v239, 0.0
      %277 = vadd.xlane.f32.xlu0 %v276
      %v278 = vpop.xlane.xlu0 %277
      %v279 = vsel %vm245, %v240, 0.0
      %280 = vadd.xlane.f32.xlu0 %v279
      %v281 = vpop.xlane.xlu0 %280
      %v282 = vsel %vm245, %v241, 0.0
      %283 = vadd.xlane.f32.xlu0 %v282
      %v284 = vpop.xlane.xlu0 %283
      %v285 = vsel %vm245, %v242, 0.0
      %286 = vadd.xlane.f32.xlu0 %v285
      %v287 = vpop.xlane.xlu0 %286
      %v288 = vsel %vm245, %v243, 0.0
      %289 = vadd.xlane.f32.xlu0 %v288
      %v290 = vpop.xlane.xlu0 %289
      %v291 = vsel %vm245, %v244, 0.0
      %292 = vadd.xlane.f32.xlu0 %v291
      %v293 = vpop.xlane.xlu0 %292
      %v294 = vrcp.pop 16.0
      %v295 = vmul.f32 16.0, %v294
      %v296 = vsub.f32 1.0, %v295
      %v297 = vmul.f32 %v294, %v296
      %v298 = vadd.f32 %v294, %v297
      %vm299 = vweird.f32 %v294
      %v300 = vsel %vm299, %v294, %v298
      %v301 = vmul.f32 %v248, %v300
      %v302 = vmul.f32 %v251, %v300
      %v303 = vmul.f32 %v254, %v300
      %v304 = vmul.f32 %v257, %v300
      %v305 = vmul.f32 %v260, %v300
      %v306 = vmul.f32 %v263, %v300
      %v307 = vmul.f32 %v266, %v300
      %v308 = vmul.f32 %v269, %v300
      %v309 = vmul.f32 %v272, %v300
      %v310 = vmul.f32 %v275, %v300
      %v311 = vmul.f32 %v278, %v300
      %v312 = vmul.f32 %v281, %v300
      %v313 = vmul.f32 %v284, %v300
      %v314 = vmul.f32 %v287, %v300
      %v315 = vmul.f32 %v290, %v300
      %v316 = vmul.f32 %v293, %v300
      %v317 = vsub.f32 %v229, %v301
      %v318 = vsub.f32 %v230, %v302
      %v319 = vsub.f32 %v231, %v303
      %v320 = vsub.f32 %v232, %v304
      %v321 = vsub.f32 %v233, %v305
      %v322 = vsub.f32 %v234, %v306
      %v323 = vsub.f32 %v235, %v307
      %v324 = vsub.f32 %v236, %v308
      %v325 = vsub.f32 %v237, %v309
      %v326 = vsub.f32 %v238, %v310
      %v327 = vsub.f32 %v239, %v311
      %v328 = vsub.f32 %v240, %v312
      %v329 = vsub.f32 %v241, %v313
      %v330 = vsub.f32 %v242, %v314
      %v331 = vsub.f32 %v243, %v315
      %v332 = vsub.f32 %v244, %v316
      %v333 = vmul.f32 %v317, %v317
      %v334 = vmul.f32 %v318, %v318
      %v335 = vmul.f32 %v319, %v319
      %v336 = vmul.f32 %v320, %v320
      %v337 = vmul.f32 %v321, %v321
      %v338 = vmul.f32 %v322, %v322
      %v339 = vmul.f32 %v323, %v323
      %v340 = vmul.f32 %v324, %v324
      %v341 = vmul.f32 %v325, %v325
      %v342 = vmul.f32 %v326, %v326
      %v343 = vmul.f32 %v327, %v327
      %v344 = vmul.f32 %v328, %v328
      %v345 = vmul.f32 %v329, %v329
      %v346 = vmul.f32 %v330, %v330
      %v347 = vmul.f32 %v331, %v331
      %v348 = vmul.f32 %v332, %v332
      %v349 = vsel %vm245, %v333, 0.0
      %350 = vadd.xlane.f32.xlu0 %v349
      %v351 = vpop.xlane.xlu0 %350
      %v352 = vsel %vm245, %v334, 0.0
      %353 = vadd.xlane.f32.xlu0 %v352
      %v354 = vpop.xlane.xlu0 %353
      %v355 = vsel %vm245, %v335, 0.0
      %356 = vadd.xlane.f32.xlu0 %v355
      %v357 = vpop.xlane.xlu0 %356
      %v358 = vsel %vm245, %v336, 0.0
      %359 = vadd.xlane.f32.xlu0 %v358
      %v360 = vpop.xlane.xlu0 %359
      %v361 = vsel %vm245, %v337, 0.0
      %362 = vadd.xlane.f32.xlu0 %v361
      %v363 = vpop.xlane.xlu0 %362
      %v364 = vsel %vm245, %v338, 0.0
      %365 = vadd.xlane.f32.xlu0 %v364
      %v366 = vpop.xlane.xlu0 %365
      %v367 = vsel %vm245, %v339, 0.0
      %368 = vadd.xlane.f32.xlu0 %v367
      %v369 = vpop.xlane.xlu0 %368
      %v370 = vsel %vm245, %v340, 0.0
      %371 = vadd.xlane.f32.xlu0 %v370
      %v372 = vpop.xlane.xlu0 %371
      %v373 = vsel %vm245, %v341, 0.0
      %374 = vadd.xlane.f32.xlu0 %v373
      %v375 = vpop.xlane.xlu0 %374
      %v376 = vsel %vm245, %v342, 0.0
      %377 = vadd.xlane.f32.xlu0 %v376
      %v378 = vpop.xlane.xlu0 %377
      %v379 = vsel %vm245, %v343, 0.0
      %380 = vadd.xlane.f32.xlu0 %v379
      %v381 = vpop.xlane.xlu0 %380
      %v382 = vsel %vm245, %v344, 0.0
      %383 = vadd.xlane.f32.xlu0 %v382
      %v384 = vpop.xlane.xlu0 %383
      %v385 = vsel %vm245, %v345, 0.0
      %386 = vadd.xlane.f32.xlu0 %v385
      %v387 = vpop.xlane.xlu0 %386
      %v388 = vsel %vm245, %v346, 0.0
      %389 = vadd.xlane.f32.xlu0 %v388
      %v390 = vpop.xlane.xlu0 %389
      %v391 = vsel %vm245, %v347, 0.0
      %392 = vadd.xlane.f32.xlu0 %v391
      %v393 = vpop.xlane.xlu0 %392
      %v394 = vsel %vm245, %v348, 0.0
      %395 = vadd.xlane.f32.xlu0 %v394
      %v396 = vpop.xlane.xlu0 %395
      %v397 = vmul.f32 %v351, %v300
      %v398 = vmul.f32 %v354, %v300
      %v399 = vmul.f32 %v357, %v300
      %v400 = vmul.f32 %v360, %v300
      %v401 = vmul.f32 %v363, %v300
      %v402 = vmul.f32 %v366, %v300
      %v403 = vmul.f32 %v369, %v300
      %v404 = vmul.f32 %v372, %v300
      %v405 = vmul.f32 %v375, %v300
      %v406 = vmul.f32 %v378, %v300
      %v407 = vmul.f32 %v381, %v300
      %v408 = vmul.f32 %v384, %v300
      %v409 = vmul.f32 %v387, %v300
      %v410 = vmul.f32 %v390, %v300
      %v411 = vmul.f32 %v393, %v300
      %v412 = vmul.f32 %v396, %v300
      %v413 = vadd.f32 %v397, 1e-05
      %v414 = vadd.f32 %v398, 1e-05
      %v415 = vadd.f32 %v399, 1e-05
      %v416 = vadd.f32 %v400, 1e-05
      %v417 = vadd.f32 %v401, 1e-05
      %v418 = vadd.f32 %v402, 1e-05
      %v419 = vadd.f32 %v403, 1e-05
      %v420 = vadd.f32 %v404, 1e-05
      %v421 = vadd.f32 %v405, 1e-05
      %v422 = vadd.f32 %v406, 1e-05
      %v423 = vadd.f32 %v407, 1e-05
      %v424 = vadd.f32 %v408, 1e-05
      %v425 = vadd.f32 %v409, 1e-05
      %v426 = vadd.f32 %v410, 1e-05
      %v427 = vadd.f32 %v411, 1e-05
      %v428 = vadd.f32 %v412, 1e-05
      %v429 = vrsqrt.pop %v413
      %v430 = vmul.f32 %v429, %v413
      %v431 = vmul.f32 %v430, %v429
      %v432 = vmul.f32 0.5, %v431
      %v433 = vsub.f32 1.5, %v432
      %v434 = vmul.f32 %v429, %v433
      %vm435 = vweird.f32 %v413
      %vm436 = vweird.f32 %v429
      %vm437 = vmor %vm435, %vm436
      %v438 = vsel %vm437, %v429, %v434
      %v439 = vrsqrt.pop %v414
      %v440 = vmul.f32 %v439, %v414
      %v441 = vmul.f32 %v440, %v439
      %v442 = vmul.f32 0.5, %v441
      %v443 = vsub.f32 1.5, %v442
      %v444 = vmul.f32 %v439, %v443
      %vm445 = vweird.f32 %v414
      %vm446 = vweird.f32 %v439
      %vm447 = vmor %vm445, %vm446
      %v448 = vsel %vm447, %v439, %v444
      %v449 = vrsqrt.pop %v415
      %v450 = vmul.f32 %v449, %v415
      %v451 = vmul.f32 %v450, %v449
      %v452 = vmul.f32 0.5, %v451
      %v453 = vsub.f32 1.5, %v452
      %v454 = vmul.f32 %v449, %v453
      %vm455 = vweird.f32 %v415
      %vm456 = vweird.f32 %v449
      %vm457 = vmor %vm455, %vm456
      %v458 = vsel %vm457, %v449, %v454
      %v459 = vrsqrt.pop %v416
      %v460 = vmul.f32 %v459, %v416
      %v461 = vmul.f32 %v460, %v459
      %v462 = vmul.f32 0.5, %v461
      %v463 = vsub.f32 1.5, %v462
      %v464 = vmul.f32 %v459, %v463
      %vm465 = vweird.f32 %v416
      %vm466 = vweird.f32 %v459
      %vm467 = vmor %vm465, %vm466
      %v468 = vsel %vm467, %v459, %v464
      %v469 = vrsqrt.pop %v417
      %v470 = vmul.f32 %v469, %v417
      %v471 = vmul.f32 %v470, %v469
      %v472 = vmul.f32 0.5, %v471
      %v473 = vsub.f32 1.5, %v472
      %v474 = vmul.f32 %v469, %v473
      %vm475 = vweird.f32 %v417
      %vm476 = vweird.f32 %v469
      %vm477 = vmor %vm475, %vm476
      %v478 = vsel %vm477, %v469, %v474
      %v479 = vrsqrt.pop %v418
      %v480 = vmul.f32 %v479, %v418
      %v481 = vmul.f32 %v480, %v479
      %v482 = vmul.f32 0.5, %v481
      %v483 = vsub.f32 1.5, %v482
      %v484 = vmul.f32 %v479, %v483
      %vm485 = vweird.f32 %v418
      %vm486 = vweird.f32 %v479
      %vm487 = vmor %vm485, %vm486
      %v488 = vsel %vm487, %v479, %v484
      %v489 = vrsqrt.pop %v419
      %v490 = vmul.f32 %v489, %v419
      %v491 = vmul.f32 %v490, %v489
      %v492 = vmul.f32 0.5, %v491
      %v493 = vsub.f32 1.5, %v492
      %v494 = vmul.f32 %v489, %v493
      %vm495 = vweird.f32 %v419
      %vm496 = vweird.f32 %v489
      %vm497 = vmor %vm495, %vm496
      %v498 = vsel %vm497, %v489, %v494
      %v499 = vrsqrt.pop %v420
      %v500 = vmul.f32 %v499, %v420
      %v501 = vmul.f32 %v500, %v499
      %v502 = vmul.f32 0.5, %v501
      %v503 = vsub.f32 1.5, %v502
      %v504 = vmul.f32 %v499, %v503
      %vm505 = vweird.f32 %v420
      %vm506 = vweird.f32 %v499
      %vm507 = vmor %vm505, %vm506
      %v508 = vsel %vm507, %v499, %v504
      %v509 = vrsqrt.pop %v421
      %v510 = vmul.f32 %v509, %v421
      %v511 = vmul.f32 %v510, %v509
      %v512 = vmul.f32 0.5, %v511
      %v513 = vsub.f32 1.5, %v512
      %v514 = vmul.f32 %v509, %v513
      %vm515 = vweird.f32 %v421
      %vm516 = vweird.f32 %v509
      %vm517 = vmor %vm515, %vm516
      %v518 = vsel %vm517, %v509, %v514
      %v519 = vrsqrt.pop %v422
      %v520 = vmul.f32 %v519, %v422
      %v521 = vmul.f32 %v520, %v519
      %v522 = vmul.f32 0.5, %v521
      %v523 = vsub.f32 1.5, %v522
      %v524 = vmul.f32 %v519, %v523
      %vm525 = vweird.f32 %v422
      %vm526 = vweird.f32 %v519
      %vm527 = vmor %vm525, %vm526
      %v528 = vsel %vm527, %v519, %v524
      %v529 = vrsqrt.pop %v423
      %v530 = vmul.f32 %v529, %v423
      %v531 = vmul.f32 %v530, %v529
      %v532 = vmul.f32 0.5, %v531
      %v533 = vsub.f32 1.5, %v532
      %v534 = vmul.f32 %v529, %v533
      %vm535 = vweird.f32 %v423
      %vm536 = vweird.f32 %v529
      %vm537 = vmor %vm535, %vm536
      %v538 = vsel %vm537, %v529, %v534
      %v539 = vrsqrt.pop %v424
      %v540 = vmul.f32 %v539, %v424
      %v541 = vmul.f32 %v540, %v539
      %v542 = vmul.f32 0.5, %v541
      %v543 = vsub.f32 1.5, %v542
      %v544 = vmul.f32 %v539, %v543
      %vm545 = vweird.f32 %v424
      %vm546 = vweird.f32 %v539
      %vm547 = vmor %vm545, %vm546
      %v548 = vsel %vm547, %v539, %v544
      %v549 = vrsqrt.pop %v425
      %v550 = vmul.f32 %v549, %v425
      %v551 = vmul.f32 %v550, %v549
      %v552 = vmul.f32 0.5, %v551
      %v553 = vsub.f32 1.5, %v552
      %v554 = vmul.f32 %v549, %v553
      %vm555 = vweird.f32 %v425
      %vm556 = vweird.f32 %v549
      %vm557 = vmor %vm555, %vm556
      %v558 = vsel %vm557, %v549, %v554
      %v559 = vrsqrt.pop %v426
      %v560 = vmul.f32 %v559, %v426
      %v561 = vmul.f32 %v560, %v559
      %v562 = vmul.f32 0.5, %v561
      %v563 = vsub.f32 1.5, %v562
      %v564 = vmul.f32 %v559, %v563
      %vm565 = vweird.f32 %v426
      %vm566 = vweird.f32 %v559
      %vm567 = vmor %vm565, %vm566
      %v568 = vsel %vm567, %v559, %v564
      %v569 = vrsqrt.pop %v427
      %v570 = vmul.f32 %v569, %v427
      %v571 = vmul.f32 %v570, %v569
      %v572 = vmul.f32 0.5, %v571
      %v573 = vsub.f32 1.5, %v572
      %v574 = vmul.f32 %v569, %v573
      %vm575 = vweird.f32 %v427
      %vm576 = vweird.f32 %v569
      %vm577 = vmor %vm575, %vm576
      %v578 = vsel %vm577, %v569, %v574
      %v579 = vrsqrt.pop %v428
      %v580 = vmul.f32 %v579, %v428
      %v581 = vmul.f32 %v580, %v579
      %v582 = vmul.f32 0.5, %v581
      %v583 = vsub.f32 1.5, %v582
      %v584 = vmul.f32 %v579, %v583
      %vm585 = vweird.f32 %v428
      %vm586 = vweird.f32 %v579
      %vm587 = vmor %vm585, %vm586
      %v588 = vsel %vm587, %v579, %v584
      %v589 = vmul.f32 %v317, %v438
      %v590 = vmul.f32 %v318, %v448
      %v591 = vmul.f32 %v319, %v458
      %v592 = vmul.f32 %v320, %v468
      %v593 = vmul.f32 %v321, %v478
      %v594 = vmul.f32 %v322, %v488
      %v595 = vmul.f32 %v323, %v498
      %v596 = vmul.f32 %v324, %v508
      %v597 = vmul.f32 %v325, %v518
      %v598 = vmul.f32 %v326, %v528
      %v599 = vmul.f32 %v327, %v538
      %v600 = vmul.f32 %v328, %v548
      %v601 = vmul.f32 %v329, %v558
      %v602 = vmul.f32 %v330, %v568
      %v603 = vmul.f32 %v331, %v578
      %v604 = vmul.f32 %v332, %v588
      %v605 = vld [vmem:[%s1] sm:$0x1]
      %v607 = vperm.slane %v605, 0
      %v609 = vmul.f32 %v589, %v607
      %v610 = vmul.f32 %v590, %v607
      %v611 = vmul.f32 %v591, %v607
      %v612 = vmul.f32 %v592, %v607
      %v613 = vmul.f32 %v593, %v607
      %v614 = vmul.f32 %v594, %v607
      %v615 = vmul.f32 %v595, %v607
      %v616 = vmul.f32 %v596, %v607
      %v617 = vmul.f32 %v597, %v607
      %v618 = vmul.f32 %v598, %v607
      %v619 = vmul.f32 %v599, %v607
      %v620 = vmul.f32 %v600, %v607
      %v621 = vmul.f32 %v601, %v607
      %v622 = vmul.f32 %v602, %v607
      %v623 = vmul.f32 %v603, %v607
      %v624 = vmul.f32 %v604, %v607
      %v625 = vld [vmem:[%s2] sm:$0x1]
      %v627 = vperm.slane %v625, 0
      %v629 = vadd.f32 %v609, %v627
      %v630 = vadd.f32 %v610, %v627
      %v631 = vadd.f32 %v611, %v627
      %v632 = vadd.f32 %v612, %v627
      %v633 = vadd.f32 %v613, %v627
      %v634 = vadd.f32 %v614, %v627
      %v635 = vadd.f32 %v615, %v627
      %v636 = vadd.f32 %v616, %v627
      %v637 = vadd.f32 %v617, %v627
      %v638 = vadd.f32 %v618, %v627
      %v639 = vadd.f32 %v619, %v627
      %v640 = vadd.f32 %v620, %v627
      %v641 = vadd.f32 %v621, %v627
      %v642 = vadd.f32 %v622, %v627
      %v643 = vadd.f32 %v623, %v627
      %v644 = vadd.f32 %v624, %v627
      %v645 = vpack.c.bf16 %v630, %v629
      %v646 = vpack.c.bf16 %v632, %v631
      %v647 = vpack.c.bf16 %v634, %v633
      %v648 = vpack.c.bf16 %v636, %v635
      %v649 = vpack.c.bf16 %v638, %v637
      %v650 = vpack.c.bf16 %v640, %v639
      %v651 = vpack.c.bf16 %v642, %v641
      %v652 = vpack.c.bf16 %v644, %v643
      %v653 = vld [vmem:[%s3] sm:$0xff]
      %v654 = vld [vmem:[%s3 + $0x8] sm:$0xff]
      %v655 = vpack.c.bf16 %v654, %v653
      %v656 = vld [vmem:[%s4] sm:$0x1]
      %v658 = vperm.slane %v656, 0
      %v661 = vsel %vm245, %v645, 0
      %v664 = vsel %vm245, %v646, 0
      %v667 = vsel %vm245, %v647, 0
      %v670 = vsel %vm245, %v648, 0
      %v673 = vsel %vm245, %v649, 0
      %v676 = vsel %vm245, %v650, 0
      %v679 = vsel %vm245, %v651, 0
      %v682 = vsel %vm245, %v652, 0
      %684 = vmatpush.bf16.msra.mxu0 0
      %685 = vmatpush.bf16.msra.mxu0 0
      %686 = vmatpush.bf16.msra.mxu0 0
      %687 = vmatpush.bf16.msra.mxu0 0
      %688 = vmatpush.bf16.msra.mxu0 0
      %689 = vmatpush.bf16.msra.mxu0 0
      %690 = vmatpush.bf16.msra.mxu0 0
      %691 = vmatpush.bf16.msra.mxu0 %v655
      %692 = vmatmul.bf16.gmra.mxu0 %v661
      %v693 = vpop.f32.mrf.mxu0
      %v694 = vadd.f32 %v658, %v693
      %v695 = vpop.f32.mrf.mxu0
      %v696 = vadd.f32 %v658, %v695
      %697 = vmatmul.bf16.gmra.mxu0 %v664
      %v698 = vpop.f32.mrf.mxu0
      %v699 = vadd.f32 %v658, %v698
      %v700 = vpop.f32.mrf.mxu0
      %v701 = vadd.f32 %v658, %v700
      %702 = vmatmul.bf16.gmra.mxu0 %v667
      %v703 = vpop.f32.mrf.mxu0
      %v704 = vadd.f32 %v658, %v703
      %v705 = vpop.f32.mrf.mxu0
      %v706 = vadd.f32 %v658, %v705
      %707 = vmatmul.bf16.gmra.mxu0 %v670
      %v708 = vpop.f32.mrf.mxu0
      %v709 = vadd.f32 %v658, %v708
      %v710 = vpop.f32.mrf.mxu0
      %v711 = vadd.f32 %v658, %v710
      %712 = vmatmul.bf16.gmra.mxu0 %v673
      %v713 = vpop.f32.mrf.mxu0
      %v714 = vadd.f32 %v658, %v713
      %v715 = vpop.f32.mrf.mxu0
      %v716 = vadd.f32 %v658, %v715
      %717 = vmatmul.bf16.gmra.mxu0 %v676
      %v718 = vpop.f32.mrf.mxu0
      %v719 = vadd.f32 %v658, %v718
      %v720 = vpop.f32.mrf.mxu0
      %v721 = vadd.f32 %v658, %v720
      %722 = vmatmul.bf16.gmra.mxu0 %v679
      %v723 = vpop.f32.mrf.mxu0
      %v724 = vadd.f32 %v658, %v723
      %v725 = vpop.f32.mrf.mxu0
      %v726 = vadd.f32 %v658, %v725
      %727 = vmatmul.bf16.gmra.mxu0 %v682
      %v728 = vpop.f32.mrf.mxu0
      %v729 = vadd.f32 %v658, %v728
      %v730 = vpop.f32.mrf.mxu0
      %v731 = vadd.f32 %v658, %v730
      %732 = vdwg.mxu0
      %733 = vst.msk [vmem:[%s226] sm:$0xff] %vm245, %v694
      %734 = vst.msk [vmem:[%s226 + $0x8] sm:$0xff] %vm245, %v696
      %735 = vst.msk [vmem:[%s226 + $0x10] sm:$0xff] %vm245, %v699
      %736 = vst.msk [vmem:[%s226 + $0x18] sm:$0xff] %vm245, %v701
      %737 = vst.msk [vmem:[%s226 + $0x20] sm:$0xff] %vm245, %v704
      %738 = vst.msk [vmem:[%s226 + $0x28] sm:$0xff] %vm245, %v706
      %739 = vst.msk [vmem:[%s226 + $0x30] sm:$0xff] %vm245, %v709
      %740 = vst.msk [vmem:[%s226 + $0x38] sm:$0xff] %vm245, %v711
      %741 = vst.msk [vmem:[%s226 + $0x40] sm:$0xff] %vm245, %v714
      %742 = vst.msk [vmem:[%s226 + $0x48] sm:$0xff] %vm245, %v716
      %743 = vst.msk [vmem:[%s226 + $0x50] sm:$0xff] %vm245, %v719
      %744 = vst.msk [vmem:[%s226 + $0x58] sm:$0xff] %vm245, %v721
      %745 = vst.msk [vmem:[%s226 + $0x60] sm:$0xff] %vm245, %v724
      %746 = vst.msk [vmem:[%s226 + $0x68] sm:$0xff] %vm245, %v726
      %747 = vst.msk [vmem:[%s226 + $0x70] sm:$0xff] %vm245, %v729
      %748 = vst.msk [vmem:[%s226 + $0x78] sm:$0xff] %vm245, %v731
      %s749 = smul.u32 16, %s16
      %p750 = scmp.lt.s32.totalorder %s749, 31
      %s751 = scalar_select %p750, %s749, 31
      %s752 = smul.addr %s751, 8
      %s753 = scalar_lea.vmem %s5, %s752
      // Predicated region
      $region41: #{asl_forward.14} parent=39 // pred_check
        %p754 = pneg %p144
      $region42: #{asl_forward.14} parent=39 // pred_check_branch
        %756 = sbr.rel (%p754) target = $region44
      $region43: #{asl_forward.14} parent=39 // pred_region
        %s757 = smul.u32 16, %s16
      $region44: #{asl_forward.14} parent=39 // pred_fallthru
        _
    $region40: #{asl_forward.14} parent=5 // pred_fallthru
      _
    %p758 = scmp.le.s32.totalorder 2, %s11
    // Predicated region
    $region45: #{asl_forward.14} parent=5 // pred_check
      %p759 = pneg %p758
    $region46: #{asl_forward.14} parent=5 // pred_check_branch
      %761 = sbr.rel (%p759) target = $region48
    $region47: #{asl_forward.14} parent=5 // pred_region
      %s762 = ssub.s32 %s11, 2
      // Predicated region
      $region49: #{asl_forward.14} parent=47 // pred_check
        %p763 = pneg %p150
      $region50: #{asl_forward.14} parent=47 // pred_check_branch
        %765 = sbr.rel (%p763) target = $region52
      $region51: #{asl_forward.14} parent=47 // pred_region
        %s766 = smul.u32 16, %s17
        %p767 = scmp.lt.s32.totalorder %s766, 31
        %s768 = scalar_select %p767, %s766, 31
        %s769 = smul.addr %s768, 8
        %s770 = scalar_lea.vmem %s5, %s769
      $region52: #{asl_forward.14} parent=47 // pred_fallthru
        _
    $region48: #{asl_forward.14} parent=5 // pred_fallthru
      _
  $region6: #{asl_forward.14} parent=0 // loop_footer
    %s15 = sadd.s32 1, %s11
  $region7: #{asl_forward.14} parent=0 // loop_footer_branch
    %10 = sbr.rel target = $region3
  $region8: #{asl_forward.14} parent=0 // loop_exit
    _

// kernel: asl_forward.15
$region0: #{asl_forward.15}
  #allocation0 [shape = 'u32[]', space=smem, size = 0x4, offset = 0x4, fixed_abs, tag = 'smem constant byte address 0x4 - core index']
  #allocation1 [shape = 'u32[72,128]{1,0:T(1,128)}', space=vmem, size = 0x9000, scoped, tag = 'internal scratch']
  #allocation2 [shape = 'f32[128,16]{1,0:T(8,128)}', space=vmem, size = 0x10000, scoped, tag = 'scratch operand']
  %s0 = inlined_call_operand.vmem [shape: f32[128,32], index: 0, kind: input, shape index: {}]
  %s1 = inlined_call_operand.vmem [shape: f32[32,16], index: 1, kind: input, shape index: {}]
  %s2 = inlined_call_operand.vmem [shape: f32[1,16], index: 2, kind: input, shape index: {}]
  %s3 = inlined_call_operand.hbm [shape: f32[128,16], index: 3, kind: output, shape index: {}]
  %s4 = sld [smem:[#allocation0]]
  $region30: #{asl_forward.15} parent=0
    _
  %s6 = ssub.s32 1, %s4
  %s7 = scalar_select 0, %s6, %s4
  $region1: #{asl_forward.15} parent=0
    #allocation3 [shape = 'u8[65536]{0}', space=vmem, size = 0x10000, scoped, tag = 'output window, operand 0, single buffered']
    #allocation4 [shape = 's32[1]{0}', space=sflag, size = 0x4, scoped, tag = 'scoped memory for asl_forward.15']
    %8 = vsyncpa [#allocation4], 0
    // Predicated region
    $region2: #{asl_forward.15} parent=1 // pred_check
      _
    $region3: #{asl_forward.15} parent=1 // pred_check_branch
      %10 = sbr.rel (0) target = $region5
    $region4: #{asl_forward.15} parent=1 // pred_region
      _
    $region5: #{asl_forward.15} parent=1 // pred_fallthru
      _
    // Predicated region
    $region6: #{asl_forward.15} parent=1 // pred_check
      _
    $region7: #{asl_forward.15} parent=1 // pred_check_branch
      %12 = sbr.rel (0) target = $region9
    $region8: #{asl_forward.15} parent=1 // pred_region
      _
    $region9: #{asl_forward.15} parent=1 // pred_fallthru
      _
    // Predicated region
    $region10: #{asl_forward.15} parent=1 // pred_check
      _
    $region11: #{asl_forward.15} parent=1 // pred_check_branch
      %14 = sbr.rel (0) target = $region13
    $region12: #{asl_forward.15} parent=1 // pred_region
      _
    $region13: #{asl_forward.15} parent=1 // pred_fallthru
      _
    %p16 = scmp.eq.s32.totalorder 0, 0
    // Predicated region
    $region14: #{asl_forward.15} parent=1 // pred_check
      %p17 = pneg %p16
    $region15: #{asl_forward.15} parent=1 // pred_check_branch
      %19 = sbr.rel (%p17) target = $region17
    $region16: #{asl_forward.15} parent=1 // pred_region
      %vm20 = vcmask 130048
      %21 = vst.msk [vmem:[#allocation2] sm:$0xff] %vm20, 0.0
      %22 = vst.msk [vmem:[#allocation2 + $0x8] sm:$0xff] %vm20, 0.0
      %23 = vst.msk [vmem:[#allocation2 + $0x10] sm:$0xff] %vm20, 0.0
      %24 = vst.msk [vmem:[#allocation2 + $0x18] sm:$0xff] %vm20, 0.0
      %25 = vst.msk [vmem:[#allocation2 + $0x20] sm:$0xff] %vm20, 0.0
      %26 = vst.msk [vmem:[#allocation2 + $0x28] sm:$0xff] %vm20, 0.0
      %27 = vst.msk [vmem:[#allocation2 + $0x30] sm:$0xff] %vm20, 0.0
      %28 = vst.msk [vmem:[#allocation2 + $0x38] sm:$0xff] %vm20, 0.0
      %29 = vst.msk [vmem:[#allocation2 + $0x40] sm:$0xff] %vm20, 0.0
      %30 = vst.msk [vmem:[#allocation2 + $0x48] sm:$0xff] %vm20, 0.0
      %31 = vst.msk [vmem:[#allocation2 + $0x50] sm:$0xff] %vm20, 0.0
      %32 = vst.msk [vmem:[#allocation2 + $0x58] sm:$0xff] %vm20, 0.0
      %33 = vst.msk [vmem:[#allocation2 + $0x60] sm:$0xff] %vm20, 0.0
      %34 = vst.msk [vmem:[#allocation2 + $0x68] sm:$0xff] %vm20, 0.0
      %35 = vst.msk [vmem:[#allocation2 + $0x70] sm:$0xff] %vm20, 0.0
      %36 = vst.msk [vmem:[#allocation2 + $0x78] sm:$0xff] %vm20, 0.0
    $region17: #{asl_forward.15} parent=1 // pred_fallthru
      _
    %v37 = vld [vmem:[#allocation2] sm:$0xff]
    %v38 = vld [vmem:[#allocation2 + $0x8] sm:$0xff]
    %v39 = vld [vmem:[#allocation2 + $0x10] sm:$0xff]
    %v40 = vld [vmem:[#allocation2 + $0x18] sm:$0xff]
    %v41 = vld [vmem:[#allocation2 + $0x20] sm:$0xff]
    %v42 = vld [vmem:[#allocation2 + $0x28] sm:$0xff]
    %v43 = vld [vmem:[#allocation2 + $0x30] sm:$0xff]
    %v44 = vld [vmem:[#allocation2 + $0x38] sm:$0xff]
    %v45 = vld [vmem:[#allocation2 + $0x40] sm:$0xff]
    %v46 = vld [vmem:[#allocation2 + $0x48] sm:$0xff]
    %v47 = vld [vmem:[#allocation2 + $0x50] sm:$0xff]
    %v48 = vld [vmem:[#allocation2 + $0x58] sm:$0xff]
    %v49 = vld [vmem:[#allocation2 + $0x60] sm:$0xff]
    %v50 = vld [vmem:[#allocation2 + $0x68] sm:$0xff]
    %v51 = vld [vmem:[#allocation2 + $0x70] sm:$0xff]
    %v52 = vld [vmem:[#allocation2 + $0x78] sm:$0xff]
    %v53 = vld [vmem:[%s0] sm:$0xff]
    %v54 = vld [vmem:[%s0 + $0x8] sm:$0xff]
    %v55 = vld [vmem:[%s0 + $0x10] sm:$0xff]
    %v56 = vld [vmem:[%s0 + $0x18] sm:$0xff]
    %v57 = vld [vmem:[%s0 + $0x20] sm:$0xff]
    %v58 = vld [vmem:[%s0 + $0x28] sm:$0xff]
    %v59 = vld [vmem:[%s0 + $0x30] sm:$0xff]
    %v60 = vld [vmem:[%s0 + $0x38] sm:$0xff]
    %v61 = vld [vmem:[%s0 + $0x40] sm:$0xff]
    %v62 = vld [vmem:[%s0 + $0x48] sm:$0xff]
    %v63 = vld [vmem:[%s0 + $0x50] sm:$0xff]
    %v64 = vld [vmem:[%s0 + $0x58] sm:$0xff]
    %v65 = vld [vmem:[%s0 + $0x60] sm:$0xff]
    %v66 = vld [vmem:[%s0 + $0x68] sm:$0xff]
    %v67 = vld [vmem:[%s0 + $0x70] sm:$0xff]
    %v68 = vld [vmem:[%s0 + $0x78] sm:$0xff]
    %v69 = vpack.c.bf16 %v54, %v53
    %v70 = vpack.c.bf16 %v56, %v55
    %v71 = vpack.c.bf16 %v58, %v57
    %v72 = vpack.c.bf16 %v60, %v59
    %v73 = vpack.c.bf16 %v62, %v61
    %v74 = vpack.c.bf16 %v64, %v63
    %v75 = vpack.c.bf16 %v66, %v65
    %v76 = vpack.c.bf16 %v68, %v67
    %v77 = vld [vmem:[%s1] sm:$0xff]
    %v78 = vld [vmem:[%s1 + $0x8] sm:$0xff]
    %v79 = vld [vmem:[%s1 + $0x10] sm:$0xff]
    %v80 = vld [vmem:[%s1 + $0x18] sm:$0xff]
    %v81 = vpack.c.bf16 %v78, %v77
    %v82 = vpack.c.bf16 %v80, %v79
    %vm83 = vcmask 261120
    %v85 = vsel %vm83, %v69, 0
    %v88 = vsel %vm83, %v70, 0
    %v91 = vsel %vm83, %v71, 0
    %v94 = vsel %vm83, %v72, 0
    %v97 = vsel %vm83, %v73, 0
    %v100 = vsel %vm83, %v74, 0
    %v103 = vsel %vm83, %v75, 0
    %v106 = vsel %vm83, %v76, 0
    %108 = vmatpush.bf16.msra.mxu0 0
    %109 = vmatpush.bf16.msra.mxu0 0
    %110 = vmatpush.bf16.msra.mxu0 0
    %111 = vmatpush.bf16.msra.mxu0 0
    %112 = vmatpush.bf16.msra.mxu0 0
    %113 = vmatpush.bf16.msra.mxu0 0
    %114 = vmatpush.bf16.msra.mxu0 %v82
    %115 = vmatpush.bf16.msra.mxu0 %v81
    %116 = vmatmul.bf16.gmra.mxu0 %v85
    %v117 = vpop.f32.mrf.mxu0
    %v118 = vadd.f32 0.0, %v117
    %v119 = vpop.f32.mrf.mxu0
    %v120 = vadd.f32 0.0, %v119
    %121 = vmatmul.bf16.gmra.mxu0 %v88
    %v122 = vpop.f32.mrf.mxu0
    %v123 = vadd.f32 0.0, %v122
    %v124 = vpop.f32.mrf.mxu0
    %v125 = vadd.f32 0.0, %v124
    %126 = vmatmul.bf16.gmra.mxu0 %v91
    %v127 = vpop.f32.mrf.mxu0
    %v128 = vadd.f32 0.0, %v127
    %v129 = vpop.f32.mrf.mxu0
    %v130 = vadd.f32 0.0, %v129
    %131 = vmatmul.bf16.gmra.mxu0 %v94
    %v132 = vpop.f32.mrf.mxu0
    %v133 = vadd.f32 0.0, %v132
    %v134 = vpop.f32.mrf.mxu0
    %v135 = vadd.f32 0.0, %v134
    %136 = vmatmul.bf16.gmra.mxu0 %v97
    %v137 = vpop.f32.mrf.mxu0
    %v138 = vadd.f32 0.0, %v137
    %v139 = vpop.f32.mrf.mxu0
    %v140 = vadd.f32 0.0, %v139
    %141 = vmatmul.bf16.gmra.mxu0 %v100
    %v142 = vpop.f32.mrf.mxu0
    %v143 = vadd.f32 0.0, %v142
    %v144 = vpop.f32.mrf.mxu0
    %v145 = vadd.f32 0.0, %v144
    %146 = vmatmul.bf16.gmra.mxu0 %v103
    %v147 = vpop.f32.mrf.mxu0
    %v148 = vadd.f32 0.0, %v147
    %v149 = vpop.f32.mrf.mxu0
    %v150 = vadd.f32 0.0, %v149
    %151 = vmatmul.bf16.gmra.mxu0 %v106
    %v152 = vpop.f32.mrf.mxu0
    %v153 = vadd.f32 0.0, %v152
    %v154 = vpop.f32.mrf.mxu0
    %v155 = vadd.f32 0.0, %v154
    %156 = vdwg.mxu0
    %v157 = vadd.f32 %v37, %v118
    %v158 = vadd.f32 %v38, %v120
    %v159 = vadd.f32 %v39, %v123
    %v160 = vadd.f32 %v40, %v125
    %v161 = vadd.f32 %v41, %v128
    %v162 = vadd.f32 %v42, %v130
    %v163 = vadd.f32 %v43, %v133
    %v164 = vadd.f32 %v44, %v135
    %v165 = vadd.f32 %v45, %v138
    %v166 = vadd.f32 %v46, %v140
    %v167 = vadd.f32 %v47, %v143
    %v168 = vadd.f32 %v48, %v145
    %v169 = vadd.f32 %v49, %v148
    %v170 = vadd.f32 %v50, %v150
    %v171 = vadd.f32 %v51, %v153
    %v172 = vadd.f32 %v52, %v155
    %vm173 = vcmask 130048
    %174 = vst.msk [vmem:[#allocation2] sm:$0xff] %vm173, %v157
    %175 = vst.msk [vmem:[#allocation2 + $0x8] sm:$0xff] %vm173, %v158
    %176 = vst.msk [vmem:[#allocation2 + $0x10] sm:$0xff] %vm173, %v159
    %177 = vst.msk [vmem:[#allocation2 + $0x18] sm:$0xff] %vm173, %v160
    %178 = vst.msk [vmem:[#allocation2 + $0x20] sm:$0xff] %vm173, %v161
    %179 = vst.msk [vmem:[#allocation2 + $0x28] sm:$0xff] %vm173, %v162
    %180 = vst.msk [vmem:[#allocation2 + $0x30] sm:$0xff] %vm173, %v163
    %181 = vst.msk [vmem:[#allocation2 + $0x38] sm:$0xff] %vm173, %v164
    %182 = vst.msk [vmem:[#allocation2 + $0x40] sm:$0xff] %vm173, %v165
    %183 = vst.msk [vmem:[#allocation2 + $0x48] sm:$0xff] %vm173, %v166
    %184 = vst.msk [vmem:[#allocation2 + $0x50] sm:$0xff] %vm173, %v167
    %185 = vst.msk [vmem:[#allocation2 + $0x58] sm:$0xff] %vm173, %v168
    %186 = vst.msk [vmem:[#allocation2 + $0x60] sm:$0xff] %vm173, %v169
    %187 = vst.msk [vmem:[#allocation2 + $0x68] sm:$0xff] %vm173, %v170
    %188 = vst.msk [vmem:[#allocation2 + $0x70] sm:$0xff] %vm173, %v171
    %189 = vst.msk [vmem:[#allocation2 + $0x78] sm:$0xff] %vm173, %v172
    // Predicated region
    $region18: #{asl_forward.15} parent=1 // pred_check
      %p190 = pneg %p16
    $region19: #{asl_forward.15} parent=1 // pred_check_branch
      %192 = sbr.rel (%p190) target = $region21
    $region20: #{asl_forward.15} parent=1 // pred_region
      %v193 = vld [vmem:[#allocation2] sm:$0xff]
      %v194 = vld [vmem:[#allocation2 + $0x8] sm:$0xff]
      %v195 = vld [vmem:[#allocation2 + $0x10] sm:$0xff]
      %v196 = vld [vmem:[#allocation2 + $0x18] sm:$0xff]
      %v197 = vld [vmem:[#allocation2 + $0x20] sm:$0xff]
      %v198 = vld [vmem:[#allocation2 + $0x28] sm:$0xff]
      %v199 = vld [vmem:[#allocation2 + $0x30] sm:$0xff]
      %v200 = vld [vmem:[#allocation2 + $0x38] sm:$0xff]
      %v201 = vld [vmem:[#allocation2 + $0x40] sm:$0xff]
      %v202 = vld [vmem:[#allocation2 + $0x48] sm:$0xff]
      %v203 = vld [vmem:[#allocation2 + $0x50] sm:$0xff]
      %v204 = vld [vmem:[#allocation2 + $0x58] sm:$0xff]
      %v205 = vld [vmem:[#allocation2 + $0x60] sm:$0xff]
      %v206 = vld [vmem:[#allocation2 + $0x68] sm:$0xff]
      %v207 = vld [vmem:[#allocation2 + $0x70] sm:$0xff]
      %v208 = vld [vmem:[#allocation2 + $0x78] sm:$0xff]
      %v209 = vld [vmem:[%s2] sm:$0x1]
      %v211 = vperm.slane %v209, 0
      %v213 = vadd.f32 %v193, %v211
      %v214 = vadd.f32 %v194, %v211
      %v215 = vadd.f32 %v195, %v211
      %v216 = vadd.f32 %v196, %v211
      %v217 = vadd.f32 %v197, %v211
      %v218 = vadd.f32 %v198, %v211
      %v219 = vadd.f32 %v199, %v211
      %v220 = vadd.f32 %v200, %v211
      %v221 = vadd.f32 %v201, %v211
      %v222 = vadd.f32 %v202, %v211
      %v223 = vadd.f32 %v203, %v211
      %v224 = vadd.f32 %v204, %v211
      %v225 = vadd.f32 %v205, %v211
      %v226 = vadd.f32 %v206, %v211
      %v227 = vadd.f32 %v207, %v211
      %v228 = vadd.f32 %v208, %v211
      %229 = vst.msk [vmem:[#allocation3] sm:$0xff] %vm173, %v213
      %230 = vst.msk [vmem:[#allocation3 + $0x8] sm:$0xff] %vm173, %v214
      %231 = vst.msk [vmem:[#allocation3 + $0x10] sm:$0xff] %vm173, %v215
      %232 = vst.msk [vmem:[#allocation3 + $0x18] sm:$0xff] %vm173, %v216
      %233 = vst.msk [vmem:[#allocation3 + $0x20] sm:$0xff] %vm173, %v217
      %234 = vst.msk [vmem:[#allocation3 + $0x28] sm:$0xff] %vm173, %v218
      %235 = vst.msk [vmem:[#allocation3 + $0x30] sm:$0xff] %vm173, %v219
      %236 = vst.msk [vmem:[#allocation3 + $0x38] sm:$0xff] %vm173, %v220
      %237 = vst.msk [vmem:[#allocation3 + $0x40] sm:$0xff] %vm173, %v221
      %238 = vst.msk [vmem:[#allocation3 + $0x48] sm:$0xff] %vm173, %v222
      %239 = vst.msk [vmem:[#allocation3 + $0x50] sm:$0xff] %vm173, %v223
      %240 = vst.msk [vmem:[#allocation3 + $0x58] sm:$0xff] %vm173, %v224
      %241 = vst.msk [vmem:[#allocation3 + $0x60] sm:$0xff] %vm173, %v225
      %242 = vst.msk [vmem:[#allocation3 + $0x68] sm:$0xff] %vm173, %v226
      %243 = vst.msk [vmem:[#allocation3 + $0x70] sm:$0xff] %vm173, %v227
      %244 = vst.msk [vmem:[#allocation3 + $0x78] sm:$0xff] %vm173, %v228
    $region21: #{asl_forward.15} parent=1 // pred_fallthru
      _
    // Predicated region
    $region22: #{asl_forward.15} parent=1 // pred_check
      _
    $region23: #{asl_forward.15} parent=1 // pred_check_branch
      %246 = sbr.rel (0) target = $region25
    $region24: #{asl_forward.15} parent=1 // pred_region
      %248 = vsyncadd [#allocation4], 0
      %s249 = sshll.u32 [#allocation3], 4
      %s250 = int_to_ptr.vmem [resolvable:$true] %s249
      %s251 = sshll.u32 %s3, 4
      %s252 = int_to_ptr.hbm [resolvable:$true] %s251
      %257 = dma.vmem_to_hbm [thread:$0]  %s250, 2048, %s252, [#allocation4], 128, 128, 8
    $region25: #{asl_forward.15} parent=1 // pred_fallthru
      _
    // Predicated region
    $region26: #{asl_forward.15} parent=1 // pred_check
      _
    $region27: #{asl_forward.15} parent=1 // pred_check_branch
      %259 = sbr.rel (0) target = $region29
    $region28: #{asl_forward.15} parent=1 // pred_region
      %261 = dma.done [#allocation4], 2048
    $region29: #{asl_forward.15} parent=1 // pred_fallthru
      _
    %262 = vsyncpa [#allocation4], 1

// kernel: asl_forward.12
$region0: #{asl_forward.12}
  #allocation0 [shape = 'u32[]', space=smem, size = 0x4, offset = 0x4, fixed_abs, tag = 'smem constant byte address 0x4 - core index']
  #allocation1 [shape = 'u32[72,128]{1,0:T(1,128)}', space=vmem, size = 0x9000, scoped, tag = 'internal scratch']
  #allocation2 [shape = 'f32[64,16,128]{2,1,0:T(8,128)}', space=vmem, size = 0x80000, scoped, tag = 'scratch operand']
  #allocation3 [shape = 'f32[64,16,128]{2,1,0:T(8,128)}', space=vmem, size = 0x80000, scoped, tag = 'scratch operand']
  %s0 = inlined_call_operand.vmem [shape: f32[64,128], index: 0, kind: input, shape index: {}]
  %s1 = inlined_call_operand.vmem [shape: f32[64,128], index: 1, kind: input, shape index: {}]
  %s2 = inlined_call_operand.vmem [shape: f32[16,128], index: 2, kind: input, shape index: {}]
  %s3 = inlined_call_operand.vmem [shape: f32[1024,8], index: 3, kind: input, shape index: {}]
  %s4 = inlined_call_operand.vmem [shape: f32[1024,8], index: 4, kind: input, shape index: {}]
  %s5 = inlined_call_operand.vmem [shape: f32[1,128], index: 5, kind: input, shape index: {}]
  %s6 = inlined_call_operand.vmem [shape: f32[64,128], index: 6, kind: input, shape index: {}]
  %s7 = inlined_call_operand.vmem [shape: f32[8,128], index: 7, kind: input, shape index: {}]
  %s8 = inlined_call_operand.vmem [shape: f32[64,128], index: 8, kind: output, shape index: {}]
  %s9 = sld [smem:[#allocation0]]
  $region49: #{asl_forward.12} parent=0
    _
  %s11 = ssub.s32 1, %s9
  %s12 = scalar_select 0, %s11, %s9
  // Predicated region
  $region2: #{asl_forward.12} parent=0 // pred_check
    _
  $region3: #{asl_forward.12} parent=0 // pred_check_branch
    %14 = sbr.rel (0) target = $region5
  $region4: #{asl_forward.12} parent=0 // pred_region
    _
  $region5: #{asl_forward.12} parent=0 // pred_fallthru
    _
  // Predicated region
  $region6: #{asl_forward.12} parent=0 // pred_check
    _
  $region7: #{asl_forward.12} parent=0 // pred_check_branch
    %16 = sbr.rel (0) target = $region9
  $region8: #{asl_forward.12} parent=0 // pred_region
    _
  $region9: #{asl_forward.12} parent=0 // pred_fallthru
    _
  // Predicated region
  $region10: #{asl_forward.12} parent=0 // pred_check
    _
  $region11: #{asl_forward.12} parent=0 // pred_check_branch
    %18 = sbr.rel (0) target = $region13
  $region12: #{asl_forward.12} parent=0 // pred_region
    _
  $region13: #{asl_forward.12} parent=0 // pred_fallthru
    _
  // Predicated region
  $region14: #{asl_forward.12} parent=0 // pred_check
    _
  $region15: #{asl_forward.12} parent=0 // pred_check_branch
    %20 = sbr.rel (0) target = $region17
  $region16: #{asl_forward.12} parent=0 // pred_region
    _
  $region17: #{asl_forward.12} parent=0 // pred_fallthru
    _
  // Predicated region
  $region18: #{asl_forward.12} parent=0 // pred_check
    _
  $region19: #{asl_forward.12} parent=0 // pred_check_branch
    %22 = sbr.rel (0) target = $region21
  $region20: #{asl_forward.12} parent=0 // pred_region
    _
  $region21: #{asl_forward.12} parent=0 // pred_fallthru
    _
  // Predicated region
  $region22: #{asl_forward.12} parent=0 // pred_check
    _
  $region23: #{asl_forward.12} parent=0 // pred_check_branch
    %24 = sbr.rel (0) target = $region25
  $region24: #{asl_forward.12} parent=0 // pred_region
    _
  $region25: #{asl_forward.12} parent=0 // pred_fallthru
    _
  // Predicated region
  $region26: #{asl_forward.12} parent=0 // pred_check
    _
  $region27: #{asl_forward.12} parent=0 // pred_check_branch
    %26 = sbr.rel (0) target = $region29
  $region28: #{asl_forward.12} parent=0 // pred_region
    _
  $region29: #{asl_forward.12} parent=0 // pred_fallthru
    _
  // Predicated region
  $region30: #{asl_forward.12} parent=0 // pred_check
    _
  $region31: #{asl_forward.12} parent=0 // pred_check_branch
    %28 = sbr.rel (0) target = $region33
  $region32: #{asl_forward.12} parent=0 // pred_region
    _
  $region33: #{asl_forward.12} parent=0 // pred_fallthru
    _
  %v29 = vld [vmem:[%s0] sm:$0xff]
  %v30 = vld [vmem:[%s0 + $0x8] sm:$0xff]
  %v31 = vld [vmem:[%s0 + $0x10] sm:$0xff]
  %v32 = vld [vmem:[%s0 + $0x18] sm:$0xff]
  %v33 = vld [vmem:[%s0 + $0x20] sm:$0xff]
  %v34 = vld [vmem:[%s0 + $0x28] sm:$0xff]
  %v35 = vld [vmem:[%s0 + $0x30] sm:$0xff]
  %v36 = vld [vmem:[%s0 + $0x38] sm:$0xff]
  %v37 = vld [vmem:[%s1] sm:$0xff]
  %v38 = vld [vmem:[%s1 + $0x8] sm:$0xff]
  %v39 = vld [vmem:[%s1 + $0x10] sm:$0xff]
  %v40 = vld [vmem:[%s1 + $0x18] sm:$0xff]
  %v41 = vld [vmem:[%s1 + $0x20] sm:$0xff]
  %v42 = vld [vmem:[%s1 + $0x28] sm:$0xff]
  %v43 = vld [vmem:[%s1 + $0x30] sm:$0xff]
  %v44 = vld [vmem:[%s1 + $0x38] sm:$0xff]
  %v45 = vmax.f32 %v37, 0.0
  %v46 = vmax.f32 %v38, 0.0
  %v47 = vmax.f32 %v39, 0.0
  %v48 = vmax.f32 %v40, 0.0
  %v49 = vmax.f32 %v41, 0.0
  %v50 = vmax.f32 %v42, 0.0
  %v51 = vmax.f32 %v43, 0.0
  %v52 = vmax.f32 %v44, 0.0
  %v53 = vand.u32 2147483647, %v37
  %v54 = vand.u32 2147483647, %v38
  %v55 = vand.u32 2147483647, %v39
  %v56 = vand.u32 2147483647, %v40
  %v57 = vand.u32 2147483647, %v41
  %v58 = vand.u32 2147483647, %v42
  %v59 = vand.u32 2147483647, %v43
  %v60 = vand.u32 2147483647, %v44
  %v61 = vsub.f32 0.0, %v53
  %v62 = vsub.f32 0.0, %v54
  %v63 = vsub.f32 0.0, %v55
  %v64 = vsub.f32 0.0, %v56
  %v65 = vsub.f32 0.0, %v57
  %v66 = vsub.f32 0.0, %v58
  %v67 = vsub.f32 0.0, %v59
  %v68 = vsub.f32 0.0, %v60
  %v69 = vmul.f32 %v61, 1.442695
  %v70 = vpow.pop %v69
  %v71 = vmul.f32 %v62, 1.442695
  %v72 = vpow.pop %v71
  %v73 = vmul.f32 %v63, 1.442695
  %v74 = vpow.pop %v73
  %v75 = vmul.f32 %v64, 1.442695
  %v76 = vpow.pop %v75
  %v77 = vmul.f32 %v65, 1.442695
  %v78 = vpow.pop %v77
  %v79 = vmul.f32 %v66, 1.442695
  %v80 = vpow.pop %v79
  %v81 = vmul.f32 %v67, 1.442695
  %v82 = vpow.pop %v81
  %v83 = vmul.f32 %v68, 1.442695
  %v84 = vpow.pop %v83
  %v85 = vadd.f32 %v70, 1.0
  %v86 = vadd.f32 %v72, 1.0
  %v87 = vadd.f32 %v74, 1.0
  %v88 = vadd.f32 %v76, 1.0
  %v89 = vadd.f32 %v78, 1.0
  %v90 = vadd.f32 %v80, 1.0
  %v91 = vadd.f32 %v82, 1.0
  %v92 = vadd.f32 %v84, 1.0
  %v93 = vlog2.pop %v85
  %v94 = vmul.f32 %v93, 0.6931472
  %v95 = vlog2.pop %v86
  %v96 = vmul.f32 %v95, 0.6931472
  %v97 = vlog2.pop %v87
  %v98 = vmul.f32 %v97, 0.6931472
  %v99 = vlog2.pop %v88
  %v100 = vmul.f32 %v99, 0.6931472
  %v101 = vlog2.pop %v89
  %v102 = vmul.f32 %v101, 0.6931472
  %v103 = vlog2.pop %v90
  %v104 = vmul.f32 %v103, 0.6931472
  %v105 = vlog2.pop %v91
  %v106 = vmul.f32 %v105, 0.6931472
  %v107 = vlog2.pop %v92
  %v108 = vmul.f32 %v107, 0.6931472
  %v109 = vadd.f32 %v45, %v94
  %v110 = vadd.f32 %v46, %v96
  %v111 = vadd.f32 %v47, %v98
  %v112 = vadd.f32 %v48, %v100
  %v113 = vadd.f32 %v49, %v102
  %v114 = vadd.f32 %v50, %v104
  %v115 = vadd.f32 %v51, %v106
  %v116 = vadd.f32 %v52, %v108
  %v117 = vld [vmem:[%s2] sm:$0xff]
  %v118 = vld [vmem:[%s2 + $0x8] sm:$0xff]
  %v119 = vld [vmem:[%s7] sm:$0xff]
  %v128 = vrot.slane %v109, 1
  %v129 = vrot.slane %v109, 2
  %v130 = vrot.slane %v109, 3
  %v131 = vrot.slane %v109, 4
  %v132 = vrot.slane %v109, 5
  %v133 = vrot.slane %v109, 6
  %v134 = vrot.slane %v109, 7
  %v135 = vrot.slane %v110, 1
  %v136 = vrot.slane %v110, 2
  %v137 = vrot.slane %v110, 3
  %v138 = vrot.slane %v110, 4
  %v139 = vrot.slane %v110, 5
  %v140 = vrot.slane %v110, 6
  %v141 = vrot.slane %v110, 7
  %v142 = vrot.slane %v111, 1
  %v143 = vrot.slane %v111, 2
  %v144 = vrot.slane %v111, 3
  %v145 = vrot.slane %v111, 4
  %v146 = vrot.slane %v111, 5
  %v147 = vrot.slane %v111, 6
  %v148 = vrot.slane %v111, 7
  %v149 = vrot.slane %v112, 1
  %v150 = vrot.slane %v112, 2
  %v151 = vrot.slane %v112, 3
  %v152 = vrot.slane %v112, 4
  %v153 = vrot.slane %v112, 5
  %v154 = vrot.slane %v112, 6
  %v155 = vrot.slane %v112, 7
  %v156 = vrot.slane %v113, 1
  %v157 = vrot.slane %v113, 2
  %v158 = vrot.slane %v113, 3
  %v159 = vrot.slane %v113, 4
  %v160 = vrot.slane %v113, 5
  %v161 = vrot.slane %v113, 6
  %v162 = vrot.slane %v113, 7
  %v163 = vrot.slane %v114, 1
  %v164 = vrot.slane %v114, 2
  %v165 = vrot.slane %v114, 3
  %v166 = vrot.slane %v114, 4
  %v167 = vrot.slane %v114, 5
  %v168 = vrot.slane %v114, 6
  %v169 = vrot.slane %v114, 7
  %v170 = vrot.slane %v115, 1
  %v171 = vrot.slane %v115, 2
  %v172 = vrot.slane %v115, 3
  %v173 = vrot.slane %v115, 4
  %v174 = vrot.slane %v115, 5
  %v175 = vrot.slane %v115, 6
  %v176 = vrot.slane %v115, 7
  %v177 = vrot.slane %v116, 1
  %v178 = vrot.slane %v116, 2
  %v179 = vrot.slane %v116, 3
  %v180 = vrot.slane %v116, 4
  %v181 = vrot.slane %v116, 5
  %v182 = vrot.slane %v116, 6
  %v183 = vrot.slane %v116, 7
  %v184 = vperm.slane %v109, 0
  %v185 = vperm.slane %v128, 0
  %v186 = vperm.slane %v129, 0
  %v187 = vperm.slane %v130, 0
  %v188 = vperm.slane %v131, 0
  %v189 = vperm.slane %v132, 0
  %v190 = vperm.slane %v133, 0
  %v191 = vperm.slane %v134, 0
  %v192 = vperm.slane %v110, 0
  %v193 = vperm.slane %v135, 0
  %v194 = vperm.slane %v136, 0
  %v195 = vperm.slane %v137, 0
  %v196 = vperm.slane %v138, 0
  %v197 = vperm.slane %v139, 0
  %v198 = vperm.slane %v140, 0
  %v199 = vperm.slane %v141, 0
  %v200 = vperm.slane %v111, 0
  %v201 = vperm.slane %v142, 0
  %v202 = vperm.slane %v143, 0
  %v203 = vperm.slane %v144, 0
  %v204 = vperm.slane %v145, 0
  %v205 = vperm.slane %v146, 0
  %v206 = vperm.slane %v147, 0
  %v207 = vperm.slane %v148, 0
  %v208 = vperm.slane %v112, 0
  %v209 = vperm.slane %v149, 0
  %v210 = vperm.slane %v150, 0
  %v211 = vperm.slane %v151, 0
  %v212 = vperm.slane %v152, 0
  %v213 = vperm.slane %v153, 0
  %v214 = vperm.slane %v154, 0
  %v215 = vperm.slane %v155, 0
  %v216 = vperm.slane %v113, 0
  %v217 = vperm.slane %v156, 0
  %v218 = vperm.slane %v157, 0
  %v219 = vperm.slane %v158, 0
  %v220 = vperm.slane %v159, 0
  %v221 = vperm.slane %v160, 0
  %v222 = vperm.slane %v161, 0
  %v223 = vperm.slane %v162, 0
  %v224 = vperm.slane %v114, 0
  %v225 = vperm.slane %v163, 0
  %v226 = vperm.slane %v164, 0
  %v227 = vperm.slane %v165, 0
  %v228 = vperm.slane %v166, 0
  %v229 = vperm.slane %v167, 0
  %v230 = vperm.slane %v168, 0
  %v231 = vperm.slane %v169, 0
  %v232 = vperm.slane %v115, 0
  %v233 = vperm.slane %v170, 0
  %v234 = vperm.slane %v171, 0
  %v235 = vperm.slane %v172, 0
  %v236 = vperm.slane %v173, 0
  %v237 = vperm.slane %v174, 0
  %v238 = vperm.slane %v175, 0
  %v239 = vperm.slane %v176, 0
  %v240 = vperm.slane %v116, 0
  %v241 = vperm.slane %v177, 0
  %v242 = vperm.slane %v178, 0
  %v243 = vperm.slane %v179, 0
  %v244 = vperm.slane %v180, 0
  %v245 = vperm.slane %v181, 0
  %v246 = vperm.slane %v182, 0
  %v247 = vperm.slane %v183, 0
  %v312 = vmul.f32 %v184, %v117
  %v313 = vmul.f32 %v184, %v118
  %v314 = vmul.f32 %v185, %v117
  %v315 = vmul.f32 %v185, %v118
  %v316 = vmul.f32 %v186, %v117
  %v317 = vmul.f32 %v186, %v118
  %v318 = vmul.f32 %v187, %v117
  %v319 = vmul.f32 %v187, %v118
  %v320 = vmul.f32 %v188, %v117
  %v321 = vmul.f32 %v188, %v118
  %v322 = vmul.f32 %v189, %v117
  %v323 = vmul.f32 %v189, %v118
  %v324 = vmul.f32 %v190, %v117
  %v325 = vmul.f32 %v190, %v118
  %v326 = vmul.f32 %v191, %v117
  %v327 = vmul.f32 %v191, %v118
  %v328 = vmul.f32 %v192, %v117
  %v329 = vmul.f32 %v192, %v118
  %v330 = vmul.f32 %v193, %v117
  %v331 = vmul.f32 %v193, %v118
  %v332 = vmul.f32 %v194, %v117
  %v333 = vmul.f32 %v194, %v118
  %v334 = vmul.f32 %v195, %v117
  %v335 = vmul.f32 %v195, %v118
  %v336 = vmul.f32 %v196, %v117
  %v337 = vmul.f32 %v196, %v118
  %v338 = vmul.f32 %v197, %v117
  %v339 = vmul.f32 %v197, %v118
  %v340 = vmul.f32 %v198, %v117
  %v341 = vmul.f32 %v198, %v118
  %v342 = vmul.f32 %v199, %v117
  %v343 = vmul.f32 %v199, %v118
  %v344 = vmul.f32 %v200, %v117
  %v345 = vmul.f32 %v200, %v118
  %v346 = vmul.f32 %v201, %v117
  %v347 = vmul.f32 %v201, %v118
  %v348 = vmul.f32 %v202, %v117
  %v349 = vmul.f32 %v202, %v118
  %v350 = vmul.f32 %v203, %v117
  %v351 = vmul.f32 %v203, %v118
  %v352 = vmul.f32 %v204, %v117
  %v353 = vmul.f32 %v204, %v118
  %v354 = vmul.f32 %v205, %v117
  %v355 = vmul.f32 %v205, %v118
  %v356 = vmul.f32 %v206, %v117
  %v357 = vmul.f32 %v206, %v118
  %v358 = vmul.f32 %v207, %v117
  %v359 = vmul.f32 %v207, %v118
  %v360 = vmul.f32 %v208, %v117
  %v361 = vmul.f32 %v208, %v118
  %v362 = vmul.f32 %v209, %v117
  %v363 = vmul.f32 %v209, %v118
  %v364 = vmul.f32 %v210, %v117
  %v365 = vmul.f32 %v210, %v118
  %v366 = vmul.f32 %v211, %v117
  %v367 = vmul.f32 %v211, %v118
  %v368 = vmul.f32 %v212, %v117
  %v369 = vmul.f32 %v212, %v118
  %v370 = vmul.f32 %v213, %v117
  %v371 = vmul.f32 %v213, %v118
  %v372 = vmul.f32 %v214, %v117
  %v373 = vmul.f32 %v214, %v118
  %v374 = vmul.f32 %v215, %v117
  %v375 = vmul.f32 %v215, %v118
  %v376 = vmul.f32 %v216, %v117
  %v377 = vmul.f32 %v216, %v118
  %v378 = vmul.f32 %v217, %v117
  %v379 = vmul.f32 %v217, %v118
  %v380 = vmul.f32 %v218, %v117
  %v381 = vmul.f32 %v218, %v118
  %v382 = vmul.f32 %v219, %v117
  %v383 = vmul.f32 %v219, %v118
  %v384 = vmul.f32 %v220, %v117
  %v385 = vmul.f32 %v220, %v118
  %v386 = vmul.f32 %v221, %v117
  %v387 = vmul.f32 %v221, %v118
  %v388 = vmul.f32 %v222, %v117
  %v389 = vmul.f32 %v222, %v118
  %v390 = vmul.f32 %v223, %v117
  %v391 = vmul.f32 %v223, %v118
  %v392 = vmul.f32 %v224, %v117
  %v393 = vmul.f32 %v224, %v118
  %v394 = vmul.f32 %v225, %v117
  %v395 = vmul.f32 %v225, %v118
  %v396 = vmul.f32 %v226, %v117
  %v397 = vmul.f32 %v226, %v118
  %v398 = vmul.f32 %v227, %v117
  %v399 = vmul.f32 %v227, %v118
  %v400 = vmul.f32 %v228, %v117
  %v401 = vmul.f32 %v228, %v118
  %v402 = vmul.f32 %v229, %v117
  %v403 = vmul.f32 %v229, %v118
  %v404 = vmul.f32 %v230, %v117
  %v405 = vmul.f32 %v230, %v118
  %v406 = vmul.f32 %v231, %v117
  %v407 = vmul.f32 %v231, %v118
  %v408 = vmul.f32 %v232, %v117
  %v409 = vmul.f32 %v232, %v118
  %v410 = vmul.f32 %v233, %v117
  %v411 = vmul.f32 %v233, %v118
  %v412 = vmul.f32 %v234, %v117
  %v413 = vmul.f32 %v234, %v118
  %v414 = vmul.f32 %v235, %v117
  %v415 = vmul.f32 %v235, %v118
  %v416 = vmul.f32 %v236, %v117
  %v417 = vmul.f32 %v236, %v118
  %v418 = vmul.f32 %v237, %v117
  %v419 = vmul.f32 %v237, %v118
  %v420 = vmul.f32 %v238, %v117
  %v421 = vmul.f32 %v238, %v118
  %v422 = vmul.f32 %v239, %v117
  %v423 = vmul.f32 %v239, %v118
  %v424 = vmul.f32 %v240, %v117
  %v425 = vmul.f32 %v240, %v118
  %v426 = vmul.f32 %v241, %v117
  %v427 = vmul.f32 %v241, %v118
  %v428 = vmul.f32 %v242, %v117
  %v429 = vmul.f32 %v242, %v118
  %v430 = vmul.f32 %v243, %v117
  %v431 = vmul.f32 %v243, %v118
  %v432 = vmul.f32 %v244, %v117
  %v433 = vmul.f32 %v244, %v118
  %v434 = vmul.f32 %v245, %v117
  %v435 = vmul.f32 %v245, %v118
  %v436 = vmul.f32 %v246, %v117
  %v437 = vmul.f32 %v246, %v118
  %v438 = vmul.f32 %v247, %v117
  %v439 = vmul.f32 %v247, %v118
  %v440 = vmul.f32 %v312, 1.442695
  %v441 = vpow.pop %v440
  %v442 = vmul.f32 %v313, 1.442695
  %v443 = vpow.pop %v442
  %v444 = vmul.f32 %v314, 1.442695
  %v445 = vpow.pop %v444
  %v446 = vmul.f32 %v315, 1.442695
  %v447 = vpow.pop %v446
  %v448 = vmul.f32 %v316, 1.442695
  %v449 = vpow.pop %v448
  %v450 = vmul.f32 %v317, 1.442695
  %v451 = vpow.pop %v450
  %v452 = vmul.f32 %v318, 1.442695
  %v453 = vpow.pop %v452
  %v454 = vmul.f32 %v319, 1.442695
  %v455 = vpow.pop %v454
  %v456 = vmul.f32 %v320, 1.442695
  %v457 = vpow.pop %v456
  %v458 = vmul.f32 %v321, 1.442695
  %v459 = vpow.pop %v458
  %v460 = vmul.f32 %v322, 1.442695
  %v461 = vpow.pop %v460
  %v462 = vmul.f32 %v323, 1.442695
  %v463 = vpow.pop %v462
  %v464 = vmul.f32 %v324, 1.442695
  %v465 = vpow.pop %v464
  %v466 = vmul.f32 %v325, 1.442695
  %v467 = vpow.pop %v466
  %v468 = vmul.f32 %v326, 1.442695
  %v469 = vpow.pop %v468
  %v470 = vmul.f32 %v327, 1.442695
  %v471 = vpow.pop %v470
  %v472 = vmul.f32 %v328, 1.442695
  %v473 = vpow.pop %v472
  %v474 = vmul.f32 %v329, 1.442695
  %v475 = vpow.pop %v474
  %v476 = vmul.f32 %v330, 1.442695
  %v477 = vpow.pop %v476
  %v478 = vmul.f32 %v331, 1.442695
  %v479 = vpow.pop %v478
  %v480 = vmul.f32 %v332, 1.442695
  %v481 = vpow.pop %v480
  %v482 = vmul.f32 %v333, 1.442695
  %v483 = vpow.pop %v482
  %v484 = vmul.f32 %v334, 1.442695
  %v485 = vpow.pop %v484
  %v486 = vmul.f32 %v335, 1.442695
  %v487 = vpow.pop %v486
  %v488 = vmul.f32 %v336, 1.442695
  %v489 = vpow.pop %v488
  %v490 = vmul.f32 %v337, 1.442695
  %v491 = vpow.pop %v490
  %v492 = vmul.f32 %v338, 1.442695
  %v493 = vpow.pop %v492
  %v494 = vmul.f32 %v339, 1.442695
  %v495 = vpow.pop %v494
  %v496 = vmul.f32 %v340, 1.442695
  %v497 = vpow.pop %v496
  %v498 = vmul.f32 %v341, 1.442695
  %v499 = vpow.pop %v498
  %v500 = vmul.f32 %v342, 1.442695
  %v501 = vpow.pop %v500
  %v502 = vmul.f32 %v343, 1.442695
  %v503 = vpow.pop %v502
  %v504 = vmul.f32 %v344, 1.442695
  %v505 = vpow.pop %v504
  %v506 = vmul.f32 %v345, 1.442695
  %v507 = vpow.pop %v506
  %v508 = vmul.f32 %v346, 1.442695
  %v509 = vpow.pop %v508
  %v510 = vmul.f32 %v347, 1.442695
  %v511 = vpow.pop %v510
  %v512 = vmul.f32 %v348, 1.442695
  %v513 = vpow.pop %v512
  %v514 = vmul.f32 %v349, 1.442695
  %v515 = vpow.pop %v514
  %v516 = vmul.f32 %v350, 1.442695
  %v517 = vpow.pop %v516
  %v518 = vmul.f32 %v351, 1.442695
  %v519 = vpow.pop %v518
  %v520 = vmul.f32 %v352, 1.442695
  %v521 = vpow.pop %v520
  %v522 = vmul.f32 %v353, 1.442695
  %v523 = vpow.pop %v522
  %v524 = vmul.f32 %v354, 1.442695
  %v525 = vpow.pop %v524
  %v526 = vmul.f32 %v355, 1.442695
  %v527 = vpow.pop %v526
  %v528 = vmul.f32 %v356, 1.442695
  %v529 = vpow.pop %v528
  %v530 = vmul.f32 %v357, 1.442695
  %v531 = vpow.pop %v530
  %v532 = vmul.f32 %v358, 1.442695
  %v533 = vpow.pop %v532
  %v534 = vmul.f32 %v359, 1.442695
  %v535 = vpow.pop %v534
  %v536 = vmul.f32 %v360, 1.442695
  %v537 = vpow.pop %v536
  %v538 = vmul.f32 %v361, 1.442695
  %v539 = vpow.pop %v538
  %v540 = vmul.f32 %v362, 1.442695
  %v541 = vpow.pop %v540
  %v542 = vmul.f32 %v363, 1.442695
  %v543 = vpow.pop %v542
  %v544 = vmul.f32 %v364, 1.442695
  %v545 = vpow.pop %v544
  %v546 = vmul.f32 %v365, 1.442695
  %v547 = vpow.pop %v546
  %v548 = vmul.f32 %v366, 1.442695
  %v549 = vpow.pop %v548
  %v550 = vmul.f32 %v367, 1.442695
  %v551 = vpow.pop %v550
  %v552 = vmul.f32 %v368, 1.442695
  %v553 = vpow.pop %v552
  %v554 = vmul.f32 %v369, 1.442695
  %v555 = vpow.pop %v554
  %v556 = vmul.f32 %v370, 1.442695
  %v557 = vpow.pop %v556
  %v558 = vmul.f32 %v371, 1.442695
  %v559 = vpow.pop %v558
  %v560 = vmul.f32 %v372, 1.442695
  %v561 = vpow.pop %v560
  %v562 = vmul.f32 %v373, 1.442695
  %v563 = vpow.pop %v562
  %v564 = vmul.f32 %v374, 1.442695
  %v565 = vpow.pop %v564
  %v566 = vmul.f32 %v375, 1.442695
  %v567 = vpow.pop %v566
  %v568 = vmul.f32 %v376, 1.442695
  %v569 = vpow.pop %v568
  %v570 = vmul.f32 %v377, 1.442695
  %v571 = vpow.pop %v570
  %v572 = vmul.f32 %v378, 1.442695
  %v573 = vpow.pop %v572
  %v574 = vmul.f32 %v379, 1.442695
  %v575 = vpow.pop %v574
  %v576 = vmul.f32 %v380, 1.442695
  %v577 = vpow.pop %v576
  %v578 = vmul.f32 %v381, 1.442695
  %v579 = vpow.pop %v578
  %v580 = vmul.f32 %v382, 1.442695
  %v581 = vpow.pop %v580
  %v582 = vmul.f32 %v383, 1.442695
  %v583 = vpow.pop %v582
  %v584 = vmul.f32 %v384, 1.442695
  %v585 = vpow.pop %v584
  %v586 = vmul.f32 %v385, 1.442695
  %v587 = vpow.pop %v586
  %v588 = vmul.f32 %v386, 1.442695
  %v589 = vpow.pop %v588
  %v590 = vmul.f32 %v387, 1.442695
  %v591 = vpow.pop %v590
  %v592 = vmul.f32 %v388, 1.442695
  %v593 = vpow.pop %v592
  %v594 = vmul.f32 %v389, 1.442695
  %v595 = vpow.pop %v594
  %v596 = vmul.f32 %v390, 1.442695
  %v597 = vpow.pop %v596
  %v598 = vmul.f32 %v391, 1.442695
  %v599 = vpow.pop %v598
  %v600 = vmul.f32 %v392, 1.442695
  %v601 = vpow.pop %v600
  %v602 = vmul.f32 %v393, 1.442695
  %v603 = vpow.pop %v602
  %v604 = vmul.f32 %v394, 1.442695
  %v605 = vpow.pop %v604
  %v606 = vmul.f32 %v395, 1.442695
  %v607 = vpow.pop %v606
  %v608 = vmul.f32 %v396, 1.442695
  %v609 = vpow.pop %v608
  %v610 = vmul.f32 %v397, 1.442695
  %v611 = vpow.pop %v610
  %v612 = vmul.f32 %v398, 1.442695
  %v613 = vpow.pop %v612
  %v614 = vmul.f32 %v399, 1.442695
  %v615 = vpow.pop %v614
  %v616 = vmul.f32 %v400, 1.442695
  %v617 = vpow.pop %v616
  %v618 = vmul.f32 %v401, 1.442695
  %v619 = vpow.pop %v618
  %v620 = vmul.f32 %v402, 1.442695
  %v621 = vpow.pop %v620
  %v622 = vmul.f32 %v403, 1.442695
  %v623 = vpow.pop %v622
  %v624 = vmul.f32 %v404, 1.442695
  %v625 = vpow.pop %v624
  %v626 = vmul.f32 %v405, 1.442695
  %v627 = vpow.pop %v626
  %v628 = vmul.f32 %v406, 1.442695
  %v629 = vpow.pop %v628
  %v630 = vmul.f32 %v407, 1.442695
  %v631 = vpow.pop %v630
  %v632 = vmul.f32 %v408, 1.442695
  %v633 = vpow.pop %v632
  %v634 = vmul.f32 %v409, 1.442695
  %v635 = vpow.pop %v634
  %v636 = vmul.f32 %v410, 1.442695
  %v637 = vpow.pop %v636
  %v638 = vmul.f32 %v411, 1.442695
  %v639 = vpow.pop %v638
  %v640 = vmul.f32 %v412, 1.442695
  %v641 = vpow.pop %v640
  %v642 = vmul.f32 %v413, 1.442695
  %v643 = vpow.pop %v642
  %v644 = vmul.f32 %v414, 1.442695
  %v645 = vpow.pop %v644
  %v646 = vmul.f32 %v415, 1.442695
  %v647 = vpow.pop %v646
  %v648 = vmul.f32 %v416, 1.442695
  %v649 = vpow.pop %v648
  %v650 = vmul.f32 %v417, 1.442695
  %v651 = vpow.pop %v650
  %v652 = vmul.f32 %v418, 1.442695
  %v653 = vpow.pop %v652
  %v654 = vmul.f32 %v419, 1.442695
  %v655 = vpow.pop %v654
  %v656 = vmul.f32 %v420, 1.442695
  %v657 = vpow.pop %v656
  %v658 = vmul.f32 %v421, 1.442695
  %v659 = vpow.pop %v658
  %v660 = vmul.f32 %v422, 1.442695
  %v661 = vpow.pop %v660
  %v662 = vmul.f32 %v423, 1.442695
  %v663 = vpow.pop %v662
  %v664 = vmul.f32 %v424, 1.442695
  %v665 = vpow.pop %v664
  %v666 = vmul.f32 %v425, 1.442695
  %v667 = vpow.pop %v666
  %v668 = vmul.f32 %v426, 1.442695
  %v669 = vpow.pop %v668
  %v670 = vmul.f32 %v427, 1.442695
  %v671 = vpow.pop %v670
  %v672 = vmul.f32 %v428, 1.442695
  %v673 = vpow.pop %v672
  %v674 = vmul.f32 %v429, 1.442695
  %v675 = vpow.pop %v674
  %v676 = vmul.f32 %v430, 1.442695
  %v677 = vpow.pop %v676
  %v678 = vmul.f32 %v431, 1.442695
  %v679 = vpow.pop %v678
  %v680 = vmul.f32 %v432, 1.442695
  %v681 = vpow.pop %v680
  %v682 = vmul.f32 %v433, 1.442695
  %v683 = vpow.pop %v682
  %v684 = vmul.f32 %v434, 1.442695
  %v685 = vpow.pop %v684
  %v686 = vmul.f32 %v435, 1.442695
  %v687 = vpow.pop %v686
  %v688 = vmul.f32 %v436, 1.442695
  %v689 = vpow.pop %v688
  %v690 = vmul.f32 %v437, 1.442695
  %v691 = vpow.pop %v690
  %v692 = vmul.f32 %v438, 1.442695
  %v693 = vpow.pop %v692
  %v694 = vmul.f32 %v439, 1.442695
  %v695 = vpow.pop %v694
  %696 = vst [vmem:[#allocation2] sm:$0xff] %v441
  %697 = vst [vmem:[#allocation2 + $0x8] sm:$0xff] %v443
  %698 = vst [vmem:[#allocation2 + $0x10] sm:$0xff] %v445
  %699 = vst [vmem:[#allocation2 + $0x18] sm:$0xff] %v447
  %700 = vst [vmem:[#allocation2 + $0x20] sm:$0xff] %v449
  %701 = vst [vmem:[#allocation2 + $0x28] sm:$0xff] %v451
  %702 = vst [vmem:[#allocation2 + $0x30] sm:$0xff] %v453
  %703 = vst [vmem:[#allocation2 + $0x38] sm:$0xff] %v455
  %704 = vst [vmem:[#allocation2 + $0x40] sm:$0xff] %v457
  %705 = vst [vmem:[#allocation2 + $0x48] sm:$0xff] %v459
  %706 = vst [vmem:[#allocation2 + $0x50] sm:$0xff] %v461
  %707 = vst [vmem:[#allocation2 + $0x58] sm:$0xff] %v463
  %708 = vst [vmem:[#allocation2 + $0x60] sm:$0xff] %v465
  %709 = vst [vmem:[#allocation2 + $0x68] sm:$0xff] %v467
  %710 = vst [vmem:[#allocation2 + $0x70] sm:$0xff] %v469
  %711 = vst [vmem:[#allocation2 + $0x78] sm:$0xff] %v471
  %712 = vst [vmem:[#allocation2 + $0x80] sm:$0xff] %v473
  %713 = vst [vmem:[#allocation2 + $0x88] sm:$0xff] %v475
  %714 = vst [vmem:[#allocation2 + $0x90] sm:$0xff] %v477
  %715 = vst [vmem:[#allocation2 + $0x98] sm:$0xff] %v479
  %716 = vst [vmem:[#allocation2 + $0xa0] sm:$0xff] %v481
  %717 = vst [vmem:[#allocation2 + $0xa8] sm:$0xff] %v483
  %718 = vst [vmem:[#allocation2 + $0xb0] sm:$0xff] %v485
  %719 = vst [vmem:[#allocation2 + $0xb8] sm:$0xff] %v487
  %720 = vst [vmem:[#allocation2 + $0xc0] sm:$0xff] %v489
  %721 = vst [vmem:[#allocation2 + $0xc8] sm:$0xff] %v491
  %722 = vst [vmem:[#allocation2 + $0xd0] sm:$0xff] %v493
  %723 = vst [vmem:[#allocation2 + $0xd8] sm:$0xff] %v495
  %724 = vst [vmem:[#allocation2 + $0xe0] sm:$0xff] %v497
  %725 = vst [vmem:[#allocation2 + $0xe8] sm:$0xff] %v499
  %726 = vst [vmem:[#allocation2 + $0xf0] sm:$0xff] %v501
  %727 = vst [vmem:[#allocation2 + $0xf8] sm:$0xff] %v503
  %728 = vst [vmem:[#allocation2 + $0x100] sm:$0xff] %v505
  %729 = vst [vmem:[#allocation2 + $0x108] sm:$0xff] %v507
  %730 = vst [vmem:[#allocation2 + $0x110] sm:$0xff] %v509
  %731 = vst [vmem:[#allocation2 + $0x118] sm:$0xff] %v511
  %732 = vst [vmem:[#allocation2 + $0x120] sm:$0xff] %v513
  %733 = vst [vmem:[#allocation2 + $0x128] sm:$0xff] %v515
  %734 = vst [vmem:[#allocation2 + $0x130] sm:$0xff] %v517
  %735 = vst [vmem:[#allocation2 + $0x138] sm:$0xff] %v519
  %736 = vst [vmem:[#allocation2 + $0x140] sm:$0xff] %v521
  %737 = vst [vmem:[#allocation2 + $0x148] sm:$0xff] %v523
  %738 = vst [vmem:[#allocation2 + $0x150] sm:$0xff] %v525
  %739 = vst [vmem:[#allocation2 + $0x158] sm:$0xff] %v527
  %740 = vst [vmem:[#allocation2 + $0x160] sm:$0xff] %v529
  %741 = vst [vmem:[#allocation2 + $0x168] sm:$0xff] %v531
  %742 = vst [vmem:[#allocation2 + $0x170] sm:$0xff] %v533
  %743 = vst [vmem:[#allocation2 + $0x178] sm:$0xff] %v535
  %744 = vst [vmem:[#allocation2 + $0x180] sm:$0xff] %v537
  %745 = vst [vmem:[#allocation2 + $0x188] sm:$0xff] %v539
  %746 = vst [vmem:[#allocation2 + $0x190] sm:$0xff] %v541
  %747 = vst [vmem:[#allocation2 + $0x198] sm:$0xff] %v543
  %748 = vst [vmem:[#allocation2 + $0x1a0] sm:$0xff] %v545
  %749 = vst [vmem:[#allocation2 + $0x1a8] sm:$0xff] %v547
  %750 = vst [vmem:[#allocation2 + $0x1b0] sm:$0xff] %v549
  %751 = vst [vmem:[#allocation2 + $0x1b8] sm:$0xff] %v551
  %752 = vst [vmem:[#allocation2 + $0x1c0] sm:$0xff] %v553
  %753 = vst [vmem:[#allocation2 + $0x1c8] sm:$0xff] %v555
  %754 = vst [vmem:[#allocation2 + $0x1d0] sm:$0xff] %v557
  %755 = vst [vmem:[#allocation2 + $0x1d8] sm:$0xff] %v559
  %756 = vst [vmem:[#allocation2 + $0x1e0] sm:$0xff] %v561
  %757 = vst [vmem:[#allocation2 + $0x1e8] sm:$0xff] %v563
  %758 = vst [vmem:[#allocation2 + $0x1f0] sm:$0xff] %v565
  %759 = vst [vmem:[#allocation2 + $0x1f8] sm:$0xff] %v567
  %760 = vst [vmem:[#allocation2 + $0x200] sm:$0xff] %v569
  %761 = vst [vmem:[#allocation2 + $0x208] sm:$0xff] %v571
  %762 = vst [vmem:[#allocation2 + $0x210] sm:$0xff] %v573
  %763 = vst [vmem:[#allocation2 + $0x218] sm:$0xff] %v575
  %764 = vst [vmem:[#allocation2 + $0x220] sm:$0xff] %v577
  %765 = vst [vmem:[#allocation2 + $0x228] sm:$0xff] %v579
  %766 = vst [vmem:[#allocation2 + $0x230] sm:$0xff] %v581
  %767 = vst [vmem:[#allocation2 + $0x238] sm:$0xff] %v583
  %768 = vst [vmem:[#allocation2 + $0x240] sm:$0xff] %v585
  %769 = vst [vmem:[#allocation2 + $0x248] sm:$0xff] %v587
  %770 = vst [vmem:[#allocation2 + $0x250] sm:$0xff] %v589
  %771 = vst [vmem:[#allocation2 + $0x258] sm:$0xff] %v591
  %772 = vst [vmem:[#allocation2 + $0x260] sm:$0xff] %v593
  %773 = vst [vmem:[#allocation2 + $0x268] sm:$0xff] %v595
  %774 = vst [vmem:[#allocation2 + $0x270] sm:$0xff] %v597
  %775 = vst [vmem:[#allocation2 + $0x278] sm:$0xff] %v599
  %776 = vst [vmem:[#allocation2 + $0x280] sm:$0xff] %v601
  %777 = vst [vmem:[#allocation2 + $0x288] sm:$0xff] %v603
  %778 = vst [vmem:[#allocation2 + $0x290] sm:$0xff] %v605
  %779 = vst [vmem:[#allocation2 + $0x298] sm:$0xff] %v607
  %780 = vst [vmem:[#allocation2 + $0x2a0] sm:$0xff] %v609
  %781 = vst [vmem:[#allocation2 + $0x2a8] sm:$0xff] %v611
  %782 = vst [vmem:[#allocation2 + $0x2b0] sm:$0xff] %v613
  %783 = vst [vmem:[#allocation2 + $0x2b8] sm:$0xff] %v615
  %784 = vst [vmem:[#allocation2 + $0x2c0] sm:$0xff] %v617
  %785 = vst [vmem:[#allocation2 + $0x2c8] sm:$0xff] %v619
  %786 = vst [vmem:[#allocation2 + $0x2d0] sm:$0xff] %v621
  %787 = vst [vmem:[#allocation2 + $0x2d8] sm:$0xff] %v623
  %788 = vst [vmem:[#allocation2 + $0x2e0] sm:$0xff] %v625
  %789 = vst [vmem:[#allocation2 + $0x2e8] sm:$0xff] %v627
  %790 = vst [vmem:[#allocation2 + $0x2f0] sm:$0xff] %v629
  %791 = vst [vmem:[#allocation2 + $0x2f8] sm:$0xff] %v631
  %792 = vst [vmem:[#allocation2 + $0x300] sm:$0xff] %v633
  %793 = vst [vmem:[#allocation2 + $0x308] sm:$0xff] %v635
  %794 = vst [vmem:[#allocation2 + $0x310] sm:$0xff] %v637
  %795 = vst [vmem:[#allocation2 + $0x318] sm:$0xff] %v639
  %796 = vst [vmem:[#allocation2 + $0x320] sm:$0xff] %v641
  %797 = vst [vmem:[#allocation2 + $0x328] sm:$0xff] %v643
  %798 = vst [vmem:[#allocation2 + $0x330] sm:$0xff] %v645
  %799 = vst [vmem:[#allocation2 + $0x338] sm:$0xff] %v647
  %800 = vst [vmem:[#allocation2 + $0x340] sm:$0xff] %v649
  %801 = vst [vmem:[#allocation2 + $0x348] sm:$0xff] %v651
  %802 = vst [vmem:[#allocation2 + $0x350] sm:$0xff] %v653
  %803 = vst [vmem:[#allocation2 + $0x358] sm:$0xff] %v655
  %804 = vst [vmem:[#allocation2 + $0x360] sm:$0xff] %v657
  %805 = vst [vmem:[#allocation2 + $0x368] sm:$0xff] %v659
  %806 = vst [vmem:[#allocation2 + $0x370] sm:$0xff] %v661
  %807 = vst [vmem:[#allocation2 + $0x378] sm:$0xff] %v663
  %808 = vst [vmem:[#allocation2 + $0x380] sm:$0xff] %v665
  %809 = vst [vmem:[#allocation2 + $0x388] sm:$0xff] %v667
  %810 = vst [vmem:[#allocation2 + $0x390] sm:$0xff] %v669
  %811 = vst [vmem:[#allocation2 + $0x398] sm:$0xff] %v671
  %812 = vst [vmem:[#allocation2 + $0x3a0] sm:$0xff] %v673
  %813 = vst [vmem:[#allocation2 + $0x3a8] sm:$0xff] %v675
  %814 = vst [vmem:[#allocation2 + $0x3b0] sm:$0xff] %v677
  %815 = vst [vmem:[#allocation2 + $0x3b8] sm:$0xff] %v679
  %816 = vst [vmem:[#allocation2 + $0x3c0] sm:$0xff] %v681
  %817 = vst [vmem:[#allocation2 + $0x3c8] sm:$0xff] %v683
  %818 = vst [vmem:[#allocation2 + $0x3d0] sm:$0xff] %v685
  %819 = vst [vmem:[#allocation2 + $0x3d8] sm:$0xff] %v687
  %820 = vst [vmem:[#allocation2 + $0x3e0] sm:$0xff] %v689
  %821 = vst [vmem:[#allocation2 + $0x3e8] sm:$0xff] %v691
  %822 = vst [vmem:[#allocation2 + $0x3f0] sm:$0xff] %v693
  %823 = vst [vmem:[#allocation2 + $0x3f8] sm:$0xff] %v695
  %v824 = vld [vmem:[%s3] sm:$0xff]
  %v825 = vld [vmem:[%s3 + $0x8] sm:$0xff]
  %v826 = vld [vmem:[%s3 + $0x10] sm:$0xff]
  %v827 = vld [vmem:[%s3 + $0x18] sm:$0xff]
  %v828 = vld [vmem:[%s3 + $0x20] sm:$0xff]
  %v829 = vld [vmem:[%s3 + $0x28] sm:$0xff]
  %v830 = vld [vmem:[%s3 + $0x30] sm:$0xff]
  %v831 = vld [vmem:[%s3 + $0x38] sm:$0xff]
  %v832 = vld [vmem:[%s3 + $0x40] sm:$0xff]
  %v833 = vld [vmem:[%s3 + $0x48] sm:$0xff]
  %v834 = vld [vmem:[%s3 + $0x50] sm:$0xff]
  %v835 = vld [vmem:[%s3 + $0x58] sm:$0xff]
  %v836 = vld [vmem:[%s3 + $0x60] sm:$0xff]
  %v837 = vld [vmem:[%s3 + $0x68] sm:$0xff]
  %v838 = vld [vmem:[%s3 + $0x70] sm:$0xff]
  %v839 = vld [vmem:[%s3 + $0x78] sm:$0xff]
  %v840 = vld [vmem:[%s3 + $0x80] sm:$0xff]
  %v841 = vld [vmem:[%s3 + $0x88] sm:$0xff]
  %v842 = vld [vmem:[%s3 + $0x90] sm:$0xff]
  %v843 = vld [vmem:[%s3 + $0x98] sm:$0xff]
  %v844 = vld [vmem:[%s3 + $0xa0] sm:$0xff]
  %v845 = vld [vmem:[%s3 + $0xa8] sm:$0xff]
  %v846 = vld [vmem:[%s3 + $0xb0] sm:$0xff]
  %v847 = vld [vmem:[%s3 + $0xb8] sm:$0xff]
  %v848 = vld [vmem:[%s3 + $0xc0] sm:$0xff]
  %v849 = vld [vmem:[%s3 + $0xc8] sm:$0xff]
  %v850 = vld [vmem:[%s3 + $0xd0] sm:$0xff]
  %v851 = vld [vmem:[%s3 + $0xd8] sm:$0xff]
  %v852 = vld [vmem:[%s3 + $0xe0] sm:$0xff]
  %v853 = vld [vmem:[%s3 + $0xe8] sm:$0xff]
  %v854 = vld [vmem:[%s3 + $0xf0] sm:$0xff]
  %v855 = vld [vmem:[%s3 + $0xf8] sm:$0xff]
  %v856 = vld [vmem:[%s3 + $0x100] sm:$0xff]
  %v857 = vld [vmem:[%s3 + $0x108] sm:$0xff]
  %v858 = vld [vmem:[%s3 + $0x110] sm:$0xff]
  %v859 = vld [vmem:[%s3 + $0x118] sm:$0xff]
  %v860 = vld [vmem:[%s3 + $0x120] sm:$0xff]
  %v861 = vld [vmem:[%s3 + $0x128] sm:$0xff]
  %v862 = vld [vmem:[%s3 + $0x130] sm:$0xff]
  %v863 = vld [vmem:[%s3 + $0x138] sm:$0xff]
  %v864 = vld [vmem:[%s3 + $0x140] sm:$0xff]
  %v865 = vld [vmem:[%s3 + $0x148] sm:$0xff]
  %v866 = vld [vmem:[%s3 + $0x150] sm:$0xff]
  %v867 = vld [vmem:[%s3 + $0x158] sm:$0xff]
  %v868 = vld [vmem:[%s3 + $0x160] sm:$0xff]
  %v869 = vld [vmem:[%s3 + $0x168] sm:$0xff]
  %v870 = vld [vmem:[%s3 + $0x170] sm:$0xff]
  %v871 = vld [vmem:[%s3 + $0x178] sm:$0xff]
  %v872 = vld [vmem:[%s3 + $0x180] sm:$0xff]
  %v873 = vld [vmem:[%s3 + $0x188] sm:$0xff]
  %v874 = vld [vmem:[%s3 + $0x190] sm:$0xff]
  %v875 = vld [vmem:[%s3 + $0x198] sm:$0xff]
  %v876 = vld [vmem:[%s3 + $0x1a0] sm:$0xff]
  %v877 = vld [vmem:[%s3 + $0x1a8] sm:$0xff]
  %v878 = vld [vmem:[%s3 + $0x1b0] sm:$0xff]
  %v879 = vld [vmem:[%s3 + $0x1b8] sm:$0xff]
  %v880 = vld [vmem:[%s3 + $0x1c0] sm:$0xff]
  %v881 = vld [vmem:[%s3 + $0x1c8] sm:$0xff]
  %v882 = vld [vmem:[%s3 + $0x1d0] sm:$0xff]
  %v883 = vld [vmem:[%s3 + $0x1d8] sm:$0xff]
  %v884 = vld [vmem:[%s3 + $0x1e0] sm:$0xff]
  %v885 = vld [vmem:[%s3 + $0x1e8] sm:$0xff]
  %v886 = vld [vmem:[%s3 + $0x1f0] sm:$0xff]
  %v887 = vld [vmem:[%s3 + $0x1f8] sm:$0xff]
  %v888 = vld [vmem:[%s3 + $0x200] sm:$0xff]
  %v889 = vld [vmem:[%s3 + $0x208] sm:$0xff]
  %v890 = vld [vmem:[%s3 + $0x210] sm:$0xff]
  %v891 = vld [vmem:[%s3 + $0x218] sm:$0xff]
  %v892 = vld [vmem:[%s3 + $0x220] sm:$0xff]
  %v893 = vld [vmem:[%s3 + $0x228] sm:$0xff]
  %v894 = vld [vmem:[%s3 + $0x230] sm:$0xff]
  %v895 = vld [vmem:[%s3 + $0x238] sm:$0xff]
  %v896 = vld [vmem:[%s3 + $0x240] sm:$0xff]
  %v897 = vld [vmem:[%s3 + $0x248] sm:$0xff]
  %v898 = vld [vmem:[%s3 + $0x250] sm:$0xff]
  %v899 = vld [vmem:[%s3 + $0x258] sm:$0xff]
  %v900 = vld [vmem:[%s3 + $0x260] sm:$0xff]
  %v901 = vld [vmem:[%s3 + $0x268] sm:$0xff]
  %v902 = vld [vmem:[%s3 + $0x270] sm:$0xff]
  %v903 = vld [vmem:[%s3 + $0x278] sm:$0xff]
  %v904 = vld [vmem:[%s3 + $0x280] sm:$0xff]
  %v905 = vld [vmem:[%s3 + $0x288] sm:$0xff]
  %v906 = vld [vmem:[%s3 + $0x290] sm:$0xff]
  %v907 = vld [vmem:[%s3 + $0x298] sm:$0xff]
  %v908 = vld [vmem:[%s3 + $0x2a0] sm:$0xff]
  %v909 = vld [vmem:[%s3 + $0x2a8] sm:$0xff]
  %v910 = vld [vmem:[%s3 + $0x2b0] sm:$0xff]
  %v911 = vld [vmem:[%s3 + $0x2b8] sm:$0xff]
  %v912 = vld [vmem:[%s3 + $0x2c0] sm:$0xff]
  %v913 = vld [vmem:[%s3 + $0x2c8] sm:$0xff]
  %v914 = vld [vmem:[%s3 + $0x2d0] sm:$0xff]
  %v915 = vld [vmem:[%s3 + $0x2d8] sm:$0xff]
  %v916 = vld [vmem:[%s3 + $0x2e0] sm:$0xff]
  %v917 = vld [vmem:[%s3 + $0x2e8] sm:$0xff]
  %v918 = vld [vmem:[%s3 + $0x2f0] sm:$0xff]
  %v919 = vld [vmem:[%s3 + $0x2f8] sm:$0xff]
  %v920 = vld [vmem:[%s3 + $0x300] sm:$0xff]
  %v921 = vld [vmem:[%s3 + $0x308] sm:$0xff]
  %v922 = vld [vmem:[%s3 + $0x310] sm:$0xff]
  %v923 = vld [vmem:[%s3 + $0x318] sm:$0xff]
  %v924 = vld [vmem:[%s3 + $0x320] sm:$0xff]
  %v925 = vld [vmem:[%s3 + $0x328] sm:$0xff]
  %v926 = vld [vmem:[%s3 + $0x330] sm:$0xff]
  %v927 = vld [vmem:[%s3 + $0x338] sm:$0xff]
  %v928 = vld [vmem:[%s3 + $0x340] sm:$0xff]
  %v929 = vld [vmem:[%s3 + $0x348] sm:$0xff]
  %v930 = vld [vmem:[%s3 + $0x350] sm:$0xff]
  %v931 = vld [vmem:[%s3 + $0x358] sm:$0xff]
  %v932 = vld [vmem:[%s3 + $0x360] sm:$0xff]
  %v933 = vld [vmem:[%s3 + $0x368] sm:$0xff]
  %v934 = vld [vmem:[%s3 + $0x370] sm:$0xff]
  %v935 = vld [vmem:[%s3 + $0x378] sm:$0xff]
  %v936 = vld [vmem:[%s3 + $0x380] sm:$0xff]
  %v937 = vld [vmem:[%s3 + $0x388] sm:$0xff]
  %v938 = vld [vmem:[%s3 + $0x390] sm:$0xff]
  %v939 = vld [vmem:[%s3 + $0x398] sm:$0xff]
  %v940 = vld [vmem:[%s3 + $0x3a0] sm:$0xff]
  %v941 = vld [vmem:[%s3 + $0x3a8] sm:$0xff]
  %v942 = vld [vmem:[%s3 + $0x3b0] sm:$0xff]
  %v943 = vld [vmem:[%s3 + $0x3b8] sm:$0xff]
  %v944 = vld [vmem:[%s3 + $0x3c0] sm:$0xff]
  %v945 = vld [vmem:[%s3 + $0x3c8] sm:$0xff]
  %v946 = vld [vmem:[%s3 + $0x3d0] sm:$0xff]
  %v947 = vld [vmem:[%s3 + $0x3d8] sm:$0xff]
  %v948 = vld [vmem:[%s3 + $0x3e0] sm:$0xff]
  %v949 = vld [vmem:[%s3 + $0x3e8] sm:$0xff]
  %v950 = vld [vmem:[%s3 + $0x3f0] sm:$0xff]
  %v951 = vld [vmem:[%s3 + $0x3f8] sm:$0xff]
  %vm952 = vcmask 64512
  %v954 = vsel %vm952, %v824, 0
  %v957 = vsel %vm952, %v825, 0
  %v960 = vsel %vm952, %v826, 0
  %v963 = vsel %vm952, %v827, 0
  %v966 = vsel %vm952, %v828, 0
  %v969 = vsel %vm952, %v829, 0
  %v972 = vsel %vm952, %v830, 0
  %v975 = vsel %vm952, %v831, 0
  %v978 = vsel %vm952, %v832, 0
  %v981 = vsel %vm952, %v833, 0
  %v984 = vsel %vm952, %v834, 0
  %v987 = vsel %vm952, %v835, 0
  %v990 = vsel %vm952, %v836, 0
  %v993 = vsel %vm952, %v837, 0
  %v996 = vsel %vm952, %v838, 0
  %v999 = vsel %vm952, %v839, 0
  %v1002 = vsel %vm952, %v840, 0
  %v1005 = vsel %vm952, %v841, 0
  %v1008 = vsel %vm952, %v842, 0
  %v1011 = vsel %vm952, %v843, 0
  %v1014 = vsel %vm952, %v844, 0
  %v1017 = vsel %vm952, %v845, 0
  %v1020 = vsel %vm952, %v846, 0
  %v1023 = vsel %vm952, %v847, 0
  %v1026 = vsel %vm952, %v848, 0
  %v1029 = vsel %vm952, %v849, 0
  %v1032 = vsel %vm952, %v850, 0
  %v1035 = vsel %vm952, %v851, 0
  %v1038 = vsel %vm952, %v852, 0
  %v1041 = vsel %vm952, %v853, 0
  %v1044 = vsel %vm952, %v854, 0
  %v1047 = vsel %vm952, %v855, 0
  %v1050 = vsel %vm952, %v856, 0
  %v1053 = vsel %vm952, %v857, 0
  %v1056 = vsel %vm952, %v858, 0
  %v1059 = vsel %vm952, %v859, 0
  %v1062 = vsel %vm952, %v860, 0
  %v1065 = vsel %vm952, %v861, 0
  %v1068 = vsel %vm952, %v862, 0
  %v1071 = vsel %vm952, %v863, 0
  %v1074 = vsel %vm952, %v864, 0
  %v1077 = vsel %vm952, %v865, 0
  %v1080 = vsel %vm952, %v866, 0
  %v1083 = vsel %vm952, %v867, 0
  %v1086 = vsel %vm952, %v868, 0
  %v1089 = vsel %vm952, %v869, 0
  %v1092 = vsel %vm952, %v870, 0
  %v1095 = vsel %vm952, %v871, 0
  %v1098 = vsel %vm952, %v872, 0
  %v1101 = vsel %vm952, %v873, 0
  %v1104 = vsel %vm952, %v874, 0
  %v1107 = vsel %vm952, %v875, 0
  %v1110 = vsel %vm952, %v876, 0
  %v1113 = vsel %vm952, %v877, 0
  %v1116 = vsel %vm952, %v878, 0
  %v1119 = vsel %vm952, %v879, 0
  %v1122 = vsel %vm952, %v880, 0
  %v1125 = vsel %vm952, %v881, 0
  %v1128 = vsel %vm952, %v882, 0
  %v1131 = vsel %vm952, %v883, 0
  %v1134 = vsel %vm952, %v884, 0
  %v1137 = vsel %vm952, %v885, 0
  %v1140 = vsel %vm952, %v886, 0
  %v1143 = vsel %vm952, %v887, 0
  %v1146 = vsel %vm952, %v888, 0
  %v1149 = vsel %vm952, %v889, 0
  %v1152 = vsel %vm952, %v890, 0
  %v1155 = vsel %vm952, %v891, 0
  %v1158 = vsel %vm952, %v892, 0
  %v1161 = vsel %vm952, %v893, 0
  %v1164 = vsel %vm952, %v894, 0
  %v1167 = vsel %vm952, %v895, 0
  %v1170 = vsel %vm952, %v896, 0
  %v1173 = vsel %vm952, %v897, 0
  %v1176 = vsel %vm952, %v898, 0
  %v1179 = vsel %vm952, %v899, 0
  %v1182 = vsel %vm952, %v900, 0
  %v1185 = vsel %vm952, %v901, 0
  %v1188 = vsel %vm952, %v902, 0
  %v1191 = vsel %vm952, %v903, 0
  %v1194 = vsel %vm952, %v904, 0
  %v1197 = vsel %vm952, %v905, 0
  %v1200 = vsel %vm952, %v906, 0
  %v1203 = vsel %vm952, %v907, 0
  %v1206 = vsel %vm952, %v908, 0
  %v1209 = vsel %vm952, %v909, 0
  %v1212 = vsel %vm952, %v910, 0
  %v1215 = vsel %vm952, %v911, 0
  %v1218 = vsel %vm952, %v912, 0
  %v1221 = vsel %vm952, %v913, 0
  %v1224 = vsel %vm952, %v914, 0
  %v1227 = vsel %vm952, %v915, 0
  %v1230 = vsel %vm952, %v916, 0
  %v1233 = vsel %vm952, %v917, 0
  %v1236 = vsel %vm952, %v918, 0
  %v1239 = vsel %vm952, %v919, 0
  %v1242 = vsel %vm952, %v920, 0
  %v1245 = vsel %vm952, %v921, 0
  %v1248 = vsel %vm952, %v922, 0
  %v1251 = vsel %vm952, %v923, 0
  %v1254 = vsel %vm952, %v924, 0
  %v1257 = vsel %vm952, %v925, 0
  %v1260 = vsel %vm952, %v926, 0
  %v1263 = vsel %vm952, %v927, 0
  %v1266 = vsel %vm952, %v928, 0
  %v1269 = vsel %vm952, %v929, 0
  %v1272 = vsel %vm952, %v930, 0
  %v1275 = vsel %vm952, %v931, 0
  %v1278 = vsel %vm952, %v932, 0
  %v1281 = vsel %vm952, %v933, 0
  %v1284 = vsel %vm952, %v934, 0
  %v1287 = vsel %vm952, %v935, 0
  %v1290 = vsel %vm952, %v936, 0
  %v1293 = vsel %vm952, %v937, 0
  %v1296 = vsel %vm952, %v938, 0
  %v1299 = vsel %vm952, %v939, 0
  %v1302 = vsel %vm952, %v940, 0
  %v1305 = vsel %vm952, %v941, 0
  %v1308 = vsel %vm952, %v942, 0
  %v1311 = vsel %vm952, %v943, 0
  %v1314 = vsel %vm952, %v944, 0
  %v1317 = vsel %vm952, %v945, 0
  %v1320 = vsel %vm952, %v946, 0
  %v1323 = vsel %vm952, %v947, 0
  %v1326 = vsel %vm952, %v948, 0
  %v1329 = vsel %vm952, %v949, 0
  %v1332 = vsel %vm952, %v950, 0
  %v1335 = vsel %vm952, %v951, 0
  %1337 = vmatpush.msra.mxu0 0.0
  %1338 = vmatpush.msra.mxu0 0.0
  %1339 = vmatpush.msra.mxu0 0.0
  %1340 = vmatpush.msra.mxu0 0.0
  %1341 = vmatpush.msra.mxu0 0.0
  %1342 = vmatpush.msra.mxu0 0.0
  %1343 = vmatpush.msra.mxu0 0.0
  %1344 = vmatpush.msra.mxu0 0.0
  %1345 = vmatpush.msra.mxu0 0.0
  %1346 = vmatpush.msra.mxu0 0.0
  %1347 = vmatpush.msra.mxu0 0.0
  %1348 = vmatpush.msra.mxu0 0.0
  %1349 = vmatpush.msra.mxu0 0.0
  %1350 = vmatpush.msra.mxu0 0.0
  %1351 = vmatpush.msra.mxu0 0.0
  %1352 = vmatpush.msra.mxu0 %v119
  %1353 = vmatmul.f32.gmra.mxu0 %v954
  %v1354 = vpop.f32.mrf.mxu0
  %v1355 = vadd.f32 0.0, %v1354
  %1356 = vmatmul.f32.gmra.mxu0 %v957
  %v1357 = vpop.f32.mrf.mxu0
  %v1358 = vadd.f32 0.0, %v1357
  %1359 = vmatmul.f32.gmra.mxu0 %v960
  %v1360 = vpop.f32.mrf.mxu0
  %v1361 = vadd.f32 0.0, %v1360
  %1362 = vmatmul.f32.gmra.mxu0 %v963
  %v1363 = vpop.f32.mrf.mxu0
  %v1364 = vadd.f32 0.0, %v1363
  %1365 = vmatmul.f32.gmra.mxu0 %v966
  %v1366 = vpop.f32.mrf.mxu0
  %v1367 = vadd.f32 0.0, %v1366
  %1368 = vmatmul.f32.gmra.mxu0 %v969
  %v1369 = vpop.f32.mrf.mxu0
  %v1370 = vadd.f32 0.0, %v1369
  %1371 = vmatmul.f32.gmra.mxu0 %v972
  %v1372 = vpop.f32.mrf.mxu0
  %v1373 = vadd.f32 0.0, %v1372
  %1374 = vmatmul.f32.gmra.mxu0 %v975
  %v1375 = vpop.f32.mrf.mxu0
  %v1376 = vadd.f32 0.0, %v1375
  %1377 = vmatmul.f32.gmra.mxu0 %v978
  %v1378 = vpop.f32.mrf.mxu0
  %v1379 = vadd.f32 0.0, %v1378
  %1380 = vmatmul.f32.gmra.mxu0 %v981
  %v1381 = vpop.f32.mrf.mxu0
  %v1382 = vadd.f32 0.0, %v1381
  %1383 = vmatmul.f32.gmra.mxu0 %v984
  %v1384 = vpop.f32.mrf.mxu0
  %v1385 = vadd.f32 0.0, %v1384
  %1386 = vmatmul.f32.gmra.mxu0 %v987
  %v1387 = vpop.f32.mrf.mxu0
  %v1388 = vadd.f32 0.0, %v1387
  %1389 = vmatmul.f32.gmra.mxu0 %v990
  %v1390 = vpop.f32.mrf.mxu0
  %v1391 = vadd.f32 0.0, %v1390
  %1392 = vmatmul.f32.gmra.mxu0 %v993
  %v1393 = vpop.f32.mrf.mxu0
  %v1394 = vadd.f32 0.0, %v1393
  %1395 = vmatmul.f32.gmra.mxu0 %v996
  %v1396 = vpop.f32.mrf.mxu0
  %v1397 = vadd.f32 0.0, %v1396
  %1398 = vmatmul.f32.gmra.mxu0 %v999
  %v1399 = vpop.f32.mrf.mxu0
  %v1400 = vadd.f32 0.0, %v1399
  %1401 = vmatmul.f32.gmra.mxu0 %v1002
  %v1402 = vpop.f32.mrf.mxu0
  %v1403 = vadd.f32 0.0, %v1402
  %1404 = vmatmul.f32.gmra.mxu0 %v1005
  %v1405 = vpop.f32.mrf.mxu0
  %v1406 = vadd.f32 0.0, %v1405
  %1407 = vmatmul.f32.gmra.mxu0 %v1008
  %v1408 = vpop.f32.mrf.mxu0
  %v1409 = vadd.f32 0.0, %v1408
  %1410 = vmatmul.f32.gmra.mxu0 %v1011
  %v1411 = vpop.f32.mrf.mxu0
  %v1412 = vadd.f32 0.0, %v1411
  %1413 = vmatmul.f32.gmra.mxu0 %v1014
  %v1414 = vpop.f32.mrf.mxu0
  %v1415 = vadd.f32 0.0, %v1414
  %1416 = vmatmul.f32.gmra.mxu0 %v1017
  %v1417 = vpop.f32.mrf.mxu0
  %v1418 = vadd.f32 0.0, %v1417
  %1419 = vmatmul.f32.gmra.mxu0 %v1020
  %v1420 = vpop.f32.mrf.mxu0
  %v1421 = vadd.f32 0.0, %v1420
  %1422 = vmatmul.f32.gmra.mxu0 %v1023
  %v1423 = vpop.f32.mrf.mxu0
  %v1424 = vadd.f32 0.0, %v1423
  %1425 = vmatmul.f32.gmra.mxu0 %v1026
  %v1426 = vpop.f32.mrf.mxu0
  %v1427 = vadd.f32 0.0, %v1426
  %1428 = vmatmul.f32.gmra.mxu0 %v1029
  %v1429 = vpop.f32.mrf.mxu0
  %v1430 = vadd.f32 0.0, %v1429
  %1431 = vmatmul.f32.gmra.mxu0 %v1032
  %v1432 = vpop.f32.mrf.mxu0
  %v1433 = vadd.f32 0.0, %v1432
  %1434 = vmatmul.f32.gmra.mxu0 %v1035
  %v1435 = vpop.f32.mrf.mxu0
  %v1436 = vadd.f32 0.0, %v1435
  %1437 = vmatmul.f32.gmra.mxu0 %v1038
  %v1438 = vpop.f32.mrf.mxu0
  %v1439 = vadd.f32 0.0, %v1438
  %1440 = vmatmul.f32.gmra.mxu0 %v1041
  %v1441 = vpop.f32.mrf.mxu0
  %v1442 = vadd.f32 0.0, %v1441
  %1443 = vmatmul.f32.gmra.mxu0 %v1044
  %v1444 = vpop.f32.mrf.mxu0
  %v1445 = vadd.f32 0.0, %v1444
  %1446 = vmatmul.f32.gmra.mxu0 %v1047
  %v1447 = vpop.f32.mrf.mxu0
  %v1448 = vadd.f32 0.0, %v1447
  %1449 = vmatmul.f32.gmra.mxu0 %v1050
  %v1450 = vpop.f32.mrf.mxu0
  %v1451 = vadd.f32 0.0, %v1450
  %1452 = vmatmul.f32.gmra.mxu0 %v1053
  %v1453 = vpop.f32.mrf.mxu0
  %v1454 = vadd.f32 0.0, %v1453
  %1455 = vmatmul.f32.gmra.mxu0 %v1056
  %v1456 = vpop.f32.mrf.mxu0
  %v1457 = vadd.f32 0.0, %v1456
  %1458 = vmatmul.f32.gmra.mxu0 %v1059
  %v1459 = vpop.f32.mrf.mxu0
  %v1460 = vadd.f32 0.0, %v1459
  %1461 = vmatmul.f32.gmra.mxu0 %v1062
  %v1462 = vpop.f32.mrf.mxu0
  %v1463 = vadd.f32 0.0, %v1462
  %1464 = vmatmul.f32.gmra.mxu0 %v1065
  %v1465 = vpop.f32.mrf.mxu0
  %v1466 = vadd.f32 0.0, %v1465
  %1467 = vmatmul.f32.gmra.mxu0 %v1068
  %v1468 = vpop.f32.mrf.mxu0
  %v1469 = vadd.f32 0.0, %v1468
  %1470 = vmatmul.f32.gmra.mxu0 %v1071
  %v1471 = vpop.f32.mrf.mxu0
  %v1472 = vadd.f32 0.0, %v1471
  %1473 = vmatmul.f32.gmra.mxu0 %v1074
  %v1474 = vpop.f32.mrf.mxu0
  %v1475 = vadd.f32 0.0, %v1474
  %1476 = vmatmul.f32.gmra.mxu0 %v1077
  %v1477 = vpop.f32.mrf.mxu0
  %v1478 = vadd.f32 0.0, %v1477
  %1479 = vmatmul.f32.gmra.mxu0 %v1080
  %v1480 = vpop.f32.mrf.mxu0
  %v1481 = vadd.f32 0.0, %v1480
  %1482 = vmatmul.f32.gmra.mxu0 %v1083
  %v1483 = vpop.f32.mrf.mxu0
  %v1484 = vadd.f32 0.0, %v1483
  %1485 = vmatmul.f32.gmra.mxu0 %v1086
  %v1486 = vpop.f32.mrf.mxu0
  %v1487 = vadd.f32 0.0, %v1486
  %1488 = vmatmul.f32.gmra.mxu0 %v1089
  %v1489 = vpop.f32.mrf.mxu0
  %v1490 = vadd.f32 0.0, %v1489
  %1491 = vmatmul.f32.gmra.mxu0 %v1092
  %v1492 = vpop.f32.mrf.mxu0
  %v1493 = vadd.f32 0.0, %v1492
  %1494 = vmatmul.f32.gmra.mxu0 %v1095
  %v1495 = vpop.f32.mrf.mxu0
  %v1496 = vadd.f32 0.0, %v1495
  %1497 = vmatmul.f32.gmra.mxu0 %v1098
  %v1498 = vpop.f32.mrf.mxu0
  %v1499 = vadd.f32 0.0, %v1498
  %1500 = vmatmul.f32.gmra.mxu0 %v1101
  %v1501 = vpop.f32.mrf.mxu0
  %v1502 = vadd.f32 0.0, %v1501
  %1503 = vmatmul.f32.gmra.mxu0 %v1104
  %v1504 = vpop.f32.mrf.mxu0
  %v1505 = vadd.f32 0.0, %v1504
  %1506 = vmatmul.f32.gmra.mxu0 %v1107
  %v1507 = vpop.f32.mrf.mxu0
  %v1508 = vadd.f32 0.0, %v1507
  %1509 = vmatmul.f32.gmra.mxu0 %v1110
  %v1510 = vpop.f32.mrf.mxu0
  %v1511 = vadd.f32 0.0, %v1510
  %1512 = vmatmul.f32.gmra.mxu0 %v1113
  %v1513 = vpop.f32.mrf.mxu0
  %v1514 = vadd.f32 0.0, %v1513
  %1515 = vmatmul.f32.gmra.mxu0 %v1116
  %v1516 = vpop.f32.mrf.mxu0
  %v1517 = vadd.f32 0.0, %v1516
  %1518 = vmatmul.f32.gmra.mxu0 %v1119
  %v1519 = vpop.f32.mrf.mxu0
  %v1520 = vadd.f32 0.0, %v1519
  %1521 = vmatmul.f32.gmra.mxu0 %v1122
  %v1522 = vpop.f32.mrf.mxu0
  %v1523 = vadd.f32 0.0, %v1522
  %1524 = vmatmul.f32.gmra.mxu0 %v1125
  %v1525 = vpop.f32.mrf.mxu0
  %v1526 = vadd.f32 0.0, %v1525
  %1527 = vmatmul.f32.gmra.mxu0 %v1128
  %v1528 = vpop.f32.mrf.mxu0
  %v1529 = vadd.f32 0.0, %v1528
  %1530 = vmatmul.f32.gmra.mxu0 %v1131
  %v1531 = vpop.f32.mrf.mxu0
  %v1532 = vadd.f32 0.0, %v1531
  %1533 = vmatmul.f32.gmra.mxu0 %v1134
  %v1534 = vpop.f32.mrf.mxu0
  %v1535 = vadd.f32 0.0, %v1534
  %1536 = vmatmul.f32.gmra.mxu0 %v1137
  %v1537 = vpop.f32.mrf.mxu0
  %v1538 = vadd.f32 0.0, %v1537
  %1539 = vmatmul.f32.gmra.mxu0 %v1140
  %v1540 = vpop.f32.mrf.mxu0
  %v1541 = vadd.f32 0.0, %v1540
  %1542 = vmatmul.f32.gmra.mxu0 %v1143
  %v1543 = vpop.f32.mrf.mxu0
  %v1544 = vadd.f32 0.0, %v1543
  %1545 = vmatmul.f32.gmra.mxu0 %v1146
  %v1546 = vpop.f32.mrf.mxu0
  %v1547 = vadd.f32 0.0, %v1546
  %1548 = vmatmul.f32.gmra.mxu0 %v1149
  %v1549 = vpop.f32.mrf.mxu0
  %v1550 = vadd.f32 0.0, %v1549
  %1551 = vmatmul.f32.gmra.mxu0 %v1152
  %v1552 = vpop.f32.mrf.mxu0
  %v1553 = vadd.f32 0.0, %v1552
  %1554 = vmatmul.f32.gmra.mxu0 %v1155
  %v1555 = vpop.f32.mrf.mxu0
  %v1556 = vadd.f32 0.0, %v1555
  %1557 = vmatmul.f32.gmra.mxu0 %v1158
  %v1558 = vpop.f32.mrf.mxu0
  %v1559 = vadd.f32 0.0, %v1558
  %1560 = vmatmul.f32.gmra.mxu0 %v1161
  %v1561 = vpop.f32.mrf.mxu0
  %v1562 = vadd.f32 0.0, %v1561
  %1563 = vmatmul.f32.gmra.mxu0 %v1164
  %v1564 = vpop.f32.mrf.mxu0
  %v1565 = vadd.f32 0.0, %v1564
  %1566 = vmatmul.f32.gmra.mxu0 %v1167
  %v1567 = vpop.f32.mrf.mxu0
  %v1568 = vadd.f32 0.0, %v1567
  %1569 = vmatmul.f32.gmra.mxu0 %v1170
  %v1570 = vpop.f32.mrf.mxu0
  %v1571 = vadd.f32 0.0, %v1570
  %1572 = vmatmul.f32.gmra.mxu0 %v1173
  %v1573 = vpop.f32.mrf.mxu0
  %v1574 = vadd.f32 0.0, %v1573
  %1575 = vmatmul.f32.gmra.mxu0 %v1176
  %v1576 = vpop.f32.mrf.mxu0
  %v1577 = vadd.f32 0.0, %v1576
  %1578 = vmatmul.f32.gmra.mxu0 %v1179
  %v1579 = vpop.f32.mrf.mxu0
  %v1580 = vadd.f32 0.0, %v1579
  %1581 = vmatmul.f32.gmra.mxu0 %v1182
  %v1582 = vpop.f32.mrf.mxu0
  %v1583 = vadd.f32 0.0, %v1582
  %1584 = vmatmul.f32.gmra.mxu0 %v1185
  %v1585 = vpop.f32.mrf.mxu0
  %v1586 = vadd.f32 0.0, %v1585
  %1587 = vmatmul.f32.gmra.mxu0 %v1188
  %v1588 = vpop.f32.mrf.mxu0
  %v1589 = vadd.f32 0.0, %v1588
  %1590 = vmatmul.f32.gmra.mxu0 %v1191
  %v1591 = vpop.f32.mrf.mxu0
  %v1592 = vadd.f32 0.0, %v1591
  %1593 = vmatmul.f32.gmra.mxu0 %v1194
  %v1594 = vpop.f32.mrf.mxu0
  %v1595 = vadd.f32 0.0, %v1594
  %1596 = vmatmul.f32.gmra.mxu0 %v1197
  %v1597 = vpop.f32.mrf.mxu0
  %v1598 = vadd.f32 0.0, %v1597
  %1599 = vmatmul.f32.gmra.mxu0 %v1200
  %v1600 = vpop.f32.mrf.mxu0
  %v1601 = vadd.f32 0.0, %v1600
  %1602 = vmatmul.f32.gmra.mxu0 %v1203
  %v1603 = vpop.f32.mrf.mxu0
  %v1604 = vadd.f32 0.0, %v1603
  %1605 = vmatmul.f32.gmra.mxu0 %v1206
  %v1606 = vpop.f32.mrf.mxu0
  %v1607 = vadd.f32 0.0, %v1606
  %1608 = vmatmul.f32.gmra.mxu0 %v1209
  %v1609 = vpop.f32.mrf.mxu0
  %v1610 = vadd.f32 0.0, %v1609
  %1611 = vmatmul.f32.gmra.mxu0 %v1212
  %v1612 = vpop.f32.mrf.mxu0
  %v1613 = vadd.f32 0.0, %v1612
  %1614 = vmatmul.f32.gmra.mxu0 %v1215
  %v1615 = vpop.f32.mrf.mxu0
  %v1616 = vadd.f32 0.0, %v1615
  %1617 = vmatmul.f32.gmra.mxu0 %v1218
  %v1618 = vpop.f32.mrf.mxu0
  %v1619 = vadd.f32 0.0, %v1618
  %1620 = vmatmul.f32.gmra.mxu0 %v1221
  %v1621 = vpop.f32.mrf.mxu0
  %v1622 = vadd.f32 0.0, %v1621
  %1623 = vmatmul.f32.gmra.mxu0 %v1224
  %v1624 = vpop.f32.mrf.mxu0
  %v1625 = vadd.f32 0.0, %v1624
  %1626 = vmatmul.f32.gmra.mxu0 %v1227
  %v1627 = vpop.f32.mrf.mxu0
  %v1628 = vadd.f32 0.0, %v1627
  %1629 = vmatmul.f32.gmra.mxu0 %v1230
  %v1630 = vpop.f32.mrf.mxu0
  %v1631 = vadd.f32 0.0, %v1630
  %1632 = vmatmul.f32.gmra.mxu0 %v1233
  %v1633 = vpop.f32.mrf.mxu0
  %v1634 = vadd.f32 0.0, %v1633
  %1635 = vmatmul.f32.gmra.mxu0 %v1236
  %v1636 = vpop.f32.mrf.mxu0
  %v1637 = vadd.f32 0.0, %v1636
  %1638 = vmatmul.f32.gmra.mxu0 %v1239
  %v1639 = vpop.f32.mrf.mxu0
  %v1640 = vadd.f32 0.0, %v1639
  %1641 = vmatmul.f32.gmra.mxu0 %v1242
  %v1642 = vpop.f32.mrf.mxu0
  %v1643 = vadd.f32 0.0, %v1642
  %1644 = vmatmul.f32.gmra.mxu0 %v1245
  %v1645 = vpop.f32.mrf.mxu0
  %v1646 = vadd.f32 0.0, %v1645
  %1647 = vmatmul.f32.gmra.mxu0 %v1248
  %v1648 = vpop.f32.mrf.mxu0
  %v1649 = vadd.f32 0.0, %v1648
  %1650 = vmatmul.f32.gmra.mxu0 %v1251
  %v1651 = vpop.f32.mrf.mxu0
  %v1652 = vadd.f32 0.0, %v1651
  %1653 = vmatmul.f32.gmra.mxu0 %v1254
  %v1654 = vpop.f32.mrf.mxu0
  %v1655 = vadd.f32 0.0, %v1654
  %1656 = vmatmul.f32.gmra.mxu0 %v1257
  %v1657 = vpop.f32.mrf.mxu0
  %v1658 = vadd.f32 0.0, %v1657
  %1659 = vmatmul.f32.gmra.mxu0 %v1260
  %v1660 = vpop.f32.mrf.mxu0
  %v1661 = vadd.f32 0.0, %v1660
  %1662 = vmatmul.f32.gmra.mxu0 %v1263
  %v1663 = vpop.f32.mrf.mxu0
  %v1664 = vadd.f32 0.0, %v1663
  %1665 = vmatmul.f32.gmra.mxu0 %v1266
  %v1666 = vpop.f32.mrf.mxu0
  %v1667 = vadd.f32 0.0, %v1666
  %1668 = vmatmul.f32.gmra.mxu0 %v1269
  %v1669 = vpop.f32.mrf.mxu0
  %v1670 = vadd.f32 0.0, %v1669
  %1671 = vmatmul.f32.gmra.mxu0 %v1272
  %v1672 = vpop.f32.mrf.mxu0
  %v1673 = vadd.f32 0.0, %v1672
  %1674 = vmatmul.f32.gmra.mxu0 %v1275
  %v1675 = vpop.f32.mrf.mxu0
  %v1676 = vadd.f32 0.0, %v1675
  %1677 = vmatmul.f32.gmra.mxu0 %v1278
  %v1678 = vpop.f32.mrf.mxu0
  %v1679 = vadd.f32 0.0, %v1678
  %1680 = vmatmul.f32.gmra.mxu0 %v1281
  %v1681 = vpop.f32.mrf.mxu0
  %v1682 = vadd.f32 0.0, %v1681
  %1683 = vmatmul.f32.gmra.mxu0 %v1284
  %v1684 = vpop.f32.mrf.mxu0
  %v1685 = vadd.f32 0.0, %v1684
  %1686 = vmatmul.f32.gmra.mxu0 %v1287
  %v1687 = vpop.f32.mrf.mxu0
  %v1688 = vadd.f32 0.0, %v1687
  %1689 = vmatmul.f32.gmra.mxu0 %v1290
  %v1690 = vpop.f32.mrf.mxu0
  %v1691 = vadd.f32 0.0, %v1690
  %1692 = vmatmul.f32.gmra.mxu0 %v1293
  %v1693 = vpop.f32.mrf.mxu0
  %v1694 = vadd.f32 0.0, %v1693
  %1695 = vmatmul.f32.gmra.mxu0 %v1296
  %v1696 = vpop.f32.mrf.mxu0
  %v1697 = vadd.f32 0.0, %v1696
  %1698 = vmatmul.f32.gmra.mxu0 %v1299
  %v1699 = vpop.f32.mrf.mxu0
  %v1700 = vadd.f32 0.0, %v1699
  %1701 = vmatmul.f32.gmra.mxu0 %v1302
  %v1702 = vpop.f32.mrf.mxu0
  %v1703 = vadd.f32 0.0, %v1702
  %1704 = vmatmul.f32.gmra.mxu0 %v1305
  %v1705 = vpop.f32.mrf.mxu0
  %v1706 = vadd.f32 0.0, %v1705
  %1707 = vmatmul.f32.gmra.mxu0 %v1308
  %v1708 = vpop.f32.mrf.mxu0
  %v1709 = vadd.f32 0.0, %v1708
  %1710 = vmatmul.f32.gmra.mxu0 %v1311
  %v1711 = vpop.f32.mrf.mxu0
  %v1712 = vadd.f32 0.0, %v1711
  %1713 = vmatmul.f32.gmra.mxu0 %v1314
  %v1714 = vpop.f32.mrf.mxu0
  %v1715 = vadd.f32 0.0, %v1714
  %1716 = vmatmul.f32.gmra.mxu0 %v1317
  %v1717 = vpop.f32.mrf.mxu0
  %v1718 = vadd.f32 0.0, %v1717
  %1719 = vmatmul.f32.gmra.mxu0 %v1320
  %v1720 = vpop.f32.mrf.mxu0
  %v1721 = vadd.f32 0.0, %v1720
  %1722 = vmatmul.f32.gmra.mxu0 %v1323
  %v1723 = vpop.f32.mrf.mxu0
  %v1724 = vadd.f32 0.0, %v1723
  %1725 = vmatmul.f32.gmra.mxu0 %v1326
  %v1726 = vpop.f32.mrf.mxu0
  %v1727 = vadd.f32 0.0, %v1726
  %1728 = vmatmul.f32.gmra.mxu0 %v1329
  %v1729 = vpop.f32.mrf.mxu0
  %v1730 = vadd.f32 0.0, %v1729
  %1731 = vmatmul.f32.gmra.mxu0 %v1332
  %v1732 = vpop.f32.mrf.mxu0
  %v1733 = vadd.f32 0.0, %v1732
  %1734 = vmatmul.f32.gmra.mxu0 %v1335
  %v1735 = vpop.f32.mrf.mxu0
  %v1736 = vadd.f32 0.0, %v1735
  %1737 = vdwg.mxu0
  %v1738 = vmul.f32 %v109, %v29
  %v1739 = vmul.f32 %v110, %v30
  %v1740 = vmul.f32 %v111, %v31
  %v1741 = vmul.f32 %v112, %v32
  %v1742 = vmul.f32 %v113, %v33
  %v1743 = vmul.f32 %v114, %v34
  %v1744 = vmul.f32 %v115, %v35
  %v1745 = vmul.f32 %v116, %v36
  %v1754 = vrot.slane %v1738, 1
  %v1755 = vrot.slane %v1738, 2
  %v1756 = vrot.slane %v1738, 3
  %v1757 = vrot.slane %v1738, 4
  %v1758 = vrot.slane %v1738, 5
  %v1759 = vrot.slane %v1738, 6
  %v1760 = vrot.slane %v1738, 7
  %v1761 = vrot.slane %v1739, 1
  %v1762 = vrot.slane %v1739, 2
  %v1763 = vrot.slane %v1739, 3
  %v1764 = vrot.slane %v1739, 4
  %v1765 = vrot.slane %v1739, 5
  %v1766 = vrot.slane %v1739, 6
  %v1767 = vrot.slane %v1739, 7
  %v1768 = vrot.slane %v1740, 1
  %v1769 = vrot.slane %v1740, 2
  %v1770 = vrot.slane %v1740, 3
  %v1771 = vrot.slane %v1740, 4
  %v1772 = vrot.slane %v1740, 5
  %v1773 = vrot.slane %v1740, 6
  %v1774 = vrot.slane %v1740, 7
  %v1775 = vrot.slane %v1741, 1
  %v1776 = vrot.slane %v1741, 2
  %v1777 = vrot.slane %v1741, 3
  %v1778 = vrot.slane %v1741, 4
  %v1779 = vrot.slane %v1741, 5
  %v1780 = vrot.slane %v1741, 6
  %v1781 = vrot.slane %v1741, 7
  %v1782 = vrot.slane %v1742, 1
  %v1783 = vrot.slane %v1742, 2
  %v1784 = vrot.slane %v1742, 3
  %v1785 = vrot.slane %v1742, 4
  %v1786 = vrot.slane %v1742, 5
  %v1787 = vrot.slane %v1742, 6
  %v1788 = vrot.slane %v1742, 7
  %v1789 = vrot.slane %v1743, 1
  %v1790 = vrot.slane %v1743, 2
  %v1791 = vrot.slane %v1743, 3
  %v1792 = vrot.slane %v1743, 4
  %v1793 = vrot.slane %v1743, 5
  %v1794 = vrot.slane %v1743, 6
  %v1795 = vrot.slane %v1743, 7
  %v1796 = vrot.slane %v1744, 1
  %v1797 = vrot.slane %v1744, 2
  %v1798 = vrot.slane %v1744, 3
  %v1799 = vrot.slane %v1744, 4
  %v1800 = vrot.slane %v1744, 5
  %v1801 = vrot.slane %v1744, 6
  %v1802 = vrot.slane %v1744, 7
  %v1803 = vrot.slane %v1745, 1
  %v1804 = vrot.slane %v1745, 2
  %v1805 = vrot.slane %v1745, 3
  %v1806 = vrot.slane %v1745, 4
  %v1807 = vrot.slane %v1745, 5
  %v1808 = vrot.slane %v1745, 6
  %v1809 = vrot.slane %v1745, 7
  %v1810 = vperm.slane %v1738, 0
  %v1811 = vperm.slane %v1754, 0
  %v1812 = vperm.slane %v1755, 0
  %v1813 = vperm.slane %v1756, 0
  %v1814 = vperm.slane %v1757, 0
  %v1815 = vperm.slane %v1758, 0
  %v1816 = vperm.slane %v1759, 0
  %v1817 = vperm.slane %v1760, 0
  %v1818 = vperm.slane %v1739, 0
  %v1819 = vperm.slane %v1761, 0
  %v1820 = vperm.slane %v1762, 0
  %v1821 = vperm.slane %v1763, 0
  %v1822 = vperm.slane %v1764, 0
  %v1823 = vperm.slane %v1765, 0
  %v1824 = vperm.slane %v1766, 0
  %v1825 = vperm.slane %v1767, 0
  %v1826 = vperm.slane %v1740, 0
  %v1827 = vperm.slane %v1768, 0
  %v1828 = vperm.slane %v1769, 0
  %v1829 = vperm.slane %v1770, 0
  %v1830 = vperm.slane %v1771, 0
  %v1831 = vperm.slane %v1772, 0
  %v1832 = vperm.slane %v1773, 0
  %v1833 = vperm.slane %v1774, 0
  %v1834 = vperm.slane %v1741, 0
  %v1835 = vperm.slane %v1775, 0
  %v1836 = vperm.slane %v1776, 0
  %v1837 = vperm.slane %v1777, 0
  %v1838 = vperm.slane %v1778, 0
  %v1839 = vperm.slane %v1779, 0
  %v1840 = vperm.slane %v1780, 0
  %v1841 = vperm.slane %v1781, 0
  %v1842 = vperm.slane %v1742, 0
  %v1843 = vperm.slane %v1782, 0
  %v1844 = vperm.slane %v1783, 0
  %v1845 = vperm.slane %v1784, 0
  %v1846 = vperm.slane %v1785, 0
  %v1847 = vperm.slane %v1786, 0
  %v1848 = vperm.slane %v1787, 0
  %v1849 = vperm.slane %v1788, 0
  %v1850 = vperm.slane %v1743, 0
  %v1851 = vperm.slane %v1789, 0
  %v1852 = vperm.slane %v1790, 0
  %v1853 = vperm.slane %v1791, 0
  %v1854 = vperm.slane %v1792, 0
  %v1855 = vperm.slane %v1793, 0
  %v1856 = vperm.slane %v1794, 0
  %v1857 = vperm.slane %v1795, 0
  %v1858 = vperm.slane %v1744, 0
  %v1859 = vperm.slane %v1796, 0
  %v1860 = vperm.slane %v1797, 0
  %v1861 = vperm.slane %v1798, 0
  %v1862 = vperm.slane %v1799, 0
  %v1863 = vperm.slane %v1800, 0
  %v1864 = vperm.slane %v1801, 0
  %v1865 = vperm.slane %v1802, 0
  %v1866 = vperm.slane %v1745, 0
  %v1867 = vperm.slane %v1803, 0
  %v1868 = vperm.slane %v1804, 0
  %v1869 = vperm.slane %v1805, 0
  %v1870 = vperm.slane %v1806, 0
  %v1871 = vperm.slane %v1807, 0
  %v1872 = vperm.slane %v1808, 0
  %v1873 = vperm.slane %v1809, 0
  %v1938 = vmul.f32 %v1810, %v1355
  %v1939 = vmul.f32 %v1810, %v1358
  %v1940 = vmul.f32 %v1811, %v1361
  %v1941 = vmul.f32 %v1811, %v1364
  %v1942 = vmul.f32 %v1812, %v1367
  %v1943 = vmul.f32 %v1812, %v1370
  %v1944 = vmul.f32 %v1813, %v1373
  %v1945 = vmul.f32 %v1813, %v1376
  %v1946 = vmul.f32 %v1814, %v1379
  %v1947 = vmul.f32 %v1814, %v1382
  %v1948 = vmul.f32 %v1815, %v1385
  %v1949 = vmul.f32 %v1815, %v1388
  %v1950 = vmul.f32 %v1816, %v1391
  %v1951 = vmul.f32 %v1816, %v1394
  %v1952 = vmul.f32 %v1817, %v1397
  %v1953 = vmul.f32 %v1817, %v1400
  %v1954 = vmul.f32 %v1818, %v1403
  %v1955 = vmul.f32 %v1818, %v1406
  %v1956 = vmul.f32 %v1819, %v1409
  %v1957 = vmul.f32 %v1819, %v1412
  %v1958 = vmul.f32 %v1820, %v1415
  %v1959 = vmul.f32 %v1820, %v1418
  %v1960 = vmul.f32 %v1821, %v1421
  %v1961 = vmul.f32 %v1821, %v1424
  %v1962 = vmul.f32 %v1822, %v1427
  %v1963 = vmul.f32 %v1822, %v1430
  %v1964 = vmul.f32 %v1823, %v1433
  %v1965 = vmul.f32 %v1823, %v1436
  %v1966 = vmul.f32 %v1824, %v1439
  %v1967 = vmul.f32 %v1824, %v1442
  %v1968 = vmul.f32 %v1825, %v1445
  %v1969 = vmul.f32 %v1825, %v1448
  %v1970 = vmul.f32 %v1826, %v1451
  %v1971 = vmul.f32 %v1826, %v1454
  %v1972 = vmul.f32 %v1827, %v1457
  %v1973 = vmul.f32 %v1827, %v1460
  %v1974 = vmul.f32 %v1828, %v1463
  %v1975 = vmul.f32 %v1828, %v1466
  %v1976 = vmul.f32 %v1829, %v1469
  %v1977 = vmul.f32 %v1829, %v1472
  %v1978 = vmul.f32 %v1830, %v1475
  %v1979 = vmul.f32 %v1830, %v1478
  %v1980 = vmul.f32 %v1831, %v1481
  %v1981 = vmul.f32 %v1831, %v1484
  %v1982 = vmul.f32 %v1832, %v1487
  %v1983 = vmul.f32 %v1832, %v1490
  %v1984 = vmul.f32 %v1833, %v1493
  %v1985 = vmul.f32 %v1833, %v1496
  %v1986 = vmul.f32 %v1834, %v1499
  %v1987 = vmul.f32 %v1834, %v1502
  %v1988 = vmul.f32 %v1835, %v1505
  %v1989 = vmul.f32 %v1835, %v1508
  %v1990 = vmul.f32 %v1836, %v1511
  %v1991 = vmul.f32 %v1836, %v1514
  %v1992 = vmul.f32 %v1837, %v1517
  %v1993 = vmul.f32 %v1837, %v1520
  %v1994 = vmul.f32 %v1838, %v1523
  %v1995 = vmul.f32 %v1838, %v1526
  %v1996 = vmul.f32 %v1839, %v1529
  %v1997 = vmul.f32 %v1839, %v1532
  %v1998 = vmul.f32 %v1840, %v1535
  %v1999 = vmul.f32 %v1840, %v1538
  %v2000 = vmul.f32 %v1841, %v1541
  %v2001 = vmul.f32 %v1841, %v1544
  %v2002 = vmul.f32 %v1842, %v1547
  %v2003 = vmul.f32 %v1842, %v1550
  %v2004 = vmul.f32 %v1843, %v1553
  %v2005 = vmul.f32 %v1843, %v1556
  %v2006 = vmul.f32 %v1844, %v1559
  %v2007 = vmul.f32 %v1844, %v1562
  %v2008 = vmul.f32 %v1845, %v1565
  %v2009 = vmul.f32 %v1845, %v1568
  %v2010 = vmul.f32 %v1846, %v1571
  %v2011 = vmul.f32 %v1846, %v1574
  %v2012 = vmul.f32 %v1847, %v1577
  %v2013 = vmul.f32 %v1847, %v1580
  %v2014 = vmul.f32 %v1848, %v1583
  %v2015 = vmul.f32 %v1848, %v1586
  %v2016 = vmul.f32 %v1849, %v1589
  %v2017 = vmul.f32 %v1849, %v1592
  %v2018 = vmul.f32 %v1850, %v1595
  %v2019 = vmul.f32 %v1850, %v1598
  %v2020 = vmul.f32 %v1851, %v1601
  %v2021 = vmul.f32 %v1851, %v1604
  %v2022 = vmul.f32 %v1852, %v1607
  %v2023 = vmul.f32 %v1852, %v1610
  %v2024 = vmul.f32 %v1853, %v1613
  %v2025 = vmul.f32 %v1853, %v1616
  %v2026 = vmul.f32 %v1854, %v1619
  %v2027 = vmul.f32 %v1854, %v1622
  %v2028 = vmul.f32 %v1855, %v1625
  %v2029 = vmul.f32 %v1855, %v1628
  %v2030 = vmul.f32 %v1856, %v1631
  %v2031 = vmul.f32 %v1856, %v1634
  %v2032 = vmul.f32 %v1857, %v1637
  %v2033 = vmul.f32 %v1857, %v1640
  %v2034 = vmul.f32 %v1858, %v1643
  %v2035 = vmul.f32 %v1858, %v1646
  %v2036 = vmul.f32 %v1859, %v1649
  %v2037 = vmul.f32 %v1859, %v1652
  %v2038 = vmul.f32 %v1860, %v1655
  %v2039 = vmul.f32 %v1860, %v1658
  %v2040 = vmul.f32 %v1861, %v1661
  %v2041 = vmul.f32 %v1861, %v1664
  %v2042 = vmul.f32 %v1862, %v1667
  %v2043 = vmul.f32 %v1862, %v1670
  %v2044 = vmul.f32 %v1863, %v1673
  %v2045 = vmul.f32 %v1863, %v1676
  %v2046 = vmul.f32 %v1864, %v1679
  %v2047 = vmul.f32 %v1864, %v1682
  %v2048 = vmul.f32 %v1865, %v1685
  %v2049 = vmul.f32 %v1865, %v1688
  %v2050 = vmul.f32 %v1866, %v1691
  %v2051 = vmul.f32 %v1866, %v1694
  %v2052 = vmul.f32 %v1867, %v1697
  %v2053 = vmul.f32 %v1867, %v1700
  %v2054 = vmul.f32 %v1868, %v1703
  %v2055 = vmul.f32 %v1868, %v1706
  %v2056 = vmul.f32 %v1869, %v1709
  %v2057 = vmul.f32 %v1869, %v1712
  %v2058 = vmul.f32 %v1870, %v1715
  %v2059 = vmul.f32 %v1870, %v1718
  %v2060 = vmul.f32 %v1871, %v1721
  %v2061 = vmul.f32 %v1871, %v1724
  %v2062 = vmul.f32 %v1872, %v1727
  %v2063 = vmul.f32 %v1872, %v1730
  %v2064 = vmul.f32 %v1873, %v1733
  %v2065 = vmul.f32 %v1873, %v1736
  %2066 = vst [vmem:[#allocation3] sm:$0xff] %v1938
  %2067 = vst [vmem:[#allocation3 + $0x8] sm:$0xff] %v1939
  %2068 = vst [vmem:[#allocation3 + $0x10] sm:$0xff] %v1940
  %2069 = vst [vmem:[#allocation3 + $0x18] sm:$0xff] %v1941
  %2070 = vst [vmem:[#allocation3 + $0x20] sm:$0xff] %v1942
  %2071 = vst [vmem:[#allocation3 + $0x28] sm:$0xff] %v1943
  %2072 = vst [vmem:[#allocation3 + $0x30] sm:$0xff] %v1944
  %2073 = vst [vmem:[#allocation3 + $0x38] sm:$0xff] %v1945
  %2074 = vst [vmem:[#allocation3 + $0x40] sm:$0xff] %v1946
  %2075 = vst [vmem:[#allocation3 + $0x48] sm:$0xff] %v1947
  %2076 = vst [vmem:[#allocation3 + $0x50] sm:$0xff] %v1948
  %2077 = vst [vmem:[#allocation3 + $0x58] sm:$0xff] %v1949
  %2078 = vst [vmem:[#allocation3 + $0x60] sm:$0xff] %v1950
  %2079 = vst [vmem:[#allocation3 + $0x68] sm:$0xff] %v1951
  %2080 = vst [vmem:[#allocation3 + $0x70] sm:$0xff] %v1952
  %2081 = vst [vmem:[#allocation3 + $0x78] sm:$0xff] %v1953
  %2082 = vst [vmem:[#allocation3 + $0x80] sm:$0xff] %v1954
  %2083 = vst [vmem:[#allocation3 + $0x88] sm:$0xff] %v1955
  %2084 = vst [vmem:[#allocation3 + $0x90] sm:$0xff] %v1956
  %2085 = vst [vmem:[#allocation3 + $0x98] sm:$0xff] %v1957
  %2086 = vst [vmem:[#allocation3 + $0xa0] sm:$0xff] %v1958
  %2087 = vst [vmem:[#allocation3 + $0xa8] sm:$0xff] %v1959
  %2088 = vst [vmem:[#allocation3 + $0xb0] sm:$0xff] %v1960
  %2089 = vst [vmem:[#allocation3 + $0xb8] sm:$0xff] %v1961
  %2090 = vst [vmem:[#allocation3 + $0xc0] sm:$0xff] %v1962
  %2091 = vst [vmem:[#allocation3 + $0xc8] sm:$0xff] %v1963
  %2092 = vst [vmem:[#allocation3 + $0xd0] sm:$0xff] %v1964
  %2093 = vst [vmem:[#allocation3 + $0xd8] sm:$0xff] %v1965
  %2094 = vst [vmem:[#allocation3 + $0xe0] sm:$0xff] %v1966
  %2095 = vst [vmem:[#allocation3 + $0xe8] sm:$0xff] %v1967
  %2096 = vst [vmem:[#allocation3 + $0xf0] sm:$0xff] %v1968
  %2097 = vst [vmem:[#allocation3 + $0xf8] sm:$0xff] %v1969
  %2098 = vst [vmem:[#allocation3 + $0x100] sm:$0xff] %v1970
  %2099 = vst [vmem:[#allocation3 + $0x108] sm:$0xff] %v1971
  %2100 = vst [vmem:[#allocation3 + $0x110] sm:$0xff] %v1972
  %2101 = vst [vmem:[#allocation3 + $0x118] sm:$0xff] %v1973
  %2102 = vst [vmem:[#allocation3 + $0x120] sm:$0xff] %v1974
  %2103 = vst [vmem:[#allocation3 + $0x128] sm:$0xff] %v1975
  %2104 = vst [vmem:[#allocation3 + $0x130] sm:$0xff] %v1976
  %2105 = vst [vmem:[#allocation3 + $0x138] sm:$0xff] %v1977
  %2106 = vst [vmem:[#allocation3 + $0x140] sm:$0xff] %v1978
  %2107 = vst [vmem:[#allocation3 + $0x148] sm:$0xff] %v1979
  %2108 = vst [vmem:[#allocation3 + $0x150] sm:$0xff] %v1980
  %2109 = vst [vmem:[#allocation3 + $0x158] sm:$0xff] %v1981
  %2110 = vst [vmem:[#allocation3 + $0x160] sm:$0xff] %v1982
  %2111 = vst [vmem:[#allocation3 + $0x168] sm:$0xff] %v1983
  %2112 = vst [vmem:[#allocation3 + $0x170] sm:$0xff] %v1984
  %2113 = vst [vmem:[#allocation3 + $0x178] sm:$0xff] %v1985
  %2114 = vst [vmem:[#allocation3 + $0x180] sm:$0xff] %v1986
  %2115 = vst [vmem:[#allocation3 + $0x188] sm:$0xff] %v1987
  %2116 = vst [vmem:[#allocation3 + $0x190] sm:$0xff] %v1988
  %2117 = vst [vmem:[#allocation3 + $0x198] sm:$0xff] %v1989
  %2118 = vst [vmem:[#allocation3 + $0x1a0] sm:$0xff] %v1990
  %2119 = vst [vmem:[#allocation3 + $0x1a8] sm:$0xff] %v1991
  %2120 = vst [vmem:[#allocation3 + $0x1b0] sm:$0xff] %v1992
  %2121 = vst [vmem:[#allocation3 + $0x1b8] sm:$0xff] %v1993
  %2122 = vst [vmem:[#allocation3 + $0x1c0] sm:$0xff] %v1994
  %2123 = vst [vmem:[#allocation3 + $0x1c8] sm:$0xff] %v1995
  %2124 = vst [vmem:[#allocation3 + $0x1d0] sm:$0xff] %v1996
  %2125 = vst [vmem:[#allocation3 + $0x1d8] sm:$0xff] %v1997
  %2126 = vst [vmem:[#allocation3 + $0x1e0] sm:$0xff] %v1998
  %2127 = vst [vmem:[#allocation3 + $0x1e8] sm:$0xff] %v1999
  %2128 = vst [vmem:[#allocation3 + $0x1f0] sm:$0xff] %v2000
  %2129 = vst [vmem:[#allocation3 + $0x1f8] sm:$0xff] %v2001
  %2130 = vst [vmem:[#allocation3 + $0x200] sm:$0xff] %v2002
  %2131 = vst [vmem:[#allocation3 + $0x208] sm:$0xff] %v2003
  %2132 = vst [vmem:[#allocation3 + $0x210] sm:$0xff] %v2004
  %2133 = vst [vmem:[#allocation3 + $0x218] sm:$0xff] %v2005
  %2134 = vst [vmem:[#allocation3 + $0x220] sm:$0xff] %v2006
  %2135 = vst [vmem:[#allocation3 + $0x228] sm:$0xff] %v2007
  %2136 = vst [vmem:[#allocation3 + $0x230] sm:$0xff] %v2008
  %2137 = vst [vmem:[#allocation3 + $0x238] sm:$0xff] %v2009
  %2138 = vst [vmem:[#allocation3 + $0x240] sm:$0xff] %v2010
  %2139 = vst [vmem:[#allocation3 + $0x248] sm:$0xff] %v2011
  %2140 = vst [vmem:[#allocation3 + $0x250] sm:$0xff] %v2012
  %2141 = vst [vmem:[#allocation3 + $0x258] sm:$0xff] %v2013
  %2142 = vst [vmem:[#allocation3 + $0x260] sm:$0xff] %v2014
  %2143 = vst [vmem:[#allocation3 + $0x268] sm:$0xff] %v2015
  %2144 = vst [vmem:[#allocation3 + $0x270] sm:$0xff] %v2016
  %2145 = vst [vmem:[#allocation3 + $0x278] sm:$0xff] %v2017
  %2146 = vst [vmem:[#allocation3 + $0x280] sm:$0xff] %v2018
  %2147 = vst [vmem:[#allocation3 + $0x288] sm:$0xff] %v2019
  %2148 = vst [vmem:[#allocation3 + $0x290] sm:$0xff] %v2020
  %2149 = vst [vmem:[#allocation3 + $0x298] sm:$0xff] %v2021
  %2150 = vst [vmem:[#allocation3 + $0x2a0] sm:$0xff] %v2022
  %2151 = vst [vmem:[#allocation3 + $0x2a8] sm:$0xff] %v2023
  %2152 = vst [vmem:[#allocation3 + $0x2b0] sm:$0xff] %v2024
  %2153 = vst [vmem:[#allocation3 + $0x2b8] sm:$0xff] %v2025
  %2154 = vst [vmem:[#allocation3 + $0x2c0] sm:$0xff] %v2026
  %2155 = vst [vmem:[#allocation3 + $0x2c8] sm:$0xff] %v2027
  %2156 = vst [vmem:[#allocation3 + $0x2d0] sm:$0xff] %v2028
  %2157 = vst [vmem:[#allocation3 + $0x2d8] sm:$0xff] %v2029
  %2158 = vst [vmem:[#allocation3 + $0x2e0] sm:$0xff] %v2030
  %2159 = vst [vmem:[#allocation3 + $0x2e8] sm:$0xff] %v2031
  %2160 = vst [vmem:[#allocation3 + $0x2f0] sm:$0xff] %v2032
  %2161 = vst [vmem:[#allocation3 + $0x2f8] sm:$0xff] %v2033
  %2162 = vst [vmem:[#allocation3 + $0x300] sm:$0xff] %v2034
  %2163 = vst [vmem:[#allocation3 + $0x308] sm:$0xff] %v2035
  %2164 = vst [vmem:[#allocation3 + $0x310] sm:$0xff] %v2036
  %2165 = vst [vmem:[#allocation3 + $0x318] sm:$0xff] %v2037
  %2166 = vst [vmem:[#allocation3 + $0x320] sm:$0xff] %v2038
  %2167 = vst [vmem:[#allocation3 + $0x328] sm:$0xff] %v2039
  %2168 = vst [vmem:[#allocation3 + $0x330] sm:$0xff] %v2040
  %2169 = vst [vmem:[#allocation3 + $0x338] sm:$0xff] %v2041
  %2170 = vst [vmem:[#allocation3 + $0x340] sm:$0xff] %v2042
  %2171 = vst [vmem:[#allocation3 + $0x348] sm:$0xff] %v2043
  %2172 = vst [vmem:[#allocation3 + $0x350] sm:$0xff] %v2044
  %2173 = vst [vmem:[#allocation3 + $0x358] sm:$0xff] %v2045
  %2174 = vst [vmem:[#allocation3 + $0x360] sm:$0xff] %v2046
  %2175 = vst [vmem:[#allocation3 + $0x368] sm:$0xff] %v2047
  %2176 = vst [vmem:[#allocation3 + $0x370] sm:$0xff] %v2048
  %2177 = vst [vmem:[#allocation3 + $0x378] sm:$0xff] %v2049
  %2178 = vst [vmem:[#allocation3 + $0x380] sm:$0xff] %v2050
  %2179 = vst [vmem:[#allocation3 + $0x388] sm:$0xff] %v2051
  %2180 = vst [vmem:[#allocation3 + $0x390] sm:$0xff] %v2052
  %2181 = vst [vmem:[#allocation3 + $0x398] sm:$0xff] %v2053
  %2182 = vst [vmem:[#allocation3 + $0x3a0] sm:$0xff] %v2054
  %2183 = vst [vmem:[#allocation3 + $0x3a8] sm:$0xff] %v2055
  %2184 = vst [vmem:[#allocation3 + $0x3b0] sm:$0xff] %v2056
  %2185 = vst [vmem:[#allocation3 + $0x3b8] sm:$0xff] %v2057
  %2186 = vst [vmem:[#allocation3 + $0x3c0] sm:$0xff] %v2058
  %2187 = vst [vmem:[#allocation3 + $0x3c8] sm:$0xff] %v2059
  %2188 = vst [vmem:[#allocation3 + $0x3d0] sm:$0xff] %v2060
  %2189 = vst [vmem:[#allocation3 + $0x3d8] sm:$0xff] %v2061
  %2190 = vst [vmem:[#allocation3 + $0x3e0] sm:$0xff] %v2062
  %2191 = vst [vmem:[#allocation3 + $0x3e8] sm:$0xff] %v2063
  %2192 = vst [vmem:[#allocation3 + $0x3f0] sm:$0xff] %v2064
  %2193 = vst [vmem:[#allocation3 + $0x3f8] sm:$0xff] %v2065
  loop: start=0, step=1, limit=64
  $region34: #{asl_forward.12} parent=0 // loop_pre_header
    _
  $region35: #{asl_forward.12} parent=0 // loop_header
    %s2195 = sphi 0, %s2199
    %p2196 = scmp.ge.s32.totalorder %s2195, 64
    %v2200 = vphi 0.0, %v2211
    %v2201 = vphi 0.0, %v2212
  $region36: #{asl_forward.12} parent=0 // loop_header_branch
    %2198 = sbr.rel (%p2196) target = $region40
  $region37: #{asl_forward.12} parent=0 // loop_body
    %s2202 = smul.u32 %s2195, 16
    %s2203 = scalar_lea.vmem [#allocation2], %s2202
    %v2204 = vld [vmem:[%s2203] sm:$0xff]
    %v2205 = vld [vmem:[%s2203 + $0x8] sm:$0xff]
    %v2206 = vmul.f32 %v2204, %v2200
    %v2207 = vmul.f32 %v2205, %v2201
    %s2208 = scalar_lea.vmem [#allocation3], %s2202
    %v2209 = vld [vmem:[%s2208] sm:$0xff]
    %v2210 = vld [vmem:[%s2208 + $0x8] sm:$0xff]
    %v2211 = vadd.f32 %v2206, %v2209
    %v2212 = vadd.f32 %v2207, %v2210
    %2213 = vst [vmem:[%s2208] sm:$0xff] %v2211
    %2214 = vst [vmem:[%s2208 + $0x8] sm:$0xff] %v2212
  $region38: #{asl_forward.12} parent=0 // loop_footer
    %s2199 = sadd.s32 1, %s2195
  $region39: #{asl_forward.12} parent=0 // loop_footer_branch
    %2194 = sbr.rel target = $region35
  $region40: #{asl_forward.12} parent=0 // loop_exit
    _
  %v2215 = vld [vmem:[%s4] sm:$0xff]
  %v2216 = vld [vmem:[%s4 + $0x8] sm:$0xff]
  %v2217 = vld [vmem:[%s4 + $0x10] sm:$0xff]
  %v2218 = vld [vmem:[%s4 + $0x18] sm:$0xff]
  %v2219 = vld [vmem:[%s4 + $0x20] sm:$0xff]
  %v2220 = vld [vmem:[%s4 + $0x28] sm:$0xff]
  %v2221 = vld [vmem:[%s4 + $0x30] sm:$0xff]
  %v2222 = vld [vmem:[%s4 + $0x38] sm:$0xff]
  %v2223 = vld [vmem:[%s4 + $0x40] sm:$0xff]
  %v2224 = vld [vmem:[%s4 + $0x48] sm:$0xff]
  %v2225 = vld [vmem:[%s4 + $0x50] sm:$0xff]
  %v2226 = vld [vmem:[%s4 + $0x58] sm:$0xff]
  %v2227 = vld [vmem:[%s4 + $0x60] sm:$0xff]
  %v2228 = vld [vmem:[%s4 + $0x68] sm:$0xff]
  %v2229 = vld [vmem:[%s4 + $0x70] sm:$0xff]
  %v2230 = vld [vmem:[%s4 + $0x78] sm:$0xff]
  %v2231 = vld [vmem:[%s4 + $0x80] sm:$0xff]
  %v2232 = vld [vmem:[%s4 + $0x88] sm:$0xff]
  %v2233 = vld [vmem:[%s4 + $0x90] sm:$0xff]
  %v2234 = vld [vmem:[%s4 + $0x98] sm:$0xff]
  %v2235 = vld [vmem:[%s4 + $0xa0] sm:$0xff]
  %v2236 = vld [vmem:[%s4 + $0xa8] sm:$0xff]
  %v2237 = vld [vmem:[%s4 + $0xb0] sm:$0xff]
  %v2238 = vld [vmem:[%s4 + $0xb8] sm:$0xff]
  %v2239 = vld [vmem:[%s4 + $0xc0] sm:$0xff]
  %v2240 = vld [vmem:[%s4 + $0xc8] sm:$0xff]
  %v2241 = vld [vmem:[%s4 + $0xd0] sm:$0xff]
  %v2242 = vld [vmem:[%s4 + $0xd8] sm:$0xff]
  %v2243 = vld [vmem:[%s4 + $0xe0] sm:$0xff]
  %v2244 = vld [vmem:[%s4 + $0xe8] sm:$0xff]
  %v2245 = vld [vmem:[%s4 + $0xf0] sm:$0xff]
  %v2246 = vld [vmem:[%s4 + $0xf8] sm:$0xff]
  %v2247 = vld [vmem:[%s4 + $0x100] sm:$0xff]
  %v2248 = vld [vmem:[%s4 + $0x108] sm:$0xff]
  %v2249 = vld [vmem:[%s4 + $0x110] sm:$0xff]
  %v2250 = vld [vmem:[%s4 + $0x118] sm:$0xff]
  %v2251 = vld [vmem:[%s4 + $0x120] sm:$0xff]
  %v2252 = vld [vmem:[%s4 + $0x128] sm:$0xff]
  %v2253 = vld [vmem:[%s4 + $0x130] sm:$0xff]
  %v2254 = vld [vmem:[%s4 + $0x138] sm:$0xff]
  %v2255 = vld [vmem:[%s4 + $0x140] sm:$0xff]
  %v2256 = vld [vmem:[%s4 + $0x148] sm:$0xff]
  %v2257 = vld [vmem:[%s4 + $0x150] sm:$0xff]
  %v2258 = vld [vmem:[%s4 + $0x158] sm:$0xff]
  %v2259 = vld [vmem:[%s4 + $0x160] sm:$0xff]
  %v2260 = vld [vmem:[%s4 + $0x168] sm:$0xff]
  %v2261 = vld [vmem:[%s4 + $0x170] sm:$0xff]
  %v2262 = vld [vmem:[%s4 + $0x178] sm:$0xff]
  %v2263 = vld [vmem:[%s4 + $0x180] sm:$0xff]
  %v2264 = vld [vmem:[%s4 + $0x188] sm:$0xff]
  %v2265 = vld [vmem:[%s4 + $0x190] sm:$0xff]
  %v2266 = vld [vmem:[%s4 + $0x198] sm:$0xff]
  %v2267 = vld [vmem:[%s4 + $0x1a0] sm:$0xff]
  %v2268 = vld [vmem:[%s4 + $0x1a8] sm:$0xff]
  %v2269 = vld [vmem:[%s4 + $0x1b0] sm:$0xff]
  %v2270 = vld [vmem:[%s4 + $0x1b8] sm:$0xff]
  %v2271 = vld [vmem:[%s4 + $0x1c0] sm:$0xff]
  %v2272 = vld [vmem:[%s4 + $0x1c8] sm:$0xff]
  %v2273 = vld [vmem:[%s4 + $0x1d0] sm:$0xff]
  %v2274 = vld [vmem:[%s4 + $0x1d8] sm:$0xff]
  %v2275 = vld [vmem:[%s4 + $0x1e0] sm:$0xff]
  %v2276 = vld [vmem:[%s4 + $0x1e8] sm:$0xff]
  %v2277 = vld [vmem:[%s4 + $0x1f0] sm:$0xff]
  %v2278 = vld [vmem:[%s4 + $0x1f8] sm:$0xff]
  %v2279 = vld [vmem:[%s4 + $0x200] sm:$0xff]
  %v2280 = vld [vmem:[%s4 + $0x208] sm:$0xff]
  %v2281 = vld [vmem:[%s4 + $0x210] sm:$0xff]
  %v2282 = vld [vmem:[%s4 + $0x218] sm:$0xff]
  %v2283 = vld [vmem:[%s4 + $0x220] sm:$0xff]
  %v2284 = vld [vmem:[%s4 + $0x228] sm:$0xff]
  %v2285 = vld [vmem:[%s4 + $0x230] sm:$0xff]
  %v2286 = vld [vmem:[%s4 + $0x238] sm:$0xff]
  %v2287 = vld [vmem:[%s4 + $0x240] sm:$0xff]
  %v2288 = vld [vmem:[%s4 + $0x248] sm:$0xff]
  %v2289 = vld [vmem:[%s4 + $0x250] sm:$0xff]
  %v2290 = vld [vmem:[%s4 + $0x258] sm:$0xff]
  %v2291 = vld [vmem:[%s4 + $0x260] sm:$0xff]
  %v2292 = vld [vmem:[%s4 + $0x268] sm:$0xff]
  %v2293 = vld [vmem:[%s4 + $0x270] sm:$0xff]
  %v2294 = vld [vmem:[%s4 + $0x278] sm:$0xff]
  %v2295 = vld [vmem:[%s4 + $0x280] sm:$0xff]
  %v2296 = vld [vmem:[%s4 + $0x288] sm:$0xff]
  %v2297 = vld [vmem:[%s4 + $0x290] sm:$0xff]
  %v2298 = vld [vmem:[%s4 + $0x298] sm:$0xff]
  %v2299 = vld [vmem:[%s4 + $0x2a0] sm:$0xff]
  %v2300 = vld [vmem:[%s4 + $0x2a8] sm:$0xff]
  %v2301 = vld [vmem:[%s4 + $0x2b0] sm:$0xff]
  %v2302 = vld [vmem:[%s4 + $0x2b8] sm:$0xff]
  %v2303 = vld [vmem:[%s4 + $0x2c0] sm:$0xff]
  %v2304 = vld [vmem:[%s4 + $0x2c8] sm:$0xff]
  %v2305 = vld [vmem:[%s4 + $0x2d0] sm:$0xff]
  %v2306 = vld [vmem:[%s4 + $0x2d8] sm:$0xff]
  %v2307 = vld [vmem:[%s4 + $0x2e0] sm:$0xff]
  %v2308 = vld [vmem:[%s4 + $0x2e8] sm:$0xff]
  %v2309 = vld [vmem:[%s4 + $0x2f0] sm:$0xff]
  %v2310 = vld [vmem:[%s4 + $0x2f8] sm:$0xff]
  %v2311 = vld [vmem:[%s4 + $0x300] sm:$0xff]
  %v2312 = vld [vmem:[%s4 + $0x308] sm:$0xff]
  %v2313 = vld [vmem:[%s4 + $0x310] sm:$0xff]
  %v2314 = vld [vmem:[%s4 + $0x318] sm:$0xff]
  %v2315 = vld [vmem:[%s4 + $0x320] sm:$0xff]
  %v2316 = vld [vmem:[%s4 + $0x328] sm:$0xff]
  %v2317 = vld [vmem:[%s4 + $0x330] sm:$0xff]
  %v2318 = vld [vmem:[%s4 + $0x338] sm:$0xff]
  %v2319 = vld [vmem:[%s4 + $0x340] sm:$0xff]
  %v2320 = vld [vmem:[%s4 + $0x348] sm:$0xff]
  %v2321 = vld [vmem:[%s4 + $0x350] sm:$0xff]
  %v2322 = vld [vmem:[%s4 + $0x358] sm:$0xff]
  %v2323 = vld [vmem:[%s4 + $0x360] sm:$0xff]
  %v2324 = vld [vmem:[%s4 + $0x368] sm:$0xff]
  %v2325 = vld [vmem:[%s4 + $0x370] sm:$0xff]
  %v2326 = vld [vmem:[%s4 + $0x378] sm:$0xff]
  %v2327 = vld [vmem:[%s4 + $0x380] sm:$0xff]
  %v2328 = vld [vmem:[%s4 + $0x388] sm:$0xff]
  %v2329 = vld [vmem:[%s4 + $0x390] sm:$0xff]
  %v2330 = vld [vmem:[%s4 + $0x398] sm:$0xff]
  %v2331 = vld [vmem:[%s4 + $0x3a0] sm:$0xff]
  %v2332 = vld [vmem:[%s4 + $0x3a8] sm:$0xff]
  %v2333 = vld [vmem:[%s4 + $0x3b0] sm:$0xff]
  %v2334 = vld [vmem:[%s4 + $0x3b8] sm:$0xff]
  %v2335 = vld [vmem:[%s4 + $0x3c0] sm:$0xff]
  %v2336 = vld [vmem:[%s4 + $0x3c8] sm:$0xff]
  %v2337 = vld [vmem:[%s4 + $0x3d0] sm:$0xff]
  %v2338 = vld [vmem:[%s4 + $0x3d8] sm:$0xff]
  %v2339 = vld [vmem:[%s4 + $0x3e0] sm:$0xff]
  %v2340 = vld [vmem:[%s4 + $0x3e8] sm:$0xff]
  %v2341 = vld [vmem:[%s4 + $0x3f0] sm:$0xff]
  %v2342 = vld [vmem:[%s4 + $0x3f8] sm:$0xff]
  %v2344 = vsel %vm952, %v2215, 0
  %v2347 = vsel %vm952, %v2216, 0
  %v2350 = vsel %vm952, %v2217, 0
  %v2353 = vsel %vm952, %v2218, 0
  %v2356 = vsel %vm952, %v2219, 0
  %v2359 = vsel %vm952, %v2220, 0
  %v2362 = vsel %vm952, %v2221, 0
  %v2365 = vsel %vm952, %v2222, 0
  %v2368 = vsel %vm952, %v2223, 0
  %v2371 = vsel %vm952, %v2224, 0
  %v2374 = vsel %vm952, %v2225, 0
  %v2377 = vsel %vm952, %v2226, 0
  %v2380 = vsel %vm952, %v2227, 0
  %v2383 = vsel %vm952, %v2228, 0
  %v2386 = vsel %vm952, %v2229, 0
  %v2389 = vsel %vm952, %v2230, 0
  %v2392 = vsel %vm952, %v2231, 0
  %v2395 = vsel %vm952, %v2232, 0
  %v2398 = vsel %vm952, %v2233, 0
  %v2401 = vsel %vm952, %v2234, 0
  %v2404 = vsel %vm952, %v2235, 0
  %v2407 = vsel %vm952, %v2236, 0
  %v2410 = vsel %vm952, %v2237, 0
  %v2413 = vsel %vm952, %v2238, 0
  %v2416 = vsel %vm952, %v2239, 0
  %v2419 = vsel %vm952, %v2240, 0
  %v2422 = vsel %vm952, %v2241, 0
  %v2425 = vsel %vm952, %v2242, 0
  %v2428 = vsel %vm952, %v2243, 0
  %v2431 = vsel %vm952, %v2244, 0
  %v2434 = vsel %vm952, %v2245, 0
  %v2437 = vsel %vm952, %v2246, 0
  %v2440 = vsel %vm952, %v2247, 0
  %v2443 = vsel %vm952, %v2248, 0
  %v2446 = vsel %vm952, %v2249, 0
  %v2449 = vsel %vm952, %v2250, 0
  %v2452 = vsel %vm952, %v2251, 0
  %v2455 = vsel %vm952, %v2252, 0
  %v2458 = vsel %vm952, %v2253, 0
  %v2461 = vsel %vm952, %v2254, 0
  %v2464 = vsel %vm952, %v2255, 0
  %v2467 = vsel %vm952, %v2256, 0
  %v2470 = vsel %vm952, %v2257, 0
  %v2473 = vsel %vm952, %v2258, 0
  %v2476 = vsel %vm952, %v2259, 0
  %v2479 = vsel %vm952, %v2260, 0
  %v2482 = vsel %vm952, %v2261, 0
  %v2485 = vsel %vm952, %v2262, 0
  %v2488 = vsel %vm952, %v2263, 0
  %v2491 = vsel %vm952, %v2264, 0
  %v2494 = vsel %vm952, %v2265, 0
  %v2497 = vsel %vm952, %v2266, 0
  %v2500 = vsel %vm952, %v2267, 0
  %v2503 = vsel %vm952, %v2268, 0
  %v2506 = vsel %vm952, %v2269, 0
  %v2509 = vsel %vm952, %v2270, 0
  %v2512 = vsel %vm952, %v2271, 0
  %v2515 = vsel %vm952, %v2272, 0
  %v2518 = vsel %vm952, %v2273, 0
  %v2521 = vsel %vm952, %v2274, 0
  %v2524 = vsel %vm952, %v2275, 0
  %v2527 = vsel %vm952, %v2276, 0
  %v2530 = vsel %vm952, %v2277, 0
  %v2533 = vsel %vm952, %v2278, 0
  %v2536 = vsel %vm952, %v2279, 0
  %v2539 = vsel %vm952, %v2280, 0
  %v2542 = vsel %vm952, %v2281, 0
  %v2545 = vsel %vm952, %v2282, 0
  %v2548 = vsel %vm952, %v2283, 0
  %v2551 = vsel %vm952, %v2284, 0
  %v2554 = vsel %vm952, %v2285, 0
  %v2557 = vsel %vm952, %v2286, 0
  %v2560 = vsel %vm952, %v2287, 0
  %v2563 = vsel %vm952, %v2288, 0
  %v2566 = vsel %vm952, %v2289, 0
  %v2569 = vsel %vm952, %v2290, 0
  %v2572 = vsel %vm952, %v2291, 0
  %v2575 = vsel %vm952, %v2292, 0
  %v2578 = vsel %vm952, %v2293, 0
  %v2581 = vsel %vm952, %v2294, 0
  %v2584 = vsel %vm952, %v2295, 0
  %v2587 = vsel %vm952, %v2296, 0
  %v2590 = vsel %vm952, %v2297, 0
  %v2593 = vsel %vm952, %v2298, 0
  %v2596 = vsel %vm952, %v2299, 0
  %v2599 = vsel %vm952, %v2300, 0
  %v2602 = vsel %vm952, %v2301, 0
  %v2605 = vsel %vm952, %v2302, 0
  %v2608 = vsel %vm952, %v2303, 0
  %v2611 = vsel %vm952, %v2304, 0
  %v2614 = vsel %vm952, %v2305, 0
  %v2617 = vsel %vm952, %v2306, 0
  %v2620 = vsel %vm952, %v2307, 0
  %v2623 = vsel %vm952, %v2308, 0
  %v2626 = vsel %vm952, %v2309, 0
  %v2629 = vsel %vm952, %v2310, 0
  %v2632 = vsel %vm952, %v2311, 0
  %v2635 = vsel %vm952, %v2312, 0
  %v2638 = vsel %vm952, %v2313, 0
  %v2641 = vsel %vm952, %v2314, 0
  %v2644 = vsel %vm952, %v2315, 0
  %v2647 = vsel %vm952, %v2316, 0
  %v2650 = vsel %vm952, %v2317, 0
  %v2653 = vsel %vm952, %v2318, 0
  %v2656 = vsel %vm952, %v2319, 0
  %v2659 = vsel %vm952, %v2320, 0
  %v2662 = vsel %vm952, %v2321, 0
  %v2665 = vsel %vm952, %v2322, 0
  %v2668 = vsel %vm952, %v2323, 0
  %v2671 = vsel %vm952, %v2324, 0
  %v2674 = vsel %vm952, %v2325, 0
  %v2677 = vsel %vm952, %v2326, 0
  %v2680 = vsel %vm952, %v2327, 0
  %v2683 = vsel %vm952, %v2328, 0
  %v2686 = vsel %vm952, %v2329, 0
  %v2689 = vsel %vm952, %v2330, 0
  %v2692 = vsel %vm952, %v2331, 0
  %v2695 = vsel %vm952, %v2332, 0
  %v2698 = vsel %vm952, %v2333, 0
  %v2701 = vsel %vm952, %v2334, 0
  %v2704 = vsel %vm952, %v2335, 0
  %v2707 = vsel %vm952, %v2336, 0
  %v2710 = vsel %vm952, %v2337, 0
  %v2713 = vsel %vm952, %v2338, 0
  %v2716 = vsel %vm952, %v2339, 0
  %v2719 = vsel %vm952, %v2340, 0
  %v2722 = vsel %vm952, %v2341, 0
  %v2725 = vsel %vm952, %v2342, 0
  %2727 = vmatpush.msra.mxu0 0.0
  %2728 = vmatpush.msra.mxu0 0.0
  %2729 = vmatpush.msra.mxu0 0.0
  %2730 = vmatpush.msra.mxu0 0.0
  %2731 = vmatpush.msra.mxu0 0.0
  %2732 = vmatpush.msra.mxu0 0.0
  %2733 = vmatpush.msra.mxu0 0.0
  %2734 = vmatpush.msra.mxu0 0.0
  %2735 = vmatpush.msra.mxu0 0.0
  %2736 = vmatpush.msra.mxu0 0.0
  %2737 = vmatpush.msra.mxu0 0.0
  %2738 = vmatpush.msra.mxu0 0.0
  %2739 = vmatpush.msra.mxu0 0.0
  %2740 = vmatpush.msra.mxu0 0.0
  %2741 = vmatpush.msra.mxu0 0.0
  %2742 = vmatpush.msra.mxu0 %v119
  %2743 = vmatmul.f32.gmra.mxu0 %v2344
  %v2744 = vpop.f32.mrf.mxu0
  %v2745 = vadd.f32 0.0, %v2744
  %2746 = vmatmul.f32.gmra.mxu0 %v2347
  %v2747 = vpop.f32.mrf.mxu0
  %v2748 = vadd.f32 0.0, %v2747
  %2749 = vmatmul.f32.gmra.mxu0 %v2350
  %v2750 = vpop.f32.mrf.mxu0
  %v2751 = vadd.f32 0.0, %v2750
  %2752 = vmatmul.f32.gmra.mxu0 %v2353
  %v2753 = vpop.f32.mrf.mxu0
  %v2754 = vadd.f32 0.0, %v2753
  %2755 = vmatmul.f32.gmra.mxu0 %v2356
  %v2756 = vpop.f32.mrf.mxu0
  %v2757 = vadd.f32 0.0, %v2756
  %2758 = vmatmul.f32.gmra.mxu0 %v2359
  %v2759 = vpop.f32.mrf.mxu0
  %v2760 = vadd.f32 0.0, %v2759
  %2761 = vmatmul.f32.gmra.mxu0 %v2362
  %v2762 = vpop.f32.mrf.mxu0
  %v2763 = vadd.f32 0.0, %v2762
  %2764 = vmatmul.f32.gmra.mxu0 %v2365
  %v2765 = vpop.f32.mrf.mxu0
  %v2766 = vadd.f32 0.0, %v2765
  %2767 = vmatmul.f32.gmra.mxu0 %v2368
  %v2768 = vpop.f32.mrf.mxu0
  %v2769 = vadd.f32 0.0, %v2768
  %2770 = vmatmul.f32.gmra.mxu0 %v2371
  %v2771 = vpop.f32.mrf.mxu0
  %v2772 = vadd.f32 0.0, %v2771
  %2773 = vmatmul.f32.gmra.mxu0 %v2374
  %v2774 = vpop.f32.mrf.mxu0
  %v2775 = vadd.f32 0.0, %v2774
  %2776 = vmatmul.f32.gmra.mxu0 %v2377
  %v2777 = vpop.f32.mrf.mxu0
  %v2778 = vadd.f32 0.0, %v2777
  %2779 = vmatmul.f32.gmra.mxu0 %v2380
  %v2780 = vpop.f32.mrf.mxu0
  %v2781 = vadd.f32 0.0, %v2780
  %2782 = vmatmul.f32.gmra.mxu0 %v2383
  %v2783 = vpop.f32.mrf.mxu0
  %v2784 = vadd.f32 0.0, %v2783
  %2785 = vmatmul.f32.gmra.mxu0 %v2386
  %v2786 = vpop.f32.mrf.mxu0
  %v2787 = vadd.f32 0.0, %v2786
  %2788 = vmatmul.f32.gmra.mxu0 %v2389
  %v2789 = vpop.f32.mrf.mxu0
  %v2790 = vadd.f32 0.0, %v2789
  %2791 = vmatmul.f32.gmra.mxu0 %v2392
  %v2792 = vpop.f32.mrf.mxu0
  %v2793 = vadd.f32 0.0, %v2792
  %2794 = vmatmul.f32.gmra.mxu0 %v2395
  %v2795 = vpop.f32.mrf.mxu0
  %v2796 = vadd.f32 0.0, %v2795
  %2797 = vmatmul.f32.gmra.mxu0 %v2398
  %v2798 = vpop.f32.mrf.mxu0
  %v2799 = vadd.f32 0.0, %v2798
  %2800 = vmatmul.f32.gmra.mxu0 %v2401
  %v2801 = vpop.f32.mrf.mxu0
  %v2802 = vadd.f32 0.0, %v2801
  %2803 = vmatmul.f32.gmra.mxu0 %v2404
  %v2804 = vpop.f32.mrf.mxu0
  %v2805 = vadd.f32 0.0, %v2804
  %2806 = vmatmul.f32.gmra.mxu0 %v2407
  %v2807 = vpop.f32.mrf.mxu0
  %v2808 = vadd.f32 0.0, %v2807
  %2809 = vmatmul.f32.gmra.mxu0 %v2410
  %v2810 = vpop.f32.mrf.mxu0
  %v2811 = vadd.f32 0.0, %v2810
  %2812 = vmatmul.f32.gmra.mxu0 %v2413
  %v2813 = vpop.f32.mrf.mxu0
  %v2814 = vadd.f32 0.0, %v2813
  %2815 = vmatmul.f32.gmra.mxu0 %v2416
  %v2816 = vpop.f32.mrf.mxu0
  %v2817 = vadd.f32 0.0, %v2816
  %2818 = vmatmul.f32.gmra.mxu0 %v2419
  %v2819 = vpop.f32.mrf.mxu0
  %v2820 = vadd.f32 0.0, %v2819
  %2821 = vmatmul.f32.gmra.mxu0 %v2422
  %v2822 = vpop.f32.mrf.mxu0
  %v2823 = vadd.f32 0.0, %v2822
  %2824 = vmatmul.f32.gmra.mxu0 %v2425
  %v2825 = vpop.f32.mrf.mxu0
  %v2826 = vadd.f32 0.0, %v2825
  %2827 = vmatmul.f32.gmra.mxu0 %v2428
  %v2828 = vpop.f32.mrf.mxu0
  %v2829 = vadd.f32 0.0, %v2828
  %2830 = vmatmul.f32.gmra.mxu0 %v2431
  %v2831 = vpop.f32.mrf.mxu0
  %v2832 = vadd.f32 0.0, %v2831
  %2833 = vmatmul.f32.gmra.mxu0 %v2434
  %v2834 = vpop.f32.mrf.mxu0
  %v2835 = vadd.f32 0.0, %v2834
  %2836 = vmatmul.f32.gmra.mxu0 %v2437
  %v2837 = vpop.f32.mrf.mxu0
  %v2838 = vadd.f32 0.0, %v2837
  %2839 = vmatmul.f32.gmra.mxu0 %v2440
  %v2840 = vpop.f32.mrf.mxu0
  %v2841 = vadd.f32 0.0, %v2840
  %2842 = vmatmul.f32.gmra.mxu0 %v2443
  %v2843 = vpop.f32.mrf.mxu0
  %v2844 = vadd.f32 0.0, %v2843
  %2845 = vmatmul.f32.gmra.mxu0 %v2446
  %v2846 = vpop.f32.mrf.mxu0
  %v2847 = vadd.f32 0.0, %v2846
  %2848 = vmatmul.f32.gmra.mxu0 %v2449
  %v2849 = vpop.f32.mrf.mxu0
  %v2850 = vadd.f32 0.0, %v2849
  %2851 = vmatmul.f32.gmra.mxu0 %v2452
  %v2852 = vpop.f32.mrf.mxu0
  %v2853 = vadd.f32 0.0, %v2852
  %2854 = vmatmul.f32.gmra.mxu0 %v2455
  %v2855 = vpop.f32.mrf.mxu0
  %v2856 = vadd.f32 0.0, %v2855
  %2857 = vmatmul.f32.gmra.mxu0 %v2458
  %v2858 = vpop.f32.mrf.mxu0
  %v2859 = vadd.f32 0.0, %v2858
  %2860 = vmatmul.f32.gmra.mxu0 %v2461
  %v2861 = vpop.f32.mrf.mxu0
  %v2862 = vadd.f32 0.0, %v2861
  %2863 = vmatmul.f32.gmra.mxu0 %v2464
  %v2864 = vpop.f32.mrf.mxu0
  %v2865 = vadd.f32 0.0, %v2864
  %2866 = vmatmul.f32.gmra.mxu0 %v2467
  %v2867 = vpop.f32.mrf.mxu0
  %v2868 = vadd.f32 0.0, %v2867
  %2869 = vmatmul.f32.gmra.mxu0 %v2470
  %v2870 = vpop.f32.mrf.mxu0
  %v2871 = vadd.f32 0.0, %v2870
  %2872 = vmatmul.f32.gmra.mxu0 %v2473
  %v2873 = vpop.f32.mrf.mxu0
  %v2874 = vadd.f32 0.0, %v2873
  %2875 = vmatmul.f32.gmra.mxu0 %v2476
  %v2876 = vpop.f32.mrf.mxu0
  %v2877 = vadd.f32 0.0, %v2876
  %2878 = vmatmul.f32.gmra.mxu0 %v2479
  %v2879 = vpop.f32.mrf.mxu0
  %v2880 = vadd.f32 0.0, %v2879
  %2881 = vmatmul.f32.gmra.mxu0 %v2482
  %v2882 = vpop.f32.mrf.mxu0
  %v2883 = vadd.f32 0.0, %v2882
  %2884 = vmatmul.f32.gmra.mxu0 %v2485
  %v2885 = vpop.f32.mrf.mxu0
  %v2886 = vadd.f32 0.0, %v2885
  %2887 = vmatmul.f32.gmra.mxu0 %v2488
  %v2888 = vpop.f32.mrf.mxu0
  %v2889 = vadd.f32 0.0, %v2888
  %2890 = vmatmul.f32.gmra.mxu0 %v2491
  %v2891 = vpop.f32.mrf.mxu0
  %v2892 = vadd.f32 0.0, %v2891
  %2893 = vmatmul.f32.gmra.mxu0 %v2494
  %v2894 = vpop.f32.mrf.mxu0
  %v2895 = vadd.f32 0.0, %v2894
  %2896 = vmatmul.f32.gmra.mxu0 %v2497
  %v2897 = vpop.f32.mrf.mxu0
  %v2898 = vadd.f32 0.0, %v2897
  %2899 = vmatmul.f32.gmra.mxu0 %v2500
  %v2900 = vpop.f32.mrf.mxu0
  %v2901 = vadd.f32 0.0, %v2900
  %2902 = vmatmul.f32.gmra.mxu0 %v2503
  %v2903 = vpop.f32.mrf.mxu0
  %v2904 = vadd.f32 0.0, %v2903
  %2905 = vmatmul.f32.gmra.mxu0 %v2506
  %v2906 = vpop.f32.mrf.mxu0
  %v2907 = vadd.f32 0.0, %v2906
  %2908 = vmatmul.f32.gmra.mxu0 %v2509
  %v2909 = vpop.f32.mrf.mxu0
  %v2910 = vadd.f32 0.0, %v2909
  %2911 = vmatmul.f32.gmra.mxu0 %v2512
  %v2912 = vpop.f32.mrf.mxu0
  %v2913 = vadd.f32 0.0, %v2912
  %2914 = vmatmul.f32.gmra.mxu0 %v2515
  %v2915 = vpop.f32.mrf.mxu0
  %v2916 = vadd.f32 0.0, %v2915
  %2917 = vmatmul.f32.gmra.mxu0 %v2518
  %v2918 = vpop.f32.mrf.mxu0
  %v2919 = vadd.f32 0.0, %v2918
  %2920 = vmatmul.f32.gmra.mxu0 %v2521
  %v2921 = vpop.f32.mrf.mxu0
  %v2922 = vadd.f32 0.0, %v2921
  %2923 = vmatmul.f32.gmra.mxu0 %v2524
  %v2924 = vpop.f32.mrf.mxu0
  %v2925 = vadd.f32 0.0, %v2924
  %2926 = vmatmul.f32.gmra.mxu0 %v2527
  %v2927 = vpop.f32.mrf.mxu0
  %v2928 = vadd.f32 0.0, %v2927
  %2929 = vmatmul.f32.gmra.mxu0 %v2530
  %v2930 = vpop.f32.mrf.mxu0
  %v2931 = vadd.f32 0.0, %v2930
  %2932 = vmatmul.f32.gmra.mxu0 %v2533
  %v2933 = vpop.f32.mrf.mxu0
  %v2934 = vadd.f32 0.0, %v2933
  %2935 = vmatmul.f32.gmra.mxu0 %v2536
  %v2936 = vpop.f32.mrf.mxu0
  %v2937 = vadd.f32 0.0, %v2936
  %2938 = vmatmul.f32.gmra.mxu0 %v2539
  %v2939 = vpop.f32.mrf.mxu0
  %v2940 = vadd.f32 0.0, %v2939
  %2941 = vmatmul.f32.gmra.mxu0 %v2542
  %v2942 = vpop.f32.mrf.mxu0
  %v2943 = vadd.f32 0.0, %v2942
  %2944 = vmatmul.f32.gmra.mxu0 %v2545
  %v2945 = vpop.f32.mrf.mxu0
  %v2946 = vadd.f32 0.0, %v2945
  %2947 = vmatmul.f32.gmra.mxu0 %v2548
  %v2948 = vpop.f32.mrf.mxu0
  %v2949 = vadd.f32 0.0, %v2948
  %2950 = vmatmul.f32.gmra.mxu0 %v2551
  %v2951 = vpop.f32.mrf.mxu0
  %v2952 = vadd.f32 0.0, %v2951
  %2953 = vmatmul.f32.gmra.mxu0 %v2554
  %v2954 = vpop.f32.mrf.mxu0
  %v2955 = vadd.f32 0.0, %v2954
  %2956 = vmatmul.f32.gmra.mxu0 %v2557
  %v2957 = vpop.f32.mrf.mxu0
  %v2958 = vadd.f32 0.0, %v2957
  %2959 = vmatmul.f32.gmra.mxu0 %v2560
  %v2960 = vpop.f32.mrf.mxu0
  %v2961 = vadd.f32 0.0, %v2960
  %2962 = vmatmul.f32.gmra.mxu0 %v2563
  %v2963 = vpop.f32.mrf.mxu0
  %v2964 = vadd.f32 0.0, %v2963
  %2965 = vmatmul.f32.gmra.mxu0 %v2566
  %v2966 = vpop.f32.mrf.mxu0
  %v2967 = vadd.f32 0.0, %v2966
  %2968 = vmatmul.f32.gmra.mxu0 %v2569
  %v2969 = vpop.f32.mrf.mxu0
  %v2970 = vadd.f32 0.0, %v2969
  %2971 = vmatmul.f32.gmra.mxu0 %v2572
  %v2972 = vpop.f32.mrf.mxu0
  %v2973 = vadd.f32 0.0, %v2972
  %2974 = vmatmul.f32.gmra.mxu0 %v2575
  %v2975 = vpop.f32.mrf.mxu0
  %v2976 = vadd.f32 0.0, %v2975
  %2977 = vmatmul.f32.gmra.mxu0 %v2578
  %v2978 = vpop.f32.mrf.mxu0
  %v2979 = vadd.f32 0.0, %v2978
  %2980 = vmatmul.f32.gmra.mxu0 %v2581
  %v2981 = vpop.f32.mrf.mxu0
  %v2982 = vadd.f32 0.0, %v2981
  %2983 = vmatmul.f32.gmra.mxu0 %v2584
  %v2984 = vpop.f32.mrf.mxu0
  %v2985 = vadd.f32 0.0, %v2984
  %2986 = vmatmul.f32.gmra.mxu0 %v2587
  %v2987 = vpop.f32.mrf.mxu0
  %v2988 = vadd.f32 0.0, %v2987
  %2989 = vmatmul.f32.gmra.mxu0 %v2590
  %v2990 = vpop.f32.mrf.mxu0
  %v2991 = vadd.f32 0.0, %v2990
  %2992 = vmatmul.f32.gmra.mxu0 %v2593
  %v2993 = vpop.f32.mrf.mxu0
  %v2994 = vadd.f32 0.0, %v2993
  %2995 = vmatmul.f32.gmra.mxu0 %v2596
  %v2996 = vpop.f32.mrf.mxu0
  %v2997 = vadd.f32 0.0, %v2996
  %2998 = vmatmul.f32.gmra.mxu0 %v2599
  %v2999 = vpop.f32.mrf.mxu0
  %v3000 = vadd.f32 0.0, %v2999
  %3001 = vmatmul.f32.gmra.mxu0 %v2602
  %v3002 = vpop.f32.mrf.mxu0
  %v3003 = vadd.f32 0.0, %v3002
  %3004 = vmatmul.f32.gmra.mxu0 %v2605
  %v3005 = vpop.f32.mrf.mxu0
  %v3006 = vadd.f32 0.0, %v3005
  %3007 = vmatmul.f32.gmra.mxu0 %v2608
  %v3008 = vpop.f32.mrf.mxu0
  %v3009 = vadd.f32 0.0, %v3008
  %3010 = vmatmul.f32.gmra.mxu0 %v2611
  %v3011 = vpop.f32.mrf.mxu0
  %v3012 = vadd.f32 0.0, %v3011
  %3013 = vmatmul.f32.gmra.mxu0 %v2614
  %v3014 = vpop.f32.mrf.mxu0
  %v3015 = vadd.f32 0.0, %v3014
  %3016 = vmatmul.f32.gmra.mxu0 %v2617
  %v3017 = vpop.f32.mrf.mxu0
  %v3018 = vadd.f32 0.0, %v3017
  %3019 = vmatmul.f32.gmra.mxu0 %v2620
  %v3020 = vpop.f32.mrf.mxu0
  %v3021 = vadd.f32 0.0, %v3020
  %3022 = vmatmul.f32.gmra.mxu0 %v2623
  %v3023 = vpop.f32.mrf.mxu0
  %v3024 = vadd.f32 0.0, %v3023
  %3025 = vmatmul.f32.gmra.mxu0 %v2626
  %v3026 = vpop.f32.mrf.mxu0
  %v3027 = vadd.f32 0.0, %v3026
  %3028 = vmatmul.f32.gmra.mxu0 %v2629
  %v3029 = vpop.f32.mrf.mxu0
  %v3030 = vadd.f32 0.0, %v3029
  %3031 = vmatmul.f32.gmra.mxu0 %v2632
  %v3032 = vpop.f32.mrf.mxu0
  %v3033 = vadd.f32 0.0, %v3032
  %3034 = vmatmul.f32.gmra.mxu0 %v2635
  %v3035 = vpop.f32.mrf.mxu0
  %v3036 = vadd.f32 0.0, %v3035
  %3037 = vmatmul.f32.gmra.mxu0 %v2638
  %v3038 = vpop.f32.mrf.mxu0
  %v3039 = vadd.f32 0.0, %v3038
  %3040 = vmatmul.f32.gmra.mxu0 %v2641
  %v3041 = vpop.f32.mrf.mxu0
  %v3042 = vadd.f32 0.0, %v3041
  %3043 = vmatmul.f32.gmra.mxu0 %v2644
  %v3044 = vpop.f32.mrf.mxu0
  %v3045 = vadd.f32 0.0, %v3044
  %3046 = vmatmul.f32.gmra.mxu0 %v2647
  %v3047 = vpop.f32.mrf.mxu0
  %v3048 = vadd.f32 0.0, %v3047
  %3049 = vmatmul.f32.gmra.mxu0 %v2650
  %v3050 = vpop.f32.mrf.mxu0
  %v3051 = vadd.f32 0.0, %v3050
  %3052 = vmatmul.f32.gmra.mxu0 %v2653
  %v3053 = vpop.f32.mrf.mxu0
  %v3054 = vadd.f32 0.0, %v3053
  %3055 = vmatmul.f32.gmra.mxu0 %v2656
  %v3056 = vpop.f32.mrf.mxu0
  %v3057 = vadd.f32 0.0, %v3056
  %3058 = vmatmul.f32.gmra.mxu0 %v2659
  %v3059 = vpop.f32.mrf.mxu0
  %v3060 = vadd.f32 0.0, %v3059
  %3061 = vmatmul.f32.gmra.mxu0 %v2662
  %v3062 = vpop.f32.mrf.mxu0
  %v3063 = vadd.f32 0.0, %v3062
  %3064 = vmatmul.f32.gmra.mxu0 %v2665
  %v3065 = vpop.f32.mrf.mxu0
  %v3066 = vadd.f32 0.0, %v3065
  %3067 = vmatmul.f32.gmra.mxu0 %v2668
  %v3068 = vpop.f32.mrf.mxu0
  %v3069 = vadd.f32 0.0, %v3068
  %3070 = vmatmul.f32.gmra.mxu0 %v2671
  %v3071 = vpop.f32.mrf.mxu0
  %v3072 = vadd.f32 0.0, %v3071
  %3073 = vmatmul.f32.gmra.mxu0 %v2674
  %v3074 = vpop.f32.mrf.mxu0
  %v3075 = vadd.f32 0.0, %v3074
  %3076 = vmatmul.f32.gmra.mxu0 %v2677
  %v3077 = vpop.f32.mrf.mxu0
  %v3078 = vadd.f32 0.0, %v3077
  %3079 = vmatmul.f32.gmra.mxu0 %v2680
  %v3080 = vpop.f32.mrf.mxu0
  %v3081 = vadd.f32 0.0, %v3080
  %3082 = vmatmul.f32.gmra.mxu0 %v2683
  %v3083 = vpop.f32.mrf.mxu0
  %v3084 = vadd.f32 0.0, %v3083
  %3085 = vmatmul.f32.gmra.mxu0 %v2686
  %v3086 = vpop.f32.mrf.mxu0
  %v3087 = vadd.f32 0.0, %v3086
  %3088 = vmatmul.f32.gmra.mxu0 %v2689
  %v3089 = vpop.f32.mrf.mxu0
  %v3090 = vadd.f32 0.0, %v3089
  %3091 = vmatmul.f32.gmra.mxu0 %v2692
  %v3092 = vpop.f32.mrf.mxu0
  %v3093 = vadd.f32 0.0, %v3092
  %3094 = vmatmul.f32.gmra.mxu0 %v2695
  %v3095 = vpop.f32.mrf.mxu0
  %v3096 = vadd.f32 0.0, %v3095
  %3097 = vmatmul.f32.gmra.mxu0 %v2698
  %v3098 = vpop.f32.mrf.mxu0
  %v3099 = vadd.f32 0.0, %v3098
  %3100 = vmatmul.f32.gmra.mxu0 %v2701
  %v3101 = vpop.f32.mrf.mxu0
  %v3102 = vadd.f32 0.0, %v3101
  %3103 = vmatmul.f32.gmra.mxu0 %v2704
  %v3104 = vpop.f32.mrf.mxu0
  %v3105 = vadd.f32 0.0, %v3104
  %3106 = vmatmul.f32.gmra.mxu0 %v2707
  %v3107 = vpop.f32.mrf.mxu0
  %v3108 = vadd.f32 0.0, %v3107
  %3109 = vmatmul.f32.gmra.mxu0 %v2710
  %v3110 = vpop.f32.mrf.mxu0
  %v3111 = vadd.f32 0.0, %v3110
  %3112 = vmatmul.f32.gmra.mxu0 %v2713
  %v3113 = vpop.f32.mrf.mxu0
  %v3114 = vadd.f32 0.0, %v3113
  %3115 = vmatmul.f32.gmra.mxu0 %v2716
  %v3116 = vpop.f32.mrf.mxu0
  %v3117 = vadd.f32 0.0, %v3116
  %3118 = vmatmul.f32.gmra.mxu0 %v2719
  %v3119 = vpop.f32.mrf.mxu0
  %v3120 = vadd.f32 0.0, %v3119
  %3121 = vmatmul.f32.gmra.mxu0 %v2722
  %v3122 = vpop.f32.mrf.mxu0
  %v3123 = vadd.f32 0.0, %v3122
  %3124 = vmatmul.f32.gmra.mxu0 %v2725
  %v3125 = vpop.f32.mrf.mxu0
  %v3126 = vadd.f32 0.0, %v3125
  %3127 = vdwg.mxu0
  %v3128 = vld [vmem:[#allocation3] sm:$0xff]
  %v3129 = vld [vmem:[#allocation3 + $0x8] sm:$0xff]
  %v3130 = vld [vmem:[#allocation3 + $0x10] sm:$0xff]
  %v3131 = vld [vmem:[#allocation3 + $0x18] sm:$0xff]
  %v3132 = vld [vmem:[#allocation3 + $0x20] sm:$0xff]
  %v3133 = vld [vmem:[#allocation3 + $0x28] sm:$0xff]
  %v3134 = vld [vmem:[#allocation3 + $0x30] sm:$0xff]
  %v3135 = vld [vmem:[#allocation3 + $0x38] sm:$0xff]
  %v3136 = vld [vmem:[#allocation3 + $0x40] sm:$0xff]
  %v3137 = vld [vmem:[#allocation3 + $0x48] sm:$0xff]
  %v3138 = vld [vmem:[#allocation3 + $0x50] sm:$0xff]
  %v3139 = vld [vmem:[#allocation3 + $0x58] sm:$0xff]
  %v3140 = vld [vmem:[#allocation3 + $0x60] sm:$0xff]
  %v3141 = vld [vmem:[#allocation3 + $0x68] sm:$0xff]
  %v3142 = vld [vmem:[#allocation3 + $0x70] sm:$0xff]
  %v3143 = vld [vmem:[#allocation3 + $0x78] sm:$0xff]
  %v3144 = vld [vmem:[#allocation3 + $0x80] sm:$0xff]
  %v3145 = vld [vmem:[#allocation3 + $0x88] sm:$0xff]
  %v3146 = vld [vmem:[#allocation3 + $0x90] sm:$0xff]
  %v3147 = vld [vmem:[#allocation3 + $0x98] sm:$0xff]
  %v3148 = vld [vmem:[#allocation3 + $0xa0] sm:$0xff]
  %v3149 = vld [vmem:[#allocation3 + $0xa8] sm:$0xff]
  %v3150 = vld [vmem:[#allocation3 + $0xb0] sm:$0xff]
  %v3151 = vld [vmem:[#allocation3 + $0xb8] sm:$0xff]
  %v3152 = vld [vmem:[#allocation3 + $0xc0] sm:$0xff]
  %v3153 = vld [vmem:[#allocation3 + $0xc8] sm:$0xff]
  %v3154 = vld [vmem:[#allocation3 + $0xd0] sm:$0xff]
  %v3155 = vld [vmem:[#allocation3 + $0xd8] sm:$0xff]
  %v3156 = vld [vmem:[#allocation3 + $0xe0] sm:$0xff]
  %v3157 = vld [vmem:[#allocation3 + $0xe8] sm:$0xff]
  %v3158 = vld [vmem:[#allocation3 + $0xf0] sm:$0xff]
  %v3159 = vld [vmem:[#allocation3 + $0xf8] sm:$0xff]
  %v3160 = vld [vmem:[#allocation3 + $0x100] sm:$0xff]
  %v3161 = vld [vmem:[#allocation3 + $0x108] sm:$0xff]
  %v3162 = vld [vmem:[#allocation3 + $0x110] sm:$0xff]
  %v3163 = vld [vmem:[#allocation3 + $0x118] sm:$0xff]
  %v3164 = vld [vmem:[#allocation3 + $0x120] sm:$0xff]
  %v3165 = vld [vmem:[#allocation3 + $0x128] sm:$0xff]
  %v3166 = vld [vmem:[#allocation3 + $0x130] sm:$0xff]
  %v3167 = vld [vmem:[#allocation3 + $0x138] sm:$0xff]
  %v3168 = vld [vmem:[#allocation3 + $0x140] sm:$0xff]
  %v3169 = vld [vmem:[#allocation3 + $0x148] sm:$0xff]
  %v3170 = vld [vmem:[#allocation3 + $0x150] sm:$0xff]
  %v3171 = vld [vmem:[#allocation3 + $0x158] sm:$0xff]
  %v3172 = vld [vmem:[#allocation3 + $0x160] sm:$0xff]
  %v3173 = vld [vmem:[#allocation3 + $0x168] sm:$0xff]
  %v3174 = vld [vmem:[#allocation3 + $0x170] sm:$0xff]
  %v3175 = vld [vmem:[#allocation3 + $0x178] sm:$0xff]
  %v3176 = vld [vmem:[#allocation3 + $0x180] sm:$0xff]
  %v3177 = vld [vmem:[#allocation3 + $0x188] sm:$0xff]
  %v3178 = vld [vmem:[#allocation3 + $0x190] sm:$0xff]
  %v3179 = vld [vmem:[#allocation3 + $0x198] sm:$0xff]
  %v3180 = vld [vmem:[#allocation3 + $0x1a0] sm:$0xff]
  %v3181 = vld [vmem:[#allocation3 + $0x1a8] sm:$0xff]
  %v3182 = vld [vmem:[#allocation3 + $0x1b0] sm:$0xff]
  %v3183 = vld [vmem:[#allocation3 + $0x1b8] sm:$0xff]
  %v3184 = vld [vmem:[#allocation3 + $0x1c0] sm:$0xff]
  %v3185 = vld [vmem:[#allocation3 + $0x1c8] sm:$0xff]
  %v3186 = vld [vmem:[#allocation3 + $0x1d0] sm:$0xff]
  %v3187 = vld [vmem:[#allocation3 + $0x1d8] sm:$0xff]
  %v3188 = vld [vmem:[#allocation3 + $0x1e0] sm:$0xff]
  %v3189 = vld [vmem:[#allocation3 + $0x1e8] sm:$0xff]
  %v3190 = vld [vmem:[#allocation3 + $0x1f0] sm:$0xff]
  %v3191 = vld [vmem:[#allocation3 + $0x1f8] sm:$0xff]
  %v3192 = vld [vmem:[#allocation3 + $0x200] sm:$0xff]
  %v3193 = vld [vmem:[#allocation3 + $0x208] sm:$0xff]
  %v3194 = vld [vmem:[#allocation3 + $0x210] sm:$0xff]
  %v3195 = vld [vmem:[#allocation3 + $0x218] sm:$0xff]
  %v3196 = vld [vmem:[#allocation3 + $0x220] sm:$0xff]
  %v3197 = vld [vmem:[#allocation3 + $0x228] sm:$0xff]
  %v3198 = vld [vmem:[#allocation3 + $0x230] sm:$0xff]
  %v3199 = vld [vmem:[#allocation3 + $0x238] sm:$0xff]
  %v3200 = vld [vmem:[#allocation3 + $0x240] sm:$0xff]
  %v3201 = vld [vmem:[#allocation3 + $0x248] sm:$0xff]
  %v3202 = vld [vmem:[#allocation3 + $0x250] sm:$0xff]
  %v3203 = vld [vmem:[#allocation3 + $0x258] sm:$0xff]
  %v3204 = vld [vmem:[#allocation3 + $0x260] sm:$0xff]
  %v3205 = vld [vmem:[#allocation3 + $0x268] sm:$0xff]
  %v3206 = vld [vmem:[#allocation3 + $0x270] sm:$0xff]
  %v3207 = vld [vmem:[#allocation3 + $0x278] sm:$0xff]
  %v3208 = vld [vmem:[#allocation3 + $0x280] sm:$0xff]
  %v3209 = vld [vmem:[#allocation3 + $0x288] sm:$0xff]
  %v3210 = vld [vmem:[#allocation3 + $0x290] sm:$0xff]
  %v3211 = vld [vmem:[#allocation3 + $0x298] sm:$0xff]
  %v3212 = vld [vmem:[#allocation3 + $0x2a0] sm:$0xff]
  %v3213 = vld [vmem:[#allocation3 + $0x2a8] sm:$0xff]
  %v3214 = vld [vmem:[#allocation3 + $0x2b0] sm:$0xff]
  %v3215 = vld [vmem:[#allocation3 + $0x2b8] sm:$0xff]
  %v3216 = vld [vmem:[#allocation3 + $0x2c0] sm:$0xff]
  %v3217 = vld [vmem:[#allocation3 + $0x2c8] sm:$0xff]
  %v3218 = vld [vmem:[#allocation3 + $0x2d0] sm:$0xff]
  %v3219 = vld [vmem:[#allocation3 + $0x2d8] sm:$0xff]
  %v3220 = vld [vmem:[#allocation3 + $0x2e0] sm:$0xff]
  %v3221 = vld [vmem:[#allocation3 + $0x2e8] sm:$0xff]
  %v3222 = vld [vmem:[#allocation3 + $0x2f0] sm:$0xff]
  %v3223 = vld [vmem:[#allocation3 + $0x2f8] sm:$0xff]
  %v3224 = vld [vmem:[#allocation3 + $0x300] sm:$0xff]
  %v3225 = vld [vmem:[#allocation3 + $0x308] sm:$0xff]
  %v3226 = vld [vmem:[#allocation3 + $0x310] sm:$0xff]
  %v3227 = vld [vmem:[#allocation3 + $0x318] sm:$0xff]
  %v3228 = vld [vmem:[#allocation3 + $0x320] sm:$0xff]
  %v3229 = vld [vmem:[#allocation3 + $0x328] sm:$0xff]
  %v3230 = vld [vmem:[#allocation3 + $0x330] sm:$0xff]
  %v3231 = vld [vmem:[#allocation3 + $0x338] sm:$0xff]
  %v3232 = vld [vmem:[#allocation3 + $0x340] sm:$0xff]
  %v3233 = vld [vmem:[#allocation3 + $0x348] sm:$0xff]
  %v3234 = vld [vmem:[#allocation3 + $0x350] sm:$0xff]
  %v3235 = vld [vmem:[#allocation3 + $0x358] sm:$0xff]
  %v3236 = vld [vmem:[#allocation3 + $0x360] sm:$0xff]
  %v3237 = vld [vmem:[#allocation3 + $0x368] sm:$0xff]
  %v3238 = vld [vmem:[#allocation3 + $0x370] sm:$0xff]
  %v3239 = vld [vmem:[#allocation3 + $0x378] sm:$0xff]
  %v3240 = vld [vmem:[#allocation3 + $0x380] sm:$0xff]
  %v3241 = vld [vmem:[#allocation3 + $0x388] sm:$0xff]
  %v3242 = vld [vmem:[#allocation3 + $0x390] sm:$0xff]
  %v3243 = vld [vmem:[#allocation3 + $0x398] sm:$0xff]
  %v3244 = vld [vmem:[#allocation3 + $0x3a0] sm:$0xff]
  %v3245 = vld [vmem:[#allocation3 + $0x3a8] sm:$0xff]
  %v3246 = vld [vmem:[#allocation3 + $0x3b0] sm:$0xff]
  %v3247 = vld [vmem:[#allocation3 + $0x3b8] sm:$0xff]
  %v3248 = vld [vmem:[#allocation3 + $0x3c0] sm:$0xff]
  %v3249 = vld [vmem:[#allocation3 + $0x3c8] sm:$0xff]
  %v3250 = vld [vmem:[#allocation3 + $0x3d0] sm:$0xff]
  %v3251 = vld [vmem:[#allocation3 + $0x3d8] sm:$0xff]
  %v3252 = vld [vmem:[#allocation3 + $0x3e0] sm:$0xff]
  %v3253 = vld [vmem:[#allocation3 + $0x3e8] sm:$0xff]
  %v3254 = vld [vmem:[#allocation3 + $0x3f0] sm:$0xff]
  %v3255 = vld [vmem:[#allocation3 + $0x3f8] sm:$0xff]
  %v3256 = vmul.f32 %v2745, %v3128
  %v3257 = vmul.f32 %v2748, %v3129
  %v3258 = vmul.f32 %v2751, %v3130
  %v3259 = vmul.f32 %v2754, %v3131
  %v3260 = vmul.f32 %v2757, %v3132
  %v3261 = vmul.f32 %v2760, %v3133
  %v3262 = vmul.f32 %v2763, %v3134
  %v3263 = vmul.f32 %v2766, %v3135
  %v3264 = vmul.f32 %v2769, %v3136
  %v3265 = vmul.f32 %v2772, %v3137
  %v3266 = vmul.f32 %v2775, %v3138
  %v3267 = vmul.f32 %v2778, %v3139
  %v3268 = vmul.f32 %v2781, %v3140
  %v3269 = vmul.f32 %v2784, %v3141
  %v3270 = vmul.f32 %v2787, %v3142
  %v3271 = vmul.f32 %v2790, %v3143
  %v3272 = vmul.f32 %v2793, %v3144
  %v3273 = vmul.f32 %v2796, %v3145
  %v3274 = vmul.f32 %v2799, %v3146
  %v3275 = vmul.f32 %v2802, %v3147
  %v3276 = vmul.f32 %v2805, %v3148
  %v3277 = vmul.f32 %v2808, %v3149
  %v3278 = vmul.f32 %v2811, %v3150
  %v3279 = vmul.f32 %v2814, %v3151
  %v3280 = vmul.f32 %v2817, %v3152
  %v3281 = vmul.f32 %v2820, %v3153
  %v3282 = vmul.f32 %v2823, %v3154
  %v3283 = vmul.f32 %v2826, %v3155
  %v3284 = vmul.f32 %v2829, %v3156
  %v3285 = vmul.f32 %v2832, %v3157
  %v3286 = vmul.f32 %v2835, %v3158
  %v3287 = vmul.f32 %v2838, %v3159
  %v3288 = vmul.f32 %v2841, %v3160
  %v3289 = vmul.f32 %v2844, %v3161
  %v3290 = vmul.f32 %v2847, %v3162
  %v3291 = vmul.f32 %v2850, %v3163
  %v3292 = vmul.f32 %v2853, %v3164
  %v3293 = vmul.f32 %v2856, %v3165
  %v3294 = vmul.f32 %v2859, %v3166
  %v3295 = vmul.f32 %v2862, %v3167
  %v3296 = vmul.f32 %v2865, %v3168
  %v3297 = vmul.f32 %v2868, %v3169
  %v3298 = vmul.f32 %v2871, %v3170
  %v3299 = vmul.f32 %v2874, %v3171
  %v3300 = vmul.f32 %v2877, %v3172
  %v3301 = vmul.f32 %v2880, %v3173
  %v3302 = vmul.f32 %v2883, %v3174
  %v3303 = vmul.f32 %v2886, %v3175
  %v3304 = vmul.f32 %v2889, %v3176
  %v3305 = vmul.f32 %v2892, %v3177
  %v3306 = vmul.f32 %v2895, %v3178
  %v3307 = vmul.f32 %v2898, %v3179
  %v3308 = vmul.f32 %v2901, %v3180
  %v3309 = vmul.f32 %v2904, %v3181
  %v3310 = vmul.f32 %v2907, %v3182
  %v3311 = vmul.f32 %v2910, %v3183
  %v3312 = vmul.f32 %v2913, %v3184
  %v3313 = vmul.f32 %v2916, %v3185
  %v3314 = vmul.f32 %v2919, %v3186
  %v3315 = vmul.f32 %v2922, %v3187
  %v3316 = vmul.f32 %v2925, %v3188
  %v3317 = vmul.f32 %v2928, %v3189
  %v3318 = vmul.f32 %v2931, %v3190
  %v3319 = vmul.f32 %v2934, %v3191
  %v3320 = vmul.f32 %v2937, %v3192
  %v3321 = vmul.f32 %v2940, %v3193
  %v3322 = vmul.f32 %v2943, %v3194
  %v3323 = vmul.f32 %v2946, %v3195
  %v3324 = vmul.f32 %v2949, %v3196
  %v3325 = vmul.f32 %v2952, %v3197
  %v3326 = vmul.f32 %v2955, %v3198
  %v3327 = vmul.f32 %v2958, %v3199
  %v3328 = vmul.f32 %v2961, %v3200
  %v3329 = vmul.f32 %v2964, %v3201
  %v3330 = vmul.f32 %v2967, %v3202
  %v3331 = vmul.f32 %v2970, %v3203
  %v3332 = vmul.f32 %v2973, %v3204
  %v3333 = vmul.f32 %v2976, %v3205
  %v3334 = vmul.f32 %v2979, %v3206
  %v3335 = vmul.f32 %v2982, %v3207
  %v3336 = vmul.f32 %v2985, %v3208
  %v3337 = vmul.f32 %v2988, %v3209
  %v3338 = vmul.f32 %v2991, %v3210
  %v3339 = vmul.f32 %v2994, %v3211
  %v3340 = vmul.f32 %v2997, %v3212
  %v3341 = vmul.f32 %v3000, %v3213
  %v3342 = vmul.f32 %v3003, %v3214
  %v3343 = vmul.f32 %v3006, %v3215
  %v3344 = vmul.f32 %v3009, %v3216
  %v3345 = vmul.f32 %v3012, %v3217
  %v3346 = vmul.f32 %v3015, %v3218
  %v3347 = vmul.f32 %v3018, %v3219
  %v3348 = vmul.f32 %v3021, %v3220
  %v3349 = vmul.f32 %v3024, %v3221
  %v3350 = vmul.f32 %v3027, %v3222
  %v3351 = vmul.f32 %v3030, %v3223
  %v3352 = vmul.f32 %v3033, %v3224
  %v3353 = vmul.f32 %v3036, %v3225
  %v3354 = vmul.f32 %v3039, %v3226
  %v3355 = vmul.f32 %v3042, %v3227
  %v3356 = vmul.f32 %v3045, %v3228
  %v3357 = vmul.f32 %v3048, %v3229
  %v3358 = vmul.f32 %v3051, %v3230
  %v3359 = vmul.f32 %v3054, %v3231
  %v3360 = vmul.f32 %v3057, %v3232
  %v3361 = vmul.f32 %v3060, %v3233
  %v3362 = vmul.f32 %v3063, %v3234
  %v3363 = vmul.f32 %v3066, %v3235
  %v3364 = vmul.f32 %v3069, %v3236
  %v3365 = vmul.f32 %v3072, %v3237
  %v3366 = vmul.f32 %v3075, %v3238
  %v3367 = vmul.f32 %v3078, %v3239
  %v3368 = vmul.f32 %v3081, %v3240
  %v3369 = vmul.f32 %v3084, %v3241
  %v3370 = vmul.f32 %v3087, %v3242
  %v3371 = vmul.f32 %v3090, %v3243
  %v3372 = vmul.f32 %v3093, %v3244
  %v3373 = vmul.f32 %v3096, %v3245
  %v3374 = vmul.f32 %v3099, %v3246
  %v3375 = vmul.f32 %v3102, %v3247
  %v3376 = vmul.f32 %v3105, %v3248
  %v3377 = vmul.f32 %v3108, %v3249
  %v3378 = vmul.f32 %v3111, %v3250
  %v3379 = vmul.f32 %v3114, %v3251
  %v3380 = vmul.f32 %v3117, %v3252
  %v3381 = vmul.f32 %v3120, %v3253
  %v3382 = vmul.f32 %v3123, %v3254
  %v3383 = vmul.f32 %v3126, %v3255
  %v3384 = vadd.f32 %v3256, %v3257
  %v3385 = vrot.slane %v3384, 4
  %v3386 = vadd.f32 %v3384, %v3385
  %v3387 = vrot.slane %v3386, 2
  %v3388 = vadd.f32 %v3386, %v3387
  %v3389 = vrot.slane %v3388, 1
  %v3390 = vadd.f32 %v3388, %v3389
  %v3391 = vadd.f32 %v3258, %v3259
  %v3392 = vrot.slane %v3391, 4
  %v3393 = vadd.f32 %v3391, %v3392
  %v3394 = vrot.slane %v3393, 2
  %v3395 = vadd.f32 %v3393, %v3394
  %v3396 = vrot.slane %v3395, 1
  %v3397 = vadd.f32 %v3395, %v3396
  %v3398 = vadd.f32 %v3260, %v3261
  %v3399 = vrot.slane %v3398, 4
  %v3400 = vadd.f32 %v3398, %v3399
  %v3401 = vrot.slane %v3400, 2
  %v3402 = vadd.f32 %v3400, %v3401
  %v3403 = vrot.slane %v3402, 1
  %v3404 = vadd.f32 %v3402, %v3403
  %v3405 = vadd.f32 %v3262, %v3263
  %v3406 = vrot.slane %v3405, 4
  %v3407 = vadd.f32 %v3405, %v3406
  %v3408 = vrot.slane %v3407, 2
  %v3409 = vadd.f32 %v3407, %v3408
  %v3410 = vrot.slane %v3409, 1
  %v3411 = vadd.f32 %v3409, %v3410
  %v3412 = vadd.f32 %v3264, %v3265
  %v3413 = vrot.slane %v3412, 4
  %v3414 = vadd.f32 %v3412, %v3413
  %v3415 = vrot.slane %v3414, 2
  %v3416 = vadd.f32 %v3414, %v3415
  %v3417 = vrot.slane %v3416, 1
  %v3418 = vadd.f32 %v3416, %v3417
  %v3419 = vadd.f32 %v3266, %v3267
  %v3420 = vrot.slane %v3419, 4
  %v3421 = vadd.f32 %v3419, %v3420
  %v3422 = vrot.slane %v3421, 2
  %v3423 = vadd.f32 %v3421, %v3422
  %v3424 = vrot.slane %v3423, 1
  %v3425 = vadd.f32 %v3423, %v3424
  %v3426 = vadd.f32 %v3268, %v3269
  %v3427 = vrot.slane %v3426, 4
  %v3428 = vadd.f32 %v3426, %v3427
  %v3429 = vrot.slane %v3428, 2
  %v3430 = vadd.f32 %v3428, %v3429
  %v3431 = vrot.slane %v3430, 1
  %v3432 = vadd.f32 %v3430, %v3431
  %v3433 = vadd.f32 %v3270, %v3271
  %v3434 = vrot.slane %v3433, 4
  %v3435 = vadd.f32 %v3433, %v3434
  %v3436 = vrot.slane %v3435, 2
  %v3437 = vadd.f32 %v3435, %v3436
  %v3438 = vrot.slane %v3437, 1
  %v3439 = vadd.f32 %v3437, %v3438
  %v3440 = vadd.f32 %v3272, %v3273
  %v3441 = vrot.slane %v3440, 4
  %v3442 = vadd.f32 %v3440, %v3441
  %v3443 = vrot.slane %v3442, 2
  %v3444 = vadd.f32 %v3442, %v3443
  %v3445 = vrot.slane %v3444, 1
  %v3446 = vadd.f32 %v3444, %v3445
  %v3447 = vadd.f32 %v3274, %v3275
  %v3448 = vrot.slane %v3447, 4
  %v3449 = vadd.f32 %v3447, %v3448
  %v3450 = vrot.slane %v3449, 2
  %v3451 = vadd.f32 %v3449, %v3450
  %v3452 = vrot.slane %v3451, 1
  %v3453 = vadd.f32 %v3451, %v3452
  %v3454 = vadd.f32 %v3276, %v3277
  %v3455 = vrot.slane %v3454, 4
  %v3456 = vadd.f32 %v3454, %v3455
  %v3457 = vrot.slane %v3456, 2
  %v3458 = vadd.f32 %v3456, %v3457
  %v3459 = vrot.slane %v3458, 1
  %v3460 = vadd.f32 %v3458, %v3459
  %v3461 = vadd.f32 %v3278, %v3279
  %v3462 = vrot.slane %v3461, 4
  %v3463 = vadd.f32 %v3461, %v3462
  %v3464 = vrot.slane %v3463, 2
  %v3465 = vadd.f32 %v3463, %v3464
  %v3466 = vrot.slane %v3465, 1
  %v3467 = vadd.f32 %v3465, %v3466
  %v3468 = vadd.f32 %v3280, %v3281
  %v3469 = vrot.slane %v3468, 4
  %v3470 = vadd.f32 %v3468, %v3469
  %v3471 = vrot.slane %v3470, 2
  %v3472 = vadd.f32 %v3470, %v3471
  %v3473 = vrot.slane %v3472, 1
  %v3474 = vadd.f32 %v3472, %v3473
  %v3475 = vadd.f32 %v3282, %v3283
  %v3476 = vrot.slane %v3475, 4
  %v3477 = vadd.f32 %v3475, %v3476
  %v3478 = vrot.slane %v3477, 2
  %v3479 = vadd.f32 %v3477, %v3478
  %v3480 = vrot.slane %v3479, 1
  %v3481 = vadd.f32 %v3479, %v3480
  %v3482 = vadd.f32 %v3284, %v3285
  %v3483 = vrot.slane %v3482, 4
  %v3484 = vadd.f32 %v3482, %v3483
  %v3485 = vrot.slane %v3484, 2
  %v3486 = vadd.f32 %v3484, %v3485
  %v3487 = vrot.slane %v3486, 1
  %v3488 = vadd.f32 %v3486, %v3487
  %v3489 = vadd.f32 %v3286, %v3287
  %v3490 = vrot.slane %v3489, 4
  %v3491 = vadd.f32 %v3489, %v3490
  %v3492 = vrot.slane %v3491, 2
  %v3493 = vadd.f32 %v3491, %v3492
  %v3494 = vrot.slane %v3493, 1
  %v3495 = vadd.f32 %v3493, %v3494
  %v3496 = vadd.f32 %v3288, %v3289
  %v3497 = vrot.slane %v3496, 4
  %v3498 = vadd.f32 %v3496, %v3497
  %v3499 = vrot.slane %v3498, 2
  %v3500 = vadd.f32 %v3498, %v3499
  %v3501 = vrot.slane %v3500, 1
  %v3502 = vadd.f32 %v3500, %v3501
  %v3503 = vadd.f32 %v3290, %v3291
  %v3504 = vrot.slane %v3503, 4
  %v3505 = vadd.f32 %v3503, %v3504
  %v3506 = vrot.slane %v3505, 2
  %v3507 = vadd.f32 %v3505, %v3506
  %v3508 = vrot.slane %v3507, 1
  %v3509 = vadd.f32 %v3507, %v3508
  %v3510 = vadd.f32 %v3292, %v3293
  %v3511 = vrot.slane %v3510, 4
  %v3512 = vadd.f32 %v3510, %v3511
  %v3513 = vrot.slane %v3512, 2
  %v3514 = vadd.f32 %v3512, %v3513
  %v3515 = vrot.slane %v3514, 1
  %v3516 = vadd.f32 %v3514, %v3515
  %v3517 = vadd.f32 %v3294, %v3295
  %v3518 = vrot.slane %v3517, 4
  %v3519 = vadd.f32 %v3517, %v3518
  %v3520 = vrot.slane %v3519, 2
  %v3521 = vadd.f32 %v3519, %v3520
  %v3522 = vrot.slane %v3521, 1
  %v3523 = vadd.f32 %v3521, %v3522
  %v3524 = vadd.f32 %v3296, %v3297
  %v3525 = vrot.slane %v3524, 4
  %v3526 = vadd.f32 %v3524, %v3525
  %v3527 = vrot.slane %v3526, 2
  %v3528 = vadd.f32 %v3526, %v3527
  %v3529 = vrot.slane %v3528, 1
  %v3530 = vadd.f32 %v3528, %v3529
  %v3531 = vadd.f32 %v3298, %v3299
  %v3532 = vrot.slane %v3531, 4
  %v3533 = vadd.f32 %v3531, %v3532
  %v3534 = vrot.slane %v3533, 2
  %v3535 = vadd.f32 %v3533, %v3534
  %v3536 = vrot.slane %v3535, 1
  %v3537 = vadd.f32 %v3535, %v3536
  %v3538 = vadd.f32 %v3300, %v3301
  %v3539 = vrot.slane %v3538, 4
  %v3540 = vadd.f32 %v3538, %v3539
  %v3541 = vrot.slane %v3540, 2
  %v3542 = vadd.f32 %v3540, %v3541
  %v3543 = vrot.slane %v3542, 1
  %v3544 = vadd.f32 %v3542, %v3543
  %v3545 = vadd.f32 %v3302, %v3303
  %v3546 = vrot.slane %v3545, 4
  %v3547 = vadd.f32 %v3545, %v3546
  %v3548 = vrot.slane %v3547, 2
  %v3549 = vadd.f32 %v3547, %v3548
  %v3550 = vrot.slane %v3549, 1
  %v3551 = vadd.f32 %v3549, %v3550
  %v3552 = vadd.f32 %v3304, %v3305
  %v3553 = vrot.slane %v3552, 4
  %v3554 = vadd.f32 %v3552, %v3553
  %v3555 = vrot.slane %v3554, 2
  %v3556 = vadd.f32 %v3554, %v3555
  %v3557 = vrot.slane %v3556, 1
  %v3558 = vadd.f32 %v3556, %v3557
  %v3559 = vadd.f32 %v3306, %v3307
  %v3560 = vrot.slane %v3559, 4
  %v3561 = vadd.f32 %v3559, %v3560
  %v3562 = vrot.slane %v3561, 2
  %v3563 = vadd.f32 %v3561, %v3562
  %v3564 = vrot.slane %v3563, 1
  %v3565 = vadd.f32 %v3563, %v3564
  %v3566 = vadd.f32 %v3308, %v3309
  %v3567 = vrot.slane %v3566, 4
  %v3568 = vadd.f32 %v3566, %v3567
  %v3569 = vrot.slane %v3568, 2
  %v3570 = vadd.f32 %v3568, %v3569
  %v3571 = vrot.slane %v3570, 1
  %v3572 = vadd.f32 %v3570, %v3571
  %v3573 = vadd.f32 %v3310, %v3311
  %v3574 = vrot.slane %v3573, 4
  %v3575 = vadd.f32 %v3573, %v3574
  %v3576 = vrot.slane %v3575, 2
  %v3577 = vadd.f32 %v3575, %v3576
  %v3578 = vrot.slane %v3577, 1
  %v3579 = vadd.f32 %v3577, %v3578
  %v3580 = vadd.f32 %v3312, %v3313
  %v3581 = vrot.slane %v3580, 4
  %v3582 = vadd.f32 %v3580, %v3581
  %v3583 = vrot.slane %v3582, 2
  %v3584 = vadd.f32 %v3582, %v3583
  %v3585 = vrot.slane %v3584, 1
  %v3586 = vadd.f32 %v3584, %v3585
  %v3587 = vadd.f32 %v3314, %v3315
  %v3588 = vrot.slane %v3587, 4
  %v3589 = vadd.f32 %v3587, %v3588
  %v3590 = vrot.slane %v3589, 2
  %v3591 = vadd.f32 %v3589, %v3590
  %v3592 = vrot.slane %v3591, 1
  %v3593 = vadd.f32 %v3591, %v3592
  %v3594 = vadd.f32 %v3316, %v3317
  %v3595 = vrot.slane %v3594, 4
  %v3596 = vadd.f32 %v3594, %v3595
  %v3597 = vrot.slane %v3596, 2
  %v3598 = vadd.f32 %v3596, %v3597
  %v3599 = vrot.slane %v3598, 1
  %v3600 = vadd.f32 %v3598, %v3599
  %v3601 = vadd.f32 %v3318, %v3319
  %v3602 = vrot.slane %v3601, 4
  %v3603 = vadd.f32 %v3601, %v3602
  %v3604 = vrot.slane %v3603, 2
  %v3605 = vadd.f32 %v3603, %v3604
  %v3606 = vrot.slane %v3605, 1
  %v3607 = vadd.f32 %v3605, %v3606
  %v3608 = vadd.f32 %v3320, %v3321
  %v3609 = vrot.slane %v3608, 4
  %v3610 = vadd.f32 %v3608, %v3609
  %v3611 = vrot.slane %v3610, 2
  %v3612 = vadd.f32 %v3610, %v3611
  %v3613 = vrot.slane %v3612, 1
  %v3614 = vadd.f32 %v3612, %v3613
  %v3615 = vadd.f32 %v3322, %v3323
  %v3616 = vrot.slane %v3615, 4
  %v3617 = vadd.f32 %v3615, %v3616
  %v3618 = vrot.slane %v3617, 2
  %v3619 = vadd.f32 %v3617, %v3618
  %v3620 = vrot.slane %v3619, 1
  %v3621 = vadd.f32 %v3619, %v3620
  %v3622 = vadd.f32 %v3324, %v3325
  %v3623 = vrot.slane %v3622, 4
  %v3624 = vadd.f32 %v3622, %v3623
  %v3625 = vrot.slane %v3624, 2
  %v3626 = vadd.f32 %v3624, %v3625
  %v3627 = vrot.slane %v3626, 1
  %v3628 = vadd.f32 %v3626, %v3627
  %v3629 = vadd.f32 %v3326, %v3327
  %v3630 = vrot.slane %v3629, 4
  %v3631 = vadd.f32 %v3629, %v3630
  %v3632 = vrot.slane %v3631, 2
  %v3633 = vadd.f32 %v3631, %v3632
  %v3634 = vrot.slane %v3633, 1
  %v3635 = vadd.f32 %v3633, %v3634
  %v3636 = vadd.f32 %v3328, %v3329
  %v3637 = vrot.slane %v3636, 4
  %v3638 = vadd.f32 %v3636, %v3637
  %v3639 = vrot.slane %v3638, 2
  %v3640 = vadd.f32 %v3638, %v3639
  %v3641 = vrot.slane %v3640, 1
  %v3642 = vadd.f32 %v3640, %v3641
  %v3643 = vadd.f32 %v3330, %v3331
  %v3644 = vrot.slane %v3643, 4
  %v3645 = vadd.f32 %v3643, %v3644
  %v3646 = vrot.slane %v3645, 2
  %v3647 = vadd.f32 %v3645, %v3646
  %v3648 = vrot.slane %v3647, 1
  %v3649 = vadd.f32 %v3647, %v3648
  %v3650 = vadd.f32 %v3332, %v3333
  %v3651 = vrot.slane %v3650, 4
  %v3652 = vadd.f32 %v3650, %v3651
  %v3653 = vrot.slane %v3652, 2
  %v3654 = vadd.f32 %v3652, %v3653
  %v3655 = vrot.slane %v3654, 1
  %v3656 = vadd.f32 %v3654, %v3655
  %v3657 = vadd.f32 %v3334, %v3335
  %v3658 = vrot.slane %v3657, 4
  %v3659 = vadd.f32 %v3657, %v3658
  %v3660 = vrot.slane %v3659, 2
  %v3661 = vadd.f32 %v3659, %v3660
  %v3662 = vrot.slane %v3661, 1
  %v3663 = vadd.f32 %v3661, %v3662
  %v3664 = vadd.f32 %v3336, %v3337
  %v3665 = vrot.slane %v3664, 4
  %v3666 = vadd.f32 %v3664, %v3665
  %v3667 = vrot.slane %v3666, 2
  %v3668 = vadd.f32 %v3666, %v3667
  %v3669 = vrot.slane %v3668, 1
  %v3670 = vadd.f32 %v3668, %v3669
  %v3671 = vadd.f32 %v3338, %v3339
  %v3672 = vrot.slane %v3671, 4
  %v3673 = vadd.f32 %v3671, %v3672
  %v3674 = vrot.slane %v3673, 2
  %v3675 = vadd.f32 %v3673, %v3674
  %v3676 = vrot.slane %v3675, 1
  %v3677 = vadd.f32 %v3675, %v3676
  %v3678 = vadd.f32 %v3340, %v3341
  %v3679 = vrot.slane %v3678, 4
  %v3680 = vadd.f32 %v3678, %v3679
  %v3681 = vrot.slane %v3680, 2
  %v3682 = vadd.f32 %v3680, %v3681
  %v3683 = vrot.slane %v3682, 1
  %v3684 = vadd.f32 %v3682, %v3683
  %v3685 = vadd.f32 %v3342, %v3343
  %v3686 = vrot.slane %v3685, 4
  %v3687 = vadd.f32 %v3685, %v3686
  %v3688 = vrot.slane %v3687, 2
  %v3689 = vadd.f32 %v3687, %v3688
  %v3690 = vrot.slane %v3689, 1
  %v3691 = vadd.f32 %v3689, %v3690
  %v3692 = vadd.f32 %v3344, %v3345
  %v3693 = vrot.slane %v3692, 4
  %v3694 = vadd.f32 %v3692, %v3693
  %v3695 = vrot.slane %v3694, 2
  %v3696 = vadd.f32 %v3694, %v3695
  %v3697 = vrot.slane %v3696, 1
  %v3698 = vadd.f32 %v3696, %v3697
  %v3699 = vadd.f32 %v3346, %v3347
  %v3700 = vrot.slane %v3699, 4
  %v3701 = vadd.f32 %v3699, %v3700
  %v3702 = vrot.slane %v3701, 2
  %v3703 = vadd.f32 %v3701, %v3702
  %v3704 = vrot.slane %v3703, 1
  %v3705 = vadd.f32 %v3703, %v3704
  %v3706 = vadd.f32 %v3348, %v3349
  %v3707 = vrot.slane %v3706, 4
  %v3708 = vadd.f32 %v3706, %v3707
  %v3709 = vrot.slane %v3708, 2
  %v3710 = vadd.f32 %v3708, %v3709
  %v3711 = vrot.slane %v3710, 1
  %v3712 = vadd.f32 %v3710, %v3711
  %v3713 = vadd.f32 %v3350, %v3351
  %v3714 = vrot.slane %v3713, 4
  %v3715 = vadd.f32 %v3713, %v3714
  %v3716 = vrot.slane %v3715, 2
  %v3717 = vadd.f32 %v3715, %v3716
  %v3718 = vrot.slane %v3717, 1
  %v3719 = vadd.f32 %v3717, %v3718
  %v3720 = vadd.f32 %v3352, %v3353
  %v3721 = vrot.slane %v3720, 4
  %v3722 = vadd.f32 %v3720, %v3721
  %v3723 = vrot.slane %v3722, 2
  %v3724 = vadd.f32 %v3722, %v3723
  %v3725 = vrot.slane %v3724, 1
  %v3726 = vadd.f32 %v3724, %v3725
  %v3727 = vadd.f32 %v3354, %v3355
  %v3728 = vrot.slane %v3727, 4
  %v3729 = vadd.f32 %v3727, %v3728
  %v3730 = vrot.slane %v3729, 2
  %v3731 = vadd.f32 %v3729, %v3730
  %v3732 = vrot.slane %v3731, 1
  %v3733 = vadd.f32 %v3731, %v3732
  %v3734 = vadd.f32 %v3356, %v3357
  %v3735 = vrot.slane %v3734, 4
  %v3736 = vadd.f32 %v3734, %v3735
  %v3737 = vrot.slane %v3736, 2
  %v3738 = vadd.f32 %v3736, %v3737
  %v3739 = vrot.slane %v3738, 1
  %v3740 = vadd.f32 %v3738, %v3739
  %v3741 = vadd.f32 %v3358, %v3359
  %v3742 = vrot.slane %v3741, 4
  %v3743 = vadd.f32 %v3741, %v3742
  %v3744 = vrot.slane %v3743, 2
  %v3745 = vadd.f32 %v3743, %v3744
  %v3746 = vrot.slane %v3745, 1
  %v3747 = vadd.f32 %v3745, %v3746
  %v3748 = vadd.f32 %v3360, %v3361
  %v3749 = vrot.slane %v3748, 4
  %v3750 = vadd.f32 %v3748, %v3749
  %v3751 = vrot.slane %v3750, 2
  %v3752 = vadd.f32 %v3750, %v3751
  %v3753 = vrot.slane %v3752, 1
  %v3754 = vadd.f32 %v3752, %v3753
  %v3755 = vadd.f32 %v3362, %v3363
  %v3756 = vrot.slane %v3755, 4
  %v3757 = vadd.f32 %v3755, %v3756
  %v3758 = vrot.slane %v3757, 2
  %v3759 = vadd.f32 %v3757, %v3758
  %v3760 = vrot.slane %v3759, 1
  %v3761 = vadd.f32 %v3759, %v3760
  %v3762 = vadd.f32 %v3364, %v3365
  %v3763 = vrot.slane %v3762, 4
  %v3764 = vadd.f32 %v3762, %v3763
  %v3765 = vrot.slane %v3764, 2
  %v3766 = vadd.f32 %v3764, %v3765
  %v3767 = vrot.slane %v3766, 1
  %v3768 = vadd.f32 %v3766, %v3767
  %v3769 = vadd.f32 %v3366, %v3367
  %v3770 = vrot.slane %v3769, 4
  %v3771 = vadd.f32 %v3769, %v3770
  %v3772 = vrot.slane %v3771, 2
  %v3773 = vadd.f32 %v3771, %v3772
  %v3774 = vrot.slane %v3773, 1
  %v3775 = vadd.f32 %v3773, %v3774
  %v3776 = vadd.f32 %v3368, %v3369
  %v3777 = vrot.slane %v3776, 4
  %v3778 = vadd.f32 %v3776, %v3777
  %v3779 = vrot.slane %v3778, 2
  %v3780 = vadd.f32 %v3778, %v3779
  %v3781 = vrot.slane %v3780, 1
  %v3782 = vadd.f32 %v3780, %v3781
  %v3783 = vadd.f32 %v3370, %v3371
  %v3784 = vrot.slane %v3783, 4
  %v3785 = vadd.f32 %v3783, %v3784
  %v3786 = vrot.slane %v3785, 2
  %v3787 = vadd.f32 %v3785, %v3786
  %v3788 = vrot.slane %v3787, 1
  %v3789 = vadd.f32 %v3787, %v3788
  %v3790 = vadd.f32 %v3372, %v3373
  %v3791 = vrot.slane %v3790, 4
  %v3792 = vadd.f32 %v3790, %v3791
  %v3793 = vrot.slane %v3792, 2
  %v3794 = vadd.f32 %v3792, %v3793
  %v3795 = vrot.slane %v3794, 1
  %v3796 = vadd.f32 %v3794, %v3795
  %v3797 = vadd.f32 %v3374, %v3375
  %v3798 = vrot.slane %v3797, 4
  %v3799 = vadd.f32 %v3797, %v3798
  %v3800 = vrot.slane %v3799, 2
  %v3801 = vadd.f32 %v3799, %v3800
  %v3802 = vrot.slane %v3801, 1
  %v3803 = vadd.f32 %v3801, %v3802
  %v3804 = vadd.f32 %v3376, %v3377
  %v3805 = vrot.slane %v3804, 4
  %v3806 = vadd.f32 %v3804, %v3805
  %v3807 = vrot.slane %v3806, 2
  %v3808 = vadd.f32 %v3806, %v3807
  %v3809 = vrot.slane %v3808, 1
  %v3810 = vadd.f32 %v3808, %v3809
  %v3811 = vadd.f32 %v3378, %v3379
  %v3812 = vrot.slane %v3811, 4
  %v3813 = vadd.f32 %v3811, %v3812
  %v3814 = vrot.slane %v3813, 2
  %v3815 = vadd.f32 %v3813, %v3814
  %v3816 = vrot.slane %v3815, 1
  %v3817 = vadd.f32 %v3815, %v3816
  %v3818 = vadd.f32 %v3380, %v3381
  %v3819 = vrot.slane %v3818, 4
  %v3820 = vadd.f32 %v3818, %v3819
  %v3821 = vrot.slane %v3820, 2
  %v3822 = vadd.f32 %v3820, %v3821
  %v3823 = vrot.slane %v3822, 1
  %v3824 = vadd.f32 %v3822, %v3823
  %v3825 = vadd.f32 %v3382, %v3383
  %v3826 = vrot.slane %v3825, 4
  %v3827 = vadd.f32 %v3825, %v3826
  %v3828 = vrot.slane %v3827, 2
  %v3829 = vadd.f32 %v3827, %v3828
  %v3830 = vrot.slane %v3829, 1
  %v3831 = vadd.f32 %v3829, %v3830
  %v3832 = vld [vmem:[%s5] sm:$0x1]
  %v3834 = vperm.slane %v3832, 0
  %v3836 = vmul.f32 %v29, %v3834
  %v3837 = vmul.f32 %v30, %v3834
  %v3838 = vmul.f32 %v31, %v3834
  %v3839 = vmul.f32 %v32, %v3834
  %v3840 = vmul.f32 %v33, %v3834
  %v3841 = vmul.f32 %v34, %v3834
  %v3842 = vmul.f32 %v35, %v3834
  %v3843 = vmul.f32 %v36, %v3834
  %v3852 = vrot.slane %v3836, 1
  %v3853 = vrot.slane %v3836, 2
  %v3854 = vrot.slane %v3836, 3
  %v3855 = vrot.slane %v3836, 4
  %v3856 = vrot.slane %v3836, 5
  %v3857 = vrot.slane %v3836, 6
  %v3858 = vrot.slane %v3836, 7
  %v3859 = vrot.slane %v3837, 1
  %v3860 = vrot.slane %v3837, 2
  %v3861 = vrot.slane %v3837, 3
  %v3862 = vrot.slane %v3837, 4
  %v3863 = vrot.slane %v3837, 5
  %v3864 = vrot.slane %v3837, 6
  %v3865 = vrot.slane %v3837, 7
  %v3866 = vrot.slane %v3838, 1
  %v3867 = vrot.slane %v3838, 2
  %v3868 = vrot.slane %v3838, 3
  %v3869 = vrot.slane %v3838, 4
  %v3870 = vrot.slane %v3838, 5
  %v3871 = vrot.slane %v3838, 6
  %v3872 = vrot.slane %v3838, 7
  %v3873 = vrot.slane %v3839, 1
  %v3874 = vrot.slane %v3839, 2
  %v3875 = vrot.slane %v3839, 3
  %v3876 = vrot.slane %v3839, 4
  %v3877 = vrot.slane %v3839, 5
  %v3878 = vrot.slane %v3839, 6
  %v3879 = vrot.slane %v3839, 7
  %v3880 = vrot.slane %v3840, 1
  %v3881 = vrot.slane %v3840, 2
  %v3882 = vrot.slane %v3840, 3
  %v3883 = vrot.slane %v3840, 4
  %v3884 = vrot.slane %v3840, 5
  %v3885 = vrot.slane %v3840, 6
  %v3886 = vrot.slane %v3840, 7
  %v3887 = vrot.slane %v3841, 1
  %v3888 = vrot.slane %v3841, 2
  %v3889 = vrot.slane %v3841, 3
  %v3890 = vrot.slane %v3841, 4
  %v3891 = vrot.slane %v3841, 5
  %v3892 = vrot.slane %v3841, 6
  %v3893 = vrot.slane %v3841, 7
  %v3894 = vrot.slane %v3842, 1
  %v3895 = vrot.slane %v3842, 2
  %v3896 = vrot.slane %v3842, 3
  %v3897 = vrot.slane %v3842, 4
  %v3898 = vrot.slane %v3842, 5
  %v3899 = vrot.slane %v3842, 6
  %v3900 = vrot.slane %v3842, 7
  %v3901 = vrot.slane %v3843, 1
  %v3902 = vrot.slane %v3843, 2
  %v3903 = vrot.slane %v3843, 3
  %v3904 = vrot.slane %v3843, 4
  %v3905 = vrot.slane %v3843, 5
  %v3906 = vrot.slane %v3843, 6
  %v3907 = vrot.slane %v3843, 7
  %v3972 = vadd.f32 %v3390, %v3836
  %v3973 = vadd.f32 %v3397, %v3852
  %v3974 = vadd.f32 %v3404, %v3853
  %v3975 = vadd.f32 %v3411, %v3854
  %v3976 = vadd.f32 %v3418, %v3855
  %v3977 = vadd.f32 %v3425, %v3856
  %v3978 = vadd.f32 %v3432, %v3857
  %v3979 = vadd.f32 %v3439, %v3858
  %v3980 = vadd.f32 %v3446, %v3837
  %v3981 = vadd.f32 %v3453, %v3859
  %v3982 = vadd.f32 %v3460, %v3860
  %v3983 = vadd.f32 %v3467, %v3861
  %v3984 = vadd.f32 %v3474, %v3862
  %v3985 = vadd.f32 %v3481, %v3863
  %v3986 = vadd.f32 %v3488, %v3864
  %v3987 = vadd.f32 %v3495, %v3865
  %v3988 = vadd.f32 %v3502, %v3838
  %v3989 = vadd.f32 %v3509, %v3866
  %v3990 = vadd.f32 %v3516, %v3867
  %v3991 = vadd.f32 %v3523, %v3868
  %v3992 = vadd.f32 %v3530, %v3869
  %v3993 = vadd.f32 %v3537, %v3870
  %v3994 = vadd.f32 %v3544, %v3871
  %v3995 = vadd.f32 %v3551, %v3872
  %v3996 = vadd.f32 %v3558, %v3839
  %v3997 = vadd.f32 %v3565, %v3873
  %v3998 = vadd.f32 %v3572, %v3874
  %v3999 = vadd.f32 %v3579, %v3875
  %v4000 = vadd.f32 %v3586, %v3876
  %v4001 = vadd.f32 %v3593, %v3877
  %v4002 = vadd.f32 %v3600, %v3878
  %v4003 = vadd.f32 %v3607, %v3879
  %v4004 = vadd.f32 %v3614, %v3840
  %v4005 = vadd.f32 %v3621, %v3880
  %v4006 = vadd.f32 %v3628, %v3881
  %v4007 = vadd.f32 %v3635, %v3882
  %v4008 = vadd.f32 %v3642, %v3883
  %v4009 = vadd.f32 %v3649, %v3884
  %v4010 = vadd.f32 %v3656, %v3885
  %v4011 = vadd.f32 %v3663, %v3886
  %v4012 = vadd.f32 %v3670, %v3841
  %v4013 = vadd.f32 %v3677, %v3887
  %v4014 = vadd.f32 %v3684, %v3888
  %v4015 = vadd.f32 %v3691, %v3889
  %v4016 = vadd.f32 %v3698, %v3890
  %v4017 = vadd.f32 %v3705, %v3891
  %v4018 = vadd.f32 %v3712, %v3892
  %v4019 = vadd.f32 %v3719, %v3893
  %v4020 = vadd.f32 %v3726, %v3842
  %v4021 = vadd.f32 %v3733, %v3894
  %v4022 = vadd.f32 %v3740, %v3895
  %v4023 = vadd.f32 %v3747, %v3896
  %v4024 = vadd.f32 %v3754, %v3897
  %v4025 = vadd.f32 %v3761, %v3898
  %v4026 = vadd.f32 %v3768, %v3899
  %v4027 = vadd.f32 %v3775, %v3900
  %v4028 = vadd.f32 %v3782, %v3843
  %v4029 = vadd.f32 %v3789, %v3901
  %v4030 = vadd.f32 %v3796, %v3902
  %v4031 = vadd.f32 %v3803, %v3903
  %v4032 = vadd.f32 %v3810, %v3904
  %v4033 = vadd.f32 %v3817, %v3905
  %v4034 = vadd.f32 %v3824, %v3906
  %v4035 = vadd.f32 %v3831, %v3907
  %v4036 = vld [vmem:[%s6] sm:$0xff]
  %v4037 = vld [vmem:[%s6 + $0x8] sm:$0xff]
  %v4038 = vld [vmem:[%s6 + $0x10] sm:$0xff]
  %v4039 = vld [vmem:[%s6 + $0x18] sm:$0xff]
  %v4040 = vld [vmem:[%s6 + $0x20] sm:$0xff]
  %v4041 = vld [vmem:[%s6 + $0x28] sm:$0xff]
  %v4042 = vld [vmem:[%s6 + $0x30] sm:$0xff]
  %v4043 = vld [vmem:[%s6 + $0x38] sm:$0xff]
  %v4044 = vsub.f32 0.0, %v4036
  %v4045 = vsub.f32 0.0, %v4037
  %v4046 = vsub.f32 0.0, %v4038
  %v4047 = vsub.f32 0.0, %v4039
  %v4048 = vsub.f32 0.0, %v4040
  %v4049 = vsub.f32 0.0, %v4041
  %v4050 = vsub.f32 0.0, %v4042
  %v4051 = vsub.f32 0.0, %v4043
  %v4052 = vmul.f32 %v4044, 1.442695
  %v4053 = vpow.pop %v4052
  %v4054 = vmul.f32 %v4045, 1.442695
  %v4055 = vpow.pop %v4054
  %v4056 = vmul.f32 %v4046, 1.442695
  %v4057 = vpow.pop %v4056
  %v4058 = vmul.f32 %v4047, 1.442695
  %v4059 = vpow.pop %v4058
  %v4060 = vmul.f32 %v4048, 1.442695
  %v4061 = vpow.pop %v4060
  %v4062 = vmul.f32 %v4049, 1.442695
  %v4063 = vpow.pop %v4062
  %v4064 = vmul.f32 %v4050, 1.442695
  %v4065 = vpow.pop %v4064
  %v4066 = vmul.f32 %v4051, 1.442695
  %v4067 = vpow.pop %v4066
  %v4068 = vadd.f32 %v4053, 1.0
  %v4069 = vadd.f32 %v4055, 1.0
  %v4070 = vadd.f32 %v4057, 1.0
  %v4071 = vadd.f32 %v4059, 1.0
  %v4072 = vadd.f32 %v4061, 1.0
  %v4073 = vadd.f32 %v4063, 1.0
  %v4074 = vadd.f32 %v4065, 1.0
  %v4075 = vadd.f32 %v4067, 1.0
  %v4076 = vrcp.pop %v4068
  %v4077 = vmul.f32 %v4068, %v4076
  %v4078 = vsub.f32 1.0, %v4077
  %v4079 = vmul.f32 %v4076, %v4078
  %v4080 = vadd.f32 %v4076, %v4079
  %vm4081 = vweird.f32 %v4068
  %vm4082 = vweird.f32 %v4076
  %vm4083 = vmor %vm4081, %vm4082
  %v4084 = vsel %vm4083, %v4076, %v4080
  %v4085 = vand.u32 2147483647, %v4068
  %vm4086 = vcmp.eq.f32.partialorder %v4085, 8.507059e+37
  %v4087 = vand.u32 %v4068, 2147483648
  %v4088 = vor.u32 1.1754944e-38, %v4087
  %v4089 = vsel %vm4086, %v4088, %v4084
  %v4090 = vmul.f32 1.0, %v4089
  %v4091 = vrcp.pop %v4069
  %v4092 = vmul.f32 %v4069, %v4091
  %v4093 = vsub.f32 1.0, %v4092
  %v4094 = vmul.f32 %v4091, %v4093
  %v4095 = vadd.f32 %v4091, %v4094
  %vm4096 = vweird.f32 %v4069
  %vm4097 = vweird.f32 %v4091
  %vm4098 = vmor %vm4096, %vm4097
  %v4099 = vsel %vm4098, %v4091, %v4095
  %v4100 = vand.u32 2147483647, %v4069
  %vm4101 = vcmp.eq.f32.partialorder %v4100, 8.507059e+37
  %v4102 = vand.u32 %v4069, 2147483648
  %v4103 = vor.u32 1.1754944e-38, %v4102
  %v4104 = vsel %vm4101, %v4103, %v4099
  %v4105 = vmul.f32 1.0, %v4104
  %v4106 = vrcp.pop %v4070
  %v4107 = vmul.f32 %v4070, %v4106
  %v4108 = vsub.f32 1.0, %v4107
  %v4109 = vmul.f32 %v4106, %v4108
  %v4110 = vadd.f32 %v4106, %v4109
  %vm4111 = vweird.f32 %v4070
  %vm4112 = vweird.f32 %v4106
  %vm4113 = vmor %vm4111, %vm4112
  %v4114 = vsel %vm4113, %v4106, %v4110
  %v4115 = vand.u32 2147483647, %v4070
  %vm4116 = vcmp.eq.f32.partialorder %v4115, 8.507059e+37
  %v4117 = vand.u32 %v4070, 2147483648
  %v4118 = vor.u32 1.1754944e-38, %v4117
  %v4119 = vsel %vm4116, %v4118, %v4114
  %v4120 = vmul.f32 1.0, %v4119
  %v4121 = vrcp.pop %v4071
  %v4122 = vmul.f32 %v4071, %v4121
  %v4123 = vsub.f32 1.0, %v4122
  %v4124 = vmul.f32 %v4121, %v4123
  %v4125 = vadd.f32 %v4121, %v4124
  %vm4126 = vweird.f32 %v4071
  %vm4127 = vweird.f32 %v4121
  %vm4128 = vmor %vm4126, %vm4127
  %v4129 = vsel %vm4128, %v4121, %v4125
  %v4130 = vand.u32 2147483647, %v4071
  %vm4131 = vcmp.eq.f32.partialorder %v4130, 8.507059e+37
  %v4132 = vand.u32 %v4071, 2147483648
  %v4133 = vor.u32 1.1754944e-38, %v4132
  %v4134 = vsel %vm4131, %v4133, %v4129
  %v4135 = vmul.f32 1.0, %v4134
  %v4136 = vrcp.pop %v4072
  %v4137 = vmul.f32 %v4072, %v4136
  %v4138 = vsub.f32 1.0, %v4137
  %v4139 = vmul.f32 %v4136, %v4138
  %v4140 = vadd.f32 %v4136, %v4139
  %vm4141 = vweird.f32 %v4072
  %vm4142 = vweird.f32 %v4136
  %vm4143 = vmor %vm4141, %vm4142
  %v4144 = vsel %vm4143, %v4136, %v4140
  %v4145 = vand.u32 2147483647, %v4072
  %vm4146 = vcmp.eq.f32.partialorder %v4145, 8.507059e+37
  %v4147 = vand.u32 %v4072, 2147483648
  %v4148 = vor.u32 1.1754944e-38, %v4147
  %v4149 = vsel %vm4146, %v4148, %v4144
  %v4150 = vmul.f32 1.0, %v4149
  %v4151 = vrcp.pop %v4073
  %v4152 = vmul.f32 %v4073, %v4151
  %v4153 = vsub.f32 1.0, %v4152
  %v4154 = vmul.f32 %v4151, %v4153
  %v4155 = vadd.f32 %v4151, %v4154
  %vm4156 = vweird.f32 %v4073
  %vm4157 = vweird.f32 %v4151
  %vm4158 = vmor %vm4156, %vm4157
  %v4159 = vsel %vm4158, %v4151, %v4155
  %v4160 = vand.u32 2147483647, %v4073
  %vm4161 = vcmp.eq.f32.partialorder %v4160, 8.507059e+37
  %v4162 = vand.u32 %v4073, 2147483648
  %v4163 = vor.u32 1.1754944e-38, %v4162
  %v4164 = vsel %vm4161, %v4163, %v4159
  %v4165 = vmul.f32 1.0, %v4164
  %v4166 = vrcp.pop %v4074
  %v4167 = vmul.f32 %v4074, %v4166
  %v4168 = vsub.f32 1.0, %v4167
  %v4169 = vmul.f32 %v4166, %v4168
  %v4170 = vadd.f32 %v4166, %v4169
  %vm4171 = vweird.f32 %v4074
  %vm4172 = vweird.f32 %v4166
  %vm4173 = vmor %vm4171, %vm4172
  %v4174 = vsel %vm4173, %v4166, %v4170
  %v4175 = vand.u32 2147483647, %v4074
  %vm4176 = vcmp.eq.f32.partialorder %v4175, 8.507059e+37
  %v4177 = vand.u32 %v4074, 2147483648
  %v4178 = vor.u32 1.1754944e-38, %v4177
  %v4179 = vsel %vm4176, %v4178, %v4174
  %v4180 = vmul.f32 1.0, %v4179
  %v4181 = vrcp.pop %v4075
  %v4182 = vmul.f32 %v4075, %v4181
  %v4183 = vsub.f32 1.0, %v4182
  %v4184 = vmul.f32 %v4181, %v4183
  %v4185 = vadd.f32 %v4181, %v4184
  %vm4186 = vweird.f32 %v4075
  %vm4187 = vweird.f32 %v4181
  %vm4188 = vmor %vm4186, %vm4187
  %v4189 = vsel %vm4188, %v4181, %v4185
  %v4190 = vand.u32 2147483647, %v4075
  %vm4191 = vcmp.eq.f32.partialorder %v4190, 8.507059e+37
  %v4192 = vand.u32 %v4075, 2147483648
  %v4193 = vor.u32 1.1754944e-38, %v4192
  %v4194 = vsel %vm4191, %v4193, %v4189
  %v4195 = vmul.f32 1.0, %v4194
  %v4196 = vmul.f32 %v4036, %v4090
  %v4197 = vmul.f32 %v4037, %v4105
  %v4198 = vmul.f32 %v4038, %v4120
  %v4199 = vmul.f32 %v4039, %v4135
  %v4200 = vmul.f32 %v4040, %v4150
  %v4201 = vmul.f32 %v4041, %v4165
  %v4202 = vmul.f32 %v4042, %v4180
  %v4203 = vmul.f32 %v4043, %v4195
  %v4212 = vrot.slane %v4196, 1
  %v4213 = vrot.slane %v4196, 2
  %v4214 = vrot.slane %v4196, 3
  %v4215 = vrot.slane %v4196, 4
  %v4216 = vrot.slane %v4196, 5
  %v4217 = vrot.slane %v4196, 6
  %v4218 = vrot.slane %v4196, 7
  %v4219 = vrot.slane %v4197, 1
  %v4220 = vrot.slane %v4197, 2
  %v4221 = vrot.slane %v4197, 3
  %v4222 = vrot.slane %v4197, 4
  %v4223 = vrot.slane %v4197, 5
  %v4224 = vrot.slane %v4197, 6
  %v4225 = vrot.slane %v4197, 7
  %v4226 = vrot.slane %v4198, 1
  %v4227 = vrot.slane %v4198, 2
  %v4228 = vrot.slane %v4198, 3
  %v4229 = vrot.slane %v4198, 4
  %v4230 = vrot.slane %v4198, 5
  %v4231 = vrot.slane %v4198, 6
  %v4232 = vrot.slane %v4198, 7
  %v4233 = vrot.slane %v4199, 1
  %v4234 = vrot.slane %v4199, 2
  %v4235 = vrot.slane %v4199, 3
  %v4236 = vrot.slane %v4199, 4
  %v4237 = vrot.slane %v4199, 5
  %v4238 = vrot.slane %v4199, 6
  %v4239 = vrot.slane %v4199, 7
  %v4240 = vrot.slane %v4200, 1
  %v4241 = vrot.slane %v4200, 2
  %v4242 = vrot.slane %v4200, 3
  %v4243 = vrot.slane %v4200, 4
  %v4244 = vrot.slane %v4200, 5
  %v4245 = vrot.slane %v4200, 6
  %v4246 = vrot.slane %v4200, 7
  %v4247 = vrot.slane %v4201, 1
  %v4248 = vrot.slane %v4201, 2
  %v4249 = vrot.slane %v4201, 3
  %v4250 = vrot.slane %v4201, 4
  %v4251 = vrot.slane %v4201, 5
  %v4252 = vrot.slane %v4201, 6
  %v4253 = vrot.slane %v4201, 7
  %v4254 = vrot.slane %v4202, 1
  %v4255 = vrot.slane %v4202, 2
  %v4256 = vrot.slane %v4202, 3
  %v4257 = vrot.slane %v4202, 4
  %v4258 = vrot.slane %v4202, 5
  %v4259 = vrot.slane %v4202, 6
  %v4260 = vrot.slane %v4202, 7
  %v4261 = vrot.slane %v4203, 1
  %v4262 = vrot.slane %v4203, 2
  %v4263 = vrot.slane %v4203, 3
  %v4264 = vrot.slane %v4203, 4
  %v4265 = vrot.slane %v4203, 5
  %v4266 = vrot.slane %v4203, 6
  %v4267 = vrot.slane %v4203, 7
  %v4332 = vmul.f32 %v3972, %v4196
  %v4333 = vmul.f32 %v3973, %v4212
  %v4334 = vmul.f32 %v3974, %v4213
  %v4335 = vmul.f32 %v3975, %v4214
  %v4336 = vmul.f32 %v3976, %v4215
  %v4337 = vmul.f32 %v3977, %v4216
  %v4338 = vmul.f32 %v3978, %v4217
  %v4339 = vmul.f32 %v3979, %v4218
  %v4340 = vmul.f32 %v3980, %v4197
  %v4341 = vmul.f32 %v3981, %v4219
  %v4342 = vmul.f32 %v3982, %v4220
  %v4343 = vmul.f32 %v3983, %v4221
  %v4344 = vmul.f32 %v3984, %v4222
  %v4345 = vmul.f32 %v3985, %v4223
  %v4346 = vmul.f32 %v3986, %v4224
  %v4347 = vmul.f32 %v3987, %v4225
  %v4348 = vmul.f32 %v3988, %v4198
  %v4349 = vmul.f32 %v3989, %v4226
  %v4350 = vmul.f32 %v3990, %v4227
  %v4351 = vmul.f32 %v3991, %v4228
  %v4352 = vmul.f32 %v3992, %v4229
  %v4353 = vmul.f32 %v3993, %v4230
  %v4354 = vmul.f32 %v3994, %v4231
  %v4355 = vmul.f32 %v3995, %v4232
  %v4356 = vmul.f32 %v3996, %v4199
  %v4357 = vmul.f32 %v3997, %v4233
  %v4358 = vmul.f32 %v3998, %v4234
  %v4359 = vmul.f32 %v3999, %v4235
  %v4360 = vmul.f32 %v4000, %v4236
  %v4361 = vmul.f32 %v4001, %v4237
  %v4362 = vmul.f32 %v4002, %v4238
  %v4363 = vmul.f32 %v4003, %v4239
  %v4364 = vmul.f32 %v4004, %v4200
  %v4365 = vmul.f32 %v4005, %v4240
  %v4366 = vmul.f32 %v4006, %v4241
  %v4367 = vmul.f32 %v4007, %v4242
  %v4368 = vmul.f32 %v4008, %v4243
  %v4369 = vmul.f32 %v4009, %v4244
  %v4370 = vmul.f32 %v4010, %v4245
  %v4371 = vmul.f32 %v4011, %v4246
  %v4372 = vmul.f32 %v4012, %v4201
  %v4373 = vmul.f32 %v4013, %v4247
  %v4374 = vmul.f32 %v4014, %v4248
  %v4375 = vmul.f32 %v4015, %v4249
  %v4376 = vmul.f32 %v4016, %v4250
  %v4377 = vmul.f32 %v4017, %v4251
  %v4378 = vmul.f32 %v4018, %v4252
  %v4379 = vmul.f32 %v4019, %v4253
  %v4380 = vmul.f32 %v4020, %v4202
  %v4381 = vmul.f32 %v4021, %v4254
  %v4382 = vmul.f32 %v4022, %v4255
  %v4383 = vmul.f32 %v4023, %v4256
  %v4384 = vmul.f32 %v4024, %v4257
  %v4385 = vmul.f32 %v4025, %v4258
  %v4386 = vmul.f32 %v4026, %v4259
  %v4387 = vmul.f32 %v4027, %v4260
  %v4388 = vmul.f32 %v4028, %v4203
  %v4389 = vmul.f32 %v4029, %v4261
  %v4390 = vmul.f32 %v4030, %v4262
  %v4391 = vmul.f32 %v4031, %v4263
  %v4392 = vmul.f32 %v4032, %v4264
  %v4393 = vmul.f32 %v4033, %v4265
  %v4394 = vmul.f32 %v4034, %v4266
  %v4395 = vmul.f32 %v4035, %v4267
  %v4460 = vrot.slane %v4333, 7
  %vm4461 = vcmask 1041409
  %v4462 = vsel %vm4461, %v4460, %v4332
  %v4463 = vrot.slane %v4334, 6
  %vm4464 = vcmask 1042434
  %v4465 = vsel %vm4464, %v4463, %v4462
  %v4466 = vrot.slane %v4335, 5
  %vm4467 = vcmask 1043459
  %v4468 = vsel %vm4467, %v4466, %v4465
  %v4469 = vrot.slane %v4336, 4
  %vm4470 = vcmask 1044484
  %v4471 = vsel %vm4470, %v4469, %v4468
  %v4472 = vrot.slane %v4337, 3
  %vm4473 = vcmask 1045509
  %v4474 = vsel %vm4473, %v4472, %v4471
  %v4475 = vrot.slane %v4338, 2
  %vm4476 = vcmask 1046534
  %v4477 = vsel %vm4476, %v4475, %v4474
  %v4478 = vrot.slane %v4339, 1
  %vm4479 = vcmask 1047559
  %v4480 = vsel %vm4479, %v4478, %v4477
  %v4481 = vrot.slane %v4341, 7
  %v4482 = vsel %vm4461, %v4481, %v4340
  %v4483 = vrot.slane %v4342, 6
  %v4484 = vsel %vm4464, %v4483, %v4482
  %v4485 = vrot.slane %v4343, 5
  %v4486 = vsel %vm4467, %v4485, %v4484
  %v4487 = vrot.slane %v4344, 4
  %v4488 = vsel %vm4470, %v4487, %v4486
  %v4489 = vrot.slane %v4345, 3
  %v4490 = vsel %vm4473, %v4489, %v4488
  %v4491 = vrot.slane %v4346, 2
  %v4492 = vsel %vm4476, %v4491, %v4490
  %v4493 = vrot.slane %v4347, 1
  %v4494 = vsel %vm4479, %v4493, %v4492
  %v4495 = vrot.slane %v4349, 7
  %v4496 = vsel %vm4461, %v4495, %v4348
  %v4497 = vrot.slane %v4350, 6
  %v4498 = vsel %vm4464, %v4497, %v4496
  %v4499 = vrot.slane %v4351, 5
  %v4500 = vsel %vm4467, %v4499, %v4498
  %v4501 = vrot.slane %v4352, 4
  %v4502 = vsel %vm4470, %v4501, %v4500
  %v4503 = vrot.slane %v4353, 3
  %v4504 = vsel %vm4473, %v4503, %v4502
  %v4505 = vrot.slane %v4354, 2
  %v4506 = vsel %vm4476, %v4505, %v4504
  %v4507 = vrot.slane %v4355, 1
  %v4508 = vsel %vm4479, %v4507, %v4506
  %v4509 = vrot.slane %v4357, 7
  %v4510 = vsel %vm4461, %v4509, %v4356
  %v4511 = vrot.slane %v4358, 6
  %v4512 = vsel %vm4464, %v4511, %v4510
  %v4513 = vrot.slane %v4359, 5
  %v4514 = vsel %vm4467, %v4513, %v4512
  %v4515 = vrot.slane %v4360, 4
  %v4516 = vsel %vm4470, %v4515, %v4514
  %v4517 = vrot.slane %v4361, 3
  %v4518 = vsel %vm4473, %v4517, %v4516
  %v4519 = vrot.slane %v4362, 2
  %v4520 = vsel %vm4476, %v4519, %v4518
  %v4521 = vrot.slane %v4363, 1
  %v4522 = vsel %vm4479, %v4521, %v4520
  %v4523 = vrot.slane %v4365, 7
  %v4524 = vsel %vm4461, %v4523, %v4364
  %v4525 = vrot.slane %v4366, 6
  %v4526 = vsel %vm4464, %v4525, %v4524
  %v4527 = vrot.slane %v4367, 5
  %v4528 = vsel %vm4467, %v4527, %v4526
  %v4529 = vrot.slane %v4368, 4
  %v4530 = vsel %vm4470, %v4529, %v4528
  %v4531 = vrot.slane %v4369, 3
  %v4532 = vsel %vm4473, %v4531, %v4530
  %v4533 = vrot.slane %v4370, 2
  %v4534 = vsel %vm4476, %v4533, %v4532
  %v4535 = vrot.slane %v4371, 1
  %v4536 = vsel %vm4479, %v4535, %v4534
  %v4537 = vrot.slane %v4373, 7
  %v4538 = vsel %vm4461, %v4537, %v4372
  %v4539 = vrot.slane %v4374, 6
  %v4540 = vsel %vm4464, %v4539, %v4538
  %v4541 = vrot.slane %v4375, 5
  %v4542 = vsel %vm4467, %v4541, %v4540
  %v4543 = vrot.slane %v4376, 4
  %v4544 = vsel %vm4470, %v4543, %v4542
  %v4545 = vrot.slane %v4377, 3
  %v4546 = vsel %vm4473, %v4545, %v4544
  %v4547 = vrot.slane %v4378, 2
  %v4548 = vsel %vm4476, %v4547, %v4546
  %v4549 = vrot.slane %v4379, 1
  %v4550 = vsel %vm4479, %v4549, %v4548
  %v4551 = vrot.slane %v4381, 7
  %v4552 = vsel %vm4461, %v4551, %v4380
  %v4553 = vrot.slane %v4382, 6
  %v4554 = vsel %vm4464, %v4553, %v4552
  %v4555 = vrot.slane %v4383, 5
  %v4556 = vsel %vm4467, %v4555, %v4554
  %v4557 = vrot.slane %v4384, 4
  %v4558 = vsel %vm4470, %v4557, %v4556
  %v4559 = vrot.slane %v4385, 3
  %v4560 = vsel %vm4473, %v4559, %v4558
  %v4561 = vrot.slane %v4386, 2
  %v4562 = vsel %vm4476, %v4561, %v4560
  %v4563 = vrot.slane %v4387, 1
  %v4564 = vsel %vm4479, %v4563, %v4562
  %v4565 = vrot.slane %v4389, 7
  %v4566 = vsel %vm4461, %v4565, %v4388
  %v4567 = vrot.slane %v4390, 6
  %v4568 = vsel %vm4464, %v4567, %v4566
  %v4569 = vrot.slane %v4391, 5
  %v4570 = vsel %vm4467, %v4569, %v4568
  %v4571 = vrot.slane %v4392, 4
  %v4572 = vsel %vm4470, %v4571, %v4570
  %v4573 = vrot.slane %v4393, 3
  %v4574 = vsel %vm4473, %v4573, %v4572
  %v4575 = vrot.slane %v4394, 2
  %v4576 = vsel %vm4476, %v4575, %v4574
  %v4577 = vrot.slane %v4395, 1
  %v4578 = vsel %vm4479, %v4577, %v4576
  %4587 = vst [vmem:[%s8] sm:$0xff] %v4480
  %4588 = vst [vmem:[%s8 + $0x8] sm:$0xff] %v4494
  %4589 = vst [vmem:[%s8 + $0x10] sm:$0xff] %v4508
  %4590 = vst [vmem:[%s8 + $0x18] sm:$0xff] %v4522
  %4591 = vst [vmem:[%s8 + $0x20] sm:$0xff] %v4536
  %4592 = vst [vmem:[%s8 + $0x28] sm:$0xff] %v4550
  %4593 = vst [vmem:[%s8 + $0x30] sm:$0xff] %v4564
  %4594 = vst [vmem:[%s8 + $0x38] sm:$0xff] %v4578
  // Predicated region
  $region41: #{asl_forward.12} parent=0 // pred_check
    _
  $region42: #{asl_forward.12} parent=0 // pred_check_branch
    %4596 = sbr.rel (0) target = $region44
  $region43: #{asl_forward.12} parent=0 // pred_region
    _
  $region44: #{asl_forward.12} parent=0 // pred_fallthru
    _
  // Predicated region
  $region45: #{asl_forward.12} parent=0 // pred_check
    _
  $region46: #{asl_forward.12} parent=0 // pred_check_branch
    %4598 = sbr.rel (0) target = $region48
  $region47: #{asl_forward.12} parent=0 // pred_region
    _
  $region48: #{asl_forward.12} parent=0 // pred_fallthru
    _

</llo_original>
